<compile_context>
chip_gen: v7x
topology: tpu7x:2x2x1
jax: 0.10.0
libtpu: 0.0.40
codegen_flags: <defaults>
</compile_context>

<pallas_src>
import jax
import jax.numpy as jnp
from jax.experimental import pallas as pl
from jax.experimental.pallas import tpu as pltpu

_LANE = 128


def _round_up(x, m):
    return (x + m - 1) // m * m


def _basic_block_kernel(x_ref, w1_ref, b1_ref, w2_ref, b2_ref, o_ref,
                        xpad_ref, mpad_ref):
    # x_ref : (1, H, W, Cip)      input tile (also the identity residual)
    # w*_ref: (9, Cin_p, Cout_p)  bf16, BN-scale folded, tap-major (kh*3+kw)
    # b*_ref: (1, Cout_p)         f32 BN bias
    # o_ref : (1, H, W, Cop)
    # xpad_ref / mpad_ref: (H+2, W+4, C) bf16 scratches; conv data lives at
    #   [1:H+1, 2:W+2, :] so all bf16 stores are packed-word aligned.
    _, H, W, Cop = o_ref.shape
    Cip = x_ref.shape[-1]
    Cmp = b1_ref.shape[-1]

    def zero_halo(pad_ref):
        # Only the 1-wide halo needs to be zero (the interior is fully
        # overwritten below) -> ~30x less store traffic than a full zero-fill.
        Hp, Wp, C = pad_ref.shape
        zdt = pad_ref.dtype
        pad_ref[0:1, :, :] = jnp.zeros((1, Wp, C), zdt)           # top row
        pad_ref[Hp - 1:Hp, :, :] = jnp.zeros((1, Wp, C), zdt)     # bottom row
        pad_ref[1:Hp - 1, 0:2, :] = jnp.zeros((Hp - 2, 2, C), zdt)        # L
        pad_ref[1:Hp - 1, Wp - 2:Wp, :] = jnp.zeros((Hp - 2, 2, C), zdt)  # R

    def conv3x3(pad_ref, w_ref, cin):
        # 9 accumulating (H*W, cin) x (cin, cout) MXU matmuls on shifted
        # slices of the padded scratch: no (H, W, 9*cin) im2col temporary and
        # no lane-offset concatenate.  bf16 operands, f32 accumulation.
        acc = None
        for t in range(9):
            kh, kw = divmod(t, 3)
            patch = pad_ref[kh:kh + H, kw + 1:kw + 1 + W, :]
            part = jnp.dot(patch.reshape(H * W, cin), w_ref[t],
                           preferred_element_type=jnp.float32)
            acc = part if acc is None else acc + part
        return acc

    x = x_ref[0]                                     # (H, W, Cip), stays VMEM

    # conv1 -> bn1 (scale folded into w1, bias added here) -> relu
    zero_halo(xpad_ref)
    xpad_ref[1:H + 1, 2:W + 2, :] = x.astype(xpad_ref.dtype)
    y1 = conv3x3(xpad_ref, w1_ref, Cip) + b1_ref[...]
    y1 = jnp.maximum(y1, 0.0)                        # (H*W, Cmp) f32, VMEM

    # conv2 -> bn2 -> + identity -> relu
    zero_halo(mpad_ref)
    mpad_ref[1:H + 1, 2:W + 2, :] = y1.reshape(H, W, Cmp).astype(mpad_ref.dtype)
    y2 = conv3x3(mpad_ref, w2_ref, Cmp) + b2_ref[...]
    y2 = y2 + x.reshape(H * W, Cip).astype(jnp.float32)   # identity residual
    y2 = jnp.maximum(y2, 0.0)
    o_ref[0] = y2.reshape(H, W, Cop).astype(o_ref.dtype)


def _vmem_limit_bytes(requested):
    # Generation-aware cap: 7/8 of physical VMEM (~56 MiB v7x, ~112 MiB
    # v5e/v6e) so large requests never exceed the 64 MiB v7x TensorCore VMEM.
    try:
        cap = int(pltpu.get_tpu_info().vmem_capacity_bytes)
    except Exception:
        cap = 64 * 1024 * 1024          # conservative: v7x per-TC VMEM
    ceiling = (cap * 7) // 8
    return int(min(max(requested, 32 * 1024 * 1024), ceiling))


def _fused_basic_block(x_nhwc, w1_hwio, b1, w2_hwio, b2):
    """Fused BasicBlock (stride=1, no downsample). NHWC in/out."""
    N, H, W, Ci = x_nhwc.shape
    Cm = w1_hwio.shape[-1]
    Co = w2_hwio.shape[-1]
    if Ci != Co:
        raise ValueError("identity residual requires inplanes == planes "
                         "(stride=1, downsample=None)")

    # Pad channel axes to a multiple of the 128-lane width for lane-dense
    # loads/stores and full-K MXU matmuls.
    Cip = _round_up(Ci, _LANE)
    Cmp = _round_up(Cm, _LANE)
    Cop = _round_up(Co, _LANE)
    itemsize = jnp.dtype(x_nhwc.dtype).itemsize

    x_p = x_nhwc if Cip == Ci else jnp.pad(
        x_nhwc, ((0, 0), (0, 0), (0, 0), (0, Cip - Ci)))

    # Tap-major, channel-padded, bf16 weights (BN scale already folded in).
    w1_p = jnp.zeros((3, 3, Cip, Cmp), jnp.float32)
    w1_p = w1_p.at[:, :, :Ci, :Cm].set(w1_hwio.astype(jnp.float32))
    w1_k = w1_p.reshape(9, Cip, Cmp).astype(jnp.bfloat16)
    w2_p = jnp.zeros((3, 3, Cmp, Cop), jnp.float32)
    w2_p = w2_p.at[:, :, :Cm, :Co].set(w2_hwio.astype(jnp.float32))
    w2_k = w2_p.reshape(9, Cmp, Cop).astype(jnp.bfloat16)
    b1_k = jnp.zeros((1, Cmp), jnp.float32).at[0, :Cm].set(b1.astype(jnp.float32))
    b2_k = jnp.zeros((1, Cop), jnp.float32).at[0, :Co].set(b2.astype(jnp.float32))

    # Per-step VMEM estimate (double-buffered I/O blocks, resident weights,
    # bf16 halo scratches, live f32/bf16 temporaries) with a 2x margin.
    w_bytes = (w1_k.size + w2_k.size) * 2 + (b1_k.size + b2_k.size) * 4
    io_bytes = H * W * (Cip + Cop) * itemsize
    scratch_bytes = (H + 2) * (W + 4) * (Cip + Cmp) * 2
    temp_bytes = H * W * (3 * max(Cip, Cmp) * 2 + (Cmp + Cop) * 4
                          + Cip * itemsize)
    vmem_limit = _vmem_limit_bytes(
        2 * (2 * io_bytes + 2 * w_bytes + scratch_bytes + temp_bytes))

    flops = 2 * N * H * W * 9 * (Cip * Cmp + Cmp * Cop)
    bytes_accessed = (N * H * W * (Cip + Cop) * itemsize
                      + (w1_k.size + w2_k.size) * 2
                      + (b1_k.size + b2_k.size) * 4)

    out_p = pl.pallas_call(
        _basic_block_kernel,
        out_shape=jax.ShapeDtypeStruct((N, H, W, Cop), x_nhwc.dtype),
        grid_spec=pltpu.PrefetchScalarGridSpec(
            num_scalar_prefetch=0,
            grid=(N,),
            in_specs=[
                pl.BlockSpec((1, H, W, Cip), lambda n: (n, 0, 0, 0)),
                pl.BlockSpec((9, Cip, Cmp), lambda n: (0, 0, 0)),
                pl.BlockSpec((1, Cmp), lambda n: (0, 0)),
                pl.BlockSpec((9, Cmp, Cop), lambda n: (0, 0, 0)),
                pl.BlockSpec((1, Cop), lambda n: (0, 0)),
            ],
            out_specs=pl.BlockSpec((1, H, W, Cop), lambda n: (n, 0, 0, 0)),
            scratch_shapes=[
                pltpu.VMEM((H + 2, W + 4, Cip), jnp.bfloat16),
                pltpu.VMEM((H + 2, W + 4, Cmp), jnp.bfloat16),
            ],
        ),
        compiler_params=pltpu.CompilerParams(
            dimension_semantics=("parallel",),
            vmem_limit_bytes=vmem_limit),
        cost_estimate=pl.CostEstimate(
            flops=int(flops), transcendentals=0,
            bytes_accessed=int(bytes_accessed)),
    )(x_p, w1_k, b1_k, w2_k, b2_k)

    return out_p[..., :Co] if Cop != Co else out_p


def make_basic_block_params(key, inplanes, planes, eps=1e-5):
    """Deterministic synthetic parameters mirroring BasicBlock.__init__ (eval)."""
    keys = jax.random.split(key, 10)
    # Conv weights (PyTorch OIHW) -> HWIO used by the kernel / reference.
    w1 = 0.1 * jax.random.normal(keys[0], (planes, inplanes, 3, 3), jnp.float32)
    w2 = 0.1 * jax.random.normal(keys[1], (planes, planes, 3, 3), jnp.float32)

    def bn_affine(kg, kb, km, kv):
        gamma = 1.0 + 0.1 * jax.random.normal(kg, (planes,), jnp.float32)
        beta = 0.1 * jax.random.normal(kb, (planes,), jnp.float32)
        rmean = 0.1 * jax.random.normal(km, (planes,), jnp.float32)
        rvar = 1.0 + 0.1 * jnp.abs(jax.random.normal(kv, (planes,), jnp.float32))
        scale = gamma / jnp.sqrt(rvar + eps)
        bias = beta - rmean * scale
        return scale, bias

    s1, b1 = bn_affine(*keys[2:6])
    s2, b2 = bn_affine(*keys[6:10])
    return {
        "w1_hwio": jnp.transpose(w1, (2, 3, 1, 0)),
        "w2_hwio": jnp.transpose(w2, (2, 3, 1, 0)),
        "bn1_scale": s1, "bn1_bias": b1,
        "bn2_scale": s2, "bn2_bias": b2,
    }


def basic_block_forward_nhwc(x_nhwc, params):
    """Preferred NHWC entry point (no layout transposes)."""
    # Fold the BN scale into the conv weights (exact for eval-mode BatchNorm).
    w1 = params["w1_hwio"] * params["bn1_scale"][None, None, None, :]
    w2 = params["w2_hwio"] * params["bn2_scale"][None, None, None, :]
    return _fused_basic_block(x_nhwc, w1, params["bn1_bias"],
                              w2, params["bn2_bias"])


def basic_block_forward(x_nchw, params):
    """NCHW facade matching the PyTorch module interface."""
    x = jnp.transpose(x_nchw, (0, 2, 3, 1))        # NCHW -> NHWC
    out = basic_block_forward_nhwc(x, params)
    return jnp.transpose(out, (0, 3, 1, 2))        # NHWC -> NCHW


def _reference_forward(x_nchw, params):
    """Pure-JAX f32 reference (NCHW in/out), used only for the self-check."""
    x = jnp.transpose(x_nchw, (0, 2, 3, 1))

    def conv(h, w):
        return jax.lax.conv_general_dilated(
            h, w, window_strides=(1, 1), padding=((1, 1), (1, 1)),
            dimension_numbers=("NHWC", "HWIO", "NHWC"))

    out = jnp.maximum(conv(x, params["w1_hwio"]) * params["bn1_scale"]
                      + params["bn1_bias"], 0.0)
    out = (conv(out, params["w2_hwio"]) * params["bn2_scale"]
           + params["bn2_bias"] + x)
    out = jnp.maximum(out, 0.0)
    return jnp.transpose(out, (0, 3, 1, 2))


if __name__ == "__main__":
    key = jax.random.PRNGKey(0)
    kx, kp = jax.random.split(key)

    N, C, H, W = 2, 4, 16, 16          # inplanes = planes = 4, stride = 1
    x = jax.random.normal(kx, (N, C, H, W), jnp.float32)
    params = make_basic_block_params(kp, inplanes=C, planes=C)

    out = jax.block_until_ready(basic_block_forward(x, params))
    assert out.shape == (N, C, H, W)
    assert bool(jnp.all(out >= 0.0))   # final ReLU

    ref = jax.block_until_ready(_reference_forward(x, params))
    max_err = float(jnp.max(jnp.abs(out - ref)))
    # bf16 MXU operands with f32 accumulation -> small numeric delta vs f32.
    assert jnp.allclose(out, ref, atol=5e-2, rtol=5e-2), (
        "max abs err = %g" % max_err)

    print("KERNEL_OK")
</pallas_src>

<mosaic_0001>
module attributes {stable_mosaic.version = 11 : i64} {
  func.func @_basic_block_kernel(%arg0: i32, %arg1: memref<1x16x16x128xf32, #tpu.memory_space<vmem>>, %arg2: memref<9x128x128xbf16, #tpu.memory_space<vmem>>, %arg3: memref<1x128xf32, #tpu.memory_space<vmem>>, %arg4: memref<9x128x128xbf16, #tpu.memory_space<vmem>>, %arg5: memref<1x128xf32, #tpu.memory_space<vmem>>, %arg6: memref<1x16x16x128xf32, #tpu.memory_space<vmem>>, %arg7: memref<18x20x128xbf16, #tpu.memory_space<vmem>>, %arg8: memref<18x20x128xbf16, #tpu.memory_space<vmem>>) attributes {dimension_semantics = [#tpu.dimension_semantics<parallel>], iteration_bounds = array<i64: 2>, scalar_prefetch = 0 : i64, scratch_operands = 2 : i64, tpu.core_type = #tpu.core_type<tc>, window_params = [{transform_indices = @transform_0, window_bounds = array<i64: 1, 16, 16, 128>}, {pipeline_mode = #tpu.pipeline_mode<synchronous>, transform_indices = @transform_1, window_bounds = array<i64: 9, 128, 128>}, {pipeline_mode = #tpu.pipeline_mode<synchronous>, transform_indices = @transform_2, window_bounds = array<i64: 1, 128>}, {pipeline_mode = #tpu.pipeline_mode<synchronous>, transform_indices = @transform_3, window_bounds = array<i64: 9, 128, 128>}, {pipeline_mode = #tpu.pipeline_mode<synchronous>, transform_indices = @transform_4, window_bounds = array<i64: 1, 128>}, {transform_indices = @transform_5, window_bounds = array<i64: 1, 16, 16, 128>}]} {
    %c0 = arith.constant 0 : index
    %c0_0 = arith.constant 0 : index
    %c0_1 = arith.constant 0 : index
    %c0_2 = arith.constant 0 : index
    %0 = vector.load %arg1[%c0, %c0_0, %c0_1, %c0_2] : memref<1x16x16x128xf32, #tpu.memory_space<vmem>>, vector<1x16x16x128xf32>
    %1 = vector.shape_cast %0 : vector<1x16x16x128xf32> to vector<16x16x128xf32>
    %cst = arith.constant 0.000000e+00 : bf16
    %2 = vector.broadcast %cst : bf16 to vector<1x20x128xbf16>
    %c0_3 = arith.constant 0 : index
    %c0_4 = arith.constant 0 : index
    %c0_5 = arith.constant 0 : index
    %3 = vector.load %arg7[%c0_3, %c0_4, %c0_5] : memref<18x20x128xbf16, #tpu.memory_space<vmem>>, vector<1x20x128xbf16>
    tpu.vector_store %arg7[%c0_3, %c0_4, %c0_5], %2 {strides = array<i32>} : memref<18x20x128xbf16, #tpu.memory_space<vmem>>, vector<1x20x128xbf16>,
    %cst_6 = arith.constant 0.000000e+00 : bf16
    %4 = vector.broadcast %cst_6 : bf16 to vector<1x20x128xbf16>
    %c17 = arith.constant 17 : index
    %c0_7 = arith.constant 0 : index
    %c0_8 = arith.constant 0 : index
    %5 = vector.load %arg7[%c17, %c0_7, %c0_8] : memref<18x20x128xbf16, #tpu.memory_space<vmem>>, vector<1x20x128xbf16>
    tpu.vector_store %arg7[%c17, %c0_7, %c0_8], %4 {strides = array<i32>} : memref<18x20x128xbf16, #tpu.memory_space<vmem>>, vector<1x20x128xbf16>,
    %cst_9 = arith.constant 0.000000e+00 : bf16
    %6 = vector.broadcast %cst_9 : bf16 to vector<16x2x128xbf16>
    %c1 = arith.constant 1 : index
    %c0_10 = arith.constant 0 : index
    %c0_11 = arith.constant 0 : index
    %7 = vector.load %arg7[%c1, %c0_10, %c0_11] : memref<18x20x128xbf16, #tpu.memory_space<vmem>>, vector<16x2x128xbf16>
    tpu.vector_store %arg7[%c1, %c0_10, %c0_11], %6 {strides = array<i32>} : memref<18x20x128xbf16, #tpu.memory_space<vmem>>, vector<16x2x128xbf16>,
    %cst_12 = arith.constant 0.000000e+00 : bf16
    %8 = vector.broadcast %cst_12 : bf16 to vector<16x2x128xbf16>
    %c1_13 = arith.constant 1 : index
    %c18 = arith.constant 18 : index
    %c0_14 = arith.constant 0 : index
    %9 = vector.load %arg7[%c1_13, %c18, %c0_14] : memref<18x20x128xbf16, #tpu.memory_space<vmem>>, vector<16x2x128xbf16>
    tpu.vector_store %arg7[%c1_13, %c18, %c0_14], %8 {strides = array<i32>} : memref<18x20x128xbf16, #tpu.memory_space<vmem>>, vector<16x2x128xbf16>,
    %10 = arith.truncf %1 : vector<16x16x128xf32> to vector<16x16x128xbf16>
    %c1_15 = arith.constant 1 : index
    %c2 = arith.constant 2 : index
    %c0_16 = arith.constant 0 : index
    %11 = vector.load %arg7[%c1_15, %c2, %c0_16] : memref<18x20x128xbf16, #tpu.memory_space<vmem>>, vector<16x16x128xbf16>
    tpu.vector_store %arg7[%c1_15, %c2, %c0_16], %10 {strides = array<i32>} : memref<18x20x128xbf16, #tpu.memory_space<vmem>>, vector<16x16x128xbf16>,
    %c0_17 = arith.constant 0 : index
    %c1_18 = arith.constant 1 : index
    %c0_19 = arith.constant 0 : index
    %12 = vector.load %arg7[%c0_17, %c1_18, %c0_19] : memref<18x20x128xbf16, #tpu.memory_space<vmem>>, vector<16x16x128xbf16>
    %13 = vector.shape_cast %12 : vector<16x16x128xbf16> to vector<256x128xbf16>
    %c0_20 = arith.constant 0 : index
    %c0_21 = arith.constant 0 : index
    %c0_22 = arith.constant 0 : index
    %14 = vector.load %arg2[%c0_20, %c0_21, %c0_22] : memref<9x128x128xbf16, #tpu.memory_space<vmem>>, vector<1x128x128xbf16>
    %15 = vector.shape_cast %14 : vector<1x128x128xbf16> to vector<128x128xbf16>
    %cst_23 = arith.constant dense<0.000000e+00> : vector<256x128xf32>
    %16 = tpu.matmul %13, %15, %cst_23 {dimension_numbers = #tpu.dot_dimension_numbers<[1], [0], [0], [1], [0, 0, 1, 1], [], []>} : vector<256x128xbf16>, vector<128x128xbf16>, vector<256x128xf32> -> vector<256x128xf32>
    %c0_24 = arith.constant 0 : index
    %c2_25 = arith.constant 2 : index
    %c0_26 = arith.constant 0 : index
    %17 = vector.load %arg7[%c0_24, %c2_25, %c0_26] : memref<18x20x128xbf16, #tpu.memory_space<vmem>>, vector<16x16x128xbf16>
    %18 = vector.shape_cast %17 : vector<16x16x128xbf16> to vector<256x128xbf16>
    %c1_27 = arith.constant 1 : index
    %c0_28 = arith.constant 0 : index
    %c0_29 = arith.constant 0 : index
    %19 = vector.load %arg2[%c1_27, %c0_28, %c0_29] : memref<9x128x128xbf16, #tpu.memory_space<vmem>>, vector<1x128x128xbf16>
    %20 = vector.shape_cast %19 : vector<1x128x128xbf16> to vector<128x128xbf16>
    %cst_30 = arith.constant dense<0.000000e+00> : vector<256x128xf32>
    %21 = tpu.matmul %18, %20, %cst_30 {dimension_numbers = #tpu.dot_dimension_numbers<[1], [0], [0], [1], [0, 0, 1, 1], [], []>} : vector<256x128xbf16>, vector<128x128xbf16>, vector<256x128xf32> -> vector<256x128xf32>
    %22 = arith.addf %16, %21 : vector<256x128xf32>
    %c0_31 = arith.constant 0 : index
    %c3 = arith.constant 3 : index
    %c0_32 = arith.constant 0 : index
    %23 = vector.load %arg7[%c0_31, %c3, %c0_32] : memref<18x20x128xbf16, #tpu.memory_space<vmem>>, vector<16x16x128xbf16>
    %24 = vector.shape_cast %23 : vector<16x16x128xbf16> to vector<256x128xbf16>
    %c2_33 = arith.constant 2 : index
    %c0_34 = arith.constant 0 : index
    %c0_35 = arith.constant 0 : index
    %25 = vector.load %arg2[%c2_33, %c0_34, %c0_35] : memref<9x128x128xbf16, #tpu.memory_space<vmem>>, vector<1x128x128xbf16>
    %26 = vector.shape_cast %25 : vector<1x128x128xbf16> to vector<128x128xbf16>
    %cst_36 = arith.constant dense<0.000000e+00> : vector<256x128xf32>
    %27 = tpu.matmul %24, %26, %cst_36 {dimension_numbers = #tpu.dot_dimension_numbers<[1], [0], [0], [1], [0, 0, 1, 1], [], []>} : vector<256x128xbf16>, vector<128x128xbf16>, vector<256x128xf32> -> vector<256x128xf32>
    %28 = arith.addf %22, %27 : vector<256x128xf32>
    %c1_37 = arith.constant 1 : index
    %c1_38 = arith.constant 1 : index
    %c0_39 = arith.constant 0 : index
    %29 = vector.load %arg7[%c1_37, %c1_38, %c0_39] : memref<18x20x128xbf16, #tpu.memory_space<vmem>>, vector<16x16x128xbf16>
    %30 = vector.shape_cast %29 : vector<16x16x128xbf16> to vector<256x128xbf16>
    %c3_40 = arith.constant 3 : index
    %c0_41 = arith.constant 0 : index
    %c0_42 = arith.constant 0 : index
    %31 = vector.load %arg2[%c3_40, %c0_41, %c0_42] : memref<9x128x128xbf16, #tpu.memory_space<vmem>>, vector<1x128x128xbf16>
    %32 = vector.shape_cast %31 : vector<1x128x128xbf16> to vector<128x128xbf16>
    %cst_43 = arith.constant dense<0.000000e+00> : vector<256x128xf32>
    %33 = tpu.matmul %30, %32, %cst_43 {dimension_numbers = #tpu.dot_dimension_numbers<[1], [0], [0], [1], [0, 0, 1, 1], [], []>} : vector<256x128xbf16>, vector<128x128xbf16>, vector<256x128xf32> -> vector<256x128xf32>
    %34 = arith.addf %28, %33 : vector<256x128xf32>
    %c1_44 = arith.constant 1 : index
    %c2_45 = arith.constant 2 : index
    %c0_46 = arith.constant 0 : index
    %35 = vector.load %arg7[%c1_44, %c2_45, %c0_46] : memref<18x20x128xbf16, #tpu.memory_space<vmem>>, vector<16x16x128xbf16>
    %36 = vector.shape_cast %35 : vector<16x16x128xbf16> to vector<256x128xbf16>
    %c4 = arith.constant 4 : index
    %c0_47 = arith.constant 0 : index
    %c0_48 = arith.constant 0 : index
    %37 = vector.load %arg2[%c4, %c0_47, %c0_48] : memref<9x128x128xbf16, #tpu.memory_space<vmem>>, vector<1x128x128xbf16>
    %38 = vector.shape_cast %37 : vector<1x128x128xbf16> to vector<128x128xbf16>
    %cst_49 = arith.constant dense<0.000000e+00> : vector<256x128xf32>
    %39 = tpu.matmul %36, %38, %cst_49 {dimension_numbers = #tpu.dot_dimension_numbers<[1], [0], [0], [1], [0, 0, 1, 1], [], []>} : vector<256x128xbf16>, vector<128x128xbf16>, vector<256x128xf32> -> vector<256x128xf32>
    %40 = arith.addf %34, %39 : vector<256x128xf32>
    %c1_50 = arith.constant 1 : index
    %c3_51 = arith.constant 3 : index
    %c0_52 = arith.constant 0 : index
    %41 = vector.load %arg7[%c1_50, %c3_51, %c0_52] : memref<18x20x128xbf16, #tpu.memory_space<vmem>>, vector<16x16x128xbf16>
    %42 = vector.shape_cast %41 : vector<16x16x128xbf16> to vector<256x128xbf16>
    %c5 = arith.constant 5 : index
    %c0_53 = arith.constant 0 : index
    %c0_54 = arith.constant 0 : index
    %43 = vector.load %arg2[%c5, %c0_53, %c0_54] : memref<9x128x128xbf16, #tpu.memory_space<vmem>>, vector<1x128x128xbf16>
    %44 = vector.shape_cast %43 : vector<1x128x128xbf16> to vector<128x128xbf16>
    %cst_55 = arith.constant dense<0.000000e+00> : vector<256x128xf32>
    %45 = tpu.matmul %42, %44, %cst_55 {dimension_numbers = #tpu.dot_dimension_numbers<[1], [0], [0], [1], [0, 0, 1, 1], [], []>} : vector<256x128xbf16>, vector<128x128xbf16>, vector<256x128xf32> -> vector<256x128xf32>
    %46 = arith.addf %40, %45 : vector<256x128xf32>
    %c2_56 = arith.constant 2 : index
    %c1_57 = arith.constant 1 : index
    %c0_58 = arith.constant 0 : index
    %47 = vector.load %arg7[%c2_56, %c1_57, %c0_58] : memref<18x20x128xbf16, #tpu.memory_space<vmem>>, vector<16x16x128xbf16>
    %48 = vector.shape_cast %47 : vector<16x16x128xbf16> to vector<256x128xbf16>
    %c6 = arith.constant 6 : index
    %c0_59 = arith.constant 0 : index
    %c0_60 = arith.constant 0 : index
    %49 = vector.load %arg2[%c6, %c0_59, %c0_60] : memref<9x128x128xbf16, #tpu.memory_space<vmem>>, vector<1x128x128xbf16>
    %50 = vector.shape_cast %49 : vector<1x128x128xbf16> to vector<128x128xbf16>
    %cst_61 = arith.constant dense<0.000000e+00> : vector<256x128xf32>
    %51 = tpu.matmul %48, %50, %cst_61 {dimension_numbers = #tpu.dot_dimension_numbers<[1], [0], [0], [1], [0, 0, 1, 1], [], []>} : vector<256x128xbf16>, vector<128x128xbf16>, vector<256x128xf32> -> vector<256x128xf32>
    %52 = arith.addf %46, %51 : vector<256x128xf32>
    %c2_62 = arith.constant 2 : index
    %c2_63 = arith.constant 2 : index
    %c0_64 = arith.constant 0 : index
    %53 = vector.load %arg7[%c2_62, %c2_63, %c0_64] : memref<18x20x128xbf16, #tpu.memory_space<vmem>>, vector<16x16x128xbf16>
    %54 = vector.shape_cast %53 : vector<16x16x128xbf16> to vector<256x128xbf16>
    %c7 = arith.constant 7 : index
    %c0_65 = arith.constant 0 : index
    %c0_66 = arith.constant 0 : index
    %55 = vector.load %arg2[%c7, %c0_65, %c0_66] : memref<9x128x128xbf16, #tpu.memory_space<vmem>>, vector<1x128x128xbf16>
    %56 = vector.shape_cast %55 : vector<1x128x128xbf16> to vector<128x128xbf16>
    %cst_67 = arith.constant dense<0.000000e+00> : vector<256x128xf32>
    %57 = tpu.matmul %54, %56, %cst_67 {dimension_numbers = #tpu.dot_dimension_numbers<[1], [0], [0], [1], [0, 0, 1, 1], [], []>} : vector<256x128xbf16>, vector<128x128xbf16>, vector<256x128xf32> -> vector<256x128xf32>
    %58 = arith.addf %52, %57 : vector<256x128xf32>
    %c2_68 = arith.constant 2 : index
    %c3_69 = arith.constant 3 : index
    %c0_70 = arith.constant 0 : index
    %59 = vector.load %arg7[%c2_68, %c3_69, %c0_70] : memref<18x20x128xbf16, #tpu.memory_space<vmem>>, vector<16x16x128xbf16>
    %60 = vector.shape_cast %59 : vector<16x16x128xbf16> to vector<256x128xbf16>
    %c8 = arith.constant 8 : index
    %c0_71 = arith.constant 0 : index
    %c0_72 = arith.constant 0 : index
    %61 = vector.load %arg2[%c8, %c0_71, %c0_72] : memref<9x128x128xbf16, #tpu.memory_space<vmem>>, vector<1x128x128xbf16>
    %62 = vector.shape_cast %61 : vector<1x128x128xbf16> to vector<128x128xbf16>
    %cst_73 = arith.constant dense<0.000000e+00> : vector<256x128xf32>
    %63 = tpu.matmul %60, %62, %cst_73 {dimension_numbers = #tpu.dot_dimension_numbers<[1], [0], [0], [1], [0, 0, 1, 1], [], []>} : vector<256x128xbf16>, vector<128x128xbf16>, vector<256x128xf32> -> vector<256x128xf32>
    %64 = arith.addf %58, %63 : vector<256x128xf32>
    %c0_74 = arith.constant 0 : index
    %c0_75 = arith.constant 0 : index
    %65 = vector.load %arg3[%c0_74, %c0_75] : memref<1x128xf32, #tpu.memory_space<vmem>>, vector<1x128xf32>
    %66 = vector.broadcast %65 : vector<1x128xf32> to vector<256x128xf32>
    %67 = arith.addf %64, %66 : vector<256x128xf32>
    %cst_76 = arith.constant 0.000000e+00 : f32
    %68 = vector.broadcast %cst_76 : f32 to vector<256x128xf32>
    %69 = arith.maximumf %67, %68 : vector<256x128xf32>
    %cst_77 = arith.constant 0.000000e+00 : bf16
    %70 = vector.broadcast %cst_77 : bf16 to vector<1x20x128xbf16>
    %c0_78 = arith.constant 0 : index
    %c0_79 = arith.constant 0 : index
    %c0_80 = arith.constant 0 : index
    %71 = vector.load %arg8[%c0_78, %c0_79, %c0_80] : memref<18x20x128xbf16, #tpu.memory_space<vmem>>, vector<1x20x128xbf16>
    tpu.vector_store %arg8[%c0_78, %c0_79, %c0_80], %70 {strides = array<i32>} : memref<18x20x128xbf16, #tpu.memory_space<vmem>>, vector<1x20x128xbf16>,
    %cst_81 = arith.constant 0.000000e+00 : bf16
    %72 = vector.broadcast %cst_81 : bf16 to vector<1x20x128xbf16>
    %c17_82 = arith.constant 17 : index
    %c0_83 = arith.constant 0 : index
    %c0_84 = arith.constant 0 : index
    %73 = vector.load %arg8[%c17_82, %c0_83, %c0_84] : memref<18x20x128xbf16, #tpu.memory_space<vmem>>, vector<1x20x128xbf16>
    tpu.vector_store %arg8[%c17_82, %c0_83, %c0_84], %72 {strides = array<i32>} : memref<18x20x128xbf16, #tpu.memory_space<vmem>>, vector<1x20x128xbf16>,
    %cst_85 = arith.constant 0.000000e+00 : bf16
    %74 = vector.broadcast %cst_85 : bf16 to vector<16x2x128xbf16>
    %c1_86 = arith.constant 1 : index
    %c0_87 = arith.constant 0 : index
    %c0_88 = arith.constant 0 : index
    %75 = vector.load %arg8[%c1_86, %c0_87, %c0_88] : memref<18x20x128xbf16, #tpu.memory_space<vmem>>, vector<16x2x128xbf16>
    tpu.vector_store %arg8[%c1_86, %c0_87, %c0_88], %74 {strides = array<i32>} : memref<18x20x128xbf16, #tpu.memory_space<vmem>>, vector<16x2x128xbf16>,
    %cst_89 = arith.constant 0.000000e+00 : bf16
    %76 = vector.broadcast %cst_89 : bf16 to vector<16x2x128xbf16>
    %c1_90 = arith.constant 1 : index
    %c18_91 = arith.constant 18 : index
    %c0_92 = arith.constant 0 : index
    %77 = vector.load %arg8[%c1_90, %c18_91, %c0_92] : memref<18x20x128xbf16, #tpu.memory_space<vmem>>, vector<16x2x128xbf16>
    tpu.vector_store %arg8[%c1_90, %c18_91, %c0_92], %76 {strides = array<i32>} : memref<18x20x128xbf16, #tpu.memory_space<vmem>>, vector<16x2x128xbf16>,
    %78 = vector.shape_cast %69 : vector<256x128xf32> to vector<16x16x128xf32>
    %79 = arith.truncf %78 : vector<16x16x128xf32> to vector<16x16x128xbf16>
    %c1_93 = arith.constant 1 : index
    %c2_94 = arith.constant 2 : index
    %c0_95 = arith.constant 0 : index
    %80 = vector.load %arg8[%c1_93, %c2_94, %c0_95] : memref<18x20x128xbf16, #tpu.memory_space<vmem>>, vector<16x16x128xbf16>
    tpu.vector_store %arg8[%c1_93, %c2_94, %c0_95], %79 {strides = array<i32>} : memref<18x20x128xbf16, #tpu.memory_space<vmem>>, vector<16x16x128xbf16>,
    %c0_96 = arith.constant 0 : index
    %c1_97 = arith.constant 1 : index
    %c0_98 = arith.constant 0 : index
    %81 = vector.load %arg8[%c0_96, %c1_97, %c0_98] : memref<18x20x128xbf16, #tpu.memory_space<vmem>>, vector<16x16x128xbf16>
    %82 = vector.shape_cast %81 : vector<16x16x128xbf16> to vector<256x128xbf16>
    %c0_99 = arith.constant 0 : index
    %c0_100 = arith.constant 0 : index
    %c0_101 = arith.constant 0 : index
    %83 = vector.load %arg4[%c0_99, %c0_100, %c0_101] : memref<9x128x128xbf16, #tpu.memory_space<vmem>>, vector<1x128x128xbf16>
    %84 = vector.shape_cast %83 : vector<1x128x128xbf16> to vector<128x128xbf16>
    %cst_102 = arith.constant dense<0.000000e+00> : vector<256x128xf32>
    %85 = tpu.matmul %82, %84, %cst_102 {dimension_numbers = #tpu.dot_dimension_numbers<[1], [0], [0], [1], [0, 0, 1, 1], [], []>} : vector<256x128xbf16>, vector<128x128xbf16>, vector<256x128xf32> -> vector<256x128xf32>
    %c0_103 = arith.constant 0 : index
    %c2_104 = arith.constant 2 : index
    %c0_105 = arith.constant 0 : index
    %86 = vector.load %arg8[%c0_103, %c2_104, %c0_105] : memref<18x20x128xbf16, #tpu.memory_space<vmem>>, vector<16x16x128xbf16>
    %87 = vector.shape_cast %86 : vector<16x16x128xbf16> to vector<256x128xbf16>
    %c1_106 = arith.constant 1 : index
    %c0_107 = arith.constant 0 : index
    %c0_108 = arith.constant 0 : index
    %88 = vector.load %arg4[%c1_106, %c0_107, %c0_108] : memref<9x128x128xbf16, #tpu.memory_space<vmem>>, vector<1x128x128xbf16>
    %89 = vector.shape_cast %88 : vector<1x128x128xbf16> to vector<128x128xbf16>
    %cst_109 = arith.constant dense<0.000000e+00> : vector<256x128xf32>
    %90 = tpu.matmul %87, %89, %cst_109 {dimension_numbers = #tpu.dot_dimension_numbers<[1], [0], [0], [1], [0, 0, 1, 1], [], []>} : vector<256x128xbf16>, vector<128x128xbf16>, vector<256x128xf32> -> vector<256x128xf32>
    %91 = arith.addf %85, %90 : vector<256x128xf32>
    %c0_110 = arith.constant 0 : index
    %c3_111 = arith.constant 3 : index
    %c0_112 = arith.constant 0 : index
    %92 = vector.load %arg8[%c0_110, %c3_111, %c0_112] : memref<18x20x128xbf16, #tpu.memory_space<vmem>>, vector<16x16x128xbf16>
    %93 = vector.shape_cast %92 : vector<16x16x128xbf16> to vector<256x128xbf16>
    %c2_113 = arith.constant 2 : index
    %c0_114 = arith.constant 0 : index
    %c0_115 = arith.constant 0 : index
    %94 = vector.load %arg4[%c2_113, %c0_114, %c0_115] : memref<9x128x128xbf16, #tpu.memory_space<vmem>>, vector<1x128x128xbf16>
    %95 = vector.shape_cast %94 : vector<1x128x128xbf16> to vector<128x128xbf16>
    %cst_116 = arith.constant dense<0.000000e+00> : vector<256x128xf32>
    %96 = tpu.matmul %93, %95, %cst_116 {dimension_numbers = #tpu.dot_dimension_numbers<[1], [0], [0], [1], [0, 0, 1, 1], [], []>} : vector<256x128xbf16>, vector<128x128xbf16>, vector<256x128xf32> -> vector<256x128xf32>
    %97 = arith.addf %91, %96 : vector<256x128xf32>
    %c1_117 = arith.constant 1 : index
    %c1_118 = arith.constant 1 : index
    %c0_119 = arith.constant 0 : index
    %98 = vector.load %arg8[%c1_117, %c1_118, %c0_119] : memref<18x20x128xbf16, #tpu.memory_space<vmem>>, vector<16x16x128xbf16>
    %99 = vector.shape_cast %98 : vector<16x16x128xbf16> to vector<256x128xbf16>
    %c3_120 = arith.constant 3 : index
    %c0_121 = arith.constant 0 : index
    %c0_122 = arith.constant 0 : index
    %100 = vector.load %arg4[%c3_120, %c0_121, %c0_122] : memref<9x128x128xbf16, #tpu.memory_space<vmem>>, vector<1x128x128xbf16>
    %101 = vector.shape_cast %100 : vector<1x128x128xbf16> to vector<128x128xbf16>
    %cst_123 = arith.constant dense<0.000000e+00> : vector<256x128xf32>
    %102 = tpu.matmul %99, %101, %cst_123 {dimension_numbers = #tpu.dot_dimension_numbers<[1], [0], [0], [1], [0, 0, 1, 1], [], []>} : vector<256x128xbf16>, vector<128x128xbf16>, vector<256x128xf32> -> vector<256x128xf32>
    %103 = arith.addf %97, %102 : vector<256x128xf32>
    %c1_124 = arith.constant 1 : index
    %c2_125 = arith.constant 2 : index
    %c0_126 = arith.constant 0 : index
    %104 = vector.load %arg8[%c1_124, %c2_125, %c0_126] : memref<18x20x128xbf16, #tpu.memory_space<vmem>>, vector<16x16x128xbf16>
    %105 = vector.shape_cast %104 : vector<16x16x128xbf16> to vector<256x128xbf16>
    %c4_127 = arith.constant 4 : index
    %c0_128 = arith.constant 0 : index
    %c0_129 = arith.constant 0 : index
    %106 = vector.load %arg4[%c4_127, %c0_128, %c0_129] : memref<9x128x128xbf16, #tpu.memory_space<vmem>>, vector<1x128x128xbf16>
    %107 = vector.shape_cast %106 : vector<1x128x128xbf16> to vector<128x128xbf16>
    %cst_130 = arith.constant dense<0.000000e+00> : vector<256x128xf32>
    %108 = tpu.matmul %105, %107, %cst_130 {dimension_numbers = #tpu.dot_dimension_numbers<[1], [0], [0], [1], [0, 0, 1, 1], [], []>} : vector<256x128xbf16>, vector<128x128xbf16>, vector<256x128xf32> -> vector<256x128xf32>
    %109 = arith.addf %103, %108 : vector<256x128xf32>
    %c1_131 = arith.constant 1 : index
    %c3_132 = arith.constant 3 : index
    %c0_133 = arith.constant 0 : index
    %110 = vector.load %arg8[%c1_131, %c3_132, %c0_133] : memref<18x20x128xbf16, #tpu.memory_space<vmem>>, vector<16x16x128xbf16>
    %111 = vector.shape_cast %110 : vector<16x16x128xbf16> to vector<256x128xbf16>
    %c5_134 = arith.constant 5 : index
    %c0_135 = arith.constant 0 : index
    %c0_136 = arith.constant 0 : index
    %112 = vector.load %arg4[%c5_134, %c0_135, %c0_136] : memref<9x128x128xbf16, #tpu.memory_space<vmem>>, vector<1x128x128xbf16>
    %113 = vector.shape_cast %112 : vector<1x128x128xbf16> to vector<128x128xbf16>
    %cst_137 = arith.constant dense<0.000000e+00> : vector<256x128xf32>
    %114 = tpu.matmul %111, %113, %cst_137 {dimension_numbers = #tpu.dot_dimension_numbers<[1], [0], [0], [1], [0, 0, 1, 1], [], []>} : vector<256x128xbf16>, vector<128x128xbf16>, vector<256x128xf32> -> vector<256x128xf32>
    %115 = arith.addf %109, %114 : vector<256x128xf32>
    %c2_138 = arith.constant 2 : index
    %c1_139 = arith.constant 1 : index
    %c0_140 = arith.constant 0 : index
    %116 = vector.load %arg8[%c2_138, %c1_139, %c0_140] : memref<18x20x128xbf16, #tpu.memory_space<vmem>>, vector<16x16x128xbf16>
    %117 = vector.shape_cast %116 : vector<16x16x128xbf16> to vector<256x128xbf16>
    %c6_141 = arith.constant 6 : index
    %c0_142 = arith.constant 0 : index
    %c0_143 = arith.constant 0 : index
    %118 = vector.load %arg4[%c6_141, %c0_142, %c0_143] : memref<9x128x128xbf16, #tpu.memory_space<vmem>>, vector<1x128x128xbf16>
    %119 = vector.shape_cast %118 : vector<1x128x128xbf16> to vector<128x128xbf16>
    %cst_144 = arith.constant dense<0.000000e+00> : vector<256x128xf32>
    %120 = tpu.matmul %117, %119, %cst_144 {dimension_numbers = #tpu.dot_dimension_numbers<[1], [0], [0], [1], [0, 0, 1, 1], [], []>} : vector<256x128xbf16>, vector<128x128xbf16>, vector<256x128xf32> -> vector<256x128xf32>
    %121 = arith.addf %115, %120 : vector<256x128xf32>
    %c2_145 = arith.constant 2 : index
    %c2_146 = arith.constant 2 : index
    %c0_147 = arith.constant 0 : index
    %122 = vector.load %arg8[%c2_145, %c2_146, %c0_147] : memref<18x20x128xbf16, #tpu.memory_space<vmem>>, vector<16x16x128xbf16>
    %123 = vector.shape_cast %122 : vector<16x16x128xbf16> to vector<256x128xbf16>
    %c7_148 = arith.constant 7 : index
    %c0_149 = arith.constant 0 : index
    %c0_150 = arith.constant 0 : index
    %124 = vector.load %arg4[%c7_148, %c0_149, %c0_150] : memref<9x128x128xbf16, #tpu.memory_space<vmem>>, vector<1x128x128xbf16>
    %125 = vector.shape_cast %124 : vector<1x128x128xbf16> to vector<128x128xbf16>
    %cst_151 = arith.constant dense<0.000000e+00> : vector<256x128xf32>
    %126 = tpu.matmul %123, %125, %cst_151 {dimension_numbers = #tpu.dot_dimension_numbers<[1], [0], [0], [1], [0, 0, 1, 1], [], []>} : vector<256x128xbf16>, vector<128x128xbf16>, vector<256x128xf32> -> vector<256x128xf32>
    %127 = arith.addf %121, %126 : vector<256x128xf32>
    %c2_152 = arith.constant 2 : index
    %c3_153 = arith.constant 3 : index
    %c0_154 = arith.constant 0 : index
    %128 = vector.load %arg8[%c2_152, %c3_153, %c0_154] : memref<18x20x128xbf16, #tpu.memory_space<vmem>>, vector<16x16x128xbf16>
    %129 = vector.shape_cast %128 : vector<16x16x128xbf16> to vector<256x128xbf16>
    %c8_155 = arith.constant 8 : index
    %c0_156 = arith.constant 0 : index
    %c0_157 = arith.constant 0 : index
    %130 = vector.load %arg4[%c8_155, %c0_156, %c0_157] : memref<9x128x128xbf16, #tpu.memory_space<vmem>>, vector<1x128x128xbf16>
    %131 = vector.shape_cast %130 : vector<1x128x128xbf16> to vector<128x128xbf16>
    %cst_158 = arith.constant dense<0.000000e+00> : vector<256x128xf32>
    %132 = tpu.matmul %129, %131, %cst_158 {dimension_numbers = #tpu.dot_dimension_numbers<[1], [0], [0], [1], [0, 0, 1, 1], [], []>} : vector<256x128xbf16>, vector<128x128xbf16>, vector<256x128xf32> -> vector<256x128xf32>
    %133 = arith.addf %127, %132 : vector<256x128xf32>
    %c0_159 = arith.constant 0 : index
    %c0_160 = arith.constant 0 : index
    %134 = vector.load %arg5[%c0_159, %c0_160] : memref<1x128xf32, #tpu.memory_space<vmem>>, vector<1x128xf32>
    %135 = vector.broadcast %134 : vector<1x128xf32> to vector<256x128xf32>
    %136 = arith.addf %133, %135 : vector<256x128xf32>
    %137 = vector.shape_cast %1 : vector<16x16x128xf32> to vector<256x128xf32>
    %138 = arith.addf %136, %137 : vector<256x128xf32>
    %cst_161 = arith.constant 0.000000e+00 : f32
    %139 = vector.broadcast %cst_161 : f32 to vector<256x128xf32>
    %140 = arith.maximumf %138, %139 : vector<256x128xf32>
    %141 = vector.shape_cast %140 : vector<256x128xf32> to vector<16x16x128xf32>
    %c0_162 = arith.constant 0 : index
    %c0_163 = arith.constant 0 : index
    %c0_164 = arith.constant 0 : index
    %c0_165 = arith.constant 0 : index
    %142 = vector.load %arg6[%c0_162, %c0_163, %c0_164, %c0_165] : memref<1x16x16x128xf32, #tpu.memory_space<vmem>>, vector<1x16x16x128xf32>
    %143 = vector.shape_cast %142 : vector<1x16x16x128xf32> to vector<16x16x128xf32>
    %144 = vector.shape_cast %141 : vector<16x16x128xf32> to vector<1x16x16x128xf32>
    tpu.vector_store %arg6[%c0_162, %c0_163, %c0_164, %c0_165], %144 {strides = array<i32>} : memref<1x16x16x128xf32, #tpu.memory_space<vmem>>, vector<1x16x16x128xf32>,
    return
  }
  func.func @transform_0(%arg0: i32) -> (i32, i32, i32, i32) {
    %c0_i32 = arith.constant 0 : i32
    %c0_i32_0 = arith.constant 0 : i32
    %c0_i32_1 = arith.constant 0 : i32
    %c0_i32_2 = arith.constant 0 : i32
    return %arg0, %c0_i32, %c0_i32_0, %c0_i32_1 : i32, i32, i32, i32
  }
  func.func @transform_1(%arg0: i32) -> (i32, i32, i32) {
    %c0_i32 = arith.constant 0 : i32
    %c0_i32_0 = arith.constant 0 : i32
    %c0_i32_1 = arith.constant 0 : i32
    %c0_i32_2 = arith.constant 0 : i32
    return %c0_i32, %c0_i32_0, %c0_i32_1 : i32, i32, i32
  }
  func.func @transform_2(%arg0: i32) -> (i32, i32) {
    %c0_i32 = arith.constant 0 : i32
    %c0_i32_0 = arith.constant 0 : i32
    %c0_i32_1 = arith.constant 0 : i32
    return %c0_i32, %c0_i32_0 : i32, i32
  }
  func.func @transform_3(%arg0: i32) -> (i32, i32, i32) {
    %c0_i32 = arith.constant 0 : i32
    %c0_i32_0 = arith.constant 0 : i32
    %c0_i32_1 = arith.constant 0 : i32
    %c0_i32_2 = arith.constant 0 : i32
    return %c0_i32, %c0_i32_0, %c0_i32_1 : i32, i32, i32
  }
  func.func @transform_4(%arg0: i32) -> (i32, i32) {
    %c0_i32 = arith.constant 0 : i32
    %c0_i32_0 = arith.constant 0 : i32
    %c0_i32_1 = arith.constant 0 : i32
    return %c0_i32, %c0_i32_0 : i32, i32
  }
  func.func @transform_5(%arg0: i32) -> (i32, i32, i32, i32) {
    %c0_i32 = arith.constant 0 : i32
    %c0_i32_0 = arith.constant 0 : i32
    %c0_i32_1 = arith.constant 0 : i32
    %c0_i32_2 = arith.constant 0 : i32
    return %arg0, %c0_i32, %c0_i32_0, %c0_i32_1 : i32, i32, i32, i32
  }
}

</mosaic_0001>

<llo_original>
// kernel: tpu_custom_call.1
$region0: #{tpu_custom_call.1}
  #allocation0 [shape = 'u32[]', space=smem, size = 0x4, offset = 0x4, fixed_abs, tag = 'smem constant byte address 0x4 - core index']
  #allocation1 [shape = 'u32[144,128]{1,0:T(1,128)}', space=vmem, size = 0x12000, scoped, tag = 'internal scratch']
  #allocation2 [shape = 'bf16[18,20,128]{2,1,0:T(8,128)(2,1)}', space=vmem, size = 0x1b000, scoped, tag = 'scratch operand']
  #allocation3 [shape = 'bf16[18,20,128]{2,1,0:T(8,128)(2,1)}', space=vmem, size = 0x1b000, scoped, tag = 'scratch operand']
  %s0 = inlined_call_operand.hbm [shape: f32[2,16,16,128], index: 0, kind: input, shape index: {}]
  %s1 = inlined_call_operand.hbm [shape: bf16[9,128,128], index: 1, kind: input, shape index: {}]
  %s2 = inlined_call_operand.vmem [shape: f32[1,128], index: 2, kind: input, shape index: {}]
  %s3 = inlined_call_operand.hbm [shape: bf16[9,128,128], index: 3, kind: input, shape index: {}]
  %s4 = inlined_call_operand.vmem [shape: f32[1,128], index: 4, kind: input, shape index: {}]
  %s5 = inlined_call_operand.hbm [shape: f32[2,16,16,128], index: 5, kind: output, shape index: {}]
  %s6 = sld [smem:[#allocation0]]
  $region65: #{tpu_custom_call.1} parent=0
    _
  %s8 = ssub.s32 1, %s6
  %s9 = scalar_select 0, %s8, %s6
  $region1: #{tpu_custom_call.1} parent=0
    #allocation4 [shape = 'u8[262144]{0}', space=vmem, size = 0x40000, scoped, tag = 'input window, operand 0']
    #allocation5 [shape = 's32[2]{0}', space=sflag, size = 0x8, scoped, tag = 'scoped memory for tpu_custom_call.1']
    #allocation6 [shape = 's32[2]{0}', space=sflag, size = 0x8, scoped, tag = 'scoped memory for tpu_custom_call.1']
    #allocation7 [shape = 'u8[294912]{0}', space=vmem, size = 0x48000, scoped, tag = 'input window, operand 1, single buffered']
    #allocation8 [shape = 's32[1]{0}', space=sflag, size = 0x4, scoped, tag = 'scoped memory for tpu_custom_call.1']
    #allocation9 [shape = 'u8[294912]{0}', space=vmem, size = 0x48000, scoped, tag = 'input window, operand 3, single buffered']
    #allocation10 [shape = 'u8[262144]{0}', space=vmem, size = 0x40000, scoped, tag = 'output window, operand 0']
    %10 = vsyncpa [#allocation5], 0
    %s11 = scalar_lea.sflag [#allocation5], 1
    %12 = vsyncpa %s11, 0
    %13 = vsyncpa [#allocation8], 0
    %14 = vsyncpa [#allocation6], 0
    %s15 = scalar_lea.sflag [#allocation6], 1
    %16 = vsyncpa %s15, 0
    loop: start=0, step=1, limit=4
    $region2: #{tpu_custom_call.1} parent=1 // loop_pre_header
      _
    $region3: #{tpu_custom_call.1} parent=1 // loop_header
      %s18 = sphi 0, %s22
      %p19 = scmp.ge.s32.totalorder %s18, 4
      %s28 = sphi 0, %s30
      %s31 = sphi 0, %s28
      %s32 = sphi 0, %s31
      %s48 = sphi 0, %s32
      %s52 = sphi 0, %s52
      %s54 = sphi 0, %s52
      %s55 = sphi 0, %s54
      %s69 = sphi 0, %s55
      %s73 = sphi 0, %s73
      %s75 = sphi 0, %s73
      %s76 = sphi 0, %s75
      %s90 = sphi 0, %s76
      %s94 = sphi 0, %s94
      %s96 = sphi 0, %s94
      %s97 = sphi 0, %s96
      %s111 = sphi 0, %s97
      %s115 = sphi 0, %s115
      %s117 = sphi 0, %s115
      %s118 = sphi 0, %s117
      %s132 = sphi 0, %s118
      %s138 = sphi 0, %s140
      %s141 = sphi 0, %s138
      %s142 = sphi 0, %s141
      %s158 = sphi 0, %s142
    $region4: #{tpu_custom_call.1} parent=1 // loop_header_branch
      %21 = sbr.rel (%p19) target = $region8
    $region5: #{tpu_custom_call.1} parent=1 // loop_body
      %s23 = ssub.s32 %s18, 1
      %s24 = ssub.s32 %s18, 2
      %s25 = sadd.s32 %s18, 1
      %s26 = ssub.s32 %s18, %s25
      %p27 = scmp.eq.s32.totalorder %s26, 0
      %s29 = sadd.s32 %s28, 1
      %s30 = scalar_select %p27, %s28, %s29
      %p33 = pneg %p27
      %p34 = scmp.eq.s32.totalorder %s18, 1
      %p35 = por %p33, %p34
      %p36 = scmp.ne.s32.totalorder %s28, %s31
      %p37 = scmp.eq.s32.totalorder %s18, 0
      %p38 = por %p36, %p37
      %p39 = scmp.ne.s32.totalorder %s28, %s31
      %p40 = scmp.eq.s32.totalorder %s23, 1
      %p41 = por %p39, %p40
      %p42 = scmp.ne.s32.totalorder %s31, %s32
      %p43 = scmp.eq.s32.totalorder %s23, 0
      %p44 = por %p42, %p43
      %p45 = scmp.ne.s32.totalorder %s31, %s32
      %p46 = scmp.eq.s32.totalorder %s24, 1
      %p47 = por %p45, %p46
      %p49 = scmp.ne.s32.totalorder %s32, %s48
      %p50 = scmp.eq.s32.totalorder %s24, 0
      %p51 = por %p49, %p50
      %s53 = sadd.s32 %s52, 1
      %p56 = scmp.eq.s32.totalorder %s18, 1
      %p57 = scmp.ne.s32.totalorder %s52, %s54
      %p58 = scmp.eq.s32.totalorder %s18, 0
      %p59 = por %p57, %p58
      %p60 = scmp.ne.s32.totalorder %s52, %s54
      %p61 = scmp.eq.s32.totalorder %s23, 1
      %p62 = por %p60, %p61
      %p63 = scmp.ne.s32.totalorder %s54, %s55
      %p64 = scmp.eq.s32.totalorder %s23, 0
      %p65 = por %p63, %p64
      %p66 = scmp.ne.s32.totalorder %s54, %s55
      %p67 = scmp.eq.s32.totalorder %s24, 1
      %p68 = por %p66, %p67
      %p70 = scmp.ne.s32.totalorder %s55, %s69
      %p71 = scmp.eq.s32.totalorder %s24, 0
      %p72 = por %p70, %p71
      %s74 = sadd.s32 %s73, 1
      %p77 = scmp.eq.s32.totalorder %s18, 1
      %p78 = scmp.ne.s32.totalorder %s73, %s75
      %p79 = scmp.eq.s32.totalorder %s18, 0
      %p80 = por %p78, %p79
      %p81 = scmp.ne.s32.totalorder %s73, %s75
      %p82 = scmp.eq.s32.totalorder %s23, 1
      %p83 = por %p81, %p82
      %p84 = scmp.ne.s32.totalorder %s75, %s76
      %p85 = scmp.eq.s32.totalorder %s23, 0
      %p86 = por %p84, %p85
      %p87 = scmp.ne.s32.totalorder %s75, %s76
      %p88 = scmp.eq.s32.totalorder %s24, 1
      %p89 = por %p87, %p88
      %p91 = scmp.ne.s32.totalorder %s76, %s90
      %p92 = scmp.eq.s32.totalorder %s24, 0
      %p93 = por %p91, %p92
      %s95 = sadd.s32 %s94, 1
      %p98 = scmp.eq.s32.totalorder %s18, 1
      %p99 = scmp.ne.s32.totalorder %s94, %s96
      %p100 = scmp.eq.s32.totalorder %s18, 0
      %p101 = por %p99, %p100
      %p102 = scmp.ne.s32.totalorder %s94, %s96
      %p103 = scmp.eq.s32.totalorder %s23, 1
      %p104 = por %p102, %p103
      %p105 = scmp.ne.s32.totalorder %s96, %s97
      %p106 = scmp.eq.s32.totalorder %s23, 0
      %p107 = por %p105, %p106
      %p108 = scmp.ne.s32.totalorder %s96, %s97
      %p109 = scmp.eq.s32.totalorder %s24, 1
      %p110 = por %p108, %p109
      %p112 = scmp.ne.s32.totalorder %s97, %s111
      %p113 = scmp.eq.s32.totalorder %s24, 0
      %p114 = por %p112, %p113
      %s116 = sadd.s32 %s115, 1
      %p119 = scmp.eq.s32.totalorder %s18, 1
      %p120 = scmp.ne.s32.totalorder %s115, %s117
      %p121 = scmp.eq.s32.totalorder %s18, 0
      %p122 = por %p120, %p121
      %p123 = scmp.ne.s32.totalorder %s115, %s117
      %p124 = scmp.eq.s32.totalorder %s23, 1
      %p125 = por %p123, %p124
      %p126 = scmp.ne.s32.totalorder %s117, %s118
      %p127 = scmp.eq.s32.totalorder %s23, 0
      %p128 = por %p126, %p127
      %p129 = scmp.ne.s32.totalorder %s117, %s118
      %p130 = scmp.eq.s32.totalorder %s24, 1
      %p131 = por %p129, %p130
      %p133 = scmp.ne.s32.totalorder %s118, %s132
      %p134 = scmp.eq.s32.totalorder %s24, 0
      %p135 = por %p133, %p134
      %s136 = ssub.s32 %s18, %s25
      %p137 = scmp.eq.s32.totalorder %s136, 0
      %s139 = sadd.s32 %s138, 1
      %s140 = scalar_select %p137, %s138, %s139
      %p143 = pneg %p137
      %p144 = scmp.eq.s32.totalorder %s18, 1
      %p145 = por %p143, %p144
      %p146 = scmp.ne.s32.totalorder %s138, %s141
      %p147 = scmp.eq.s32.totalorder %s18, 0
      %p148 = por %p146, %p147
      %p149 = scmp.ne.s32.totalorder %s138, %s141
      %p150 = scmp.eq.s32.totalorder %s23, 1
      %p151 = por %p149, %p150
      %p152 = scmp.ne.s32.totalorder %s141, %s142
      %p153 = scmp.eq.s32.totalorder %s23, 0
      %p154 = por %p152, %p153
      %p155 = scmp.ne.s32.totalorder %s141, %s142
      %p156 = scmp.eq.s32.totalorder %s24, 1
      %p157 = por %p155, %p156
      %p159 = scmp.ne.s32.totalorder %s142, %s158
      %p160 = scmp.eq.s32.totalorder %s24, 0
      %p161 = por %p159, %p160
      %p162 = scmp.le.s32.totalorder 1, %s18
      %p163 = scmp.lt.s32.totalorder %s18, 3
      %p164 = pnand %p162, %p163
      %p165 = pneg %p164
      // Predicated region
      $region9: #{tpu_custom_call.1} parent=5 // pred_check
        _
      $region10: #{tpu_custom_call.1} parent=5 // pred_check_branch
        %167 = sbr.rel (%p164) target = $region12
      $region11: #{tpu_custom_call.1} parent=5 // pred_region
        %s168 = ssub.s32 %s18, 1
        // Predicated region
        $region13: #{tpu_custom_call.1} parent=11 // pred_check
          %p169 = pneg %p65
        $region14: #{tpu_custom_call.1} parent=11 // pred_check_branch
          %171 = sbr.rel (%p169) target = $region16
        $region15: #{tpu_custom_call.1} parent=11 // pred_region
          %s173 = ssub.s32 9216, 9216
          %174 = vsyncadd [#allocation8], %s173
          %s175 = sshll.u32 [#allocation7], 4
          %s176 = int_to_ptr.vmem [resolvable:$true] %s175
          %181 = dma.hbm_to_vmem [thread:$0]  %s1, 9216, %s176, [#allocation8], 64, 64, 4
        $region16: #{tpu_custom_call.1} parent=11 // pred_fallthru
          _
        // Predicated region
        $region17: #{tpu_custom_call.1} parent=11 // pred_check
          %p182 = pneg %p86
        $region18: #{tpu_custom_call.1} parent=11 // pred_check_branch
          %184 = sbr.rel (%p182) target = $region20
        $region19: #{tpu_custom_call.1} parent=11 // pred_region
          _
        $region20: #{tpu_custom_call.1} parent=11 // pred_fallthru
          _
        // Predicated region
        $region21: #{tpu_custom_call.1} parent=11 // pred_check
          %p185 = pneg %p107
        $region22: #{tpu_custom_call.1} parent=11 // pred_check_branch
          %187 = sbr.rel (%p185) target = $region24
        $region23: #{tpu_custom_call.1} parent=11 // pred_region
          %s189 = ssub.s32 9216, 9216
          %190 = vsyncadd [#allocation8], %s189
          %s191 = sshll.u32 [#allocation9], 4
          %s192 = int_to_ptr.vmem [resolvable:$true] %s191
          %197 = dma.hbm_to_vmem [thread:$0]  %s3, 9216, %s192, [#allocation8], 64, 64, 4
        $region24: #{tpu_custom_call.1} parent=11 // pred_fallthru
          _
        // Predicated region
        $region25: #{tpu_custom_call.1} parent=11 // pred_check
          %p198 = pneg %p128
        $region26: #{tpu_custom_call.1} parent=11 // pred_check_branch
          %200 = sbr.rel (%p198) target = $region28
        $region27: #{tpu_custom_call.1} parent=11 // pred_region
          _
        $region28: #{tpu_custom_call.1} parent=11 // pred_fallthru
          _
      $region12: #{tpu_custom_call.1} parent=5 // pred_fallthru
        _
      %p201 = scmp.lt.s32.totalorder %s18, 2
      // Predicated region
      $region29: #{tpu_custom_call.1} parent=5 // pred_check
        %p202 = pneg %p201
      $region30: #{tpu_custom_call.1} parent=5 // pred_check_branch
        %204 = sbr.rel (%p202) target = $region32
      $region31: #{tpu_custom_call.1} parent=5 // pred_region
        // Predicated region
        $region33: #{tpu_custom_call.1} parent=31 // pred_check
          %p205 = pneg %p38
        $region34: #{tpu_custom_call.1} parent=31 // pred_check_branch
          %207 = sbr.rel (%p205) target = $region36
        $region35: #{tpu_custom_call.1} parent=31 // pred_region
          %s208 = sand.u32 %s28, 1
          %s209 = scalar_lea.sflag [#allocation5], %s208
          %s210 = sand.u32 %s28, 1
          %s211 = smul.addr %s210, 256
          %s212 = scalar_lea.vmem [#allocation4], %s211
          %s214 = ssub.s32 4096, 4096
          %215 = vsyncadd %s209, %s214
          %s216 = smul.addr %s18, 32
          %s217 = smul.addr %s216, 128
          %s218 = scalar_lea.hbm %s0, %s217
          %s219 = sshll.u32 %s212, 4
          %s220 = int_to_ptr.vmem [resolvable:$true] %s219
          %225 = dma.hbm_to_vmem [thread:$0]  %s218, 4096, %s220, %s209, 128, 128, 8
        $region36: #{tpu_custom_call.1} parent=31 // pred_fallthru
          _
      $region32: #{tpu_custom_call.1} parent=5 // pred_fallthru
        _
      %p226 = scmp.le.s32.totalorder 1, %s18
      %p227 = scmp.lt.s32.totalorder %s18, 3
      %p228 = pnand %p226, %p227
      %p229 = pneg %p228
      // Predicated region
      $region37: #{tpu_custom_call.1} parent=5 // pred_check
        _
      $region38: #{tpu_custom_call.1} parent=5 // pred_check_branch
        %231 = sbr.rel (%p228) target = $region40
      $region39: #{tpu_custom_call.1} parent=5 // pred_region
        %s232 = ssub.s32 %s18, 1
        %s233 = sand.u32 %s31, 1
        %s234 = scalar_lea.sflag [#allocation5], %s233
        %s235 = sand.u32 %s31, 1
        %s236 = smul.addr %s235, 256
        %s237 = scalar_lea.vmem [#allocation4], %s236
        // Predicated region
        $region41: #{tpu_custom_call.1} parent=39 // pred_check
          %p238 = pneg %p44
        $region42: #{tpu_custom_call.1} parent=39 // pred_check_branch
          %240 = sbr.rel (%p238) target = $region44
        $region43: #{tpu_custom_call.1} parent=39 // pred_region
          %241 = dma.done %s234, 4096
        $region44: #{tpu_custom_call.1} parent=39 // pred_fallthru
          _
        // Predicated region
        $region45: #{tpu_custom_call.1} parent=39 // pred_check
          %p242 = pneg %p65
        $region46: #{tpu_custom_call.1} parent=39 // pred_check_branch
          %244 = sbr.rel (%p242) target = $region48
        $region47: #{tpu_custom_call.1} parent=39 // pred_region
          %245 = dma.done [#allocation8], 9216
        $region48: #{tpu_custom_call.1} parent=39 // pred_fallthru
          _
        // Predicated region
        $region49: #{tpu_custom_call.1} parent=39 // pred_check
          %p246 = pneg %p107
        $region50: #{tpu_custom_call.1} parent=39 // pred_check_branch
          %248 = sbr.rel (%p246) target = $region52
        $region51: #{tpu_custom_call.1} parent=39 // pred_region
          %249 = dma.done [#allocation8], 9216
        $region52: #{tpu_custom_call.1} parent=39 // pred_fallthru
          _
        %s250 = sand.u32 %s31, 1
        %s251 = scalar_lea.sflag [#allocation5], %s250
        %s252 = sand.u32 %s31, 1
        %s253 = smul.addr %s252, 256
        %s254 = scalar_lea.vmem [#allocation4], %s253
        %p255 = pneg %p44
        %p256 = pneg %p41
        %p257 = pneg %p65
        %p258 = pneg %p62
        %p259 = pneg %p86
        %p260 = pneg %p83
        %p261 = pneg %p107
        %p262 = pneg %p104
        %p263 = pneg %p128
        %p264 = pneg %p125
        %p265 = pneg %p154
        %p266 = pneg %p151
        %s267 = sand.u32 %s141, 1
        %s268 = scalar_lea.sflag [#allocation6], %s267
        %s269 = sand.u32 %s141, 1
        %s270 = smul.addr %s269, 256
        %s271 = scalar_lea.vmem [#allocation10], %s270
        %v273 = vld [vmem:[%s237] sm:$0xff]
        %v274 = vld [vmem:[%s237 + $0x8] sm:$0xff]
        %v275 = vld [vmem:[%s237 + $0x10] sm:$0xff]
        %v276 = vld [vmem:[%s237 + $0x18] sm:$0xff]
        %v277 = vld [vmem:[%s237 + $0x20] sm:$0xff]
        %v278 = vld [vmem:[%s237 + $0x28] sm:$0xff]
        %v279 = vld [vmem:[%s237 + $0x30] sm:$0xff]
        %v280 = vld [vmem:[%s237 + $0x38] sm:$0xff]
        %v281 = vld [vmem:[%s237 + $0x40] sm:$0xff]
        %v282 = vld [vmem:[%s237 + $0x48] sm:$0xff]
        %v283 = vld [vmem:[%s237 + $0x50] sm:$0xff]
        %v284 = vld [vmem:[%s237 + $0x58] sm:$0xff]
        %v285 = vld [vmem:[%s237 + $0x60] sm:$0xff]
        %v286 = vld [vmem:[%s237 + $0x68] sm:$0xff]
        %v287 = vld [vmem:[%s237 + $0x70] sm:$0xff]
        %v288 = vld [vmem:[%s237 + $0x78] sm:$0xff]
        %v289 = vld [vmem:[%s237 + $0x80] sm:$0xff]
        %v290 = vld [vmem:[%s237 + $0x88] sm:$0xff]
        %v291 = vld [vmem:[%s237 + $0x90] sm:$0xff]
        %v292 = vld [vmem:[%s237 + $0x98] sm:$0xff]
        %v293 = vld [vmem:[%s237 + $0xa0] sm:$0xff]
        %v294 = vld [vmem:[%s237 + $0xa8] sm:$0xff]
        %v295 = vld [vmem:[%s237 + $0xb0] sm:$0xff]
        %v296 = vld [vmem:[%s237 + $0xb8] sm:$0xff]
        %v297 = vld [vmem:[%s237 + $0xc0] sm:$0xff]
        %v298 = vld [vmem:[%s237 + $0xc8] sm:$0xff]
        %v299 = vld [vmem:[%s237 + $0xd0] sm:$0xff]
        %v300 = vld [vmem:[%s237 + $0xd8] sm:$0xff]
        %v301 = vld [vmem:[%s237 + $0xe0] sm:$0xff]
        %v302 = vld [vmem:[%s237 + $0xe8] sm:$0xff]
        %v303 = vld [vmem:[%s237 + $0xf0] sm:$0xff]
        %v304 = vld [vmem:[%s237 + $0xf8] sm:$0xff]
        %305 = vst [vmem:[#allocation2] sm:$0xf] 0
        %306 = vst [vmem:[#allocation2 + $0x4] sm:$0xf] 0
        %307 = vst [vmem:[#allocation2 + $0x8] sm:$0x3] 0
        %s308 = scalar_lea.vmem [#allocation2], 204
        %309 = vst [vmem:[%s308] sm:$0xf] 0
        %310 = vst [vmem:[%s308 + $0x4] sm:$0xf] 0
        %311 = vst [vmem:[%s308 + $0x8] sm:$0x3] 0
        %s312 = scalar_lea.vmem [#allocation2], 12
        %313 = vst [vmem:[%s312] sm:$0x1] 0
        %314 = vst [vmem:[%s312 + $0xc] sm:$0x1] 0
        %315 = vst [vmem:[%s312 + $0x18] sm:$0x1] 0
        %316 = vst [vmem:[%s312 + $0x24] sm:$0x1] 0
        %317 = vst [vmem:[%s312 + $0x30] sm:$0x1] 0
        %318 = vst [vmem:[%s312 + $0x3c] sm:$0x1] 0
        %319 = vst [vmem:[%s312 + $0x48] sm:$0x1] 0
        %320 = vst [vmem:[%s312 + $0x54] sm:$0x1] 0
        %321 = vst [vmem:[%s312 + $0x60] sm:$0x1] 0
        %322 = vst [vmem:[%s312 + $0x6c] sm:$0x1] 0
        %323 = vst [vmem:[%s312 + $0x78] sm:$0x1] 0
        %324 = vst [vmem:[%s312 + $0x84] sm:$0x1] 0
        %325 = vst [vmem:[%s312 + $0x90] sm:$0x1] 0
        %326 = vst [vmem:[%s312 + $0x9c] sm:$0x1] 0
        %327 = vst [vmem:[%s312 + $0xa8] sm:$0x1] 0
        %328 = vst [vmem:[%s312 + $0xb4] sm:$0x1] 0
        %329 = vst [vmem:[%s312 + $0x8] sm:$0x2] 0
        %330 = vst [vmem:[%s312 + $0x14] sm:$0x2] 0
        %331 = vst [vmem:[%s312 + $0x20] sm:$0x2] 0
        %332 = vst [vmem:[%s312 + $0x2c] sm:$0x2] 0
        %333 = vst [vmem:[%s312 + $0x38] sm:$0x2] 0
        %334 = vst [vmem:[%s312 + $0x44] sm:$0x2] 0
        %335 = vst [vmem:[%s312 + $0x50] sm:$0x2] 0
        %336 = vst [vmem:[%s312 + $0x5c] sm:$0x2] 0
        %337 = vst [vmem:[%s312 + $0x68] sm:$0x2] 0
        %338 = vst [vmem:[%s312 + $0x74] sm:$0x2] 0
        %339 = vst [vmem:[%s312 + $0x80] sm:$0x2] 0
        %340 = vst [vmem:[%s312 + $0x8c] sm:$0x2] 0
        %341 = vst [vmem:[%s312 + $0x98] sm:$0x2] 0
        %342 = vst [vmem:[%s312 + $0xa4] sm:$0x2] 0
        %343 = vst [vmem:[%s312 + $0xb0] sm:$0x2] 0
        %344 = vst [vmem:[%s312 + $0xbc] sm:$0x2] 0
        %v345 = vpack.c.bf16 %v274, %v273
        %v346 = vpack.c.bf16 %v276, %v275
        %v347 = vpack.c.bf16 %v278, %v277
        %v348 = vpack.c.bf16 %v280, %v279
        %v349 = vpack.c.bf16 %v282, %v281
        %v350 = vpack.c.bf16 %v284, %v283
        %v351 = vpack.c.bf16 %v286, %v285
        %v352 = vpack.c.bf16 %v288, %v287
        %v353 = vpack.c.bf16 %v290, %v289
        %v354 = vpack.c.bf16 %v292, %v291
        %v355 = vpack.c.bf16 %v294, %v293
        %v356 = vpack.c.bf16 %v296, %v295
        %v357 = vpack.c.bf16 %v298, %v297
        %v358 = vpack.c.bf16 %v300, %v299
        %v359 = vpack.c.bf16 %v302, %v301
        %v360 = vpack.c.bf16 %v304, %v303
        %v377 = vunpack.c.l.b16 %v345
        %v378 = vunpack.c.h.b16 %v345
        %v379 = vunpack.c.l.b16 %v346
        %v380 = vunpack.c.h.b16 %v346
        %v381 = vunpack.c.l.b16 %v347
        %v382 = vunpack.c.h.b16 %v347
        %v383 = vunpack.c.l.b16 %v348
        %v384 = vunpack.c.h.b16 %v348
        %v385 = vunpack.c.l.b16 %v349
        %v386 = vunpack.c.h.b16 %v349
        %v387 = vunpack.c.l.b16 %v350
        %v388 = vunpack.c.h.b16 %v350
        %v389 = vunpack.c.l.b16 %v351
        %v390 = vunpack.c.h.b16 %v351
        %v391 = vunpack.c.l.b16 %v352
        %v392 = vunpack.c.h.b16 %v352
        %v393 = vunpack.c.l.b16 %v353
        %v394 = vunpack.c.h.b16 %v353
        %v395 = vunpack.c.l.b16 %v354
        %v396 = vunpack.c.h.b16 %v354
        %v397 = vunpack.c.l.b16 %v355
        %v398 = vunpack.c.h.b16 %v355
        %v399 = vunpack.c.l.b16 %v356
        %v400 = vunpack.c.h.b16 %v356
        %v401 = vunpack.c.l.b16 %v357
        %v402 = vunpack.c.h.b16 %v357
        %v403 = vunpack.c.l.b16 %v358
        %v404 = vunpack.c.h.b16 %v358
        %v405 = vunpack.c.l.b16 %v359
        %v406 = vunpack.c.h.b16 %v359
        %v407 = vunpack.c.l.b16 %v360
        %v408 = vunpack.c.h.b16 %v360
        %v409 = vpack.c.b16 %v377, %v377
        %v410 = vpack.c.b16 %v378, %v378
        %v411 = vpack.c.b16 %v379, %v379
        %v412 = vpack.c.b16 %v380, %v380
        %v413 = vpack.c.b16 %v381, %v381
        %v414 = vpack.c.b16 %v382, %v382
        %v415 = vpack.c.b16 %v383, %v383
        %v416 = vpack.c.b16 %v384, %v384
        %v417 = vpack.c.b16 %v385, %v385
        %v418 = vpack.c.b16 %v386, %v386
        %v419 = vpack.c.b16 %v387, %v387
        %v420 = vpack.c.b16 %v388, %v388
        %v421 = vpack.c.b16 %v389, %v389
        %v422 = vpack.c.b16 %v390, %v390
        %v423 = vpack.c.b16 %v391, %v391
        %v424 = vpack.c.b16 %v392, %v392
        %v425 = vpack.c.b16 %v393, %v393
        %v426 = vpack.c.b16 %v394, %v394
        %v427 = vpack.c.b16 %v395, %v395
        %v428 = vpack.c.b16 %v396, %v396
        %v429 = vpack.c.b16 %v397, %v397
        %v430 = vpack.c.b16 %v398, %v398
        %v431 = vpack.c.b16 %v399, %v399
        %v432 = vpack.c.b16 %v400, %v400
        %v433 = vpack.c.b16 %v401, %v401
        %v434 = vpack.c.b16 %v402, %v402
        %v435 = vpack.c.b16 %v403, %v403
        %v436 = vpack.c.b16 %v404, %v404
        %v437 = vpack.c.b16 %v405, %v405
        %v438 = vpack.c.b16 %v406, %v406
        %v439 = vpack.c.b16 %v407, %v407
        %v440 = vpack.c.b16 %v408, %v408
        %vm441 = vcmask 1040384
        %vm442 = vcmask 1044484
        %vm443 = vmor %vm441, %vm442
        %v444 = vrot.slane %v409, 7
        %v445 = vrot.slane %v444, 4
        %v446 = vrot.slane %v410, 7
        %v447 = vsel %vm443, %v445, %v446
        %v448 = vrot.slane %v446, 4
        %v449 = vrot.slane %v411, 7
        %v450 = vrot.slane %v449, 4
        %v451 = vrot.slane %v412, 7
        %v452 = vsel %vm443, %v450, %v451
        %v453 = vrot.slane %v451, 4
        %v454 = vrot.slane %v413, 7
        %v455 = vrot.slane %v454, 4
        %v456 = vrot.slane %v414, 7
        %v457 = vsel %vm443, %v455, %v456
        %v458 = vrot.slane %v456, 4
        %v459 = vrot.slane %v415, 7
        %v460 = vrot.slane %v459, 4
        %v461 = vrot.slane %v416, 7
        %v462 = vsel %vm443, %v460, %v461
        %v463 = vrot.slane %v461, 4
        %v464 = vrot.slane %v417, 7
        %v465 = vrot.slane %v464, 4
        %v466 = vrot.slane %v418, 7
        %v467 = vsel %vm443, %v465, %v466
        %v468 = vrot.slane %v466, 4
        %v469 = vrot.slane %v419, 7
        %v470 = vrot.slane %v469, 4
        %v471 = vrot.slane %v420, 7
        %v472 = vsel %vm443, %v470, %v471
        %v473 = vrot.slane %v471, 4
        %v474 = vrot.slane %v421, 7
        %v475 = vrot.slane %v474, 4
        %v476 = vrot.slane %v422, 7
        %v477 = vsel %vm443, %v475, %v476
        %v478 = vrot.slane %v476, 4
        %v479 = vrot.slane %v423, 7
        %v480 = vrot.slane %v479, 4
        %v481 = vrot.slane %v424, 7
        %v482 = vsel %vm443, %v480, %v481
        %v483 = vrot.slane %v481, 4
        %v484 = vrot.slane %v425, 7
        %v485 = vrot.slane %v484, 4
        %v486 = vrot.slane %v426, 7
        %v487 = vsel %vm443, %v485, %v486
        %v488 = vrot.slane %v486, 4
        %v489 = vrot.slane %v427, 7
        %v490 = vrot.slane %v489, 4
        %v491 = vrot.slane %v428, 7
        %v492 = vsel %vm443, %v490, %v491
        %v493 = vrot.slane %v491, 4
        %v494 = vrot.slane %v429, 7
        %v495 = vrot.slane %v494, 4
        %v496 = vrot.slane %v430, 7
        %v497 = vsel %vm443, %v495, %v496
        %v498 = vrot.slane %v496, 4
        %v499 = vrot.slane %v431, 7
        %v500 = vrot.slane %v499, 4
        %v501 = vrot.slane %v432, 7
        %v502 = vsel %vm443, %v500, %v501
        %v503 = vrot.slane %v501, 4
        %v504 = vrot.slane %v433, 7
        %v505 = vrot.slane %v504, 4
        %v506 = vrot.slane %v434, 7
        %v507 = vsel %vm443, %v505, %v506
        %v508 = vrot.slane %v506, 4
        %v509 = vrot.slane %v435, 7
        %v510 = vrot.slane %v509, 4
        %v511 = vrot.slane %v436, 7
        %v512 = vsel %vm443, %v510, %v511
        %v513 = vrot.slane %v511, 4
        %v514 = vrot.slane %v437, 7
        %v515 = vrot.slane %v514, 4
        %v516 = vrot.slane %v438, 7
        %v517 = vsel %vm443, %v515, %v516
        %v518 = vrot.slane %v516, 4
        %v519 = vrot.slane %v439, 7
        %v520 = vrot.slane %v519, 4
        %v521 = vrot.slane %v440, 7
        %v522 = vsel %vm443, %v520, %v521
        %v523 = vrot.slane %v521, 4
        %572 = vst [vmem:[%s312] sm:$0xe] %v444
        %573 = vst [vmem:[%s312 + $0x4] sm:$0xf] %v447
        %574 = vst [vmem:[%s312 + $0x8] sm:$0x1] %v448
        %575 = vst [vmem:[%s312 + $0xc] sm:$0xe] %v449
        %576 = vst [vmem:[%s312 + $0x10] sm:$0xf] %v452
        %577 = vst [vmem:[%s312 + $0x14] sm:$0x1] %v453
        %578 = vst [vmem:[%s312 + $0x18] sm:$0xe] %v454
        %579 = vst [vmem:[%s312 + $0x1c] sm:$0xf] %v457
        %580 = vst [vmem:[%s312 + $0x20] sm:$0x1] %v458
        %581 = vst [vmem:[%s312 + $0x24] sm:$0xe] %v459
        %582 = vst [vmem:[%s312 + $0x28] sm:$0xf] %v462
        %583 = vst [vmem:[%s312 + $0x2c] sm:$0x1] %v463
        %584 = vst [vmem:[%s312 + $0x30] sm:$0xe] %v464
        %585 = vst [vmem:[%s312 + $0x34] sm:$0xf] %v467
        %586 = vst [vmem:[%s312 + $0x38] sm:$0x1] %v468
        %587 = vst [vmem:[%s312 + $0x3c] sm:$0xe] %v469
        %588 = vst [vmem:[%s312 + $0x40] sm:$0xf] %v472
        %589 = vst [vmem:[%s312 + $0x44] sm:$0x1] %v473
        %590 = vst [vmem:[%s312 + $0x48] sm:$0xe] %v474
        %591 = vst [vmem:[%s312 + $0x4c] sm:$0xf] %v477
        %592 = vst [vmem:[%s312 + $0x50] sm:$0x1] %v478
        %593 = vst [vmem:[%s312 + $0x54] sm:$0xe] %v479
        %594 = vst [vmem:[%s312 + $0x58] sm:$0xf] %v482
        %595 = vst [vmem:[%s312 + $0x5c] sm:$0x1] %v483
        %596 = vst [vmem:[%s312 + $0x60] sm:$0xe] %v484
        %597 = vst [vmem:[%s312 + $0x64] sm:$0xf] %v487
        %598 = vst [vmem:[%s312 + $0x68] sm:$0x1] %v488
        %599 = vst [vmem:[%s312 + $0x6c] sm:$0xe] %v489
        %600 = vst [vmem:[%s312 + $0x70] sm:$0xf] %v492
        %601 = vst [vmem:[%s312 + $0x74] sm:$0x1] %v493
        %602 = vst [vmem:[%s312 + $0x78] sm:$0xe] %v494
        %603 = vst [vmem:[%s312 + $0x7c] sm:$0xf] %v497
        %604 = vst [vmem:[%s312 + $0x80] sm:$0x1] %v498
        %605 = vst [vmem:[%s312 + $0x84] sm:$0xe] %v499
        %606 = vst [vmem:[%s312 + $0x88] sm:$0xf] %v502
        %607 = vst [vmem:[%s312 + $0x8c] sm:$0x1] %v503
        %608 = vst [vmem:[%s312 + $0x90] sm:$0xe] %v504
        %609 = vst [vmem:[%s312 + $0x94] sm:$0xf] %v507
        %610 = vst [vmem:[%s312 + $0x98] sm:$0x1] %v508
        %611 = vst [vmem:[%s312 + $0x9c] sm:$0xe] %v509
        %612 = vst [vmem:[%s312 + $0xa0] sm:$0xf] %v512
        %613 = vst [vmem:[%s312 + $0xa4] sm:$0x1] %v513
        %614 = vst [vmem:[%s312 + $0xa8] sm:$0xe] %v514
        %615 = vst [vmem:[%s312 + $0xac] sm:$0xf] %v517
        %616 = vst [vmem:[%s312 + $0xb0] sm:$0x1] %v518
        %617 = vst [vmem:[%s312 + $0xb4] sm:$0xe] %v519
        %618 = vst [vmem:[%s312 + $0xb8] sm:$0xf] %v522
        %619 = vst [vmem:[%s312 + $0xbc] sm:$0x1] %v523
        %v620 = vld [vmem:[#allocation2] sm:$0xf]
        %v621 = vld [vmem:[#allocation2 + $0x4] sm:$0xf]
        %v622 = vld [vmem:[#allocation2 + $0x8] sm:$0x1]
        %v623 = vld [vmem:[#allocation2 + $0xc] sm:$0xf]
        %v624 = vld [vmem:[#allocation2 + $0x10] sm:$0xf]
        %v625 = vld [vmem:[#allocation2 + $0x14] sm:$0x1]
        %v626 = vld [vmem:[#allocation2 + $0x18] sm:$0xf]
        %v627 = vld [vmem:[#allocation2 + $0x1c] sm:$0xf]
        %v628 = vld [vmem:[#allocation2 + $0x20] sm:$0x1]
        %v629 = vld [vmem:[#allocation2 + $0x24] sm:$0xf]
        %v630 = vld [vmem:[#allocation2 + $0x28] sm:$0xf]
        %v631 = vld [vmem:[#allocation2 + $0x2c] sm:$0x1]
        %v632 = vld [vmem:[#allocation2 + $0x30] sm:$0xf]
        %v633 = vld [vmem:[#allocation2 + $0x34] sm:$0xf]
        %v634 = vld [vmem:[#allocation2 + $0x38] sm:$0x1]
        %v635 = vld [vmem:[#allocation2 + $0x3c] sm:$0xf]
        %v636 = vld [vmem:[#allocation2 + $0x40] sm:$0xf]
        %v637 = vld [vmem:[#allocation2 + $0x44] sm:$0x1]
        %v638 = vld [vmem:[#allocation2 + $0x48] sm:$0xf]
        %v639 = vld [vmem:[#allocation2 + $0x4c] sm:$0xf]
        %v640 = vld [vmem:[#allocation2 + $0x50] sm:$0x1]
        %v641 = vld [vmem:[#allocation2 + $0x54] sm:$0xf]
        %v642 = vld [vmem:[#allocation2 + $0x58] sm:$0xf]
        %v643 = vld [vmem:[#allocation2 + $0x5c] sm:$0x1]
        %v644 = vld [vmem:[#allocation2 + $0x60] sm:$0xf]
        %v645 = vld [vmem:[#allocation2 + $0x64] sm:$0xf]
        %v646 = vld [vmem:[#allocation2 + $0x68] sm:$0x1]
        %v647 = vld [vmem:[#allocation2 + $0x6c] sm:$0xf]
        %v648 = vld [vmem:[#allocation2 + $0x70] sm:$0xf]
        %v649 = vld [vmem:[#allocation2 + $0x74] sm:$0x1]
        %v650 = vld [vmem:[#allocation2 + $0x78] sm:$0xf]
        %v651 = vld [vmem:[#allocation2 + $0x7c] sm:$0xf]
        %v652 = vld [vmem:[#allocation2 + $0x80] sm:$0x1]
        %v653 = vld [vmem:[#allocation2 + $0x84] sm:$0xf]
        %v654 = vld [vmem:[#allocation2 + $0x88] sm:$0xf]
        %v655 = vld [vmem:[#allocation2 + $0x8c] sm:$0x1]
        %v656 = vld [vmem:[#allocation2 + $0x90] sm:$0xf]
        %v657 = vld [vmem:[#allocation2 + $0x94] sm:$0xf]
        %v658 = vld [vmem:[#allocation2 + $0x98] sm:$0x1]
        %v659 = vld [vmem:[#allocation2 + $0x9c] sm:$0xf]
        %v660 = vld [vmem:[#allocation2 + $0xa0] sm:$0xf]
        %v661 = vld [vmem:[#allocation2 + $0xa4] sm:$0x1]
        %v662 = vld [vmem:[#allocation2 + $0xa8] sm:$0xf]
        %v663 = vld [vmem:[#allocation2 + $0xac] sm:$0xf]
        %v664 = vld [vmem:[#allocation2 + $0xb0] sm:$0x1]
        %v665 = vld [vmem:[#allocation2 + $0xb4] sm:$0xf]
        %v666 = vld [vmem:[#allocation2 + $0xb8] sm:$0xf]
        %v667 = vld [vmem:[#allocation2 + $0xbc] sm:$0x1]
        %vm668 = vsmask.f32 3328
        %vm669 = vsmask.f32 7440
        %vm670 = vmor %vm668, %vm669
        %v672 = vshrl.u32 %v620, 16
        %v674 = vrot.slane %v672, 4
        %v675 = vshll.u32 %v620, 16
        %v677 = vrot.slane %v675, 5
        %v678 = vor.u32 %v674, %v677
        %v679 = vrot.slane %v678, 4
        %v681 = vshll.u32 %v621, 16
        %v683 = vrot.slane %v681, 5
        %v684 = vsel %vm670, %v679, %v683
        %v685 = vshrl.u32 %v621, 16
        %v687 = vrot.slane %v685, 4
        %v688 = vor.u32 %v687, %v683
        %v689 = vrot.slane %v688, 4
        %v691 = vshll.u32 %v622, 16
        %v693 = vrot.slane %v691, 5
        %v694 = vsel %vm670, %v689, %v693
        %v696 = vshrl.u32 %v623, 16
        %v698 = vrot.slane %v696, 4
        %v699 = vshll.u32 %v623, 16
        %v701 = vrot.slane %v699, 5
        %v702 = vor.u32 %v698, %v701
        %v703 = vrot.slane %v702, 4
        %v705 = vshll.u32 %v624, 16
        %v707 = vrot.slane %v705, 5
        %v708 = vsel %vm670, %v703, %v707
        %v709 = vshrl.u32 %v624, 16
        %v711 = vrot.slane %v709, 4
        %v712 = vor.u32 %v711, %v707
        %v713 = vrot.slane %v712, 4
        %v715 = vshll.u32 %v625, 16
        %v717 = vrot.slane %v715, 5
        %v718 = vsel %vm670, %v713, %v717
        %v720 = vshrl.u32 %v626, 16
        %v722 = vrot.slane %v720, 4
        %v723 = vshll.u32 %v626, 16
        %v725 = vrot.slane %v723, 5
        %v726 = vor.u32 %v722, %v725
        %v727 = vrot.slane %v726, 4
        %v729 = vshll.u32 %v627, 16
        %v731 = vrot.slane %v729, 5
        %v732 = vsel %vm670, %v727, %v731
        %v733 = vshrl.u32 %v627, 16
        %v735 = vrot.slane %v733, 4
        %v736 = vor.u32 %v735, %v731
        %v737 = vrot.slane %v736, 4
        %v739 = vshll.u32 %v628, 16
        %v741 = vrot.slane %v739, 5
        %v742 = vsel %vm670, %v737, %v741
        %v744 = vshrl.u32 %v629, 16
        %v746 = vrot.slane %v744, 4
        %v747 = vshll.u32 %v629, 16
        %v749 = vrot.slane %v747, 5
        %v750 = vor.u32 %v746, %v749
        %v751 = vrot.slane %v750, 4
        %v753 = vshll.u32 %v630, 16
        %v755 = vrot.slane %v753, 5
        %v756 = vsel %vm670, %v751, %v755
        %v757 = vshrl.u32 %v630, 16
        %v759 = vrot.slane %v757, 4
        %v760 = vor.u32 %v759, %v755
        %v761 = vrot.slane %v760, 4
        %v763 = vshll.u32 %v631, 16
        %v765 = vrot.slane %v763, 5
        %v766 = vsel %vm670, %v761, %v765
        %v768 = vshrl.u32 %v632, 16
        %v770 = vrot.slane %v768, 4
        %v771 = vshll.u32 %v632, 16
        %v773 = vrot.slane %v771, 5
        %v774 = vor.u32 %v770, %v773
        %v775 = vrot.slane %v774, 4
        %v777 = vshll.u32 %v633, 16
        %v779 = vrot.slane %v777, 5
        %v780 = vsel %vm670, %v775, %v779
        %v781 = vshrl.u32 %v633, 16
        %v783 = vrot.slane %v781, 4
        %v784 = vor.u32 %v783, %v779
        %v785 = vrot.slane %v784, 4
        %v787 = vshll.u32 %v634, 16
        %v789 = vrot.slane %v787, 5
        %v790 = vsel %vm670, %v785, %v789
        %v792 = vshrl.u32 %v635, 16
        %v794 = vrot.slane %v792, 4
        %v795 = vshll.u32 %v635, 16
        %v797 = vrot.slane %v795, 5
        %v798 = vor.u32 %v794, %v797
        %v799 = vrot.slane %v798, 4
        %v801 = vshll.u32 %v636, 16
        %v803 = vrot.slane %v801, 5
        %v804 = vsel %vm670, %v799, %v803
        %v805 = vshrl.u32 %v636, 16
        %v807 = vrot.slane %v805, 4
        %v808 = vor.u32 %v807, %v803
        %v809 = vrot.slane %v808, 4
        %v811 = vshll.u32 %v637, 16
        %v813 = vrot.slane %v811, 5
        %v814 = vsel %vm670, %v809, %v813
        %v816 = vshrl.u32 %v638, 16
        %v818 = vrot.slane %v816, 4
        %v819 = vshll.u32 %v638, 16
        %v821 = vrot.slane %v819, 5
        %v822 = vor.u32 %v818, %v821
        %v823 = vrot.slane %v822, 4
        %v825 = vshll.u32 %v639, 16
        %v827 = vrot.slane %v825, 5
        %v828 = vsel %vm670, %v823, %v827
        %v829 = vshrl.u32 %v639, 16
        %v831 = vrot.slane %v829, 4
        %v832 = vor.u32 %v831, %v827
        %v833 = vrot.slane %v832, 4
        %v835 = vshll.u32 %v640, 16
        %v837 = vrot.slane %v835, 5
        %v838 = vsel %vm670, %v833, %v837
        %v840 = vshrl.u32 %v641, 16
        %v842 = vrot.slane %v840, 4
        %v843 = vshll.u32 %v641, 16
        %v845 = vrot.slane %v843, 5
        %v846 = vor.u32 %v842, %v845
        %v847 = vrot.slane %v846, 4
        %v849 = vshll.u32 %v642, 16
        %v851 = vrot.slane %v849, 5
        %v852 = vsel %vm670, %v847, %v851
        %v853 = vshrl.u32 %v642, 16
        %v855 = vrot.slane %v853, 4
        %v856 = vor.u32 %v855, %v851
        %v857 = vrot.slane %v856, 4
        %v859 = vshll.u32 %v643, 16
        %v861 = vrot.slane %v859, 5
        %v862 = vsel %vm670, %v857, %v861
        %v864 = vshrl.u32 %v644, 16
        %v866 = vrot.slane %v864, 4
        %v867 = vshll.u32 %v644, 16
        %v869 = vrot.slane %v867, 5
        %v870 = vor.u32 %v866, %v869
        %v871 = vrot.slane %v870, 4
        %v873 = vshll.u32 %v645, 16
        %v875 = vrot.slane %v873, 5
        %v876 = vsel %vm670, %v871, %v875
        %v877 = vshrl.u32 %v645, 16
        %v879 = vrot.slane %v877, 4
        %v880 = vor.u32 %v879, %v875
        %v881 = vrot.slane %v880, 4
        %v883 = vshll.u32 %v646, 16
        %v885 = vrot.slane %v883, 5
        %v886 = vsel %vm670, %v881, %v885
        %v888 = vshrl.u32 %v647, 16
        %v890 = vrot.slane %v888, 4
        %v891 = vshll.u32 %v647, 16
        %v893 = vrot.slane %v891, 5
        %v894 = vor.u32 %v890, %v893
        %v895 = vrot.slane %v894, 4
        %v897 = vshll.u32 %v648, 16
        %v899 = vrot.slane %v897, 5
        %v900 = vsel %vm670, %v895, %v899
        %v901 = vshrl.u32 %v648, 16
        %v903 = vrot.slane %v901, 4
        %v904 = vor.u32 %v903, %v899
        %v905 = vrot.slane %v904, 4
        %v907 = vshll.u32 %v649, 16
        %v909 = vrot.slane %v907, 5
        %v910 = vsel %vm670, %v905, %v909
        %v912 = vshrl.u32 %v650, 16
        %v914 = vrot.slane %v912, 4
        %v915 = vshll.u32 %v650, 16
        %v917 = vrot.slane %v915, 5
        %v918 = vor.u32 %v914, %v917
        %v919 = vrot.slane %v918, 4
        %v921 = vshll.u32 %v651, 16
        %v923 = vrot.slane %v921, 5
        %v924 = vsel %vm670, %v919, %v923
        %v925 = vshrl.u32 %v651, 16
        %v927 = vrot.slane %v925, 4
        %v928 = vor.u32 %v927, %v923
        %v929 = vrot.slane %v928, 4
        %v931 = vshll.u32 %v652, 16
        %v933 = vrot.slane %v931, 5
        %v934 = vsel %vm670, %v929, %v933
        %v936 = vshrl.u32 %v653, 16
        %v938 = vrot.slane %v936, 4
        %v939 = vshll.u32 %v653, 16
        %v941 = vrot.slane %v939, 5
        %v942 = vor.u32 %v938, %v941
        %v943 = vrot.slane %v942, 4
        %v945 = vshll.u32 %v654, 16
        %v947 = vrot.slane %v945, 5
        %v948 = vsel %vm670, %v943, %v947
        %v949 = vshrl.u32 %v654, 16
        %v951 = vrot.slane %v949, 4
        %v952 = vor.u32 %v951, %v947
        %v953 = vrot.slane %v952, 4
        %v955 = vshll.u32 %v655, 16
        %v957 = vrot.slane %v955, 5
        %v958 = vsel %vm670, %v953, %v957
        %v960 = vshrl.u32 %v656, 16
        %v962 = vrot.slane %v960, 4
        %v963 = vshll.u32 %v656, 16
        %v965 = vrot.slane %v963, 5
        %v966 = vor.u32 %v962, %v965
        %v967 = vrot.slane %v966, 4
        %v969 = vshll.u32 %v657, 16
        %v971 = vrot.slane %v969, 5
        %v972 = vsel %vm670, %v967, %v971
        %v973 = vshrl.u32 %v657, 16
        %v975 = vrot.slane %v973, 4
        %v976 = vor.u32 %v975, %v971
        %v977 = vrot.slane %v976, 4
        %v979 = vshll.u32 %v658, 16
        %v981 = vrot.slane %v979, 5
        %v982 = vsel %vm670, %v977, %v981
        %v984 = vshrl.u32 %v659, 16
        %v986 = vrot.slane %v984, 4
        %v987 = vshll.u32 %v659, 16
        %v989 = vrot.slane %v987, 5
        %v990 = vor.u32 %v986, %v989
        %v991 = vrot.slane %v990, 4
        %v993 = vshll.u32 %v660, 16
        %v995 = vrot.slane %v993, 5
        %v996 = vsel %vm670, %v991, %v995
        %v997 = vshrl.u32 %v660, 16
        %v999 = vrot.slane %v997, 4
        %v1000 = vor.u32 %v999, %v995
        %v1001 = vrot.slane %v1000, 4
        %v1003 = vshll.u32 %v661, 16
        %v1005 = vrot.slane %v1003, 5
        %v1006 = vsel %vm670, %v1001, %v1005
        %v1008 = vshrl.u32 %v662, 16
        %v1010 = vrot.slane %v1008, 4
        %v1011 = vshll.u32 %v662, 16
        %v1013 = vrot.slane %v1011, 5
        %v1014 = vor.u32 %v1010, %v1013
        %v1015 = vrot.slane %v1014, 4
        %v1017 = vshll.u32 %v663, 16
        %v1019 = vrot.slane %v1017, 5
        %v1020 = vsel %vm670, %v1015, %v1019
        %v1021 = vshrl.u32 %v663, 16
        %v1023 = vrot.slane %v1021, 4
        %v1024 = vor.u32 %v1023, %v1019
        %v1025 = vrot.slane %v1024, 4
        %v1027 = vshll.u32 %v664, 16
        %v1029 = vrot.slane %v1027, 5
        %v1030 = vsel %vm670, %v1025, %v1029
        %v1032 = vshrl.u32 %v665, 16
        %v1034 = vrot.slane %v1032, 4
        %v1035 = vshll.u32 %v665, 16
        %v1037 = vrot.slane %v1035, 5
        %v1038 = vor.u32 %v1034, %v1037
        %v1039 = vrot.slane %v1038, 4
        %v1041 = vshll.u32 %v666, 16
        %v1043 = vrot.slane %v1041, 5
        %v1044 = vsel %vm670, %v1039, %v1043
        %v1045 = vshrl.u32 %v666, 16
        %v1047 = vrot.slane %v1045, 4
        %v1048 = vor.u32 %v1047, %v1043
        %v1049 = vrot.slane %v1048, 4
        %v1051 = vshll.u32 %v667, 16
        %v1053 = vrot.slane %v1051, 5
        %v1054 = vsel %vm670, %v1049, %v1053
        %v1055 = vld [vmem:[#allocation7] sm:$0xf]
        %v1056 = vld [vmem:[#allocation7 + $0x4] sm:$0xf]
        %v1057 = vld [vmem:[#allocation7 + $0x8] sm:$0xf]
        %v1058 = vld [vmem:[#allocation7 + $0xc] sm:$0xf]
        %v1059 = vld [vmem:[#allocation7 + $0x10] sm:$0xf]
        %v1060 = vld [vmem:[#allocation7 + $0x14] sm:$0xf]
        %v1061 = vld [vmem:[#allocation7 + $0x18] sm:$0xf]
        %v1062 = vld [vmem:[#allocation7 + $0x1c] sm:$0xf]
        %v1063 = vld [vmem:[#allocation7 + $0x20] sm:$0xf]
        %v1064 = vld [vmem:[#allocation7 + $0x24] sm:$0xf]
        %v1065 = vld [vmem:[#allocation7 + $0x28] sm:$0xf]
        %v1066 = vld [vmem:[#allocation7 + $0x2c] sm:$0xf]
        %v1067 = vld [vmem:[#allocation7 + $0x30] sm:$0xf]
        %v1068 = vld [vmem:[#allocation7 + $0x34] sm:$0xf]
        %v1069 = vld [vmem:[#allocation7 + $0x38] sm:$0xf]
        %v1070 = vld [vmem:[#allocation7 + $0x3c] sm:$0xf]
        %v1071 = vld [vmem:[#allocation2] sm:$0xe]
        %v1072 = vld [vmem:[#allocation2 + $0xc] sm:$0xe]
        %v1073 = vld [vmem:[#allocation2 + $0x18] sm:$0xe]
        %v1074 = vld [vmem:[#allocation2 + $0x24] sm:$0xe]
        %v1075 = vld [vmem:[#allocation2 + $0x30] sm:$0xe]
        %v1076 = vld [vmem:[#allocation2 + $0x3c] sm:$0xe]
        %v1077 = vld [vmem:[#allocation2 + $0x48] sm:$0xe]
        %v1078 = vld [vmem:[#allocation2 + $0x54] sm:$0xe]
        %v1079 = vld [vmem:[#allocation2 + $0x60] sm:$0xe]
        %v1080 = vld [vmem:[#allocation2 + $0x6c] sm:$0xe]
        %v1081 = vld [vmem:[#allocation2 + $0x78] sm:$0xe]
        %v1082 = vld [vmem:[#allocation2 + $0x84] sm:$0xe]
        %v1083 = vld [vmem:[#allocation2 + $0x90] sm:$0xe]
        %v1084 = vld [vmem:[#allocation2 + $0x9c] sm:$0xe]
        %v1085 = vld [vmem:[#allocation2 + $0xa8] sm:$0xe]
        %v1086 = vld [vmem:[#allocation2 + $0xb4] sm:$0xe]
        %vm1135 = vcmask 1042432
        %vm1136 = vcmask 1046532
        %vm1137 = vmor %vm1135, %vm1136
        %v1138 = vrot.slane %v1071, 5
        %v1139 = vrot.slane %v1138, 4
        %v1140 = vrot.slane %v621, 5
        %v1141 = vsel %vm1137, %v1139, %v1140
        %v1142 = vrot.slane %v1140, 4
        %v1143 = vrot.slane %v622, 5
        %v1144 = vsel %vm1137, %v1142, %v1143
        %v1145 = vrot.slane %v1072, 5
        %v1146 = vrot.slane %v1145, 4
        %v1147 = vrot.slane %v624, 5
        %v1148 = vsel %vm1137, %v1146, %v1147
        %v1149 = vrot.slane %v1147, 4
        %v1150 = vrot.slane %v625, 5
        %v1151 = vsel %vm1137, %v1149, %v1150
        %v1152 = vrot.slane %v1073, 5
        %v1153 = vrot.slane %v1152, 4
        %v1154 = vrot.slane %v627, 5
        %v1155 = vsel %vm1137, %v1153, %v1154
        %v1156 = vrot.slane %v1154, 4
        %v1157 = vrot.slane %v628, 5
        %v1158 = vsel %vm1137, %v1156, %v1157
        %v1159 = vrot.slane %v1074, 5
        %v1160 = vrot.slane %v1159, 4
        %v1161 = vrot.slane %v630, 5
        %v1162 = vsel %vm1137, %v1160, %v1161
        %v1163 = vrot.slane %v1161, 4
        %v1164 = vrot.slane %v631, 5
        %v1165 = vsel %vm1137, %v1163, %v1164
        %v1166 = vrot.slane %v1075, 5
        %v1167 = vrot.slane %v1166, 4
        %v1168 = vrot.slane %v633, 5
        %v1169 = vsel %vm1137, %v1167, %v1168
        %v1170 = vrot.slane %v1168, 4
        %v1171 = vrot.slane %v634, 5
        %v1172 = vsel %vm1137, %v1170, %v1171
        %v1173 = vrot.slane %v1076, 5
        %v1174 = vrot.slane %v1173, 4
        %v1175 = vrot.slane %v636, 5
        %v1176 = vsel %vm1137, %v1174, %v1175
        %v1177 = vrot.slane %v1175, 4
        %v1178 = vrot.slane %v637, 5
        %v1179 = vsel %vm1137, %v1177, %v1178
        %v1180 = vrot.slane %v1077, 5
        %v1181 = vrot.slane %v1180, 4
        %v1182 = vrot.slane %v639, 5
        %v1183 = vsel %vm1137, %v1181, %v1182
        %v1184 = vrot.slane %v1182, 4
        %v1185 = vrot.slane %v640, 5
        %v1186 = vsel %vm1137, %v1184, %v1185
        %v1187 = vrot.slane %v1078, 5
        %v1188 = vrot.slane %v1187, 4
        %v1189 = vrot.slane %v642, 5
        %v1190 = vsel %vm1137, %v1188, %v1189
        %v1191 = vrot.slane %v1189, 4
        %v1192 = vrot.slane %v643, 5
        %v1193 = vsel %vm1137, %v1191, %v1192
        %v1194 = vrot.slane %v1079, 5
        %v1195 = vrot.slane %v1194, 4
        %v1196 = vrot.slane %v645, 5
        %v1197 = vsel %vm1137, %v1195, %v1196
        %v1198 = vrot.slane %v1196, 4
        %v1199 = vrot.slane %v646, 5
        %v1200 = vsel %vm1137, %v1198, %v1199
        %v1201 = vrot.slane %v1080, 5
        %v1202 = vrot.slane %v1201, 4
        %v1203 = vrot.slane %v648, 5
        %v1204 = vsel %vm1137, %v1202, %v1203
        %v1205 = vrot.slane %v1203, 4
        %v1206 = vrot.slane %v649, 5
        %v1207 = vsel %vm1137, %v1205, %v1206
        %v1208 = vrot.slane %v1081, 5
        %v1209 = vrot.slane %v1208, 4
        %v1210 = vrot.slane %v651, 5
        %v1211 = vsel %vm1137, %v1209, %v1210
        %v1212 = vrot.slane %v1210, 4
        %v1213 = vrot.slane %v652, 5
        %v1214 = vsel %vm1137, %v1212, %v1213
        %v1215 = vrot.slane %v1082, 5
        %v1216 = vrot.slane %v1215, 4
        %v1217 = vrot.slane %v654, 5
        %v1218 = vsel %vm1137, %v1216, %v1217
        %v1219 = vrot.slane %v1217, 4
        %v1220 = vrot.slane %v655, 5
        %v1221 = vsel %vm1137, %v1219, %v1220
        %v1222 = vrot.slane %v1083, 5
        %v1223 = vrot.slane %v1222, 4
        %v1224 = vrot.slane %v657, 5
        %v1225 = vsel %vm1137, %v1223, %v1224
        %v1226 = vrot.slane %v1224, 4
        %v1227 = vrot.slane %v658, 5
        %v1228 = vsel %vm1137, %v1226, %v1227
        %v1229 = vrot.slane %v1084, 5
        %v1230 = vrot.slane %v1229, 4
        %v1231 = vrot.slane %v660, 5
        %v1232 = vsel %vm1137, %v1230, %v1231
        %v1233 = vrot.slane %v1231, 4
        %v1234 = vrot.slane %v661, 5
        %v1235 = vsel %vm1137, %v1233, %v1234
        %v1236 = vrot.slane %v1085, 5
        %v1237 = vrot.slane %v1236, 4
        %v1238 = vrot.slane %v663, 5
        %v1239 = vsel %vm1137, %v1237, %v1238
        %v1240 = vrot.slane %v1238, 4
        %v1241 = vrot.slane %v664, 5
        %v1242 = vsel %vm1137, %v1240, %v1241
        %v1243 = vrot.slane %v1086, 5
        %v1244 = vrot.slane %v1243, 4
        %v1245 = vrot.slane %v666, 5
        %v1246 = vsel %vm1137, %v1244, %v1245
        %v1247 = vrot.slane %v1245, 4
        %v1248 = vrot.slane %v667, 5
        %v1249 = vsel %vm1137, %v1247, %v1248
        %s1250 = scalar_lea.vmem [#allocation7], 64
        %v1251 = vld [vmem:[%s1250] sm:$0xf]
        %v1252 = vld [vmem:[%s1250 + $0x4] sm:$0xf]
        %v1253 = vld [vmem:[%s1250 + $0x8] sm:$0xf]
        %v1254 = vld [vmem:[%s1250 + $0xc] sm:$0xf]
        %v1255 = vld [vmem:[%s1250 + $0x10] sm:$0xf]
        %v1256 = vld [vmem:[%s1250 + $0x14] sm:$0xf]
        %v1257 = vld [vmem:[%s1250 + $0x18] sm:$0xf]
        %v1258 = vld [vmem:[%s1250 + $0x1c] sm:$0xf]
        %v1259 = vld [vmem:[%s1250 + $0x20] sm:$0xf]
        %v1260 = vld [vmem:[%s1250 + $0x24] sm:$0xf]
        %v1261 = vld [vmem:[%s1250 + $0x28] sm:$0xf]
        %v1262 = vld [vmem:[%s1250 + $0x2c] sm:$0xf]
        %v1263 = vld [vmem:[%s1250 + $0x30] sm:$0xf]
        %v1264 = vld [vmem:[%s1250 + $0x34] sm:$0xf]
        %v1265 = vld [vmem:[%s1250 + $0x38] sm:$0xf]
        %v1266 = vld [vmem:[%s1250 + $0x3c] sm:$0xf]
        %v1267 = vunpack.c.l.b16 %v1141
        %v1268 = vunpack.c.l.b16 %v1144
        %v1269 = vunpack.c.l.b16 %v1148
        %v1270 = vunpack.c.l.b16 %v1151
        %v1271 = vunpack.c.l.b16 %v1155
        %v1272 = vunpack.c.l.b16 %v1158
        %v1273 = vunpack.c.l.b16 %v1162
        %v1274 = vunpack.c.l.b16 %v1165
        %v1275 = vunpack.c.l.b16 %v1169
        %v1276 = vunpack.c.l.b16 %v1172
        %v1277 = vunpack.c.l.b16 %v1176
        %v1278 = vunpack.c.l.b16 %v1179
        %v1279 = vunpack.c.l.b16 %v1183
        %v1280 = vunpack.c.l.b16 %v1186
        %v1281 = vunpack.c.l.b16 %v1190
        %v1282 = vunpack.c.l.b16 %v1193
        %v1283 = vunpack.c.l.b16 %v1197
        %v1284 = vunpack.c.l.b16 %v1200
        %v1285 = vunpack.c.l.b16 %v1204
        %v1286 = vunpack.c.l.b16 %v1207
        %v1287 = vunpack.c.l.b16 %v1211
        %v1288 = vunpack.c.l.b16 %v1214
        %v1289 = vunpack.c.l.b16 %v1218
        %v1290 = vunpack.c.l.b16 %v1221
        %v1291 = vunpack.c.l.b16 %v1225
        %v1292 = vunpack.c.l.b16 %v1228
        %v1293 = vunpack.c.l.b16 %v1232
        %v1294 = vunpack.c.l.b16 %v1235
        %v1295 = vunpack.c.l.b16 %v1239
        %v1296 = vunpack.c.l.b16 %v1242
        %v1297 = vunpack.c.l.b16 %v1246
        %v1298 = vunpack.c.l.b16 %v1249
        %v1299 = vpack.c.b16 %v1268, %v1267
        %v1300 = vpack.c.b16 %v1270, %v1269
        %v1301 = vpack.c.b16 %v1272, %v1271
        %v1302 = vpack.c.b16 %v1274, %v1273
        %v1303 = vpack.c.b16 %v1276, %v1275
        %v1304 = vpack.c.b16 %v1278, %v1277
        %v1305 = vpack.c.b16 %v1280, %v1279
        %v1306 = vpack.c.b16 %v1282, %v1281
        %v1307 = vpack.c.b16 %v1284, %v1283
        %v1308 = vpack.c.b16 %v1286, %v1285
        %v1309 = vpack.c.b16 %v1288, %v1287
        %v1310 = vpack.c.b16 %v1290, %v1289
        %v1311 = vpack.c.b16 %v1292, %v1291
        %v1312 = vpack.c.b16 %v1294, %v1293
        %v1313 = vpack.c.b16 %v1296, %v1295
        %v1314 = vpack.c.b16 %v1298, %v1297
        %v1347 = vunpack.c.l.b16 %v1251
        %v1348 = vunpack.c.l.b16 %v1252
        %v1349 = vunpack.c.l.b16 %v1253
        %v1350 = vunpack.c.l.b16 %v1254
        %v1351 = vunpack.c.l.b16 %v1255
        %v1352 = vunpack.c.l.b16 %v1256
        %v1353 = vunpack.c.l.b16 %v1257
        %v1354 = vunpack.c.l.b16 %v1258
        %v1355 = vunpack.c.l.b16 %v1259
        %v1356 = vunpack.c.l.b16 %v1260
        %v1357 = vunpack.c.l.b16 %v1261
        %v1358 = vunpack.c.l.b16 %v1262
        %v1359 = vunpack.c.l.b16 %v1263
        %v1360 = vunpack.c.l.b16 %v1264
        %v1361 = vunpack.c.l.b16 %v1265
        %v1362 = vunpack.c.l.b16 %v1266
        %v1363 = vpack.c.b16 %v1348, %v1347
        %v1364 = vpack.c.b16 %v1350, %v1349
        %v1365 = vpack.c.b16 %v1352, %v1351
        %v1366 = vpack.c.b16 %v1354, %v1353
        %v1367 = vpack.c.b16 %v1356, %v1355
        %v1368 = vpack.c.b16 %v1358, %v1357
        %v1369 = vpack.c.b16 %v1360, %v1359
        %v1370 = vpack.c.b16 %v1362, %v1361
        %1379 = vmatprep.subr.bf16.mxu0 0
        %1380 = vmatpush1.bf16.msra.mxu0 %v1363
        %1381 = vmatprep.subr.bf16.mxu0 0
        %1382 = vmatpush1.bf16.msra.mxu0 %v1364
        %1383 = vmatprep.subr.bf16.mxu0 0
        %1384 = vmatpush1.bf16.msra.mxu0 %v1365
        %1385 = vmatprep.subr.bf16.mxu0 0
        %1386 = vmatpush1.bf16.msra.mxu0 %v1366
        %1387 = vmatprep.subr.bf16.mxu0 0
        %1388 = vmatpush1.bf16.msra.mxu0 %v1367
        %1389 = vmatprep.subr.bf16.mxu0 0
        %1390 = vmatpush1.bf16.msra.mxu0 %v1368
        %1391 = vmatprep.subr.bf16.mxu0 0
        %1392 = vmatpush1.bf16.msra.mxu0 %v1369
        %1393 = vmatprep.subr.bf16.mxu0 0
        %1394 = vmatpush1.bf16.msra.mxu0 %v1370
        %1395 = vmatprep.subr.bf16.mxu0 0
        %1396 = vmatpush1.bf16.msra.mxu0 0
        %1397 = vmatprep.subr.bf16.mxu0 0
        %1398 = vmatpush1.bf16.msra.mxu0 0
        %1399 = vmatprep.subr.bf16.mxu0 0
        %1400 = vmatpush1.bf16.msra.mxu0 0
        %1401 = vmatprep.subr.bf16.mxu0 0
        %1402 = vmatpush1.bf16.msra.mxu0 0
        %1403 = vmatprep.subr.bf16.mxu0 0
        %1404 = vmatpush1.bf16.msra.mxu0 0
        %1405 = vmatprep.subr.bf16.mxu0 0
        %1406 = vmatpush1.bf16.msra.mxu0 0
        %1407 = vmatprep.subr.bf16.mxu0 0
        %1408 = vmatpush1.bf16.msra.mxu0 0
        %1409 = vmatprep.subr.bf16.mxu0 0
        %1410 = vmatpush1.bf16.msra.mxu0 0
        %1411 = vmatprep.mubr.bf16.mxu0 0
        %1412 = vmatmul.mubr.bf16.gmra.mrb[0].mxu0 %v1299
        %v1413 = vpop.f32.mrb[0].mxu0
        %v1414 = vadd.f32 0.0, %v1413
        %v1415 = vpop.f32.mrb[0].mxu0
        %v1416 = vpop.f32.mrb[0].mxu0
        %v1417 = vadd.f32 0.0, %v1416
        %v1418 = vpop.f32.mrb[0].mxu0
        %1419 = vmatprep.mubr.bf16.mxu0 0
        %1420 = vmatmul.mubr.bf16.gmra.mrb[0].mxu0 %v1300
        %v1421 = vpop.f32.mrb[0].mxu0
        %v1422 = vadd.f32 0.0, %v1421
        %v1423 = vpop.f32.mrb[0].mxu0
        %v1424 = vpop.f32.mrb[0].mxu0
        %v1425 = vadd.f32 0.0, %v1424
        %v1426 = vpop.f32.mrb[0].mxu0
        %1427 = vmatprep.mubr.bf16.mxu0 0
        %1428 = vmatmul.mubr.bf16.gmra.mrb[0].mxu0 %v1301
        %v1429 = vpop.f32.mrb[0].mxu0
        %v1430 = vadd.f32 0.0, %v1429
        %v1431 = vpop.f32.mrb[0].mxu0
        %v1432 = vpop.f32.mrb[0].mxu0
        %v1433 = vadd.f32 0.0, %v1432
        %v1434 = vpop.f32.mrb[0].mxu0
        %1435 = vmatprep.mubr.bf16.mxu0 0
        %1436 = vmatmul.mubr.bf16.gmra.mrb[0].mxu0 %v1302
        %v1437 = vpop.f32.mrb[0].mxu0
        %v1438 = vadd.f32 0.0, %v1437
        %v1439 = vpop.f32.mrb[0].mxu0
        %v1440 = vpop.f32.mrb[0].mxu0
        %v1441 = vadd.f32 0.0, %v1440
        %v1442 = vpop.f32.mrb[0].mxu0
        %1443 = vmatprep.mubr.bf16.mxu0 0
        %1444 = vmatmul.mubr.bf16.gmra.mrb[0].mxu0 %v1303
        %v1445 = vpop.f32.mrb[0].mxu0
        %v1446 = vadd.f32 0.0, %v1445
        %v1447 = vpop.f32.mrb[0].mxu0
        %v1448 = vpop.f32.mrb[0].mxu0
        %v1449 = vadd.f32 0.0, %v1448
        %v1450 = vpop.f32.mrb[0].mxu0
        %1451 = vmatprep.mubr.bf16.mxu0 0
        %1452 = vmatmul.mubr.bf16.gmra.mrb[0].mxu0 %v1304
        %v1453 = vpop.f32.mrb[0].mxu0
        %v1454 = vadd.f32 0.0, %v1453
        %v1455 = vpop.f32.mrb[0].mxu0
        %v1456 = vpop.f32.mrb[0].mxu0
        %v1457 = vadd.f32 0.0, %v1456
        %v1458 = vpop.f32.mrb[0].mxu0
        %1459 = vmatprep.mubr.bf16.mxu0 0
        %1460 = vmatmul.mubr.bf16.gmra.mrb[0].mxu0 %v1305
        %v1461 = vpop.f32.mrb[0].mxu0
        %v1462 = vadd.f32 0.0, %v1461
        %v1463 = vpop.f32.mrb[0].mxu0
        %v1464 = vpop.f32.mrb[0].mxu0
        %v1465 = vadd.f32 0.0, %v1464
        %v1466 = vpop.f32.mrb[0].mxu0
        %1467 = vmatprep.mubr.bf16.mxu0 0
        %1468 = vmatmul.mubr.bf16.gmra.mrb[0].mxu0 %v1306
        %v1469 = vpop.f32.mrb[0].mxu0
        %v1470 = vadd.f32 0.0, %v1469
        %v1471 = vpop.f32.mrb[0].mxu0
        %v1472 = vpop.f32.mrb[0].mxu0
        %v1473 = vadd.f32 0.0, %v1472
        %v1474 = vpop.f32.mrb[0].mxu0
        %1475 = vmatprep.mubr.bf16.mxu0 0
        %1476 = vmatmul.mubr.bf16.gmra.mrb[0].mxu0 %v1307
        %v1477 = vpop.f32.mrb[0].mxu0
        %v1478 = vadd.f32 0.0, %v1477
        %v1479 = vpop.f32.mrb[0].mxu0
        %v1480 = vpop.f32.mrb[0].mxu0
        %v1481 = vadd.f32 0.0, %v1480
        %v1482 = vpop.f32.mrb[0].mxu0
        %1483 = vmatprep.mubr.bf16.mxu0 0
        %1484 = vmatmul.mubr.bf16.gmra.mrb[0].mxu0 %v1308
        %v1485 = vpop.f32.mrb[0].mxu0
        %v1486 = vadd.f32 0.0, %v1485
        %v1487 = vpop.f32.mrb[0].mxu0
        %v1488 = vpop.f32.mrb[0].mxu0
        %v1489 = vadd.f32 0.0, %v1488
        %v1490 = vpop.f32.mrb[0].mxu0
        %1491 = vmatprep.mubr.bf16.mxu0 0
        %1492 = vmatmul.mubr.bf16.gmra.mrb[0].mxu0 %v1309
        %v1493 = vpop.f32.mrb[0].mxu0
        %v1494 = vadd.f32 0.0, %v1493
        %v1495 = vpop.f32.mrb[0].mxu0
        %v1496 = vpop.f32.mrb[0].mxu0
        %v1497 = vadd.f32 0.0, %v1496
        %v1498 = vpop.f32.mrb[0].mxu0
        %1499 = vmatprep.mubr.bf16.mxu0 0
        %1500 = vmatmul.mubr.bf16.gmra.mrb[0].mxu0 %v1310
        %v1501 = vpop.f32.mrb[0].mxu0
        %v1502 = vadd.f32 0.0, %v1501
        %v1503 = vpop.f32.mrb[0].mxu0
        %v1504 = vpop.f32.mrb[0].mxu0
        %v1505 = vadd.f32 0.0, %v1504
        %v1506 = vpop.f32.mrb[0].mxu0
        %1507 = vmatprep.mubr.bf16.mxu0 0
        %1508 = vmatmul.mubr.bf16.gmra.mrb[0].mxu0 %v1311
        %v1509 = vpop.f32.mrb[0].mxu0
        %v1510 = vadd.f32 0.0, %v1509
        %v1511 = vpop.f32.mrb[0].mxu0
        %v1512 = vpop.f32.mrb[0].mxu0
        %v1513 = vadd.f32 0.0, %v1512
        %v1514 = vpop.f32.mrb[0].mxu0
        %1515 = vmatprep.mubr.bf16.mxu0 0
        %1516 = vmatmul.mubr.bf16.gmra.mrb[0].mxu0 %v1312
        %v1517 = vpop.f32.mrb[0].mxu0
        %v1518 = vadd.f32 0.0, %v1517
        %v1519 = vpop.f32.mrb[0].mxu0
        %v1520 = vpop.f32.mrb[0].mxu0
        %v1521 = vadd.f32 0.0, %v1520
        %v1522 = vpop.f32.mrb[0].mxu0
        %1523 = vmatprep.mubr.bf16.mxu0 0
        %1524 = vmatmul.mubr.bf16.gmra.mrb[0].mxu0 %v1313
        %v1525 = vpop.f32.mrb[0].mxu0
        %v1526 = vadd.f32 0.0, %v1525
        %v1527 = vpop.f32.mrb[0].mxu0
        %v1528 = vpop.f32.mrb[0].mxu0
        %v1529 = vadd.f32 0.0, %v1528
        %v1530 = vpop.f32.mrb[0].mxu0
        %1531 = vmatprep.mubr.bf16.mxu0 0
        %1532 = vmatmul.mubr.bf16.gmra.mrb[0].mxu0 %v1314
        %v1533 = vpop.f32.mrb[0].mxu0
        %v1534 = vadd.f32 0.0, %v1533
        %v1535 = vpop.f32.mrb[0].mxu0
        %v1536 = vpop.f32.mrb[0].mxu0
        %v1537 = vadd.f32 0.0, %v1536
        %v1538 = vpop.f32.mrb[0].mxu0
        %1539 = vdwg.mxu0
        %v1540 = vunpack.c.l.b16 %v684
        %v1541 = vunpack.c.l.b16 %v694
        %v1542 = vunpack.c.l.b16 %v708
        %v1543 = vunpack.c.l.b16 %v718
        %v1544 = vunpack.c.l.b16 %v732
        %v1545 = vunpack.c.l.b16 %v742
        %v1546 = vunpack.c.l.b16 %v756
        %v1547 = vunpack.c.l.b16 %v766
        %v1548 = vunpack.c.l.b16 %v780
        %v1549 = vunpack.c.l.b16 %v790
        %v1550 = vunpack.c.l.b16 %v804
        %v1551 = vunpack.c.l.b16 %v814
        %v1552 = vunpack.c.l.b16 %v828
        %v1553 = vunpack.c.l.b16 %v838
        %v1554 = vunpack.c.l.b16 %v852
        %v1555 = vunpack.c.l.b16 %v862
        %v1556 = vunpack.c.l.b16 %v876
        %v1557 = vunpack.c.l.b16 %v886
        %v1558 = vunpack.c.l.b16 %v900
        %v1559 = vunpack.c.l.b16 %v910
        %v1560 = vunpack.c.l.b16 %v924
        %v1561 = vunpack.c.l.b16 %v934
        %v1562 = vunpack.c.l.b16 %v948
        %v1563 = vunpack.c.l.b16 %v958
        %v1564 = vunpack.c.l.b16 %v972
        %v1565 = vunpack.c.l.b16 %v982
        %v1566 = vunpack.c.l.b16 %v996
        %v1567 = vunpack.c.l.b16 %v1006
        %v1568 = vunpack.c.l.b16 %v1020
        %v1569 = vunpack.c.l.b16 %v1030
        %v1570 = vunpack.c.l.b16 %v1044
        %v1571 = vunpack.c.l.b16 %v1054
        %v1572 = vpack.c.b16 %v1541, %v1540
        %v1573 = vpack.c.b16 %v1543, %v1542
        %v1574 = vpack.c.b16 %v1545, %v1544
        %v1575 = vpack.c.b16 %v1547, %v1546
        %v1576 = vpack.c.b16 %v1549, %v1548
        %v1577 = vpack.c.b16 %v1551, %v1550
        %v1578 = vpack.c.b16 %v1553, %v1552
        %v1579 = vpack.c.b16 %v1555, %v1554
        %v1580 = vpack.c.b16 %v1557, %v1556
        %v1581 = vpack.c.b16 %v1559, %v1558
        %v1582 = vpack.c.b16 %v1561, %v1560
        %v1583 = vpack.c.b16 %v1563, %v1562
        %v1584 = vpack.c.b16 %v1565, %v1564
        %v1585 = vpack.c.b16 %v1567, %v1566
        %v1586 = vpack.c.b16 %v1569, %v1568
        %v1587 = vpack.c.b16 %v1571, %v1570
        %v1620 = vunpack.c.l.b16 %v1055
        %v1621 = vunpack.c.l.b16 %v1056
        %v1622 = vunpack.c.l.b16 %v1057
        %v1623 = vunpack.c.l.b16 %v1058
        %v1624 = vunpack.c.l.b16 %v1059
        %v1625 = vunpack.c.l.b16 %v1060
        %v1626 = vunpack.c.l.b16 %v1061
        %v1627 = vunpack.c.l.b16 %v1062
        %v1628 = vunpack.c.l.b16 %v1063
        %v1629 = vunpack.c.l.b16 %v1064
        %v1630 = vunpack.c.l.b16 %v1065
        %v1631 = vunpack.c.l.b16 %v1066
        %v1632 = vunpack.c.l.b16 %v1067
        %v1633 = vunpack.c.l.b16 %v1068
        %v1634 = vunpack.c.l.b16 %v1069
        %v1635 = vunpack.c.l.b16 %v1070
        %v1636 = vpack.c.b16 %v1621, %v1620
        %v1637 = vpack.c.b16 %v1623, %v1622
        %v1638 = vpack.c.b16 %v1625, %v1624
        %v1639 = vpack.c.b16 %v1627, %v1626
        %v1640 = vpack.c.b16 %v1629, %v1628
        %v1641 = vpack.c.b16 %v1631, %v1630
        %v1642 = vpack.c.b16 %v1633, %v1632
        %v1643 = vpack.c.b16 %v1635, %v1634
        %1652 = vmatprep.subr.bf16.mxu0 0
        %1653 = vmatpush1.bf16.msra.mxu0 %v1636
        %1654 = vmatprep.subr.bf16.mxu0 0
        %1655 = vmatpush1.bf16.msra.mxu0 %v1637
        %1656 = vmatprep.subr.bf16.mxu0 0
        %1657 = vmatpush1.bf16.msra.mxu0 %v1638
        %1658 = vmatprep.subr.bf16.mxu0 0
        %1659 = vmatpush1.bf16.msra.mxu0 %v1639
        %1660 = vmatprep.subr.bf16.mxu0 0
        %1661 = vmatpush1.bf16.msra.mxu0 %v1640
        %1662 = vmatprep.subr.bf16.mxu0 0
        %1663 = vmatpush1.bf16.msra.mxu0 %v1641
        %1664 = vmatprep.subr.bf16.mxu0 0
        %1665 = vmatpush1.bf16.msra.mxu0 %v1642
        %1666 = vmatprep.subr.bf16.mxu0 0
        %1667 = vmatpush1.bf16.msra.mxu0 %v1643
        %1668 = vmatprep.subr.bf16.mxu0 0
        %1669 = vmatpush1.bf16.msra.mxu0 0
        %1670 = vmatprep.subr.bf16.mxu0 0
        %1671 = vmatpush1.bf16.msra.mxu0 0
        %1672 = vmatprep.subr.bf16.mxu0 0
        %1673 = vmatpush1.bf16.msra.mxu0 0
        %1674 = vmatprep.subr.bf16.mxu0 0
        %1675 = vmatpush1.bf16.msra.mxu0 0
        %1676 = vmatprep.subr.bf16.mxu0 0
        %1677 = vmatpush1.bf16.msra.mxu0 0
        %1678 = vmatprep.subr.bf16.mxu0 0
        %1679 = vmatpush1.bf16.msra.mxu0 0
        %1680 = vmatprep.subr.bf16.mxu0 0
        %1681 = vmatpush1.bf16.msra.mxu0 0
        %1682 = vmatprep.subr.bf16.mxu0 0
        %1683 = vmatpush1.bf16.msra.mxu0 0
        %1684 = vmatprep.mubr.bf16.mxu0 0
        %1685 = vmatmul.mubr.bf16.gmra.mrb[0].mxu0 %v1572
        %v1686 = vpop.f32.mrb[0].mxu0
        %v1687 = vadd.f32 %v1414, %v1686
        %v1688 = vpop.f32.mrb[0].mxu0
        %v1689 = vpop.f32.mrb[0].mxu0
        %v1690 = vadd.f32 %v1417, %v1689
        %v1691 = vpop.f32.mrb[0].mxu0
        %1692 = vmatprep.mubr.bf16.mxu0 0
        %1693 = vmatmul.mubr.bf16.gmra.mrb[0].mxu0 %v1573
        %v1694 = vpop.f32.mrb[0].mxu0
        %v1695 = vadd.f32 %v1422, %v1694
        %v1696 = vpop.f32.mrb[0].mxu0
        %v1697 = vpop.f32.mrb[0].mxu0
        %v1698 = vadd.f32 %v1425, %v1697
        %v1699 = vpop.f32.mrb[0].mxu0
        %1700 = vmatprep.mubr.bf16.mxu0 0
        %1701 = vmatmul.mubr.bf16.gmra.mrb[0].mxu0 %v1574
        %v1702 = vpop.f32.mrb[0].mxu0
        %v1703 = vadd.f32 %v1430, %v1702
        %v1704 = vpop.f32.mrb[0].mxu0
        %v1705 = vpop.f32.mrb[0].mxu0
        %v1706 = vadd.f32 %v1433, %v1705
        %v1707 = vpop.f32.mrb[0].mxu0
        %1708 = vmatprep.mubr.bf16.mxu0 0
        %1709 = vmatmul.mubr.bf16.gmra.mrb[0].mxu0 %v1575
        %v1710 = vpop.f32.mrb[0].mxu0
        %v1711 = vadd.f32 %v1438, %v1710
        %v1712 = vpop.f32.mrb[0].mxu0
        %v1713 = vpop.f32.mrb[0].mxu0
        %v1714 = vadd.f32 %v1441, %v1713
        %v1715 = vpop.f32.mrb[0].mxu0
        %1716 = vmatprep.mubr.bf16.mxu0 0
        %1717 = vmatmul.mubr.bf16.gmra.mrb[0].mxu0 %v1576
        %v1718 = vpop.f32.mrb[0].mxu0
        %v1719 = vadd.f32 %v1446, %v1718
        %v1720 = vpop.f32.mrb[0].mxu0
        %v1721 = vpop.f32.mrb[0].mxu0
        %v1722 = vadd.f32 %v1449, %v1721
        %v1723 = vpop.f32.mrb[0].mxu0
        %1724 = vmatprep.mubr.bf16.mxu0 0
        %1725 = vmatmul.mubr.bf16.gmra.mrb[0].mxu0 %v1577
        %v1726 = vpop.f32.mrb[0].mxu0
        %v1727 = vadd.f32 %v1454, %v1726
        %v1728 = vpop.f32.mrb[0].mxu0
        %v1729 = vpop.f32.mrb[0].mxu0
        %v1730 = vadd.f32 %v1457, %v1729
        %v1731 = vpop.f32.mrb[0].mxu0
        %1732 = vmatprep.mubr.bf16.mxu0 0
        %1733 = vmatmul.mubr.bf16.gmra.mrb[0].mxu0 %v1578
        %v1734 = vpop.f32.mrb[0].mxu0
        %v1735 = vadd.f32 %v1462, %v1734
        %v1736 = vpop.f32.mrb[0].mxu0
        %v1737 = vpop.f32.mrb[0].mxu0
        %v1738 = vadd.f32 %v1465, %v1737
        %v1739 = vpop.f32.mrb[0].mxu0
        %1740 = vmatprep.mubr.bf16.mxu0 0
        %1741 = vmatmul.mubr.bf16.gmra.mrb[0].mxu0 %v1579
        %v1742 = vpop.f32.mrb[0].mxu0
        %v1743 = vadd.f32 %v1470, %v1742
        %v1744 = vpop.f32.mrb[0].mxu0
        %v1745 = vpop.f32.mrb[0].mxu0
        %v1746 = vadd.f32 %v1473, %v1745
        %v1747 = vpop.f32.mrb[0].mxu0
        %1748 = vmatprep.mubr.bf16.mxu0 0
        %1749 = vmatmul.mubr.bf16.gmra.mrb[0].mxu0 %v1580
        %v1750 = vpop.f32.mrb[0].mxu0
        %v1751 = vadd.f32 %v1478, %v1750
        %v1752 = vpop.f32.mrb[0].mxu0
        %v1753 = vpop.f32.mrb[0].mxu0
        %v1754 = vadd.f32 %v1481, %v1753
        %v1755 = vpop.f32.mrb[0].mxu0
        %1756 = vmatprep.mubr.bf16.mxu0 0
        %1757 = vmatmul.mubr.bf16.gmra.mrb[0].mxu0 %v1581
        %v1758 = vpop.f32.mrb[0].mxu0
        %v1759 = vadd.f32 %v1486, %v1758
        %v1760 = vpop.f32.mrb[0].mxu0
        %v1761 = vpop.f32.mrb[0].mxu0
        %v1762 = vadd.f32 %v1489, %v1761
        %v1763 = vpop.f32.mrb[0].mxu0
        %1764 = vmatprep.mubr.bf16.mxu0 0
        %1765 = vmatmul.mubr.bf16.gmra.mrb[0].mxu0 %v1582
        %v1766 = vpop.f32.mrb[0].mxu0
        %v1767 = vadd.f32 %v1494, %v1766
        %v1768 = vpop.f32.mrb[0].mxu0
        %v1769 = vpop.f32.mrb[0].mxu0
        %v1770 = vadd.f32 %v1497, %v1769
        %v1771 = vpop.f32.mrb[0].mxu0
        %1772 = vmatprep.mubr.bf16.mxu0 0
        %1773 = vmatmul.mubr.bf16.gmra.mrb[0].mxu0 %v1583
        %v1774 = vpop.f32.mrb[0].mxu0
        %v1775 = vadd.f32 %v1502, %v1774
        %v1776 = vpop.f32.mrb[0].mxu0
        %v1777 = vpop.f32.mrb[0].mxu0
        %v1778 = vadd.f32 %v1505, %v1777
        %v1779 = vpop.f32.mrb[0].mxu0
        %1780 = vmatprep.mubr.bf16.mxu0 0
        %1781 = vmatmul.mubr.bf16.gmra.mrb[0].mxu0 %v1584
        %v1782 = vpop.f32.mrb[0].mxu0
        %v1783 = vadd.f32 %v1510, %v1782
        %v1784 = vpop.f32.mrb[0].mxu0
        %v1785 = vpop.f32.mrb[0].mxu0
        %v1786 = vadd.f32 %v1513, %v1785
        %v1787 = vpop.f32.mrb[0].mxu0
        %1788 = vmatprep.mubr.bf16.mxu0 0
        %1789 = vmatmul.mubr.bf16.gmra.mrb[0].mxu0 %v1585
        %v1790 = vpop.f32.mrb[0].mxu0
        %v1791 = vadd.f32 %v1518, %v1790
        %v1792 = vpop.f32.mrb[0].mxu0
        %v1793 = vpop.f32.mrb[0].mxu0
        %v1794 = vadd.f32 %v1521, %v1793
        %v1795 = vpop.f32.mrb[0].mxu0
        %1796 = vmatprep.mubr.bf16.mxu0 0
        %1797 = vmatmul.mubr.bf16.gmra.mrb[0].mxu0 %v1586
        %v1798 = vpop.f32.mrb[0].mxu0
        %v1799 = vadd.f32 %v1526, %v1798
        %v1800 = vpop.f32.mrb[0].mxu0
        %v1801 = vpop.f32.mrb[0].mxu0
        %v1802 = vadd.f32 %v1529, %v1801
        %v1803 = vpop.f32.mrb[0].mxu0
        %1804 = vmatprep.mubr.bf16.mxu0 0
        %1805 = vmatmul.mubr.bf16.gmra.mrb[0].mxu0 %v1587
        %v1806 = vpop.f32.mrb[0].mxu0
        %v1807 = vadd.f32 %v1534, %v1806
        %v1808 = vpop.f32.mrb[0].mxu0
        %v1809 = vpop.f32.mrb[0].mxu0
        %v1810 = vadd.f32 %v1537, %v1809
        %v1811 = vpop.f32.mrb[0].mxu0
        %1812 = vdwg.mxu0
        %v1813 = vld [vmem:[#allocation2 + $0x8] sm:$0x3]
        %v1814 = vld [vmem:[#allocation2 + $0x14] sm:$0x3]
        %v1815 = vld [vmem:[#allocation2 + $0x20] sm:$0x3]
        %v1816 = vld [vmem:[#allocation2 + $0x2c] sm:$0x3]
        %v1817 = vld [vmem:[#allocation2 + $0x38] sm:$0x3]
        %v1818 = vld [vmem:[#allocation2 + $0x44] sm:$0x3]
        %v1819 = vld [vmem:[#allocation2 + $0x50] sm:$0x3]
        %v1820 = vld [vmem:[#allocation2 + $0x5c] sm:$0x3]
        %v1821 = vld [vmem:[#allocation2 + $0x68] sm:$0x3]
        %v1822 = vld [vmem:[#allocation2 + $0x74] sm:$0x3]
        %v1823 = vld [vmem:[#allocation2 + $0x80] sm:$0x3]
        %v1824 = vld [vmem:[#allocation2 + $0x8c] sm:$0x3]
        %v1825 = vld [vmem:[#allocation2 + $0x98] sm:$0x3]
        %v1826 = vld [vmem:[#allocation2 + $0xa4] sm:$0x3]
        %v1827 = vld [vmem:[#allocation2 + $0xb0] sm:$0x3]
        %v1828 = vld [vmem:[#allocation2 + $0xbc] sm:$0x3]
        %vm1829 = vsmask.f32 2304
        %vm1830 = vsmask.f32 6416
        %vm1831 = vmor %vm1829, %vm1830
        %v1833 = vshrl.u32 %v1071, 16
        %v1835 = vrot.slane %v1833, 5
        %v1836 = vshll.u32 %v1071, 16
        %v1838 = vrot.slane %v1836, 6
        %v1839 = vor.u32 %v1835, %v1838
        %v1840 = vrot.slane %v1839, 4
        %v1841 = vrot.slane %v685, 5
        %v1842 = vrot.slane %v681, 6
        %v1843 = vor.u32 %v1841, %v1842
        %v1844 = vsel %vm1831, %v1840, %v1843
        %v1845 = vrot.slane %v1843, 4
        %v1847 = vshrl.u32 %v1813, 16
        %v1849 = vrot.slane %v1847, 5
        %v1850 = vshll.u32 %v1813, 16
        %v1852 = vrot.slane %v1850, 6
        %v1853 = vor.u32 %v1849, %v1852
        %v1854 = vsel %vm1831, %v1845, %v1853
        %v1856 = vshrl.u32 %v1072, 16
        %v1858 = vrot.slane %v1856, 5
        %v1859 = vshll.u32 %v1072, 16
        %v1861 = vrot.slane %v1859, 6
        %v1862 = vor.u32 %v1858, %v1861
        %v1863 = vrot.slane %v1862, 4
        %v1864 = vrot.slane %v709, 5
        %v1865 = vrot.slane %v705, 6
        %v1866 = vor.u32 %v1864, %v1865
        %v1867 = vsel %vm1831, %v1863, %v1866
        %v1868 = vrot.slane %v1866, 4
        %v1870 = vshrl.u32 %v1814, 16
        %v1872 = vrot.slane %v1870, 5
        %v1873 = vshll.u32 %v1814, 16
        %v1875 = vrot.slane %v1873, 6
        %v1876 = vor.u32 %v1872, %v1875
        %v1877 = vsel %vm1831, %v1868, %v1876
        %v1879 = vshrl.u32 %v1073, 16
        %v1881 = vrot.slane %v1879, 5
        %v1882 = vshll.u32 %v1073, 16
        %v1884 = vrot.slane %v1882, 6
        %v1885 = vor.u32 %v1881, %v1884
        %v1886 = vrot.slane %v1885, 4
        %v1887 = vrot.slane %v733, 5
        %v1888 = vrot.slane %v729, 6
        %v1889 = vor.u32 %v1887, %v1888
        %v1890 = vsel %vm1831, %v1886, %v1889
        %v1891 = vrot.slane %v1889, 4
        %v1893 = vshrl.u32 %v1815, 16
        %v1895 = vrot.slane %v1893, 5
        %v1896 = vshll.u32 %v1815, 16
        %v1898 = vrot.slane %v1896, 6
        %v1899 = vor.u32 %v1895, %v1898
        %v1900 = vsel %vm1831, %v1891, %v1899
        %v1902 = vshrl.u32 %v1074, 16
        %v1904 = vrot.slane %v1902, 5
        %v1905 = vshll.u32 %v1074, 16
        %v1907 = vrot.slane %v1905, 6
        %v1908 = vor.u32 %v1904, %v1907
        %v1909 = vrot.slane %v1908, 4
        %v1910 = vrot.slane %v757, 5
        %v1911 = vrot.slane %v753, 6
        %v1912 = vor.u32 %v1910, %v1911
        %v1913 = vsel %vm1831, %v1909, %v1912
        %v1914 = vrot.slane %v1912, 4
        %v1916 = vshrl.u32 %v1816, 16
        %v1918 = vrot.slane %v1916, 5
        %v1919 = vshll.u32 %v1816, 16
        %v1921 = vrot.slane %v1919, 6
        %v1922 = vor.u32 %v1918, %v1921
        %v1923 = vsel %vm1831, %v1914, %v1922
        %v1925 = vshrl.u32 %v1075, 16
        %v1927 = vrot.slane %v1925, 5
        %v1928 = vshll.u32 %v1075, 16
        %v1930 = vrot.slane %v1928, 6
        %v1931 = vor.u32 %v1927, %v1930
        %v1932 = vrot.slane %v1931, 4
        %v1933 = vrot.slane %v781, 5
        %v1934 = vrot.slane %v777, 6
        %v1935 = vor.u32 %v1933, %v1934
        %v1936 = vsel %vm1831, %v1932, %v1935
        %v1937 = vrot.slane %v1935, 4
        %v1939 = vshrl.u32 %v1817, 16
        %v1941 = vrot.slane %v1939, 5
        %v1942 = vshll.u32 %v1817, 16
        %v1944 = vrot.slane %v1942, 6
        %v1945 = vor.u32 %v1941, %v1944
        %v1946 = vsel %vm1831, %v1937, %v1945
        %v1948 = vshrl.u32 %v1076, 16
        %v1950 = vrot.slane %v1948, 5
        %v1951 = vshll.u32 %v1076, 16
        %v1953 = vrot.slane %v1951, 6
        %v1954 = vor.u32 %v1950, %v1953
        %v1955 = vrot.slane %v1954, 4
        %v1956 = vrot.slane %v805, 5
        %v1957 = vrot.slane %v801, 6
        %v1958 = vor.u32 %v1956, %v1957
        %v1959 = vsel %vm1831, %v1955, %v1958
        %v1960 = vrot.slane %v1958, 4
        %v1962 = vshrl.u32 %v1818, 16
        %v1964 = vrot.slane %v1962, 5
        %v1965 = vshll.u32 %v1818, 16
        %v1967 = vrot.slane %v1965, 6
        %v1968 = vor.u32 %v1964, %v1967
        %v1969 = vsel %vm1831, %v1960, %v1968
        %v1971 = vshrl.u32 %v1077, 16
        %v1973 = vrot.slane %v1971, 5
        %v1974 = vshll.u32 %v1077, 16
        %v1976 = vrot.slane %v1974, 6
        %v1977 = vor.u32 %v1973, %v1976
        %v1978 = vrot.slane %v1977, 4
        %v1979 = vrot.slane %v829, 5
        %v1980 = vrot.slane %v825, 6
        %v1981 = vor.u32 %v1979, %v1980
        %v1982 = vsel %vm1831, %v1978, %v1981
        %v1983 = vrot.slane %v1981, 4
        %v1985 = vshrl.u32 %v1819, 16
        %v1987 = vrot.slane %v1985, 5
        %v1988 = vshll.u32 %v1819, 16
        %v1990 = vrot.slane %v1988, 6
        %v1991 = vor.u32 %v1987, %v1990
        %v1992 = vsel %vm1831, %v1983, %v1991
        %v1994 = vshrl.u32 %v1078, 16
        %v1996 = vrot.slane %v1994, 5
        %v1997 = vshll.u32 %v1078, 16
        %v1999 = vrot.slane %v1997, 6
        %v2000 = vor.u32 %v1996, %v1999
        %v2001 = vrot.slane %v2000, 4
        %v2002 = vrot.slane %v853, 5
        %v2003 = vrot.slane %v849, 6
        %v2004 = vor.u32 %v2002, %v2003
        %v2005 = vsel %vm1831, %v2001, %v2004
        %v2006 = vrot.slane %v2004, 4
        %v2008 = vshrl.u32 %v1820, 16
        %v2010 = vrot.slane %v2008, 5
        %v2011 = vshll.u32 %v1820, 16
        %v2013 = vrot.slane %v2011, 6
        %v2014 = vor.u32 %v2010, %v2013
        %v2015 = vsel %vm1831, %v2006, %v2014
        %v2017 = vshrl.u32 %v1079, 16
        %v2019 = vrot.slane %v2017, 5
        %v2020 = vshll.u32 %v1079, 16
        %v2022 = vrot.slane %v2020, 6
        %v2023 = vor.u32 %v2019, %v2022
        %v2024 = vrot.slane %v2023, 4
        %v2025 = vrot.slane %v877, 5
        %v2026 = vrot.slane %v873, 6
        %v2027 = vor.u32 %v2025, %v2026
        %v2028 = vsel %vm1831, %v2024, %v2027
        %v2029 = vrot.slane %v2027, 4
        %v2031 = vshrl.u32 %v1821, 16
        %v2033 = vrot.slane %v2031, 5
        %v2034 = vshll.u32 %v1821, 16
        %v2036 = vrot.slane %v2034, 6
        %v2037 = vor.u32 %v2033, %v2036
        %v2038 = vsel %vm1831, %v2029, %v2037
        %v2040 = vshrl.u32 %v1080, 16
        %v2042 = vrot.slane %v2040, 5
        %v2043 = vshll.u32 %v1080, 16
        %v2045 = vrot.slane %v2043, 6
        %v2046 = vor.u32 %v2042, %v2045
        %v2047 = vrot.slane %v2046, 4
        %v2048 = vrot.slane %v901, 5
        %v2049 = vrot.slane %v897, 6
        %v2050 = vor.u32 %v2048, %v2049
        %v2051 = vsel %vm1831, %v2047, %v2050
        %v2052 = vrot.slane %v2050, 4
        %v2054 = vshrl.u32 %v1822, 16
        %v2056 = vrot.slane %v2054, 5
        %v2057 = vshll.u32 %v1822, 16
        %v2059 = vrot.slane %v2057, 6
        %v2060 = vor.u32 %v2056, %v2059
        %v2061 = vsel %vm1831, %v2052, %v2060
        %v2063 = vshrl.u32 %v1081, 16
        %v2065 = vrot.slane %v2063, 5
        %v2066 = vshll.u32 %v1081, 16
        %v2068 = vrot.slane %v2066, 6
        %v2069 = vor.u32 %v2065, %v2068
        %v2070 = vrot.slane %v2069, 4
        %v2071 = vrot.slane %v925, 5
        %v2072 = vrot.slane %v921, 6
        %v2073 = vor.u32 %v2071, %v2072
        %v2074 = vsel %vm1831, %v2070, %v2073
        %v2075 = vrot.slane %v2073, 4
        %v2077 = vshrl.u32 %v1823, 16
        %v2079 = vrot.slane %v2077, 5
        %v2080 = vshll.u32 %v1823, 16
        %v2082 = vrot.slane %v2080, 6
        %v2083 = vor.u32 %v2079, %v2082
        %v2084 = vsel %vm1831, %v2075, %v2083
        %v2086 = vshrl.u32 %v1082, 16
        %v2088 = vrot.slane %v2086, 5
        %v2089 = vshll.u32 %v1082, 16
        %v2091 = vrot.slane %v2089, 6
        %v2092 = vor.u32 %v2088, %v2091
        %v2093 = vrot.slane %v2092, 4
        %v2094 = vrot.slane %v949, 5
        %v2095 = vrot.slane %v945, 6
        %v2096 = vor.u32 %v2094, %v2095
        %v2097 = vsel %vm1831, %v2093, %v2096
        %v2098 = vrot.slane %v2096, 4
        %v2100 = vshrl.u32 %v1824, 16
        %v2102 = vrot.slane %v2100, 5
        %v2103 = vshll.u32 %v1824, 16
        %v2105 = vrot.slane %v2103, 6
        %v2106 = vor.u32 %v2102, %v2105
        %v2107 = vsel %vm1831, %v2098, %v2106
        %v2109 = vshrl.u32 %v1083, 16
        %v2111 = vrot.slane %v2109, 5
        %v2112 = vshll.u32 %v1083, 16
        %v2114 = vrot.slane %v2112, 6
        %v2115 = vor.u32 %v2111, %v2114
        %v2116 = vrot.slane %v2115, 4
        %v2117 = vrot.slane %v973, 5
        %v2118 = vrot.slane %v969, 6
        %v2119 = vor.u32 %v2117, %v2118
        %v2120 = vsel %vm1831, %v2116, %v2119
        %v2121 = vrot.slane %v2119, 4
        %v2123 = vshrl.u32 %v1825, 16
        %v2125 = vrot.slane %v2123, 5
        %v2126 = vshll.u32 %v1825, 16
        %v2128 = vrot.slane %v2126, 6
        %v2129 = vor.u32 %v2125, %v2128
        %v2130 = vsel %vm1831, %v2121, %v2129
        %v2132 = vshrl.u32 %v1084, 16
        %v2134 = vrot.slane %v2132, 5
        %v2135 = vshll.u32 %v1084, 16
        %v2137 = vrot.slane %v2135, 6
        %v2138 = vor.u32 %v2134, %v2137
        %v2139 = vrot.slane %v2138, 4
        %v2140 = vrot.slane %v997, 5
        %v2141 = vrot.slane %v993, 6
        %v2142 = vor.u32 %v2140, %v2141
        %v2143 = vsel %vm1831, %v2139, %v2142
        %v2144 = vrot.slane %v2142, 4
        %v2146 = vshrl.u32 %v1826, 16
        %v2148 = vrot.slane %v2146, 5
        %v2149 = vshll.u32 %v1826, 16
        %v2151 = vrot.slane %v2149, 6
        %v2152 = vor.u32 %v2148, %v2151
        %v2153 = vsel %vm1831, %v2144, %v2152
        %v2155 = vshrl.u32 %v1085, 16
        %v2157 = vrot.slane %v2155, 5
        %v2158 = vshll.u32 %v1085, 16
        %v2160 = vrot.slane %v2158, 6
        %v2161 = vor.u32 %v2157, %v2160
        %v2162 = vrot.slane %v2161, 4
        %v2163 = vrot.slane %v1021, 5
        %v2164 = vrot.slane %v1017, 6
        %v2165 = vor.u32 %v2163, %v2164
        %v2166 = vsel %vm1831, %v2162, %v2165
        %v2167 = vrot.slane %v2165, 4
        %v2169 = vshrl.u32 %v1827, 16
        %v2171 = vrot.slane %v2169, 5
        %v2172 = vshll.u32 %v1827, 16
        %v2174 = vrot.slane %v2172, 6
        %v2175 = vor.u32 %v2171, %v2174
        %v2176 = vsel %vm1831, %v2167, %v2175
        %v2178 = vshrl.u32 %v1086, 16
        %v2180 = vrot.slane %v2178, 5
        %v2181 = vshll.u32 %v1086, 16
        %v2183 = vrot.slane %v2181, 6
        %v2184 = vor.u32 %v2180, %v2183
        %v2185 = vrot.slane %v2184, 4
        %v2186 = vrot.slane %v1045, 5
        %v2187 = vrot.slane %v1041, 6
        %v2188 = vor.u32 %v2186, %v2187
        %v2189 = vsel %vm1831, %v2185, %v2188
        %v2190 = vrot.slane %v2188, 4
        %v2192 = vshrl.u32 %v1828, 16
        %v2194 = vrot.slane %v2192, 5
        %v2195 = vshll.u32 %v1828, 16
        %v2197 = vrot.slane %v2195, 6
        %v2198 = vor.u32 %v2194, %v2197
        %v2199 = vsel %vm1831, %v2190, %v2198
        %s2200 = scalar_lea.vmem [#allocation7], 128
        %v2201 = vld [vmem:[%s2200] sm:$0xf]
        %v2202 = vld [vmem:[%s2200 + $0x4] sm:$0xf]
        %v2203 = vld [vmem:[%s2200 + $0x8] sm:$0xf]
        %v2204 = vld [vmem:[%s2200 + $0xc] sm:$0xf]
        %v2205 = vld [vmem:[%s2200 + $0x10] sm:$0xf]
        %v2206 = vld [vmem:[%s2200 + $0x14] sm:$0xf]
        %v2207 = vld [vmem:[%s2200 + $0x18] sm:$0xf]
        %v2208 = vld [vmem:[%s2200 + $0x1c] sm:$0xf]
        %v2209 = vld [vmem:[%s2200 + $0x20] sm:$0xf]
        %v2210 = vld [vmem:[%s2200 + $0x24] sm:$0xf]
        %v2211 = vld [vmem:[%s2200 + $0x28] sm:$0xf]
        %v2212 = vld [vmem:[%s2200 + $0x2c] sm:$0xf]
        %v2213 = vld [vmem:[%s2200 + $0x30] sm:$0xf]
        %v2214 = vld [vmem:[%s2200 + $0x34] sm:$0xf]
        %v2215 = vld [vmem:[%s2200 + $0x38] sm:$0xf]
        %v2216 = vld [vmem:[%s2200 + $0x3c] sm:$0xf]
        %v2217 = vunpack.c.l.b16 %v1844
        %v2218 = vunpack.c.l.b16 %v1854
        %v2219 = vunpack.c.l.b16 %v1867
        %v2220 = vunpack.c.l.b16 %v1877
        %v2221 = vunpack.c.l.b16 %v1890
        %v2222 = vunpack.c.l.b16 %v1900
        %v2223 = vunpack.c.l.b16 %v1913
        %v2224 = vunpack.c.l.b16 %v1923
        %v2225 = vunpack.c.l.b16 %v1936
        %v2226 = vunpack.c.l.b16 %v1946
        %v2227 = vunpack.c.l.b16 %v1959
        %v2228 = vunpack.c.l.b16 %v1969
        %v2229 = vunpack.c.l.b16 %v1982
        %v2230 = vunpack.c.l.b16 %v1992
        %v2231 = vunpack.c.l.b16 %v2005
        %v2232 = vunpack.c.l.b16 %v2015
        %v2233 = vunpack.c.l.b16 %v2028
        %v2234 = vunpack.c.l.b16 %v2038
        %v2235 = vunpack.c.l.b16 %v2051
        %v2236 = vunpack.c.l.b16 %v2061
        %v2237 = vunpack.c.l.b16 %v2074
        %v2238 = vunpack.c.l.b16 %v2084
        %v2239 = vunpack.c.l.b16 %v2097
        %v2240 = vunpack.c.l.b16 %v2107
        %v2241 = vunpack.c.l.b16 %v2120
        %v2242 = vunpack.c.l.b16 %v2130
        %v2243 = vunpack.c.l.b16 %v2143
        %v2244 = vunpack.c.l.b16 %v2153
        %v2245 = vunpack.c.l.b16 %v2166
        %v2246 = vunpack.c.l.b16 %v2176
        %v2247 = vunpack.c.l.b16 %v2189
        %v2248 = vunpack.c.l.b16 %v2199
        %v2249 = vpack.c.b16 %v2218, %v2217
        %v2250 = vpack.c.b16 %v2220, %v2219
        %v2251 = vpack.c.b16 %v2222, %v2221
        %v2252 = vpack.c.b16 %v2224, %v2223
        %v2253 = vpack.c.b16 %v2226, %v2225
        %v2254 = vpack.c.b16 %v2228, %v2227
        %v2255 = vpack.c.b16 %v2230, %v2229
        %v2256 = vpack.c.b16 %v2232, %v2231
        %v2257 = vpack.c.b16 %v2234, %v2233
        %v2258 = vpack.c.b16 %v2236, %v2235
        %v2259 = vpack.c.b16 %v2238, %v2237
        %v2260 = vpack.c.b16 %v2240, %v2239
        %v2261 = vpack.c.b16 %v2242, %v2241
        %v2262 = vpack.c.b16 %v2244, %v2243
        %v2263 = vpack.c.b16 %v2246, %v2245
        %v2264 = vpack.c.b16 %v2248, %v2247
        %v2297 = vunpack.c.l.b16 %v2201
        %v2298 = vunpack.c.l.b16 %v2202
        %v2299 = vunpack.c.l.b16 %v2203
        %v2300 = vunpack.c.l.b16 %v2204
        %v2301 = vunpack.c.l.b16 %v2205
        %v2302 = vunpack.c.l.b16 %v2206
        %v2303 = vunpack.c.l.b16 %v2207
        %v2304 = vunpack.c.l.b16 %v2208
        %v2305 = vunpack.c.l.b16 %v2209
        %v2306 = vunpack.c.l.b16 %v2210
        %v2307 = vunpack.c.l.b16 %v2211
        %v2308 = vunpack.c.l.b16 %v2212
        %v2309 = vunpack.c.l.b16 %v2213
        %v2310 = vunpack.c.l.b16 %v2214
        %v2311 = vunpack.c.l.b16 %v2215
        %v2312 = vunpack.c.l.b16 %v2216
        %v2313 = vpack.c.b16 %v2298, %v2297
        %v2314 = vpack.c.b16 %v2300, %v2299
        %v2315 = vpack.c.b16 %v2302, %v2301
        %v2316 = vpack.c.b16 %v2304, %v2303
        %v2317 = vpack.c.b16 %v2306, %v2305
        %v2318 = vpack.c.b16 %v2308, %v2307
        %v2319 = vpack.c.b16 %v2310, %v2309
        %v2320 = vpack.c.b16 %v2312, %v2311
        %2329 = vmatprep.subr.bf16.mxu0 0
        %2330 = vmatpush1.bf16.msra.mxu0 %v2313
        %2331 = vmatprep.subr.bf16.mxu0 0
        %2332 = vmatpush1.bf16.msra.mxu0 %v2314
        %2333 = vmatprep.subr.bf16.mxu0 0
        %2334 = vmatpush1.bf16.msra.mxu0 %v2315
        %2335 = vmatprep.subr.bf16.mxu0 0
        %2336 = vmatpush1.bf16.msra.mxu0 %v2316
        %2337 = vmatprep.subr.bf16.mxu0 0
        %2338 = vmatpush1.bf16.msra.mxu0 %v2317
        %2339 = vmatprep.subr.bf16.mxu0 0
        %2340 = vmatpush1.bf16.msra.mxu0 %v2318
        %2341 = vmatprep.subr.bf16.mxu0 0
        %2342 = vmatpush1.bf16.msra.mxu0 %v2319
        %2343 = vmatprep.subr.bf16.mxu0 0
        %2344 = vmatpush1.bf16.msra.mxu0 %v2320
        %2345 = vmatprep.subr.bf16.mxu0 0
        %2346 = vmatpush1.bf16.msra.mxu0 0
        %2347 = vmatprep.subr.bf16.mxu0 0
        %2348 = vmatpush1.bf16.msra.mxu0 0
        %2349 = vmatprep.subr.bf16.mxu0 0
        %2350 = vmatpush1.bf16.msra.mxu0 0
        %2351 = vmatprep.subr.bf16.mxu0 0
        %2352 = vmatpush1.bf16.msra.mxu0 0
        %2353 = vmatprep.subr.bf16.mxu0 0
        %2354 = vmatpush1.bf16.msra.mxu0 0
        %2355 = vmatprep.subr.bf16.mxu0 0
        %2356 = vmatpush1.bf16.msra.mxu0 0
        %2357 = vmatprep.subr.bf16.mxu0 0
        %2358 = vmatpush1.bf16.msra.mxu0 0
        %2359 = vmatprep.subr.bf16.mxu0 0
        %2360 = vmatpush1.bf16.msra.mxu0 0
        %2361 = vmatprep.mubr.bf16.mxu0 0
        %2362 = vmatmul.mubr.bf16.gmra.mrb[0].mxu0 %v2249
        %v2363 = vpop.f32.mrb[0].mxu0
        %v2364 = vadd.f32 0.0, %v2363
        %v2365 = vpop.f32.mrb[0].mxu0
        %v2366 = vpop.f32.mrb[0].mxu0
        %v2367 = vadd.f32 0.0, %v2366
        %v2368 = vpop.f32.mrb[0].mxu0
        %2369 = vmatprep.mubr.bf16.mxu0 0
        %2370 = vmatmul.mubr.bf16.gmra.mrb[0].mxu0 %v2250
        %v2371 = vpop.f32.mrb[0].mxu0
        %v2372 = vadd.f32 0.0, %v2371
        %v2373 = vpop.f32.mrb[0].mxu0
        %v2374 = vpop.f32.mrb[0].mxu0
        %v2375 = vadd.f32 0.0, %v2374
        %v2376 = vpop.f32.mrb[0].mxu0
        %2377 = vmatprep.mubr.bf16.mxu0 0
        %2378 = vmatmul.mubr.bf16.gmra.mrb[0].mxu0 %v2251
        %v2379 = vpop.f32.mrb[0].mxu0
        %v2380 = vadd.f32 0.0, %v2379
        %v2381 = vpop.f32.mrb[0].mxu0
        %v2382 = vpop.f32.mrb[0].mxu0
        %v2383 = vadd.f32 0.0, %v2382
        %v2384 = vpop.f32.mrb[0].mxu0
        %2385 = vmatprep.mubr.bf16.mxu0 0
        %2386 = vmatmul.mubr.bf16.gmra.mrb[0].mxu0 %v2252
        %v2387 = vpop.f32.mrb[0].mxu0
        %v2388 = vadd.f32 0.0, %v2387
        %v2389 = vpop.f32.mrb[0].mxu0
        %v2390 = vpop.f32.mrb[0].mxu0
        %v2391 = vadd.f32 0.0, %v2390
        %v2392 = vpop.f32.mrb[0].mxu0
        %2393 = vmatprep.mubr.bf16.mxu0 0
        %2394 = vmatmul.mubr.bf16.gmra.mrb[0].mxu0 %v2253
        %v2395 = vpop.f32.mrb[0].mxu0
        %v2396 = vadd.f32 0.0, %v2395
        %v2397 = vpop.f32.mrb[0].mxu0
        %v2398 = vpop.f32.mrb[0].mxu0
        %v2399 = vadd.f32 0.0, %v2398
        %v2400 = vpop.f32.mrb[0].mxu0
        %2401 = vmatprep.mubr.bf16.mxu0 0
        %2402 = vmatmul.mubr.bf16.gmra.mrb[0].mxu0 %v2254
        %v2403 = vpop.f32.mrb[0].mxu0
        %v2404 = vadd.f32 0.0, %v2403
        %v2405 = vpop.f32.mrb[0].mxu0
        %v2406 = vpop.f32.mrb[0].mxu0
        %v2407 = vadd.f32 0.0, %v2406
        %v2408 = vpop.f32.mrb[0].mxu0
        %2409 = vmatprep.mubr.bf16.mxu0 0
        %2410 = vmatmul.mubr.bf16.gmra.mrb[0].mxu0 %v2255
        %v2411 = vpop.f32.mrb[0].mxu0
        %v2412 = vadd.f32 0.0, %v2411
        %v2413 = vpop.f32.mrb[0].mxu0
        %v2414 = vpop.f32.mrb[0].mxu0
        %v2415 = vadd.f32 0.0, %v2414
        %v2416 = vpop.f32.mrb[0].mxu0
        %2417 = vmatprep.mubr.bf16.mxu0 0
        %2418 = vmatmul.mubr.bf16.gmra.mrb[0].mxu0 %v2256
        %v2419 = vpop.f32.mrb[0].mxu0
        %v2420 = vadd.f32 0.0, %v2419
        %v2421 = vpop.f32.mrb[0].mxu0
        %v2422 = vpop.f32.mrb[0].mxu0
        %v2423 = vadd.f32 0.0, %v2422
        %v2424 = vpop.f32.mrb[0].mxu0
        %2425 = vmatprep.mubr.bf16.mxu0 0
        %2426 = vmatmul.mubr.bf16.gmra.mrb[0].mxu0 %v2257
        %v2427 = vpop.f32.mrb[0].mxu0
        %v2428 = vadd.f32 0.0, %v2427
        %v2429 = vpop.f32.mrb[0].mxu0
        %v2430 = vpop.f32.mrb[0].mxu0
        %v2431 = vadd.f32 0.0, %v2430
        %v2432 = vpop.f32.mrb[0].mxu0
        %2433 = vmatprep.mubr.bf16.mxu0 0
        %2434 = vmatmul.mubr.bf16.gmra.mrb[0].mxu0 %v2258
        %v2435 = vpop.f32.mrb[0].mxu0
        %v2436 = vadd.f32 0.0, %v2435
        %v2437 = vpop.f32.mrb[0].mxu0
        %v2438 = vpop.f32.mrb[0].mxu0
        %v2439 = vadd.f32 0.0, %v2438
        %v2440 = vpop.f32.mrb[0].mxu0
        %2441 = vmatprep.mubr.bf16.mxu0 0
        %2442 = vmatmul.mubr.bf16.gmra.mrb[0].mxu0 %v2259
        %v2443 = vpop.f32.mrb[0].mxu0
        %v2444 = vadd.f32 0.0, %v2443
        %v2445 = vpop.f32.mrb[0].mxu0
        %v2446 = vpop.f32.mrb[0].mxu0
        %v2447 = vadd.f32 0.0, %v2446
        %v2448 = vpop.f32.mrb[0].mxu0
        %2449 = vmatprep.mubr.bf16.mxu0 0
        %2450 = vmatmul.mubr.bf16.gmra.mrb[0].mxu0 %v2260
        %v2451 = vpop.f32.mrb[0].mxu0
        %v2452 = vadd.f32 0.0, %v2451
        %v2453 = vpop.f32.mrb[0].mxu0
        %v2454 = vpop.f32.mrb[0].mxu0
        %v2455 = vadd.f32 0.0, %v2454
        %v2456 = vpop.f32.mrb[0].mxu0
        %2457 = vmatprep.mubr.bf16.mxu0 0
        %2458 = vmatmul.mubr.bf16.gmra.mrb[0].mxu0 %v2261
        %v2459 = vpop.f32.mrb[0].mxu0
        %v2460 = vadd.f32 0.0, %v2459
        %v2461 = vpop.f32.mrb[0].mxu0
        %v2462 = vpop.f32.mrb[0].mxu0
        %v2463 = vadd.f32 0.0, %v2462
        %v2464 = vpop.f32.mrb[0].mxu0
        %2465 = vmatprep.mubr.bf16.mxu0 0
        %2466 = vmatmul.mubr.bf16.gmra.mrb[0].mxu0 %v2262
        %v2467 = vpop.f32.mrb[0].mxu0
        %v2468 = vadd.f32 0.0, %v2467
        %v2469 = vpop.f32.mrb[0].mxu0
        %v2470 = vpop.f32.mrb[0].mxu0
        %v2471 = vadd.f32 0.0, %v2470
        %v2472 = vpop.f32.mrb[0].mxu0
        %2473 = vmatprep.mubr.bf16.mxu0 0
        %2474 = vmatmul.mubr.bf16.gmra.mrb[0].mxu0 %v2263
        %v2475 = vpop.f32.mrb[0].mxu0
        %v2476 = vadd.f32 0.0, %v2475
        %v2477 = vpop.f32.mrb[0].mxu0
        %v2478 = vpop.f32.mrb[0].mxu0
        %v2479 = vadd.f32 0.0, %v2478
        %v2480 = vpop.f32.mrb[0].mxu0
        %2481 = vmatprep.mubr.bf16.mxu0 0
        %2482 = vmatmul.mubr.bf16.gmra.mrb[0].mxu0 %v2264
        %v2483 = vpop.f32.mrb[0].mxu0
        %v2484 = vadd.f32 0.0, %v2483
        %v2485 = vpop.f32.mrb[0].mxu0
        %v2486 = vpop.f32.mrb[0].mxu0
        %v2487 = vadd.f32 0.0, %v2486
        %v2488 = vpop.f32.mrb[0].mxu0
        %2489 = vdwg.mxu0
        %v2490 = vadd.f32 %v1687, %v2364
        %v2491 = vadd.f32 %v1690, %v2367
        %v2492 = vadd.f32 %v1695, %v2372
        %v2493 = vadd.f32 %v1698, %v2375
        %v2494 = vadd.f32 %v1703, %v2380
        %v2495 = vadd.f32 %v1706, %v2383
        %v2496 = vadd.f32 %v1711, %v2388
        %v2497 = vadd.f32 %v1714, %v2391
        %v2498 = vadd.f32 %v1719, %v2396
        %v2499 = vadd.f32 %v1722, %v2399
        %v2500 = vadd.f32 %v1727, %v2404
        %v2501 = vadd.f32 %v1730, %v2407
        %v2502 = vadd.f32 %v1735, %v2412
        %v2503 = vadd.f32 %v1738, %v2415
        %v2504 = vadd.f32 %v1743, %v2420
        %v2505 = vadd.f32 %v1746, %v2423
        %v2506 = vadd.f32 %v1751, %v2428
        %v2507 = vadd.f32 %v1754, %v2431
        %v2508 = vadd.f32 %v1759, %v2436
        %v2509 = vadd.f32 %v1762, %v2439
        %v2510 = vadd.f32 %v1767, %v2444
        %v2511 = vadd.f32 %v1770, %v2447
        %v2512 = vadd.f32 %v1775, %v2452
        %v2513 = vadd.f32 %v1778, %v2455
        %v2514 = vadd.f32 %v1783, %v2460
        %v2515 = vadd.f32 %v1786, %v2463
        %v2516 = vadd.f32 %v1791, %v2468
        %v2517 = vadd.f32 %v1794, %v2471
        %v2518 = vadd.f32 %v1799, %v2476
        %v2519 = vadd.f32 %v1802, %v2479
        %v2520 = vadd.f32 %v1807, %v2484
        %v2521 = vadd.f32 %v1810, %v2487
        %v2522 = vld [vmem:[%s312] sm:$0xf]
        %v2523 = vld [vmem:[%s312 + $0x4] sm:$0xf]
        %v2524 = vld [vmem:[%s312 + $0x8] sm:$0x1]
        %v2525 = vld [vmem:[%s312 + $0xc] sm:$0xf]
        %v2526 = vld [vmem:[%s312 + $0x10] sm:$0xf]
        %v2527 = vld [vmem:[%s312 + $0x14] sm:$0x1]
        %v2528 = vld [vmem:[%s312 + $0x18] sm:$0xf]
        %v2529 = vld [vmem:[%s312 + $0x1c] sm:$0xf]
        %v2530 = vld [vmem:[%s312 + $0x20] sm:$0x1]
        %v2531 = vld [vmem:[%s312 + $0x24] sm:$0xf]
        %v2532 = vld [vmem:[%s312 + $0x28] sm:$0xf]
        %v2533 = vld [vmem:[%s312 + $0x2c] sm:$0x1]
        %v2534 = vld [vmem:[%s312 + $0x30] sm:$0xf]
        %v2535 = vld [vmem:[%s312 + $0x34] sm:$0xf]
        %v2536 = vld [vmem:[%s312 + $0x38] sm:$0x1]
        %v2537 = vld [vmem:[%s312 + $0x3c] sm:$0xf]
        %v2538 = vld [vmem:[%s312 + $0x40] sm:$0xf]
        %v2539 = vld [vmem:[%s312 + $0x44] sm:$0x1]
        %v2540 = vld [vmem:[%s312 + $0x48] sm:$0xf]
        %v2541 = vld [vmem:[%s312 + $0x4c] sm:$0xf]
        %v2542 = vld [vmem:[%s312 + $0x50] sm:$0x1]
        %v2543 = vld [vmem:[%s312 + $0x54] sm:$0xf]
        %v2544 = vld [vmem:[%s312 + $0x58] sm:$0xf]
        %v2545 = vld [vmem:[%s312 + $0x5c] sm:$0x1]
        %v2546 = vld [vmem:[%s312 + $0x60] sm:$0xf]
        %v2547 = vld [vmem:[%s312 + $0x64] sm:$0xf]
        %v2548 = vld [vmem:[%s312 + $0x68] sm:$0x1]
        %v2549 = vld [vmem:[%s312 + $0x6c] sm:$0xf]
        %v2550 = vld [vmem:[%s312 + $0x70] sm:$0xf]
        %v2551 = vld [vmem:[%s312 + $0x74] sm:$0x1]
        %v2552 = vld [vmem:[%s312 + $0x78] sm:$0xf]
        %v2553 = vld [vmem:[%s312 + $0x7c] sm:$0xf]
        %v2554 = vld [vmem:[%s312 + $0x80] sm:$0x1]
        %v2555 = vld [vmem:[%s312 + $0x84] sm:$0xf]
        %v2556 = vld [vmem:[%s312 + $0x88] sm:$0xf]
        %v2557 = vld [vmem:[%s312 + $0x8c] sm:$0x1]
        %v2558 = vld [vmem:[%s312 + $0x90] sm:$0xf]
        %v2559 = vld [vmem:[%s312 + $0x94] sm:$0xf]
        %v2560 = vld [vmem:[%s312 + $0x98] sm:$0x1]
        %v2561 = vld [vmem:[%s312 + $0x9c] sm:$0xf]
        %v2562 = vld [vmem:[%s312 + $0xa0] sm:$0xf]
        %v2563 = vld [vmem:[%s312 + $0xa4] sm:$0x1]
        %v2564 = vld [vmem:[%s312 + $0xa8] sm:$0xf]
        %v2565 = vld [vmem:[%s312 + $0xac] sm:$0xf]
        %v2566 = vld [vmem:[%s312 + $0xb0] sm:$0x1]
        %v2567 = vld [vmem:[%s312 + $0xb4] sm:$0xf]
        %v2568 = vld [vmem:[%s312 + $0xb8] sm:$0xf]
        %v2569 = vld [vmem:[%s312 + $0xbc] sm:$0x1]
        %v2571 = vshrl.u32 %v2522, 16
        %v2573 = vrot.slane %v2571, 4
        %v2574 = vshll.u32 %v2522, 16
        %v2576 = vrot.slane %v2574, 5
        %v2577 = vor.u32 %v2573, %v2576
        %v2578 = vrot.slane %v2577, 4
        %v2580 = vshll.u32 %v2523, 16
        %v2582 = vrot.slane %v2580, 5
        %v2583 = vsel %vm670, %v2578, %v2582
        %v2584 = vshrl.u32 %v2523, 16
        %v2586 = vrot.slane %v2584, 4
        %v2587 = vor.u32 %v2586, %v2582
        %v2588 = vrot.slane %v2587, 4
        %v2590 = vshll.u32 %v2524, 16
        %v2592 = vrot.slane %v2590, 5
        %v2593 = vsel %vm670, %v2588, %v2592
        %v2595 = vshrl.u32 %v2525, 16
        %v2597 = vrot.slane %v2595, 4
        %v2598 = vshll.u32 %v2525, 16
        %v2600 = vrot.slane %v2598, 5
        %v2601 = vor.u32 %v2597, %v2600
        %v2602 = vrot.slane %v2601, 4
        %v2604 = vshll.u32 %v2526, 16
        %v2606 = vrot.slane %v2604, 5
        %v2607 = vsel %vm670, %v2602, %v2606
        %v2608 = vshrl.u32 %v2526, 16
        %v2610 = vrot.slane %v2608, 4
        %v2611 = vor.u32 %v2610, %v2606
        %v2612 = vrot.slane %v2611, 4
        %v2614 = vshll.u32 %v2527, 16
        %v2616 = vrot.slane %v2614, 5
        %v2617 = vsel %vm670, %v2612, %v2616
        %v2619 = vshrl.u32 %v2528, 16
        %v2621 = vrot.slane %v2619, 4
        %v2622 = vshll.u32 %v2528, 16
        %v2624 = vrot.slane %v2622, 5
        %v2625 = vor.u32 %v2621, %v2624
        %v2626 = vrot.slane %v2625, 4
        %v2628 = vshll.u32 %v2529, 16
        %v2630 = vrot.slane %v2628, 5
        %v2631 = vsel %vm670, %v2626, %v2630
        %v2632 = vshrl.u32 %v2529, 16
        %v2634 = vrot.slane %v2632, 4
        %v2635 = vor.u32 %v2634, %v2630
        %v2636 = vrot.slane %v2635, 4
        %v2638 = vshll.u32 %v2530, 16
        %v2640 = vrot.slane %v2638, 5
        %v2641 = vsel %vm670, %v2636, %v2640
        %v2643 = vshrl.u32 %v2531, 16
        %v2645 = vrot.slane %v2643, 4
        %v2646 = vshll.u32 %v2531, 16
        %v2648 = vrot.slane %v2646, 5
        %v2649 = vor.u32 %v2645, %v2648
        %v2650 = vrot.slane %v2649, 4
        %v2652 = vshll.u32 %v2532, 16
        %v2654 = vrot.slane %v2652, 5
        %v2655 = vsel %vm670, %v2650, %v2654
        %v2656 = vshrl.u32 %v2532, 16
        %v2658 = vrot.slane %v2656, 4
        %v2659 = vor.u32 %v2658, %v2654
        %v2660 = vrot.slane %v2659, 4
        %v2662 = vshll.u32 %v2533, 16
        %v2664 = vrot.slane %v2662, 5
        %v2665 = vsel %vm670, %v2660, %v2664
        %v2667 = vshrl.u32 %v2534, 16
        %v2669 = vrot.slane %v2667, 4
        %v2670 = vshll.u32 %v2534, 16
        %v2672 = vrot.slane %v2670, 5
        %v2673 = vor.u32 %v2669, %v2672
        %v2674 = vrot.slane %v2673, 4
        %v2676 = vshll.u32 %v2535, 16
        %v2678 = vrot.slane %v2676, 5
        %v2679 = vsel %vm670, %v2674, %v2678
        %v2680 = vshrl.u32 %v2535, 16
        %v2682 = vrot.slane %v2680, 4
        %v2683 = vor.u32 %v2682, %v2678
        %v2684 = vrot.slane %v2683, 4
        %v2686 = vshll.u32 %v2536, 16
        %v2688 = vrot.slane %v2686, 5
        %v2689 = vsel %vm670, %v2684, %v2688
        %v2691 = vshrl.u32 %v2537, 16
        %v2693 = vrot.slane %v2691, 4
        %v2694 = vshll.u32 %v2537, 16
        %v2696 = vrot.slane %v2694, 5
        %v2697 = vor.u32 %v2693, %v2696
        %v2698 = vrot.slane %v2697, 4
        %v2700 = vshll.u32 %v2538, 16
        %v2702 = vrot.slane %v2700, 5
        %v2703 = vsel %vm670, %v2698, %v2702
        %v2704 = vshrl.u32 %v2538, 16
        %v2706 = vrot.slane %v2704, 4
        %v2707 = vor.u32 %v2706, %v2702
        %v2708 = vrot.slane %v2707, 4
        %v2710 = vshll.u32 %v2539, 16
        %v2712 = vrot.slane %v2710, 5
        %v2713 = vsel %vm670, %v2708, %v2712
        %v2715 = vshrl.u32 %v2540, 16
        %v2717 = vrot.slane %v2715, 4
        %v2718 = vshll.u32 %v2540, 16
        %v2720 = vrot.slane %v2718, 5
        %v2721 = vor.u32 %v2717, %v2720
        %v2722 = vrot.slane %v2721, 4
        %v2724 = vshll.u32 %v2541, 16
        %v2726 = vrot.slane %v2724, 5
        %v2727 = vsel %vm670, %v2722, %v2726
        %v2728 = vshrl.u32 %v2541, 16
        %v2730 = vrot.slane %v2728, 4
        %v2731 = vor.u32 %v2730, %v2726
        %v2732 = vrot.slane %v2731, 4
        %v2734 = vshll.u32 %v2542, 16
        %v2736 = vrot.slane %v2734, 5
        %v2737 = vsel %vm670, %v2732, %v2736
        %v2739 = vshrl.u32 %v2543, 16
        %v2741 = vrot.slane %v2739, 4
        %v2742 = vshll.u32 %v2543, 16
        %v2744 = vrot.slane %v2742, 5
        %v2745 = vor.u32 %v2741, %v2744
        %v2746 = vrot.slane %v2745, 4
        %v2748 = vshll.u32 %v2544, 16
        %v2750 = vrot.slane %v2748, 5
        %v2751 = vsel %vm670, %v2746, %v2750
        %v2752 = vshrl.u32 %v2544, 16
        %v2754 = vrot.slane %v2752, 4
        %v2755 = vor.u32 %v2754, %v2750
        %v2756 = vrot.slane %v2755, 4
        %v2758 = vshll.u32 %v2545, 16
        %v2760 = vrot.slane %v2758, 5
        %v2761 = vsel %vm670, %v2756, %v2760
        %v2763 = vshrl.u32 %v2546, 16
        %v2765 = vrot.slane %v2763, 4
        %v2766 = vshll.u32 %v2546, 16
        %v2768 = vrot.slane %v2766, 5
        %v2769 = vor.u32 %v2765, %v2768
        %v2770 = vrot.slane %v2769, 4
        %v2772 = vshll.u32 %v2547, 16
        %v2774 = vrot.slane %v2772, 5
        %v2775 = vsel %vm670, %v2770, %v2774
        %v2776 = vshrl.u32 %v2547, 16
        %v2778 = vrot.slane %v2776, 4
        %v2779 = vor.u32 %v2778, %v2774
        %v2780 = vrot.slane %v2779, 4
        %v2782 = vshll.u32 %v2548, 16
        %v2784 = vrot.slane %v2782, 5
        %v2785 = vsel %vm670, %v2780, %v2784
        %v2787 = vshrl.u32 %v2549, 16
        %v2789 = vrot.slane %v2787, 4
        %v2790 = vshll.u32 %v2549, 16
        %v2792 = vrot.slane %v2790, 5
        %v2793 = vor.u32 %v2789, %v2792
        %v2794 = vrot.slane %v2793, 4
        %v2796 = vshll.u32 %v2550, 16
        %v2798 = vrot.slane %v2796, 5
        %v2799 = vsel %vm670, %v2794, %v2798
        %v2800 = vshrl.u32 %v2550, 16
        %v2802 = vrot.slane %v2800, 4
        %v2803 = vor.u32 %v2802, %v2798
        %v2804 = vrot.slane %v2803, 4
        %v2806 = vshll.u32 %v2551, 16
        %v2808 = vrot.slane %v2806, 5
        %v2809 = vsel %vm670, %v2804, %v2808
        %v2811 = vshrl.u32 %v2552, 16
        %v2813 = vrot.slane %v2811, 4
        %v2814 = vshll.u32 %v2552, 16
        %v2816 = vrot.slane %v2814, 5
        %v2817 = vor.u32 %v2813, %v2816
        %v2818 = vrot.slane %v2817, 4
        %v2820 = vshll.u32 %v2553, 16
        %v2822 = vrot.slane %v2820, 5
        %v2823 = vsel %vm670, %v2818, %v2822
        %v2824 = vshrl.u32 %v2553, 16
        %v2826 = vrot.slane %v2824, 4
        %v2827 = vor.u32 %v2826, %v2822
        %v2828 = vrot.slane %v2827, 4
        %v2830 = vshll.u32 %v2554, 16
        %v2832 = vrot.slane %v2830, 5
        %v2833 = vsel %vm670, %v2828, %v2832
        %v2835 = vshrl.u32 %v2555, 16
        %v2837 = vrot.slane %v2835, 4
        %v2838 = vshll.u32 %v2555, 16
        %v2840 = vrot.slane %v2838, 5
        %v2841 = vor.u32 %v2837, %v2840
        %v2842 = vrot.slane %v2841, 4
        %v2844 = vshll.u32 %v2556, 16
        %v2846 = vrot.slane %v2844, 5
        %v2847 = vsel %vm670, %v2842, %v2846
        %v2848 = vshrl.u32 %v2556, 16
        %v2850 = vrot.slane %v2848, 4
        %v2851 = vor.u32 %v2850, %v2846
        %v2852 = vrot.slane %v2851, 4
        %v2854 = vshll.u32 %v2557, 16
        %v2856 = vrot.slane %v2854, 5
        %v2857 = vsel %vm670, %v2852, %v2856
        %v2859 = vshrl.u32 %v2558, 16
        %v2861 = vrot.slane %v2859, 4
        %v2862 = vshll.u32 %v2558, 16
        %v2864 = vrot.slane %v2862, 5
        %v2865 = vor.u32 %v2861, %v2864
        %v2866 = vrot.slane %v2865, 4
        %v2868 = vshll.u32 %v2559, 16
        %v2870 = vrot.slane %v2868, 5
        %v2871 = vsel %vm670, %v2866, %v2870
        %v2872 = vshrl.u32 %v2559, 16
        %v2874 = vrot.slane %v2872, 4
        %v2875 = vor.u32 %v2874, %v2870
        %v2876 = vrot.slane %v2875, 4
        %v2878 = vshll.u32 %v2560, 16
        %v2880 = vrot.slane %v2878, 5
        %v2881 = vsel %vm670, %v2876, %v2880
        %v2883 = vshrl.u32 %v2561, 16
        %v2885 = vrot.slane %v2883, 4
        %v2886 = vshll.u32 %v2561, 16
        %v2888 = vrot.slane %v2886, 5
        %v2889 = vor.u32 %v2885, %v2888
        %v2890 = vrot.slane %v2889, 4
        %v2892 = vshll.u32 %v2562, 16
        %v2894 = vrot.slane %v2892, 5
        %v2895 = vsel %vm670, %v2890, %v2894
        %v2896 = vshrl.u32 %v2562, 16
        %v2898 = vrot.slane %v2896, 4
        %v2899 = vor.u32 %v2898, %v2894
        %v2900 = vrot.slane %v2899, 4
        %v2902 = vshll.u32 %v2563, 16
        %v2904 = vrot.slane %v2902, 5
        %v2905 = vsel %vm670, %v2900, %v2904
        %v2907 = vshrl.u32 %v2564, 16
        %v2909 = vrot.slane %v2907, 4
        %v2910 = vshll.u32 %v2564, 16
        %v2912 = vrot.slane %v2910, 5
        %v2913 = vor.u32 %v2909, %v2912
        %v2914 = vrot.slane %v2913, 4
        %v2916 = vshll.u32 %v2565, 16
        %v2918 = vrot.slane %v2916, 5
        %v2919 = vsel %vm670, %v2914, %v2918
        %v2920 = vshrl.u32 %v2565, 16
        %v2922 = vrot.slane %v2920, 4
        %v2923 = vor.u32 %v2922, %v2918
        %v2924 = vrot.slane %v2923, 4
        %v2926 = vshll.u32 %v2566, 16
        %v2928 = vrot.slane %v2926, 5
        %v2929 = vsel %vm670, %v2924, %v2928
        %v2931 = vshrl.u32 %v2567, 16
        %v2933 = vrot.slane %v2931, 4
        %v2934 = vshll.u32 %v2567, 16
        %v2936 = vrot.slane %v2934, 5
        %v2937 = vor.u32 %v2933, %v2936
        %v2938 = vrot.slane %v2937, 4
        %v2940 = vshll.u32 %v2568, 16
        %v2942 = vrot.slane %v2940, 5
        %v2943 = vsel %vm670, %v2938, %v2942
        %v2944 = vshrl.u32 %v2568, 16
        %v2946 = vrot.slane %v2944, 4
        %v2947 = vor.u32 %v2946, %v2942
        %v2948 = vrot.slane %v2947, 4
        %v2950 = vshll.u32 %v2569, 16
        %v2952 = vrot.slane %v2950, 5
        %v2953 = vsel %vm670, %v2948, %v2952
        %s2954 = scalar_lea.vmem [#allocation7], 192
        %v2955 = vld [vmem:[%s2954] sm:$0xf]
        %v2956 = vld [vmem:[%s2954 + $0x4] sm:$0xf]
        %v2957 = vld [vmem:[%s2954 + $0x8] sm:$0xf]
        %v2958 = vld [vmem:[%s2954 + $0xc] sm:$0xf]
        %v2959 = vld [vmem:[%s2954 + $0x10] sm:$0xf]
        %v2960 = vld [vmem:[%s2954 + $0x14] sm:$0xf]
        %v2961 = vld [vmem:[%s2954 + $0x18] sm:$0xf]
        %v2962 = vld [vmem:[%s2954 + $0x1c] sm:$0xf]
        %v2963 = vld [vmem:[%s2954 + $0x20] sm:$0xf]
        %v2964 = vld [vmem:[%s2954 + $0x24] sm:$0xf]
        %v2965 = vld [vmem:[%s2954 + $0x28] sm:$0xf]
        %v2966 = vld [vmem:[%s2954 + $0x2c] sm:$0xf]
        %v2967 = vld [vmem:[%s2954 + $0x30] sm:$0xf]
        %v2968 = vld [vmem:[%s2954 + $0x34] sm:$0xf]
        %v2969 = vld [vmem:[%s2954 + $0x38] sm:$0xf]
        %v2970 = vld [vmem:[%s2954 + $0x3c] sm:$0xf]
        %v2971 = vunpack.c.l.b16 %v2583
        %v2972 = vunpack.c.l.b16 %v2593
        %v2973 = vunpack.c.l.b16 %v2607
        %v2974 = vunpack.c.l.b16 %v2617
        %v2975 = vunpack.c.l.b16 %v2631
        %v2976 = vunpack.c.l.b16 %v2641
        %v2977 = vunpack.c.l.b16 %v2655
        %v2978 = vunpack.c.l.b16 %v2665
        %v2979 = vunpack.c.l.b16 %v2679
        %v2980 = vunpack.c.l.b16 %v2689
        %v2981 = vunpack.c.l.b16 %v2703
        %v2982 = vunpack.c.l.b16 %v2713
        %v2983 = vunpack.c.l.b16 %v2727
        %v2984 = vunpack.c.l.b16 %v2737
        %v2985 = vunpack.c.l.b16 %v2751
        %v2986 = vunpack.c.l.b16 %v2761
        %v2987 = vunpack.c.l.b16 %v2775
        %v2988 = vunpack.c.l.b16 %v2785
        %v2989 = vunpack.c.l.b16 %v2799
        %v2990 = vunpack.c.l.b16 %v2809
        %v2991 = vunpack.c.l.b16 %v2823
        %v2992 = vunpack.c.l.b16 %v2833
        %v2993 = vunpack.c.l.b16 %v2847
        %v2994 = vunpack.c.l.b16 %v2857
        %v2995 = vunpack.c.l.b16 %v2871
        %v2996 = vunpack.c.l.b16 %v2881
        %v2997 = vunpack.c.l.b16 %v2895
        %v2998 = vunpack.c.l.b16 %v2905
        %v2999 = vunpack.c.l.b16 %v2919
        %v3000 = vunpack.c.l.b16 %v2929
        %v3001 = vunpack.c.l.b16 %v2943
        %v3002 = vunpack.c.l.b16 %v2953
        %v3003 = vpack.c.b16 %v2972, %v2971
        %v3004 = vpack.c.b16 %v2974, %v2973
        %v3005 = vpack.c.b16 %v2976, %v2975
        %v3006 = vpack.c.b16 %v2978, %v2977
        %v3007 = vpack.c.b16 %v2980, %v2979
        %v3008 = vpack.c.b16 %v2982, %v2981
        %v3009 = vpack.c.b16 %v2984, %v2983
        %v3010 = vpack.c.b16 %v2986, %v2985
        %v3011 = vpack.c.b16 %v2988, %v2987
        %v3012 = vpack.c.b16 %v2990, %v2989
        %v3013 = vpack.c.b16 %v2992, %v2991
        %v3014 = vpack.c.b16 %v2994, %v2993
        %v3015 = vpack.c.b16 %v2996, %v2995
        %v3016 = vpack.c.b16 %v2998, %v2997
        %v3017 = vpack.c.b16 %v3000, %v2999
        %v3018 = vpack.c.b16 %v3002, %v3001
        %v3051 = vunpack.c.l.b16 %v2955
        %v3052 = vunpack.c.l.b16 %v2956
        %v3053 = vunpack.c.l.b16 %v2957
        %v3054 = vunpack.c.l.b16 %v2958
        %v3055 = vunpack.c.l.b16 %v2959
        %v3056 = vunpack.c.l.b16 %v2960
        %v3057 = vunpack.c.l.b16 %v2961
        %v3058 = vunpack.c.l.b16 %v2962
        %v3059 = vunpack.c.l.b16 %v2963
        %v3060 = vunpack.c.l.b16 %v2964
        %v3061 = vunpack.c.l.b16 %v2965
        %v3062 = vunpack.c.l.b16 %v2966
        %v3063 = vunpack.c.l.b16 %v2967
        %v3064 = vunpack.c.l.b16 %v2968
        %v3065 = vunpack.c.l.b16 %v2969
        %v3066 = vunpack.c.l.b16 %v2970
        %v3067 = vpack.c.b16 %v3052, %v3051
        %v3068 = vpack.c.b16 %v3054, %v3053
        %v3069 = vpack.c.b16 %v3056, %v3055
        %v3070 = vpack.c.b16 %v3058, %v3057
        %v3071 = vpack.c.b16 %v3060, %v3059
        %v3072 = vpack.c.b16 %v3062, %v3061
        %v3073 = vpack.c.b16 %v3064, %v3063
        %v3074 = vpack.c.b16 %v3066, %v3065
        %3083 = vmatprep.subr.bf16.mxu0 0
        %3084 = vmatpush1.bf16.msra.mxu0 %v3067
        %3085 = vmatprep.subr.bf16.mxu0 0
        %3086 = vmatpush1.bf16.msra.mxu0 %v3068
        %3087 = vmatprep.subr.bf16.mxu0 0
        %3088 = vmatpush1.bf16.msra.mxu0 %v3069
        %3089 = vmatprep.subr.bf16.mxu0 0
        %3090 = vmatpush1.bf16.msra.mxu0 %v3070
        %3091 = vmatprep.subr.bf16.mxu0 0
        %3092 = vmatpush1.bf16.msra.mxu0 %v3071
        %3093 = vmatprep.subr.bf16.mxu0 0
        %3094 = vmatpush1.bf16.msra.mxu0 %v3072
        %3095 = vmatprep.subr.bf16.mxu0 0
        %3096 = vmatpush1.bf16.msra.mxu0 %v3073
        %3097 = vmatprep.subr.bf16.mxu0 0
        %3098 = vmatpush1.bf16.msra.mxu0 %v3074
        %3099 = vmatprep.subr.bf16.mxu0 0
        %3100 = vmatpush1.bf16.msra.mxu0 0
        %3101 = vmatprep.subr.bf16.mxu0 0
        %3102 = vmatpush1.bf16.msra.mxu0 0
        %3103 = vmatprep.subr.bf16.mxu0 0
        %3104 = vmatpush1.bf16.msra.mxu0 0
        %3105 = vmatprep.subr.bf16.mxu0 0
        %3106 = vmatpush1.bf16.msra.mxu0 0
        %3107 = vmatprep.subr.bf16.mxu0 0
        %3108 = vmatpush1.bf16.msra.mxu0 0
        %3109 = vmatprep.subr.bf16.mxu0 0
        %3110 = vmatpush1.bf16.msra.mxu0 0
        %3111 = vmatprep.subr.bf16.mxu0 0
        %3112 = vmatpush1.bf16.msra.mxu0 0
        %3113 = vmatprep.subr.bf16.mxu0 0
        %3114 = vmatpush1.bf16.msra.mxu0 0
        %3115 = vmatprep.mubr.bf16.mxu0 0
        %3116 = vmatmul.mubr.bf16.gmra.mrb[0].mxu0 %v3003
        %v3117 = vpop.f32.mrb[0].mxu0
        %v3118 = vadd.f32 0.0, %v3117
        %v3119 = vpop.f32.mrb[0].mxu0
        %v3120 = vpop.f32.mrb[0].mxu0
        %v3121 = vadd.f32 0.0, %v3120
        %v3122 = vpop.f32.mrb[0].mxu0
        %3123 = vmatprep.mubr.bf16.mxu0 0
        %3124 = vmatmul.mubr.bf16.gmra.mrb[0].mxu0 %v3004
        %v3125 = vpop.f32.mrb[0].mxu0
        %v3126 = vadd.f32 0.0, %v3125
        %v3127 = vpop.f32.mrb[0].mxu0
        %v3128 = vpop.f32.mrb[0].mxu0
        %v3129 = vadd.f32 0.0, %v3128
        %v3130 = vpop.f32.mrb[0].mxu0
        %3131 = vmatprep.mubr.bf16.mxu0 0
        %3132 = vmatmul.mubr.bf16.gmra.mrb[0].mxu0 %v3005
        %v3133 = vpop.f32.mrb[0].mxu0
        %v3134 = vadd.f32 0.0, %v3133
        %v3135 = vpop.f32.mrb[0].mxu0
        %v3136 = vpop.f32.mrb[0].mxu0
        %v3137 = vadd.f32 0.0, %v3136
        %v3138 = vpop.f32.mrb[0].mxu0
        %3139 = vmatprep.mubr.bf16.mxu0 0
        %3140 = vmatmul.mubr.bf16.gmra.mrb[0].mxu0 %v3006
        %v3141 = vpop.f32.mrb[0].mxu0
        %v3142 = vadd.f32 0.0, %v3141
        %v3143 = vpop.f32.mrb[0].mxu0
        %v3144 = vpop.f32.mrb[0].mxu0
        %v3145 = vadd.f32 0.0, %v3144
        %v3146 = vpop.f32.mrb[0].mxu0
        %3147 = vmatprep.mubr.bf16.mxu0 0
        %3148 = vmatmul.mubr.bf16.gmra.mrb[0].mxu0 %v3007
        %v3149 = vpop.f32.mrb[0].mxu0
        %v3150 = vadd.f32 0.0, %v3149
        %v3151 = vpop.f32.mrb[0].mxu0
        %v3152 = vpop.f32.mrb[0].mxu0
        %v3153 = vadd.f32 0.0, %v3152
        %v3154 = vpop.f32.mrb[0].mxu0
        %3155 = vmatprep.mubr.bf16.mxu0 0
        %3156 = vmatmul.mubr.bf16.gmra.mrb[0].mxu0 %v3008
        %v3157 = vpop.f32.mrb[0].mxu0
        %v3158 = vadd.f32 0.0, %v3157
        %v3159 = vpop.f32.mrb[0].mxu0
        %v3160 = vpop.f32.mrb[0].mxu0
        %v3161 = vadd.f32 0.0, %v3160
        %v3162 = vpop.f32.mrb[0].mxu0
        %3163 = vmatprep.mubr.bf16.mxu0 0
        %3164 = vmatmul.mubr.bf16.gmra.mrb[0].mxu0 %v3009
        %v3165 = vpop.f32.mrb[0].mxu0
        %v3166 = vadd.f32 0.0, %v3165
        %v3167 = vpop.f32.mrb[0].mxu0
        %v3168 = vpop.f32.mrb[0].mxu0
        %v3169 = vadd.f32 0.0, %v3168
        %v3170 = vpop.f32.mrb[0].mxu0
        %3171 = vmatprep.mubr.bf16.mxu0 0
        %3172 = vmatmul.mubr.bf16.gmra.mrb[0].mxu0 %v3010
        %v3173 = vpop.f32.mrb[0].mxu0
        %v3174 = vadd.f32 0.0, %v3173
        %v3175 = vpop.f32.mrb[0].mxu0
        %v3176 = vpop.f32.mrb[0].mxu0
        %v3177 = vadd.f32 0.0, %v3176
        %v3178 = vpop.f32.mrb[0].mxu0
        %3179 = vmatprep.mubr.bf16.mxu0 0
        %3180 = vmatmul.mubr.bf16.gmra.mrb[0].mxu0 %v3011
        %v3181 = vpop.f32.mrb[0].mxu0
        %v3182 = vadd.f32 0.0, %v3181
        %v3183 = vpop.f32.mrb[0].mxu0
        %v3184 = vpop.f32.mrb[0].mxu0
        %v3185 = vadd.f32 0.0, %v3184
        %v3186 = vpop.f32.mrb[0].mxu0
        %3187 = vmatprep.mubr.bf16.mxu0 0
        %3188 = vmatmul.mubr.bf16.gmra.mrb[0].mxu0 %v3012
        %v3189 = vpop.f32.mrb[0].mxu0
        %v3190 = vadd.f32 0.0, %v3189
        %v3191 = vpop.f32.mrb[0].mxu0
        %v3192 = vpop.f32.mrb[0].mxu0
        %v3193 = vadd.f32 0.0, %v3192
        %v3194 = vpop.f32.mrb[0].mxu0
        %3195 = vmatprep.mubr.bf16.mxu0 0
        %3196 = vmatmul.mubr.bf16.gmra.mrb[0].mxu0 %v3013
        %v3197 = vpop.f32.mrb[0].mxu0
        %v3198 = vadd.f32 0.0, %v3197
        %v3199 = vpop.f32.mrb[0].mxu0
        %v3200 = vpop.f32.mrb[0].mxu0
        %v3201 = vadd.f32 0.0, %v3200
        %v3202 = vpop.f32.mrb[0].mxu0
        %3203 = vmatprep.mubr.bf16.mxu0 0
        %3204 = vmatmul.mubr.bf16.gmra.mrb[0].mxu0 %v3014
        %v3205 = vpop.f32.mrb[0].mxu0
        %v3206 = vadd.f32 0.0, %v3205
        %v3207 = vpop.f32.mrb[0].mxu0
        %v3208 = vpop.f32.mrb[0].mxu0
        %v3209 = vadd.f32 0.0, %v3208
        %v3210 = vpop.f32.mrb[0].mxu0
        %3211 = vmatprep.mubr.bf16.mxu0 0
        %3212 = vmatmul.mubr.bf16.gmra.mrb[0].mxu0 %v3015
        %v3213 = vpop.f32.mrb[0].mxu0
        %v3214 = vadd.f32 0.0, %v3213
        %v3215 = vpop.f32.mrb[0].mxu0
        %v3216 = vpop.f32.mrb[0].mxu0
        %v3217 = vadd.f32 0.0, %v3216
        %v3218 = vpop.f32.mrb[0].mxu0
        %3219 = vmatprep.mubr.bf16.mxu0 0
        %3220 = vmatmul.mubr.bf16.gmra.mrb[0].mxu0 %v3016
        %v3221 = vpop.f32.mrb[0].mxu0
        %v3222 = vadd.f32 0.0, %v3221
        %v3223 = vpop.f32.mrb[0].mxu0
        %v3224 = vpop.f32.mrb[0].mxu0
        %v3225 = vadd.f32 0.0, %v3224
        %v3226 = vpop.f32.mrb[0].mxu0
        %3227 = vmatprep.mubr.bf16.mxu0 0
        %3228 = vmatmul.mubr.bf16.gmra.mrb[0].mxu0 %v3017
        %v3229 = vpop.f32.mrb[0].mxu0
        %v3230 = vadd.f32 0.0, %v3229
        %v3231 = vpop.f32.mrb[0].mxu0
        %v3232 = vpop.f32.mrb[0].mxu0
        %v3233 = vadd.f32 0.0, %v3232
        %v3234 = vpop.f32.mrb[0].mxu0
        %3235 = vmatprep.mubr.bf16.mxu0 0
        %3236 = vmatmul.mubr.bf16.gmra.mrb[0].mxu0 %v3018
        %v3237 = vpop.f32.mrb[0].mxu0
        %v3238 = vadd.f32 0.0, %v3237
        %v3239 = vpop.f32.mrb[0].mxu0
        %v3240 = vpop.f32.mrb[0].mxu0
        %v3241 = vadd.f32 0.0, %v3240
        %v3242 = vpop.f32.mrb[0].mxu0
        %3243 = vdwg.mxu0
        %v3244 = vadd.f32 %v2490, %v3118
        %v3245 = vadd.f32 %v2491, %v3121
        %v3246 = vadd.f32 %v2492, %v3126
        %v3247 = vadd.f32 %v2493, %v3129
        %v3248 = vadd.f32 %v2494, %v3134
        %v3249 = vadd.f32 %v2495, %v3137
        %v3250 = vadd.f32 %v2496, %v3142
        %v3251 = vadd.f32 %v2497, %v3145
        %v3252 = vadd.f32 %v2498, %v3150
        %v3253 = vadd.f32 %v2499, %v3153
        %v3254 = vadd.f32 %v2500, %v3158
        %v3255 = vadd.f32 %v2501, %v3161
        %v3256 = vadd.f32 %v2502, %v3166
        %v3257 = vadd.f32 %v2503, %v3169
        %v3258 = vadd.f32 %v2504, %v3174
        %v3259 = vadd.f32 %v2505, %v3177
        %v3260 = vadd.f32 %v2506, %v3182
        %v3261 = vadd.f32 %v2507, %v3185
        %v3262 = vadd.f32 %v2508, %v3190
        %v3263 = vadd.f32 %v2509, %v3193
        %v3264 = vadd.f32 %v2510, %v3198
        %v3265 = vadd.f32 %v2511, %v3201
        %v3266 = vadd.f32 %v2512, %v3206
        %v3267 = vadd.f32 %v2513, %v3209
        %v3268 = vadd.f32 %v2514, %v3214
        %v3269 = vadd.f32 %v2515, %v3217
        %v3270 = vadd.f32 %v2516, %v3222
        %v3271 = vadd.f32 %v2517, %v3225
        %v3272 = vadd.f32 %v2518, %v3230
        %v3273 = vadd.f32 %v2519, %v3233
        %v3274 = vadd.f32 %v2520, %v3238
        %v3275 = vadd.f32 %v2521, %v3241
        %v3276 = vld [vmem:[%s312] sm:$0xe]
        %v3277 = vld [vmem:[%s312 + $0xc] sm:$0xe]
        %v3278 = vld [vmem:[%s312 + $0x18] sm:$0xe]
        %v3279 = vld [vmem:[%s312 + $0x24] sm:$0xe]
        %v3280 = vld [vmem:[%s312 + $0x30] sm:$0xe]
        %v3281 = vld [vmem:[%s312 + $0x3c] sm:$0xe]
        %v3282 = vld [vmem:[%s312 + $0x48] sm:$0xe]
        %v3283 = vld [vmem:[%s312 + $0x54] sm:$0xe]
        %v3284 = vld [vmem:[%s312 + $0x60] sm:$0xe]
        %v3285 = vld [vmem:[%s312 + $0x6c] sm:$0xe]
        %v3286 = vld [vmem:[%s312 + $0x78] sm:$0xe]
        %v3287 = vld [vmem:[%s312 + $0x84] sm:$0xe]
        %v3288 = vld [vmem:[%s312 + $0x90] sm:$0xe]
        %v3289 = vld [vmem:[%s312 + $0x9c] sm:$0xe]
        %v3290 = vld [vmem:[%s312 + $0xa8] sm:$0xe]
        %v3291 = vld [vmem:[%s312 + $0xb4] sm:$0xe]
        %v3340 = vrot.slane %v3276, 5
        %v3341 = vrot.slane %v3340, 4
        %v3342 = vrot.slane %v2523, 5
        %v3343 = vsel %vm1137, %v3341, %v3342
        %v3344 = vrot.slane %v3342, 4
        %v3345 = vrot.slane %v2524, 5
        %v3346 = vsel %vm1137, %v3344, %v3345
        %v3347 = vrot.slane %v3277, 5
        %v3348 = vrot.slane %v3347, 4
        %v3349 = vrot.slane %v2526, 5
        %v3350 = vsel %vm1137, %v3348, %v3349
        %v3351 = vrot.slane %v3349, 4
        %v3352 = vrot.slane %v2527, 5
        %v3353 = vsel %vm1137, %v3351, %v3352
        %v3354 = vrot.slane %v3278, 5
        %v3355 = vrot.slane %v3354, 4
        %v3356 = vrot.slane %v2529, 5
        %v3357 = vsel %vm1137, %v3355, %v3356
        %v3358 = vrot.slane %v3356, 4
        %v3359 = vrot.slane %v2530, 5
        %v3360 = vsel %vm1137, %v3358, %v3359
        %v3361 = vrot.slane %v3279, 5
        %v3362 = vrot.slane %v3361, 4
        %v3363 = vrot.slane %v2532, 5
        %v3364 = vsel %vm1137, %v3362, %v3363
        %v3365 = vrot.slane %v3363, 4
        %v3366 = vrot.slane %v2533, 5
        %v3367 = vsel %vm1137, %v3365, %v3366
        %v3368 = vrot.slane %v3280, 5
        %v3369 = vrot.slane %v3368, 4
        %v3370 = vrot.slane %v2535, 5
        %v3371 = vsel %vm1137, %v3369, %v3370
        %v3372 = vrot.slane %v3370, 4
        %v3373 = vrot.slane %v2536, 5
        %v3374 = vsel %vm1137, %v3372, %v3373
        %v3375 = vrot.slane %v3281, 5
        %v3376 = vrot.slane %v3375, 4
        %v3377 = vrot.slane %v2538, 5
        %v3378 = vsel %vm1137, %v3376, %v3377
        %v3379 = vrot.slane %v3377, 4
        %v3380 = vrot.slane %v2539, 5
        %v3381 = vsel %vm1137, %v3379, %v3380
        %v3382 = vrot.slane %v3282, 5
        %v3383 = vrot.slane %v3382, 4
        %v3384 = vrot.slane %v2541, 5
        %v3385 = vsel %vm1137, %v3383, %v3384
        %v3386 = vrot.slane %v3384, 4
        %v3387 = vrot.slane %v2542, 5
        %v3388 = vsel %vm1137, %v3386, %v3387
        %v3389 = vrot.slane %v3283, 5
        %v3390 = vrot.slane %v3389, 4
        %v3391 = vrot.slane %v2544, 5
        %v3392 = vsel %vm1137, %v3390, %v3391
        %v3393 = vrot.slane %v3391, 4
        %v3394 = vrot.slane %v2545, 5
        %v3395 = vsel %vm1137, %v3393, %v3394
        %v3396 = vrot.slane %v3284, 5
        %v3397 = vrot.slane %v3396, 4
        %v3398 = vrot.slane %v2547, 5
        %v3399 = vsel %vm1137, %v3397, %v3398
        %v3400 = vrot.slane %v3398, 4
        %v3401 = vrot.slane %v2548, 5
        %v3402 = vsel %vm1137, %v3400, %v3401
        %v3403 = vrot.slane %v3285, 5
        %v3404 = vrot.slane %v3403, 4
        %v3405 = vrot.slane %v2550, 5
        %v3406 = vsel %vm1137, %v3404, %v3405
        %v3407 = vrot.slane %v3405, 4
        %v3408 = vrot.slane %v2551, 5
        %v3409 = vsel %vm1137, %v3407, %v3408
        %v3410 = vrot.slane %v3286, 5
        %v3411 = vrot.slane %v3410, 4
        %v3412 = vrot.slane %v2553, 5
        %v3413 = vsel %vm1137, %v3411, %v3412
        %v3414 = vrot.slane %v3412, 4
        %v3415 = vrot.slane %v2554, 5
        %v3416 = vsel %vm1137, %v3414, %v3415
        %v3417 = vrot.slane %v3287, 5
        %v3418 = vrot.slane %v3417, 4
        %v3419 = vrot.slane %v2556, 5
        %v3420 = vsel %vm1137, %v3418, %v3419
        %v3421 = vrot.slane %v3419, 4
        %v3422 = vrot.slane %v2557, 5
        %v3423 = vsel %vm1137, %v3421, %v3422
        %v3424 = vrot.slane %v3288, 5
        %v3425 = vrot.slane %v3424, 4
        %v3426 = vrot.slane %v2559, 5
        %v3427 = vsel %vm1137, %v3425, %v3426
        %v3428 = vrot.slane %v3426, 4
        %v3429 = vrot.slane %v2560, 5
        %v3430 = vsel %vm1137, %v3428, %v3429
        %v3431 = vrot.slane %v3289, 5
        %v3432 = vrot.slane %v3431, 4
        %v3433 = vrot.slane %v2562, 5
        %v3434 = vsel %vm1137, %v3432, %v3433
        %v3435 = vrot.slane %v3433, 4
        %v3436 = vrot.slane %v2563, 5
        %v3437 = vsel %vm1137, %v3435, %v3436
        %v3438 = vrot.slane %v3290, 5
        %v3439 = vrot.slane %v3438, 4
        %v3440 = vrot.slane %v2565, 5
        %v3441 = vsel %vm1137, %v3439, %v3440
        %v3442 = vrot.slane %v3440, 4
        %v3443 = vrot.slane %v2566, 5
        %v3444 = vsel %vm1137, %v3442, %v3443
        %v3445 = vrot.slane %v3291, 5
        %v3446 = vrot.slane %v3445, 4
        %v3447 = vrot.slane %v2568, 5
        %v3448 = vsel %vm1137, %v3446, %v3447
        %v3449 = vrot.slane %v3447, 4
        %v3450 = vrot.slane %v2569, 5
        %v3451 = vsel %vm1137, %v3449, %v3450
        %s3452 = scalar_lea.vmem [#allocation7], 256
        %v3453 = vld [vmem:[%s3452] sm:$0xf]
        %v3454 = vld [vmem:[%s3452 + $0x4] sm:$0xf]
        %v3455 = vld [vmem:[%s3452 + $0x8] sm:$0xf]
        %v3456 = vld [vmem:[%s3452 + $0xc] sm:$0xf]
        %v3457 = vld [vmem:[%s3452 + $0x10] sm:$0xf]
        %v3458 = vld [vmem:[%s3452 + $0x14] sm:$0xf]
        %v3459 = vld [vmem:[%s3452 + $0x18] sm:$0xf]
        %v3460 = vld [vmem:[%s3452 + $0x1c] sm:$0xf]
        %v3461 = vld [vmem:[%s3452 + $0x20] sm:$0xf]
        %v3462 = vld [vmem:[%s3452 + $0x24] sm:$0xf]
        %v3463 = vld [vmem:[%s3452 + $0x28] sm:$0xf]
        %v3464 = vld [vmem:[%s3452 + $0x2c] sm:$0xf]
        %v3465 = vld [vmem:[%s3452 + $0x30] sm:$0xf]
        %v3466 = vld [vmem:[%s3452 + $0x34] sm:$0xf]
        %v3467 = vld [vmem:[%s3452 + $0x38] sm:$0xf]
        %v3468 = vld [vmem:[%s3452 + $0x3c] sm:$0xf]
        %v3469 = vunpack.c.l.b16 %v3343
        %v3470 = vunpack.c.l.b16 %v3346
        %v3471 = vunpack.c.l.b16 %v3350
        %v3472 = vunpack.c.l.b16 %v3353
        %v3473 = vunpack.c.l.b16 %v3357
        %v3474 = vunpack.c.l.b16 %v3360
        %v3475 = vunpack.c.l.b16 %v3364
        %v3476 = vunpack.c.l.b16 %v3367
        %v3477 = vunpack.c.l.b16 %v3371
        %v3478 = vunpack.c.l.b16 %v3374
        %v3479 = vunpack.c.l.b16 %v3378
        %v3480 = vunpack.c.l.b16 %v3381
        %v3481 = vunpack.c.l.b16 %v3385
        %v3482 = vunpack.c.l.b16 %v3388
        %v3483 = vunpack.c.l.b16 %v3392
        %v3484 = vunpack.c.l.b16 %v3395
        %v3485 = vunpack.c.l.b16 %v3399
        %v3486 = vunpack.c.l.b16 %v3402
        %v3487 = vunpack.c.l.b16 %v3406
        %v3488 = vunpack.c.l.b16 %v3409
        %v3489 = vunpack.c.l.b16 %v3413
        %v3490 = vunpack.c.l.b16 %v3416
        %v3491 = vunpack.c.l.b16 %v3420
        %v3492 = vunpack.c.l.b16 %v3423
        %v3493 = vunpack.c.l.b16 %v3427
        %v3494 = vunpack.c.l.b16 %v3430
        %v3495 = vunpack.c.l.b16 %v3434
        %v3496 = vunpack.c.l.b16 %v3437
        %v3497 = vunpack.c.l.b16 %v3441
        %v3498 = vunpack.c.l.b16 %v3444
        %v3499 = vunpack.c.l.b16 %v3448
        %v3500 = vunpack.c.l.b16 %v3451
        %v3501 = vpack.c.b16 %v3470, %v3469
        %v3502 = vpack.c.b16 %v3472, %v3471
        %v3503 = vpack.c.b16 %v3474, %v3473
        %v3504 = vpack.c.b16 %v3476, %v3475
        %v3505 = vpack.c.b16 %v3478, %v3477
        %v3506 = vpack.c.b16 %v3480, %v3479
        %v3507 = vpack.c.b16 %v3482, %v3481
        %v3508 = vpack.c.b16 %v3484, %v3483
        %v3509 = vpack.c.b16 %v3486, %v3485
        %v3510 = vpack.c.b16 %v3488, %v3487
        %v3511 = vpack.c.b16 %v3490, %v3489
        %v3512 = vpack.c.b16 %v3492, %v3491
        %v3513 = vpack.c.b16 %v3494, %v3493
        %v3514 = vpack.c.b16 %v3496, %v3495
        %v3515 = vpack.c.b16 %v3498, %v3497
        %v3516 = vpack.c.b16 %v3500, %v3499
        %v3549 = vunpack.c.l.b16 %v3453
        %v3550 = vunpack.c.l.b16 %v3454
        %v3551 = vunpack.c.l.b16 %v3455
        %v3552 = vunpack.c.l.b16 %v3456
        %v3553 = vunpack.c.l.b16 %v3457
        %v3554 = vunpack.c.l.b16 %v3458
        %v3555 = vunpack.c.l.b16 %v3459
        %v3556 = vunpack.c.l.b16 %v3460
        %v3557 = vunpack.c.l.b16 %v3461
        %v3558 = vunpack.c.l.b16 %v3462
        %v3559 = vunpack.c.l.b16 %v3463
        %v3560 = vunpack.c.l.b16 %v3464
        %v3561 = vunpack.c.l.b16 %v3465
        %v3562 = vunpack.c.l.b16 %v3466
        %v3563 = vunpack.c.l.b16 %v3467
        %v3564 = vunpack.c.l.b16 %v3468
        %v3565 = vpack.c.b16 %v3550, %v3549
        %v3566 = vpack.c.b16 %v3552, %v3551
        %v3567 = vpack.c.b16 %v3554, %v3553
        %v3568 = vpack.c.b16 %v3556, %v3555
        %v3569 = vpack.c.b16 %v3558, %v3557
        %v3570 = vpack.c.b16 %v3560, %v3559
        %v3571 = vpack.c.b16 %v3562, %v3561
        %v3572 = vpack.c.b16 %v3564, %v3563
        %3581 = vmatprep.subr.bf16.mxu0 0
        %3582 = vmatpush1.bf16.msra.mxu0 %v3565
        %3583 = vmatprep.subr.bf16.mxu0 0
        %3584 = vmatpush1.bf16.msra.mxu0 %v3566
        %3585 = vmatprep.subr.bf16.mxu0 0
        %3586 = vmatpush1.bf16.msra.mxu0 %v3567
        %3587 = vmatprep.subr.bf16.mxu0 0
        %3588 = vmatpush1.bf16.msra.mxu0 %v3568
        %3589 = vmatprep.subr.bf16.mxu0 0
        %3590 = vmatpush1.bf16.msra.mxu0 %v3569
        %3591 = vmatprep.subr.bf16.mxu0 0
        %3592 = vmatpush1.bf16.msra.mxu0 %v3570
        %3593 = vmatprep.subr.bf16.mxu0 0
        %3594 = vmatpush1.bf16.msra.mxu0 %v3571
        %3595 = vmatprep.subr.bf16.mxu0 0
        %3596 = vmatpush1.bf16.msra.mxu0 %v3572
        %3597 = vmatprep.subr.bf16.mxu0 0
        %3598 = vmatpush1.bf16.msra.mxu0 0
        %3599 = vmatprep.subr.bf16.mxu0 0
        %3600 = vmatpush1.bf16.msra.mxu0 0
        %3601 = vmatprep.subr.bf16.mxu0 0
        %3602 = vmatpush1.bf16.msra.mxu0 0
        %3603 = vmatprep.subr.bf16.mxu0 0
        %3604 = vmatpush1.bf16.msra.mxu0 0
        %3605 = vmatprep.subr.bf16.mxu0 0
        %3606 = vmatpush1.bf16.msra.mxu0 0
        %3607 = vmatprep.subr.bf16.mxu0 0
        %3608 = vmatpush1.bf16.msra.mxu0 0
        %3609 = vmatprep.subr.bf16.mxu0 0
        %3610 = vmatpush1.bf16.msra.mxu0 0
        %3611 = vmatprep.subr.bf16.mxu0 0
        %3612 = vmatpush1.bf16.msra.mxu0 0
        %3613 = vmatprep.mubr.bf16.mxu0 0
        %3614 = vmatmul.mubr.bf16.gmra.mrb[0].mxu0 %v3501
        %v3615 = vpop.f32.mrb[0].mxu0
        %v3616 = vadd.f32 0.0, %v3615
        %v3617 = vpop.f32.mrb[0].mxu0
        %v3618 = vpop.f32.mrb[0].mxu0
        %v3619 = vadd.f32 0.0, %v3618
        %v3620 = vpop.f32.mrb[0].mxu0
        %3621 = vmatprep.mubr.bf16.mxu0 0
        %3622 = vmatmul.mubr.bf16.gmra.mrb[0].mxu0 %v3502
        %v3623 = vpop.f32.mrb[0].mxu0
        %v3624 = vadd.f32 0.0, %v3623
        %v3625 = vpop.f32.mrb[0].mxu0
        %v3626 = vpop.f32.mrb[0].mxu0
        %v3627 = vadd.f32 0.0, %v3626
        %v3628 = vpop.f32.mrb[0].mxu0
        %3629 = vmatprep.mubr.bf16.mxu0 0
        %3630 = vmatmul.mubr.bf16.gmra.mrb[0].mxu0 %v3503
        %v3631 = vpop.f32.mrb[0].mxu0
        %v3632 = vadd.f32 0.0, %v3631
        %v3633 = vpop.f32.mrb[0].mxu0
        %v3634 = vpop.f32.mrb[0].mxu0
        %v3635 = vadd.f32 0.0, %v3634
        %v3636 = vpop.f32.mrb[0].mxu0
        %3637 = vmatprep.mubr.bf16.mxu0 0
        %3638 = vmatmul.mubr.bf16.gmra.mrb[0].mxu0 %v3504
        %v3639 = vpop.f32.mrb[0].mxu0
        %v3640 = vadd.f32 0.0, %v3639
        %v3641 = vpop.f32.mrb[0].mxu0
        %v3642 = vpop.f32.mrb[0].mxu0
        %v3643 = vadd.f32 0.0, %v3642
        %v3644 = vpop.f32.mrb[0].mxu0
        %3645 = vmatprep.mubr.bf16.mxu0 0
        %3646 = vmatmul.mubr.bf16.gmra.mrb[0].mxu0 %v3505
        %v3647 = vpop.f32.mrb[0].mxu0
        %v3648 = vadd.f32 0.0, %v3647
        %v3649 = vpop.f32.mrb[0].mxu0
        %v3650 = vpop.f32.mrb[0].mxu0
        %v3651 = vadd.f32 0.0, %v3650
        %v3652 = vpop.f32.mrb[0].mxu0
        %3653 = vmatprep.mubr.bf16.mxu0 0
        %3654 = vmatmul.mubr.bf16.gmra.mrb[0].mxu0 %v3506
        %v3655 = vpop.f32.mrb[0].mxu0
        %v3656 = vadd.f32 0.0, %v3655
        %v3657 = vpop.f32.mrb[0].mxu0
        %v3658 = vpop.f32.mrb[0].mxu0
        %v3659 = vadd.f32 0.0, %v3658
        %v3660 = vpop.f32.mrb[0].mxu0
        %3661 = vmatprep.mubr.bf16.mxu0 0
        %3662 = vmatmul.mubr.bf16.gmra.mrb[0].mxu0 %v3507
        %v3663 = vpop.f32.mrb[0].mxu0
        %v3664 = vadd.f32 0.0, %v3663
        %v3665 = vpop.f32.mrb[0].mxu0
        %v3666 = vpop.f32.mrb[0].mxu0
        %v3667 = vadd.f32 0.0, %v3666
        %v3668 = vpop.f32.mrb[0].mxu0
        %3669 = vmatprep.mubr.bf16.mxu0 0
        %3670 = vmatmul.mubr.bf16.gmra.mrb[0].mxu0 %v3508
        %v3671 = vpop.f32.mrb[0].mxu0
        %v3672 = vadd.f32 0.0, %v3671
        %v3673 = vpop.f32.mrb[0].mxu0
        %v3674 = vpop.f32.mrb[0].mxu0
        %v3675 = vadd.f32 0.0, %v3674
        %v3676 = vpop.f32.mrb[0].mxu0
        %3677 = vmatprep.mubr.bf16.mxu0 0
        %3678 = vmatmul.mubr.bf16.gmra.mrb[0].mxu0 %v3509
        %v3679 = vpop.f32.mrb[0].mxu0
        %v3680 = vadd.f32 0.0, %v3679
        %v3681 = vpop.f32.mrb[0].mxu0
        %v3682 = vpop.f32.mrb[0].mxu0
        %v3683 = vadd.f32 0.0, %v3682
        %v3684 = vpop.f32.mrb[0].mxu0
        %3685 = vmatprep.mubr.bf16.mxu0 0
        %3686 = vmatmul.mubr.bf16.gmra.mrb[0].mxu0 %v3510
        %v3687 = vpop.f32.mrb[0].mxu0
        %v3688 = vadd.f32 0.0, %v3687
        %v3689 = vpop.f32.mrb[0].mxu0
        %v3690 = vpop.f32.mrb[0].mxu0
        %v3691 = vadd.f32 0.0, %v3690
        %v3692 = vpop.f32.mrb[0].mxu0
        %3693 = vmatprep.mubr.bf16.mxu0 0
        %3694 = vmatmul.mubr.bf16.gmra.mrb[0].mxu0 %v3511
        %v3695 = vpop.f32.mrb[0].mxu0
        %v3696 = vadd.f32 0.0, %v3695
        %v3697 = vpop.f32.mrb[0].mxu0
        %v3698 = vpop.f32.mrb[0].mxu0
        %v3699 = vadd.f32 0.0, %v3698
        %v3700 = vpop.f32.mrb[0].mxu0
        %3701 = vmatprep.mubr.bf16.mxu0 0
        %3702 = vmatmul.mubr.bf16.gmra.mrb[0].mxu0 %v3512
        %v3703 = vpop.f32.mrb[0].mxu0
        %v3704 = vadd.f32 0.0, %v3703
        %v3705 = vpop.f32.mrb[0].mxu0
        %v3706 = vpop.f32.mrb[0].mxu0
        %v3707 = vadd.f32 0.0, %v3706
        %v3708 = vpop.f32.mrb[0].mxu0
        %3709 = vmatprep.mubr.bf16.mxu0 0
        %3710 = vmatmul.mubr.bf16.gmra.mrb[0].mxu0 %v3513
        %v3711 = vpop.f32.mrb[0].mxu0
        %v3712 = vadd.f32 0.0, %v3711
        %v3713 = vpop.f32.mrb[0].mxu0
        %v3714 = vpop.f32.mrb[0].mxu0
        %v3715 = vadd.f32 0.0, %v3714
        %v3716 = vpop.f32.mrb[0].mxu0
        %3717 = vmatprep.mubr.bf16.mxu0 0
        %3718 = vmatmul.mubr.bf16.gmra.mrb[0].mxu0 %v3514
        %v3719 = vpop.f32.mrb[0].mxu0
        %v3720 = vadd.f32 0.0, %v3719
        %v3721 = vpop.f32.mrb[0].mxu0
        %v3722 = vpop.f32.mrb[0].mxu0
        %v3723 = vadd.f32 0.0, %v3722
        %v3724 = vpop.f32.mrb[0].mxu0
        %3725 = vmatprep.mubr.bf16.mxu0 0
        %3726 = vmatmul.mubr.bf16.gmra.mrb[0].mxu0 %v3515
        %v3727 = vpop.f32.mrb[0].mxu0
        %v3728 = vadd.f32 0.0, %v3727
        %v3729 = vpop.f32.mrb[0].mxu0
        %v3730 = vpop.f32.mrb[0].mxu0
        %v3731 = vadd.f32 0.0, %v3730
        %v3732 = vpop.f32.mrb[0].mxu0
        %3733 = vmatprep.mubr.bf16.mxu0 0
        %3734 = vmatmul.mubr.bf16.gmra.mrb[0].mxu0 %v3516
        %v3735 = vpop.f32.mrb[0].mxu0
        %v3736 = vadd.f32 0.0, %v3735
        %v3737 = vpop.f32.mrb[0].mxu0
        %v3738 = vpop.f32.mrb[0].mxu0
        %v3739 = vadd.f32 0.0, %v3738
        %v3740 = vpop.f32.mrb[0].mxu0
        %3741 = vdwg.mxu0
        %v3742 = vadd.f32 %v3244, %v3616
        %v3743 = vadd.f32 %v3245, %v3619
        %v3744 = vadd.f32 %v3246, %v3624
        %v3745 = vadd.f32 %v3247, %v3627
        %v3746 = vadd.f32 %v3248, %v3632
        %v3747 = vadd.f32 %v3249, %v3635
        %v3748 = vadd.f32 %v3250, %v3640
        %v3749 = vadd.f32 %v3251, %v3643
        %v3750 = vadd.f32 %v3252, %v3648
        %v3751 = vadd.f32 %v3253, %v3651
        %v3752 = vadd.f32 %v3254, %v3656
        %v3753 = vadd.f32 %v3255, %v3659
        %v3754 = vadd.f32 %v3256, %v3664
        %v3755 = vadd.f32 %v3257, %v3667
        %v3756 = vadd.f32 %v3258, %v3672
        %v3757 = vadd.f32 %v3259, %v3675
        %v3758 = vadd.f32 %v3260, %v3680
        %v3759 = vadd.f32 %v3261, %v3683
        %v3760 = vadd.f32 %v3262, %v3688
        %v3761 = vadd.f32 %v3263, %v3691
        %v3762 = vadd.f32 %v3264, %v3696
        %v3763 = vadd.f32 %v3265, %v3699
        %v3764 = vadd.f32 %v3266, %v3704
        %v3765 = vadd.f32 %v3267, %v3707
        %v3766 = vadd.f32 %v3268, %v3712
        %v3767 = vadd.f32 %v3269, %v3715
        %v3768 = vadd.f32 %v3270, %v3720
        %v3769 = vadd.f32 %v3271, %v3723
        %v3770 = vadd.f32 %v3272, %v3728
        %v3771 = vadd.f32 %v3273, %v3731
        %v3772 = vadd.f32 %v3274, %v3736
        %v3773 = vadd.f32 %v3275, %v3739
        %v3774 = vld [vmem:[%s312 + $0x8] sm:$0x3]
        %v3775 = vld [vmem:[%s312 + $0x14] sm:$0x3]
        %v3776 = vld [vmem:[%s312 + $0x20] sm:$0x3]
        %v3777 = vld [vmem:[%s312 + $0x2c] sm:$0x3]
        %v3778 = vld [vmem:[%s312 + $0x38] sm:$0x3]
        %v3779 = vld [vmem:[%s312 + $0x44] sm:$0x3]
        %v3780 = vld [vmem:[%s312 + $0x50] sm:$0x3]
        %v3781 = vld [vmem:[%s312 + $0x5c] sm:$0x3]
        %v3782 = vld [vmem:[%s312 + $0x68] sm:$0x3]
        %v3783 = vld [vmem:[%s312 + $0x74] sm:$0x3]
        %v3784 = vld [vmem:[%s312 + $0x80] sm:$0x3]
        %v3785 = vld [vmem:[%s312 + $0x8c] sm:$0x3]
        %v3786 = vld [vmem:[%s312 + $0x98] sm:$0x3]
        %v3787 = vld [vmem:[%s312 + $0xa4] sm:$0x3]
        %v3788 = vld [vmem:[%s312 + $0xb0] sm:$0x3]
        %v3789 = vld [vmem:[%s312 + $0xbc] sm:$0x3]
        %v3791 = vshrl.u32 %v3276, 16
        %v3793 = vrot.slane %v3791, 5
        %v3794 = vshll.u32 %v3276, 16
        %v3796 = vrot.slane %v3794, 6
        %v3797 = vor.u32 %v3793, %v3796
        %v3798 = vrot.slane %v3797, 4
        %v3799 = vrot.slane %v2584, 5
        %v3800 = vrot.slane %v2580, 6
        %v3801 = vor.u32 %v3799, %v3800
        %v3802 = vsel %vm1831, %v3798, %v3801
        %v3803 = vrot.slane %v3801, 4
        %v3805 = vshrl.u32 %v3774, 16
        %v3807 = vrot.slane %v3805, 5
        %v3808 = vshll.u32 %v3774, 16
        %v3810 = vrot.slane %v3808, 6
        %v3811 = vor.u32 %v3807, %v3810
        %v3812 = vsel %vm1831, %v3803, %v3811
        %v3814 = vshrl.u32 %v3277, 16
        %v3816 = vrot.slane %v3814, 5
        %v3817 = vshll.u32 %v3277, 16
        %v3819 = vrot.slane %v3817, 6
        %v3820 = vor.u32 %v3816, %v3819
        %v3821 = vrot.slane %v3820, 4
        %v3822 = vrot.slane %v2608, 5
        %v3823 = vrot.slane %v2604, 6
        %v3824 = vor.u32 %v3822, %v3823
        %v3825 = vsel %vm1831, %v3821, %v3824
        %v3826 = vrot.slane %v3824, 4
        %v3828 = vshrl.u32 %v3775, 16
        %v3830 = vrot.slane %v3828, 5
        %v3831 = vshll.u32 %v3775, 16
        %v3833 = vrot.slane %v3831, 6
        %v3834 = vor.u32 %v3830, %v3833
        %v3835 = vsel %vm1831, %v3826, %v3834
        %v3837 = vshrl.u32 %v3278, 16
        %v3839 = vrot.slane %v3837, 5
        %v3840 = vshll.u32 %v3278, 16
        %v3842 = vrot.slane %v3840, 6
        %v3843 = vor.u32 %v3839, %v3842
        %v3844 = vrot.slane %v3843, 4
        %v3845 = vrot.slane %v2632, 5
        %v3846 = vrot.slane %v2628, 6
        %v3847 = vor.u32 %v3845, %v3846
        %v3848 = vsel %vm1831, %v3844, %v3847
        %v3849 = vrot.slane %v3847, 4
        %v3851 = vshrl.u32 %v3776, 16
        %v3853 = vrot.slane %v3851, 5
        %v3854 = vshll.u32 %v3776, 16
        %v3856 = vrot.slane %v3854, 6
        %v3857 = vor.u32 %v3853, %v3856
        %v3858 = vsel %vm1831, %v3849, %v3857
        %v3860 = vshrl.u32 %v3279, 16
        %v3862 = vrot.slane %v3860, 5
        %v3863 = vshll.u32 %v3279, 16
        %v3865 = vrot.slane %v3863, 6
        %v3866 = vor.u32 %v3862, %v3865
        %v3867 = vrot.slane %v3866, 4
        %v3868 = vrot.slane %v2656, 5
        %v3869 = vrot.slane %v2652, 6
        %v3870 = vor.u32 %v3868, %v3869
        %v3871 = vsel %vm1831, %v3867, %v3870
        %v3872 = vrot.slane %v3870, 4
        %v3874 = vshrl.u32 %v3777, 16
        %v3876 = vrot.slane %v3874, 5
        %v3877 = vshll.u32 %v3777, 16
        %v3879 = vrot.slane %v3877, 6
        %v3880 = vor.u32 %v3876, %v3879
        %v3881 = vsel %vm1831, %v3872, %v3880
        %v3883 = vshrl.u32 %v3280, 16
        %v3885 = vrot.slane %v3883, 5
        %v3886 = vshll.u32 %v3280, 16
        %v3888 = vrot.slane %v3886, 6
        %v3889 = vor.u32 %v3885, %v3888
        %v3890 = vrot.slane %v3889, 4
        %v3891 = vrot.slane %v2680, 5
        %v3892 = vrot.slane %v2676, 6
        %v3893 = vor.u32 %v3891, %v3892
        %v3894 = vsel %vm1831, %v3890, %v3893
        %v3895 = vrot.slane %v3893, 4
        %v3897 = vshrl.u32 %v3778, 16
        %v3899 = vrot.slane %v3897, 5
        %v3900 = vshll.u32 %v3778, 16
        %v3902 = vrot.slane %v3900, 6
        %v3903 = vor.u32 %v3899, %v3902
        %v3904 = vsel %vm1831, %v3895, %v3903
        %v3906 = vshrl.u32 %v3281, 16
        %v3908 = vrot.slane %v3906, 5
        %v3909 = vshll.u32 %v3281, 16
        %v3911 = vrot.slane %v3909, 6
        %v3912 = vor.u32 %v3908, %v3911
        %v3913 = vrot.slane %v3912, 4
        %v3914 = vrot.slane %v2704, 5
        %v3915 = vrot.slane %v2700, 6
        %v3916 = vor.u32 %v3914, %v3915
        %v3917 = vsel %vm1831, %v3913, %v3916
        %v3918 = vrot.slane %v3916, 4
        %v3920 = vshrl.u32 %v3779, 16
        %v3922 = vrot.slane %v3920, 5
        %v3923 = vshll.u32 %v3779, 16
        %v3925 = vrot.slane %v3923, 6
        %v3926 = vor.u32 %v3922, %v3925
        %v3927 = vsel %vm1831, %v3918, %v3926
        %v3929 = vshrl.u32 %v3282, 16
        %v3931 = vrot.slane %v3929, 5
        %v3932 = vshll.u32 %v3282, 16
        %v3934 = vrot.slane %v3932, 6
        %v3935 = vor.u32 %v3931, %v3934
        %v3936 = vrot.slane %v3935, 4
        %v3937 = vrot.slane %v2728, 5
        %v3938 = vrot.slane %v2724, 6
        %v3939 = vor.u32 %v3937, %v3938
        %v3940 = vsel %vm1831, %v3936, %v3939
        %v3941 = vrot.slane %v3939, 4
        %v3943 = vshrl.u32 %v3780, 16
        %v3945 = vrot.slane %v3943, 5
        %v3946 = vshll.u32 %v3780, 16
        %v3948 = vrot.slane %v3946, 6
        %v3949 = vor.u32 %v3945, %v3948
        %v3950 = vsel %vm1831, %v3941, %v3949
        %v3952 = vshrl.u32 %v3283, 16
        %v3954 = vrot.slane %v3952, 5
        %v3955 = vshll.u32 %v3283, 16
        %v3957 = vrot.slane %v3955, 6
        %v3958 = vor.u32 %v3954, %v3957
        %v3959 = vrot.slane %v3958, 4
        %v3960 = vrot.slane %v2752, 5
        %v3961 = vrot.slane %v2748, 6
        %v3962 = vor.u32 %v3960, %v3961
        %v3963 = vsel %vm1831, %v3959, %v3962
        %v3964 = vrot.slane %v3962, 4
        %v3966 = vshrl.u32 %v3781, 16
        %v3968 = vrot.slane %v3966, 5
        %v3969 = vshll.u32 %v3781, 16
        %v3971 = vrot.slane %v3969, 6
        %v3972 = vor.u32 %v3968, %v3971
        %v3973 = vsel %vm1831, %v3964, %v3972
        %v3975 = vshrl.u32 %v3284, 16
        %v3977 = vrot.slane %v3975, 5
        %v3978 = vshll.u32 %v3284, 16
        %v3980 = vrot.slane %v3978, 6
        %v3981 = vor.u32 %v3977, %v3980
        %v3982 = vrot.slane %v3981, 4
        %v3983 = vrot.slane %v2776, 5
        %v3984 = vrot.slane %v2772, 6
        %v3985 = vor.u32 %v3983, %v3984
        %v3986 = vsel %vm1831, %v3982, %v3985
        %v3987 = vrot.slane %v3985, 4
        %v3989 = vshrl.u32 %v3782, 16
        %v3991 = vrot.slane %v3989, 5
        %v3992 = vshll.u32 %v3782, 16
        %v3994 = vrot.slane %v3992, 6
        %v3995 = vor.u32 %v3991, %v3994
        %v3996 = vsel %vm1831, %v3987, %v3995
        %v3998 = vshrl.u32 %v3285, 16
        %v4000 = vrot.slane %v3998, 5
        %v4001 = vshll.u32 %v3285, 16
        %v4003 = vrot.slane %v4001, 6
        %v4004 = vor.u32 %v4000, %v4003
        %v4005 = vrot.slane %v4004, 4
        %v4006 = vrot.slane %v2800, 5
        %v4007 = vrot.slane %v2796, 6
        %v4008 = vor.u32 %v4006, %v4007
        %v4009 = vsel %vm1831, %v4005, %v4008
        %v4010 = vrot.slane %v4008, 4
        %v4012 = vshrl.u32 %v3783, 16
        %v4014 = vrot.slane %v4012, 5
        %v4015 = vshll.u32 %v3783, 16
        %v4017 = vrot.slane %v4015, 6
        %v4018 = vor.u32 %v4014, %v4017
        %v4019 = vsel %vm1831, %v4010, %v4018
        %v4021 = vshrl.u32 %v3286, 16
        %v4023 = vrot.slane %v4021, 5
        %v4024 = vshll.u32 %v3286, 16
        %v4026 = vrot.slane %v4024, 6
        %v4027 = vor.u32 %v4023, %v4026
        %v4028 = vrot.slane %v4027, 4
        %v4029 = vrot.slane %v2824, 5
        %v4030 = vrot.slane %v2820, 6
        %v4031 = vor.u32 %v4029, %v4030
        %v4032 = vsel %vm1831, %v4028, %v4031
        %v4033 = vrot.slane %v4031, 4
        %v4035 = vshrl.u32 %v3784, 16
        %v4037 = vrot.slane %v4035, 5
        %v4038 = vshll.u32 %v3784, 16
        %v4040 = vrot.slane %v4038, 6
        %v4041 = vor.u32 %v4037, %v4040
        %v4042 = vsel %vm1831, %v4033, %v4041
        %v4044 = vshrl.u32 %v3287, 16
        %v4046 = vrot.slane %v4044, 5
        %v4047 = vshll.u32 %v3287, 16
        %v4049 = vrot.slane %v4047, 6
        %v4050 = vor.u32 %v4046, %v4049
        %v4051 = vrot.slane %v4050, 4
        %v4052 = vrot.slane %v2848, 5
        %v4053 = vrot.slane %v2844, 6
        %v4054 = vor.u32 %v4052, %v4053
        %v4055 = vsel %vm1831, %v4051, %v4054
        %v4056 = vrot.slane %v4054, 4
        %v4058 = vshrl.u32 %v3785, 16
        %v4060 = vrot.slane %v4058, 5
        %v4061 = vshll.u32 %v3785, 16
        %v4063 = vrot.slane %v4061, 6
        %v4064 = vor.u32 %v4060, %v4063
        %v4065 = vsel %vm1831, %v4056, %v4064
        %v4067 = vshrl.u32 %v3288, 16
        %v4069 = vrot.slane %v4067, 5
        %v4070 = vshll.u32 %v3288, 16
        %v4072 = vrot.slane %v4070, 6
        %v4073 = vor.u32 %v4069, %v4072
        %v4074 = vrot.slane %v4073, 4
        %v4075 = vrot.slane %v2872, 5
        %v4076 = vrot.slane %v2868, 6
        %v4077 = vor.u32 %v4075, %v4076
        %v4078 = vsel %vm1831, %v4074, %v4077
        %v4079 = vrot.slane %v4077, 4
        %v4081 = vshrl.u32 %v3786, 16
        %v4083 = vrot.slane %v4081, 5
        %v4084 = vshll.u32 %v3786, 16
        %v4086 = vrot.slane %v4084, 6
        %v4087 = vor.u32 %v4083, %v4086
        %v4088 = vsel %vm1831, %v4079, %v4087
        %v4090 = vshrl.u32 %v3289, 16
        %v4092 = vrot.slane %v4090, 5
        %v4093 = vshll.u32 %v3289, 16
        %v4095 = vrot.slane %v4093, 6
        %v4096 = vor.u32 %v4092, %v4095
        %v4097 = vrot.slane %v4096, 4
        %v4098 = vrot.slane %v2896, 5
        %v4099 = vrot.slane %v2892, 6
        %v4100 = vor.u32 %v4098, %v4099
        %v4101 = vsel %vm1831, %v4097, %v4100
        %v4102 = vrot.slane %v4100, 4
        %v4104 = vshrl.u32 %v3787, 16
        %v4106 = vrot.slane %v4104, 5
        %v4107 = vshll.u32 %v3787, 16
        %v4109 = vrot.slane %v4107, 6
        %v4110 = vor.u32 %v4106, %v4109
        %v4111 = vsel %vm1831, %v4102, %v4110
        %v4113 = vshrl.u32 %v3290, 16
        %v4115 = vrot.slane %v4113, 5
        %v4116 = vshll.u32 %v3290, 16
        %v4118 = vrot.slane %v4116, 6
        %v4119 = vor.u32 %v4115, %v4118
        %v4120 = vrot.slane %v4119, 4
        %v4121 = vrot.slane %v2920, 5
        %v4122 = vrot.slane %v2916, 6
        %v4123 = vor.u32 %v4121, %v4122
        %v4124 = vsel %vm1831, %v4120, %v4123
        %v4125 = vrot.slane %v4123, 4
        %v4127 = vshrl.u32 %v3788, 16
        %v4129 = vrot.slane %v4127, 5
        %v4130 = vshll.u32 %v3788, 16
        %v4132 = vrot.slane %v4130, 6
        %v4133 = vor.u32 %v4129, %v4132
        %v4134 = vsel %vm1831, %v4125, %v4133
        %v4136 = vshrl.u32 %v3291, 16
        %v4138 = vrot.slane %v4136, 5
        %v4139 = vshll.u32 %v3291, 16
        %v4141 = vrot.slane %v4139, 6
        %v4142 = vor.u32 %v4138, %v4141
        %v4143 = vrot.slane %v4142, 4
        %v4144 = vrot.slane %v2944, 5
        %v4145 = vrot.slane %v2940, 6
        %v4146 = vor.u32 %v4144, %v4145
        %v4147 = vsel %vm1831, %v4143, %v4146
        %v4148 = vrot.slane %v4146, 4
        %v4150 = vshrl.u32 %v3789, 16
        %v4152 = vrot.slane %v4150, 5
        %v4153 = vshll.u32 %v3789, 16
        %v4155 = vrot.slane %v4153, 6
        %v4156 = vor.u32 %v4152, %v4155
        %v4157 = vsel %vm1831, %v4148, %v4156
        %s4158 = scalar_lea.vmem [#allocation7], 320
        %v4159 = vld [vmem:[%s4158] sm:$0xf]
        %v4160 = vld [vmem:[%s4158 + $0x4] sm:$0xf]
        %v4161 = vld [vmem:[%s4158 + $0x8] sm:$0xf]
        %v4162 = vld [vmem:[%s4158 + $0xc] sm:$0xf]
        %v4163 = vld [vmem:[%s4158 + $0x10] sm:$0xf]
        %v4164 = vld [vmem:[%s4158 + $0x14] sm:$0xf]
        %v4165 = vld [vmem:[%s4158 + $0x18] sm:$0xf]
        %v4166 = vld [vmem:[%s4158 + $0x1c] sm:$0xf]
        %v4167 = vld [vmem:[%s4158 + $0x20] sm:$0xf]
        %v4168 = vld [vmem:[%s4158 + $0x24] sm:$0xf]
        %v4169 = vld [vmem:[%s4158 + $0x28] sm:$0xf]
        %v4170 = vld [vmem:[%s4158 + $0x2c] sm:$0xf]
        %v4171 = vld [vmem:[%s4158 + $0x30] sm:$0xf]
        %v4172 = vld [vmem:[%s4158 + $0x34] sm:$0xf]
        %v4173 = vld [vmem:[%s4158 + $0x38] sm:$0xf]
        %v4174 = vld [vmem:[%s4158 + $0x3c] sm:$0xf]
        %v4175 = vunpack.c.l.b16 %v3802
        %v4176 = vunpack.c.l.b16 %v3812
        %v4177 = vunpack.c.l.b16 %v3825
        %v4178 = vunpack.c.l.b16 %v3835
        %v4179 = vunpack.c.l.b16 %v3848
        %v4180 = vunpack.c.l.b16 %v3858
        %v4181 = vunpack.c.l.b16 %v3871
        %v4182 = vunpack.c.l.b16 %v3881
        %v4183 = vunpack.c.l.b16 %v3894
        %v4184 = vunpack.c.l.b16 %v3904
        %v4185 = vunpack.c.l.b16 %v3917
        %v4186 = vunpack.c.l.b16 %v3927
        %v4187 = vunpack.c.l.b16 %v3940
        %v4188 = vunpack.c.l.b16 %v3950
        %v4189 = vunpack.c.l.b16 %v3963
        %v4190 = vunpack.c.l.b16 %v3973
        %v4191 = vunpack.c.l.b16 %v3986
        %v4192 = vunpack.c.l.b16 %v3996
        %v4193 = vunpack.c.l.b16 %v4009
        %v4194 = vunpack.c.l.b16 %v4019
        %v4195 = vunpack.c.l.b16 %v4032
        %v4196 = vunpack.c.l.b16 %v4042
        %v4197 = vunpack.c.l.b16 %v4055
        %v4198 = vunpack.c.l.b16 %v4065
        %v4199 = vunpack.c.l.b16 %v4078
        %v4200 = vunpack.c.l.b16 %v4088
        %v4201 = vunpack.c.l.b16 %v4101
        %v4202 = vunpack.c.l.b16 %v4111
        %v4203 = vunpack.c.l.b16 %v4124
        %v4204 = vunpack.c.l.b16 %v4134
        %v4205 = vunpack.c.l.b16 %v4147
        %v4206 = vunpack.c.l.b16 %v4157
        %v4207 = vpack.c.b16 %v4176, %v4175
        %v4208 = vpack.c.b16 %v4178, %v4177
        %v4209 = vpack.c.b16 %v4180, %v4179
        %v4210 = vpack.c.b16 %v4182, %v4181
        %v4211 = vpack.c.b16 %v4184, %v4183
        %v4212 = vpack.c.b16 %v4186, %v4185
        %v4213 = vpack.c.b16 %v4188, %v4187
        %v4214 = vpack.c.b16 %v4190, %v4189
        %v4215 = vpack.c.b16 %v4192, %v4191
        %v4216 = vpack.c.b16 %v4194, %v4193
        %v4217 = vpack.c.b16 %v4196, %v4195
        %v4218 = vpack.c.b16 %v4198, %v4197
        %v4219 = vpack.c.b16 %v4200, %v4199
        %v4220 = vpack.c.b16 %v4202, %v4201
        %v4221 = vpack.c.b16 %v4204, %v4203
        %v4222 = vpack.c.b16 %v4206, %v4205
        %v4255 = vunpack.c.l.b16 %v4159
        %v4256 = vunpack.c.l.b16 %v4160
        %v4257 = vunpack.c.l.b16 %v4161
        %v4258 = vunpack.c.l.b16 %v4162
        %v4259 = vunpack.c.l.b16 %v4163
        %v4260 = vunpack.c.l.b16 %v4164
        %v4261 = vunpack.c.l.b16 %v4165
        %v4262 = vunpack.c.l.b16 %v4166
        %v4263 = vunpack.c.l.b16 %v4167
        %v4264 = vunpack.c.l.b16 %v4168
        %v4265 = vunpack.c.l.b16 %v4169
        %v4266 = vunpack.c.l.b16 %v4170
        %v4267 = vunpack.c.l.b16 %v4171
        %v4268 = vunpack.c.l.b16 %v4172
        %v4269 = vunpack.c.l.b16 %v4173
        %v4270 = vunpack.c.l.b16 %v4174
        %v4271 = vpack.c.b16 %v4256, %v4255
        %v4272 = vpack.c.b16 %v4258, %v4257
        %v4273 = vpack.c.b16 %v4260, %v4259
        %v4274 = vpack.c.b16 %v4262, %v4261
        %v4275 = vpack.c.b16 %v4264, %v4263
        %v4276 = vpack.c.b16 %v4266, %v4265
        %v4277 = vpack.c.b16 %v4268, %v4267
        %v4278 = vpack.c.b16 %v4270, %v4269
        %4287 = vmatprep.subr.bf16.mxu0 0
        %4288 = vmatpush1.bf16.msra.mxu0 %v4271
        %4289 = vmatprep.subr.bf16.mxu0 0
        %4290 = vmatpush1.bf16.msra.mxu0 %v4272
        %4291 = vmatprep.subr.bf16.mxu0 0
        %4292 = vmatpush1.bf16.msra.mxu0 %v4273
        %4293 = vmatprep.subr.bf16.mxu0 0
        %4294 = vmatpush1.bf16.msra.mxu0 %v4274
        %4295 = vmatprep.subr.bf16.mxu0 0
        %4296 = vmatpush1.bf16.msra.mxu0 %v4275
        %4297 = vmatprep.subr.bf16.mxu0 0
        %4298 = vmatpush1.bf16.msra.mxu0 %v4276
        %4299 = vmatprep.subr.bf16.mxu0 0
        %4300 = vmatpush1.bf16.msra.mxu0 %v4277
        %4301 = vmatprep.subr.bf16.mxu0 0
        %4302 = vmatpush1.bf16.msra.mxu0 %v4278
        %4303 = vmatprep.subr.bf16.mxu0 0
        %4304 = vmatpush1.bf16.msra.mxu0 0
        %4305 = vmatprep.subr.bf16.mxu0 0
        %4306 = vmatpush1.bf16.msra.mxu0 0
        %4307 = vmatprep.subr.bf16.mxu0 0
        %4308 = vmatpush1.bf16.msra.mxu0 0
        %4309 = vmatprep.subr.bf16.mxu0 0
        %4310 = vmatpush1.bf16.msra.mxu0 0
        %4311 = vmatprep.subr.bf16.mxu0 0
        %4312 = vmatpush1.bf16.msra.mxu0 0
        %4313 = vmatprep.subr.bf16.mxu0 0
        %4314 = vmatpush1.bf16.msra.mxu0 0
        %4315 = vmatprep.subr.bf16.mxu0 0
        %4316 = vmatpush1.bf16.msra.mxu0 0
        %4317 = vmatprep.subr.bf16.mxu0 0
        %4318 = vmatpush1.bf16.msra.mxu0 0
        %4319 = vmatprep.mubr.bf16.mxu0 0
        %4320 = vmatmul.mubr.bf16.gmra.mrb[0].mxu0 %v4207
        %v4321 = vpop.f32.mrb[0].mxu0
        %v4322 = vadd.f32 0.0, %v4321
        %v4323 = vpop.f32.mrb[0].mxu0
        %v4324 = vpop.f32.mrb[0].mxu0
        %v4325 = vadd.f32 0.0, %v4324
        %v4326 = vpop.f32.mrb[0].mxu0
        %4327 = vmatprep.mubr.bf16.mxu0 0
        %4328 = vmatmul.mubr.bf16.gmra.mrb[0].mxu0 %v4208
        %v4329 = vpop.f32.mrb[0].mxu0
        %v4330 = vadd.f32 0.0, %v4329
        %v4331 = vpop.f32.mrb[0].mxu0
        %v4332 = vpop.f32.mrb[0].mxu0
        %v4333 = vadd.f32 0.0, %v4332
        %v4334 = vpop.f32.mrb[0].mxu0
        %4335 = vmatprep.mubr.bf16.mxu0 0
        %4336 = vmatmul.mubr.bf16.gmra.mrb[0].mxu0 %v4209
        %v4337 = vpop.f32.mrb[0].mxu0
        %v4338 = vadd.f32 0.0, %v4337
        %v4339 = vpop.f32.mrb[0].mxu0
        %v4340 = vpop.f32.mrb[0].mxu0
        %v4341 = vadd.f32 0.0, %v4340
        %v4342 = vpop.f32.mrb[0].mxu0
        %4343 = vmatprep.mubr.bf16.mxu0 0
        %4344 = vmatmul.mubr.bf16.gmra.mrb[0].mxu0 %v4210
        %v4345 = vpop.f32.mrb[0].mxu0
        %v4346 = vadd.f32 0.0, %v4345
        %v4347 = vpop.f32.mrb[0].mxu0
        %v4348 = vpop.f32.mrb[0].mxu0
        %v4349 = vadd.f32 0.0, %v4348
        %v4350 = vpop.f32.mrb[0].mxu0
        %4351 = vmatprep.mubr.bf16.mxu0 0
        %4352 = vmatmul.mubr.bf16.gmra.mrb[0].mxu0 %v4211
        %v4353 = vpop.f32.mrb[0].mxu0
        %v4354 = vadd.f32 0.0, %v4353
        %v4355 = vpop.f32.mrb[0].mxu0
        %v4356 = vpop.f32.mrb[0].mxu0
        %v4357 = vadd.f32 0.0, %v4356
        %v4358 = vpop.f32.mrb[0].mxu0
        %4359 = vmatprep.mubr.bf16.mxu0 0
        %4360 = vmatmul.mubr.bf16.gmra.mrb[0].mxu0 %v4212
        %v4361 = vpop.f32.mrb[0].mxu0
        %v4362 = vadd.f32 0.0, %v4361
        %v4363 = vpop.f32.mrb[0].mxu0
        %v4364 = vpop.f32.mrb[0].mxu0
        %v4365 = vadd.f32 0.0, %v4364
        %v4366 = vpop.f32.mrb[0].mxu0
        %4367 = vmatprep.mubr.bf16.mxu0 0
        %4368 = vmatmul.mubr.bf16.gmra.mrb[0].mxu0 %v4213
        %v4369 = vpop.f32.mrb[0].mxu0
        %v4370 = vadd.f32 0.0, %v4369
        %v4371 = vpop.f32.mrb[0].mxu0
        %v4372 = vpop.f32.mrb[0].mxu0
        %v4373 = vadd.f32 0.0, %v4372
        %v4374 = vpop.f32.mrb[0].mxu0
        %4375 = vmatprep.mubr.bf16.mxu0 0
        %4376 = vmatmul.mubr.bf16.gmra.mrb[0].mxu0 %v4214
        %v4377 = vpop.f32.mrb[0].mxu0
        %v4378 = vadd.f32 0.0, %v4377
        %v4379 = vpop.f32.mrb[0].mxu0
        %v4380 = vpop.f32.mrb[0].mxu0
        %v4381 = vadd.f32 0.0, %v4380
        %v4382 = vpop.f32.mrb[0].mxu0
        %4383 = vmatprep.mubr.bf16.mxu0 0
        %4384 = vmatmul.mubr.bf16.gmra.mrb[0].mxu0 %v4215
        %v4385 = vpop.f32.mrb[0].mxu0
        %v4386 = vadd.f32 0.0, %v4385
        %v4387 = vpop.f32.mrb[0].mxu0
        %v4388 = vpop.f32.mrb[0].mxu0
        %v4389 = vadd.f32 0.0, %v4388
        %v4390 = vpop.f32.mrb[0].mxu0
        %4391 = vmatprep.mubr.bf16.mxu0 0
        %4392 = vmatmul.mubr.bf16.gmra.mrb[0].mxu0 %v4216
        %v4393 = vpop.f32.mrb[0].mxu0
        %v4394 = vadd.f32 0.0, %v4393
        %v4395 = vpop.f32.mrb[0].mxu0
        %v4396 = vpop.f32.mrb[0].mxu0
        %v4397 = vadd.f32 0.0, %v4396
        %v4398 = vpop.f32.mrb[0].mxu0
        %4399 = vmatprep.mubr.bf16.mxu0 0
        %4400 = vmatmul.mubr.bf16.gmra.mrb[0].mxu0 %v4217
        %v4401 = vpop.f32.mrb[0].mxu0
        %v4402 = vadd.f32 0.0, %v4401
        %v4403 = vpop.f32.mrb[0].mxu0
        %v4404 = vpop.f32.mrb[0].mxu0
        %v4405 = vadd.f32 0.0, %v4404
        %v4406 = vpop.f32.mrb[0].mxu0
        %4407 = vmatprep.mubr.bf16.mxu0 0
        %4408 = vmatmul.mubr.bf16.gmra.mrb[0].mxu0 %v4218
        %v4409 = vpop.f32.mrb[0].mxu0
        %v4410 = vadd.f32 0.0, %v4409
        %v4411 = vpop.f32.mrb[0].mxu0
        %v4412 = vpop.f32.mrb[0].mxu0
        %v4413 = vadd.f32 0.0, %v4412
        %v4414 = vpop.f32.mrb[0].mxu0
        %4415 = vmatprep.mubr.bf16.mxu0 0
        %4416 = vmatmul.mubr.bf16.gmra.mrb[0].mxu0 %v4219
        %v4417 = vpop.f32.mrb[0].mxu0
        %v4418 = vadd.f32 0.0, %v4417
        %v4419 = vpop.f32.mrb[0].mxu0
        %v4420 = vpop.f32.mrb[0].mxu0
        %v4421 = vadd.f32 0.0, %v4420
        %v4422 = vpop.f32.mrb[0].mxu0
        %4423 = vmatprep.mubr.bf16.mxu0 0
        %4424 = vmatmul.mubr.bf16.gmra.mrb[0].mxu0 %v4220
        %v4425 = vpop.f32.mrb[0].mxu0
        %v4426 = vadd.f32 0.0, %v4425
        %v4427 = vpop.f32.mrb[0].mxu0
        %v4428 = vpop.f32.mrb[0].mxu0
        %v4429 = vadd.f32 0.0, %v4428
        %v4430 = vpop.f32.mrb[0].mxu0
        %4431 = vmatprep.mubr.bf16.mxu0 0
        %4432 = vmatmul.mubr.bf16.gmra.mrb[0].mxu0 %v4221
        %v4433 = vpop.f32.mrb[0].mxu0
        %v4434 = vadd.f32 0.0, %v4433
        %v4435 = vpop.f32.mrb[0].mxu0
        %v4436 = vpop.f32.mrb[0].mxu0
        %v4437 = vadd.f32 0.0, %v4436
        %v4438 = vpop.f32.mrb[0].mxu0
        %4439 = vmatprep.mubr.bf16.mxu0 0
        %4440 = vmatmul.mubr.bf16.gmra.mrb[0].mxu0 %v4222
        %v4441 = vpop.f32.mrb[0].mxu0
        %v4442 = vadd.f32 0.0, %v4441
        %v4443 = vpop.f32.mrb[0].mxu0
        %v4444 = vpop.f32.mrb[0].mxu0
        %v4445 = vadd.f32 0.0, %v4444
        %v4446 = vpop.f32.mrb[0].mxu0
        %4447 = vdwg.mxu0
        %v4448 = vadd.f32 %v3742, %v4322
        %v4449 = vadd.f32 %v3743, %v4325
        %v4450 = vadd.f32 %v3744, %v4330
        %v4451 = vadd.f32 %v3745, %v4333
        %v4452 = vadd.f32 %v3746, %v4338
        %v4453 = vadd.f32 %v3747, %v4341
        %v4454 = vadd.f32 %v3748, %v4346
        %v4455 = vadd.f32 %v3749, %v4349
        %v4456 = vadd.f32 %v3750, %v4354
        %v4457 = vadd.f32 %v3751, %v4357
        %v4458 = vadd.f32 %v3752, %v4362
        %v4459 = vadd.f32 %v3753, %v4365
        %v4460 = vadd.f32 %v3754, %v4370
        %v4461 = vadd.f32 %v3755, %v4373
        %v4462 = vadd.f32 %v3756, %v4378
        %v4463 = vadd.f32 %v3757, %v4381
        %v4464 = vadd.f32 %v3758, %v4386
        %v4465 = vadd.f32 %v3759, %v4389
        %v4466 = vadd.f32 %v3760, %v4394
        %v4467 = vadd.f32 %v3761, %v4397
        %v4468 = vadd.f32 %v3762, %v4402
        %v4469 = vadd.f32 %v3763, %v4405
        %v4470 = vadd.f32 %v3764, %v4410
        %v4471 = vadd.f32 %v3765, %v4413
        %v4472 = vadd.f32 %v3766, %v4418
        %v4473 = vadd.f32 %v3767, %v4421
        %v4474 = vadd.f32 %v3768, %v4426
        %v4475 = vadd.f32 %v3769, %v4429
        %v4476 = vadd.f32 %v3770, %v4434
        %v4477 = vadd.f32 %v3771, %v4437
        %v4478 = vadd.f32 %v3772, %v4442
        %v4479 = vadd.f32 %v3773, %v4445
        %s4480 = scalar_lea.vmem [#allocation2], 24
        %v4481 = vld [vmem:[%s4480] sm:$0xf]
        %v4482 = vld [vmem:[%s4480 + $0x4] sm:$0xf]
        %v4483 = vld [vmem:[%s4480 + $0x8] sm:$0x1]
        %v4484 = vld [vmem:[%s4480 + $0xc] sm:$0xf]
        %v4485 = vld [vmem:[%s4480 + $0x10] sm:$0xf]
        %v4486 = vld [vmem:[%s4480 + $0x14] sm:$0x1]
        %v4487 = vld [vmem:[%s4480 + $0x18] sm:$0xf]
        %v4488 = vld [vmem:[%s4480 + $0x1c] sm:$0xf]
        %v4489 = vld [vmem:[%s4480 + $0x20] sm:$0x1]
        %v4490 = vld [vmem:[%s4480 + $0x24] sm:$0xf]
        %v4491 = vld [vmem:[%s4480 + $0x28] sm:$0xf]
        %v4492 = vld [vmem:[%s4480 + $0x2c] sm:$0x1]
        %v4493 = vld [vmem:[%s4480 + $0x30] sm:$0xf]
        %v4494 = vld [vmem:[%s4480 + $0x34] sm:$0xf]
        %v4495 = vld [vmem:[%s4480 + $0x38] sm:$0x1]
        %v4496 = vld [vmem:[%s4480 + $0x3c] sm:$0xf]
        %v4497 = vld [vmem:[%s4480 + $0x40] sm:$0xf]
        %v4498 = vld [vmem:[%s4480 + $0x44] sm:$0x1]
        %v4499 = vld [vmem:[%s4480 + $0x48] sm:$0xf]
        %v4500 = vld [vmem:[%s4480 + $0x4c] sm:$0xf]
        %v4501 = vld [vmem:[%s4480 + $0x50] sm:$0x1]
        %v4502 = vld [vmem:[%s4480 + $0x54] sm:$0xf]
        %v4503 = vld [vmem:[%s4480 + $0x58] sm:$0xf]
        %v4504 = vld [vmem:[%s4480 + $0x5c] sm:$0x1]
        %v4505 = vld [vmem:[%s4480 + $0x60] sm:$0xf]
        %v4506 = vld [vmem:[%s4480 + $0x64] sm:$0xf]
        %v4507 = vld [vmem:[%s4480 + $0x68] sm:$0x1]
        %v4508 = vld [vmem:[%s4480 + $0x6c] sm:$0xf]
        %v4509 = vld [vmem:[%s4480 + $0x70] sm:$0xf]
        %v4510 = vld [vmem:[%s4480 + $0x74] sm:$0x1]
        %v4511 = vld [vmem:[%s4480 + $0x78] sm:$0xf]
        %v4512 = vld [vmem:[%s4480 + $0x7c] sm:$0xf]
        %v4513 = vld [vmem:[%s4480 + $0x80] sm:$0x1]
        %v4514 = vld [vmem:[%s4480 + $0x84] sm:$0xf]
        %v4515 = vld [vmem:[%s4480 + $0x88] sm:$0xf]
        %v4516 = vld [vmem:[%s4480 + $0x8c] sm:$0x1]
        %v4517 = vld [vmem:[%s4480 + $0x90] sm:$0xf]
        %v4518 = vld [vmem:[%s4480 + $0x94] sm:$0xf]
        %v4519 = vld [vmem:[%s4480 + $0x98] sm:$0x1]
        %v4520 = vld [vmem:[%s4480 + $0x9c] sm:$0xf]
        %v4521 = vld [vmem:[%s4480 + $0xa0] sm:$0xf]
        %v4522 = vld [vmem:[%s4480 + $0xa4] sm:$0x1]
        %v4523 = vld [vmem:[%s4480 + $0xa8] sm:$0xf]
        %v4524 = vld [vmem:[%s4480 + $0xac] sm:$0xf]
        %v4525 = vld [vmem:[%s4480 + $0xb0] sm:$0x1]
        %v4526 = vld [vmem:[%s4480 + $0xb4] sm:$0xf]
        %v4527 = vld [vmem:[%s4480 + $0xb8] sm:$0xf]
        %v4528 = vld [vmem:[%s4480 + $0xbc] sm:$0x1]
        %v4530 = vshrl.u32 %v4481, 16
        %v4532 = vrot.slane %v4530, 4
        %v4533 = vshll.u32 %v4481, 16
        %v4535 = vrot.slane %v4533, 5
        %v4536 = vor.u32 %v4532, %v4535
        %v4537 = vrot.slane %v4536, 4
        %v4539 = vshll.u32 %v4482, 16
        %v4541 = vrot.slane %v4539, 5
        %v4542 = vsel %vm670, %v4537, %v4541
        %v4543 = vshrl.u32 %v4482, 16
        %v4545 = vrot.slane %v4543, 4
        %v4546 = vor.u32 %v4545, %v4541
        %v4547 = vrot.slane %v4546, 4
        %v4549 = vshll.u32 %v4483, 16
        %v4551 = vrot.slane %v4549, 5
        %v4552 = vsel %vm670, %v4547, %v4551
        %v4554 = vshrl.u32 %v4484, 16
        %v4556 = vrot.slane %v4554, 4
        %v4557 = vshll.u32 %v4484, 16
        %v4559 = vrot.slane %v4557, 5
        %v4560 = vor.u32 %v4556, %v4559
        %v4561 = vrot.slane %v4560, 4
        %v4563 = vshll.u32 %v4485, 16
        %v4565 = vrot.slane %v4563, 5
        %v4566 = vsel %vm670, %v4561, %v4565
        %v4567 = vshrl.u32 %v4485, 16
        %v4569 = vrot.slane %v4567, 4
        %v4570 = vor.u32 %v4569, %v4565
        %v4571 = vrot.slane %v4570, 4
        %v4573 = vshll.u32 %v4486, 16
        %v4575 = vrot.slane %v4573, 5
        %v4576 = vsel %vm670, %v4571, %v4575
        %v4578 = vshrl.u32 %v4487, 16
        %v4580 = vrot.slane %v4578, 4
        %v4581 = vshll.u32 %v4487, 16
        %v4583 = vrot.slane %v4581, 5
        %v4584 = vor.u32 %v4580, %v4583
        %v4585 = vrot.slane %v4584, 4
        %v4587 = vshll.u32 %v4488, 16
        %v4589 = vrot.slane %v4587, 5
        %v4590 = vsel %vm670, %v4585, %v4589
        %v4591 = vshrl.u32 %v4488, 16
        %v4593 = vrot.slane %v4591, 4
        %v4594 = vor.u32 %v4593, %v4589
        %v4595 = vrot.slane %v4594, 4
        %v4597 = vshll.u32 %v4489, 16
        %v4599 = vrot.slane %v4597, 5
        %v4600 = vsel %vm670, %v4595, %v4599
        %v4602 = vshrl.u32 %v4490, 16
        %v4604 = vrot.slane %v4602, 4
        %v4605 = vshll.u32 %v4490, 16
        %v4607 = vrot.slane %v4605, 5
        %v4608 = vor.u32 %v4604, %v4607
        %v4609 = vrot.slane %v4608, 4
        %v4611 = vshll.u32 %v4491, 16
        %v4613 = vrot.slane %v4611, 5
        %v4614 = vsel %vm670, %v4609, %v4613
        %v4615 = vshrl.u32 %v4491, 16
        %v4617 = vrot.slane %v4615, 4
        %v4618 = vor.u32 %v4617, %v4613
        %v4619 = vrot.slane %v4618, 4
        %v4621 = vshll.u32 %v4492, 16
        %v4623 = vrot.slane %v4621, 5
        %v4624 = vsel %vm670, %v4619, %v4623
        %v4626 = vshrl.u32 %v4493, 16
        %v4628 = vrot.slane %v4626, 4
        %v4629 = vshll.u32 %v4493, 16
        %v4631 = vrot.slane %v4629, 5
        %v4632 = vor.u32 %v4628, %v4631
        %v4633 = vrot.slane %v4632, 4
        %v4635 = vshll.u32 %v4494, 16
        %v4637 = vrot.slane %v4635, 5
        %v4638 = vsel %vm670, %v4633, %v4637
        %v4639 = vshrl.u32 %v4494, 16
        %v4641 = vrot.slane %v4639, 4
        %v4642 = vor.u32 %v4641, %v4637
        %v4643 = vrot.slane %v4642, 4
        %v4645 = vshll.u32 %v4495, 16
        %v4647 = vrot.slane %v4645, 5
        %v4648 = vsel %vm670, %v4643, %v4647
        %v4650 = vshrl.u32 %v4496, 16
        %v4652 = vrot.slane %v4650, 4
        %v4653 = vshll.u32 %v4496, 16
        %v4655 = vrot.slane %v4653, 5
        %v4656 = vor.u32 %v4652, %v4655
        %v4657 = vrot.slane %v4656, 4
        %v4659 = vshll.u32 %v4497, 16
        %v4661 = vrot.slane %v4659, 5
        %v4662 = vsel %vm670, %v4657, %v4661
        %v4663 = vshrl.u32 %v4497, 16
        %v4665 = vrot.slane %v4663, 4
        %v4666 = vor.u32 %v4665, %v4661
        %v4667 = vrot.slane %v4666, 4
        %v4669 = vshll.u32 %v4498, 16
        %v4671 = vrot.slane %v4669, 5
        %v4672 = vsel %vm670, %v4667, %v4671
        %v4674 = vshrl.u32 %v4499, 16
        %v4676 = vrot.slane %v4674, 4
        %v4677 = vshll.u32 %v4499, 16
        %v4679 = vrot.slane %v4677, 5
        %v4680 = vor.u32 %v4676, %v4679
        %v4681 = vrot.slane %v4680, 4
        %v4683 = vshll.u32 %v4500, 16
        %v4685 = vrot.slane %v4683, 5
        %v4686 = vsel %vm670, %v4681, %v4685
        %v4687 = vshrl.u32 %v4500, 16
        %v4689 = vrot.slane %v4687, 4
        %v4690 = vor.u32 %v4689, %v4685
        %v4691 = vrot.slane %v4690, 4
        %v4693 = vshll.u32 %v4501, 16
        %v4695 = vrot.slane %v4693, 5
        %v4696 = vsel %vm670, %v4691, %v4695
        %v4698 = vshrl.u32 %v4502, 16
        %v4700 = vrot.slane %v4698, 4
        %v4701 = vshll.u32 %v4502, 16
        %v4703 = vrot.slane %v4701, 5
        %v4704 = vor.u32 %v4700, %v4703
        %v4705 = vrot.slane %v4704, 4
        %v4707 = vshll.u32 %v4503, 16
        %v4709 = vrot.slane %v4707, 5
        %v4710 = vsel %vm670, %v4705, %v4709
        %v4711 = vshrl.u32 %v4503, 16
        %v4713 = vrot.slane %v4711, 4
        %v4714 = vor.u32 %v4713, %v4709
        %v4715 = vrot.slane %v4714, 4
        %v4717 = vshll.u32 %v4504, 16
        %v4719 = vrot.slane %v4717, 5
        %v4720 = vsel %vm670, %v4715, %v4719
        %v4722 = vshrl.u32 %v4505, 16
        %v4724 = vrot.slane %v4722, 4
        %v4725 = vshll.u32 %v4505, 16
        %v4727 = vrot.slane %v4725, 5
        %v4728 = vor.u32 %v4724, %v4727
        %v4729 = vrot.slane %v4728, 4
        %v4731 = vshll.u32 %v4506, 16
        %v4733 = vrot.slane %v4731, 5
        %v4734 = vsel %vm670, %v4729, %v4733
        %v4735 = vshrl.u32 %v4506, 16
        %v4737 = vrot.slane %v4735, 4
        %v4738 = vor.u32 %v4737, %v4733
        %v4739 = vrot.slane %v4738, 4
        %v4741 = vshll.u32 %v4507, 16
        %v4743 = vrot.slane %v4741, 5
        %v4744 = vsel %vm670, %v4739, %v4743
        %v4746 = vshrl.u32 %v4508, 16
        %v4748 = vrot.slane %v4746, 4
        %v4749 = vshll.u32 %v4508, 16
        %v4751 = vrot.slane %v4749, 5
        %v4752 = vor.u32 %v4748, %v4751
        %v4753 = vrot.slane %v4752, 4
        %v4755 = vshll.u32 %v4509, 16
        %v4757 = vrot.slane %v4755, 5
        %v4758 = vsel %vm670, %v4753, %v4757
        %v4759 = vshrl.u32 %v4509, 16
        %v4761 = vrot.slane %v4759, 4
        %v4762 = vor.u32 %v4761, %v4757
        %v4763 = vrot.slane %v4762, 4
        %v4765 = vshll.u32 %v4510, 16
        %v4767 = vrot.slane %v4765, 5
        %v4768 = vsel %vm670, %v4763, %v4767
        %v4770 = vshrl.u32 %v4511, 16
        %v4772 = vrot.slane %v4770, 4
        %v4773 = vshll.u32 %v4511, 16
        %v4775 = vrot.slane %v4773, 5
        %v4776 = vor.u32 %v4772, %v4775
        %v4777 = vrot.slane %v4776, 4
        %v4779 = vshll.u32 %v4512, 16
        %v4781 = vrot.slane %v4779, 5
        %v4782 = vsel %vm670, %v4777, %v4781
        %v4783 = vshrl.u32 %v4512, 16
        %v4785 = vrot.slane %v4783, 4
        %v4786 = vor.u32 %v4785, %v4781
        %v4787 = vrot.slane %v4786, 4
        %v4789 = vshll.u32 %v4513, 16
        %v4791 = vrot.slane %v4789, 5
        %v4792 = vsel %vm670, %v4787, %v4791
        %v4794 = vshrl.u32 %v4514, 16
        %v4796 = vrot.slane %v4794, 4
        %v4797 = vshll.u32 %v4514, 16
        %v4799 = vrot.slane %v4797, 5
        %v4800 = vor.u32 %v4796, %v4799
        %v4801 = vrot.slane %v4800, 4
        %v4803 = vshll.u32 %v4515, 16
        %v4805 = vrot.slane %v4803, 5
        %v4806 = vsel %vm670, %v4801, %v4805
        %v4807 = vshrl.u32 %v4515, 16
        %v4809 = vrot.slane %v4807, 4
        %v4810 = vor.u32 %v4809, %v4805
        %v4811 = vrot.slane %v4810, 4
        %v4813 = vshll.u32 %v4516, 16
        %v4815 = vrot.slane %v4813, 5
        %v4816 = vsel %vm670, %v4811, %v4815
        %v4818 = vshrl.u32 %v4517, 16
        %v4820 = vrot.slane %v4818, 4
        %v4821 = vshll.u32 %v4517, 16
        %v4823 = vrot.slane %v4821, 5
        %v4824 = vor.u32 %v4820, %v4823
        %v4825 = vrot.slane %v4824, 4
        %v4827 = vshll.u32 %v4518, 16
        %v4829 = vrot.slane %v4827, 5
        %v4830 = vsel %vm670, %v4825, %v4829
        %v4831 = vshrl.u32 %v4518, 16
        %v4833 = vrot.slane %v4831, 4
        %v4834 = vor.u32 %v4833, %v4829
        %v4835 = vrot.slane %v4834, 4
        %v4837 = vshll.u32 %v4519, 16
        %v4839 = vrot.slane %v4837, 5
        %v4840 = vsel %vm670, %v4835, %v4839
        %v4842 = vshrl.u32 %v4520, 16
        %v4844 = vrot.slane %v4842, 4
        %v4845 = vshll.u32 %v4520, 16
        %v4847 = vrot.slane %v4845, 5
        %v4848 = vor.u32 %v4844, %v4847
        %v4849 = vrot.slane %v4848, 4
        %v4851 = vshll.u32 %v4521, 16
        %v4853 = vrot.slane %v4851, 5
        %v4854 = vsel %vm670, %v4849, %v4853
        %v4855 = vshrl.u32 %v4521, 16
        %v4857 = vrot.slane %v4855, 4
        %v4858 = vor.u32 %v4857, %v4853
        %v4859 = vrot.slane %v4858, 4
        %v4861 = vshll.u32 %v4522, 16
        %v4863 = vrot.slane %v4861, 5
        %v4864 = vsel %vm670, %v4859, %v4863
        %v4866 = vshrl.u32 %v4523, 16
        %v4868 = vrot.slane %v4866, 4
        %v4869 = vshll.u32 %v4523, 16
        %v4871 = vrot.slane %v4869, 5
        %v4872 = vor.u32 %v4868, %v4871
        %v4873 = vrot.slane %v4872, 4
        %v4875 = vshll.u32 %v4524, 16
        %v4877 = vrot.slane %v4875, 5
        %v4878 = vsel %vm670, %v4873, %v4877
        %v4879 = vshrl.u32 %v4524, 16
        %v4881 = vrot.slane %v4879, 4
        %v4882 = vor.u32 %v4881, %v4877
        %v4883 = vrot.slane %v4882, 4
        %v4885 = vshll.u32 %v4525, 16
        %v4887 = vrot.slane %v4885, 5
        %v4888 = vsel %vm670, %v4883, %v4887
        %v4890 = vshrl.u32 %v4526, 16
        %v4892 = vrot.slane %v4890, 4
        %v4893 = vshll.u32 %v4526, 16
        %v4895 = vrot.slane %v4893, 5
        %v4896 = vor.u32 %v4892, %v4895
        %v4897 = vrot.slane %v4896, 4
        %v4899 = vshll.u32 %v4527, 16
        %v4901 = vrot.slane %v4899, 5
        %v4902 = vsel %vm670, %v4897, %v4901
        %v4903 = vshrl.u32 %v4527, 16
        %v4905 = vrot.slane %v4903, 4
        %v4906 = vor.u32 %v4905, %v4901
        %v4907 = vrot.slane %v4906, 4
        %v4909 = vshll.u32 %v4528, 16
        %v4911 = vrot.slane %v4909, 5
        %v4912 = vsel %vm670, %v4907, %v4911
        %s4913 = scalar_lea.vmem [#allocation7], 384
        %v4914 = vld [vmem:[%s4913] sm:$0xf]
        %v4915 = vld [vmem:[%s4913 + $0x4] sm:$0xf]
        %v4916 = vld [vmem:[%s4913 + $0x8] sm:$0xf]
        %v4917 = vld [vmem:[%s4913 + $0xc] sm:$0xf]
        %v4918 = vld [vmem:[%s4913 + $0x10] sm:$0xf]
        %v4919 = vld [vmem:[%s4913 + $0x14] sm:$0xf]
        %v4920 = vld [vmem:[%s4913 + $0x18] sm:$0xf]
        %v4921 = vld [vmem:[%s4913 + $0x1c] sm:$0xf]
        %v4922 = vld [vmem:[%s4913 + $0x20] sm:$0xf]
        %v4923 = vld [vmem:[%s4913 + $0x24] sm:$0xf]
        %v4924 = vld [vmem:[%s4913 + $0x28] sm:$0xf]
        %v4925 = vld [vmem:[%s4913 + $0x2c] sm:$0xf]
        %v4926 = vld [vmem:[%s4913 + $0x30] sm:$0xf]
        %v4927 = vld [vmem:[%s4913 + $0x34] sm:$0xf]
        %v4928 = vld [vmem:[%s4913 + $0x38] sm:$0xf]
        %v4929 = vld [vmem:[%s4913 + $0x3c] sm:$0xf]
        %v4930 = vunpack.c.l.b16 %v4542
        %v4931 = vunpack.c.l.b16 %v4552
        %v4932 = vunpack.c.l.b16 %v4566
        %v4933 = vunpack.c.l.b16 %v4576
        %v4934 = vunpack.c.l.b16 %v4590
        %v4935 = vunpack.c.l.b16 %v4600
        %v4936 = vunpack.c.l.b16 %v4614
        %v4937 = vunpack.c.l.b16 %v4624
        %v4938 = vunpack.c.l.b16 %v4638
        %v4939 = vunpack.c.l.b16 %v4648
        %v4940 = vunpack.c.l.b16 %v4662
        %v4941 = vunpack.c.l.b16 %v4672
        %v4942 = vunpack.c.l.b16 %v4686
        %v4943 = vunpack.c.l.b16 %v4696
        %v4944 = vunpack.c.l.b16 %v4710
        %v4945 = vunpack.c.l.b16 %v4720
        %v4946 = vunpack.c.l.b16 %v4734
        %v4947 = vunpack.c.l.b16 %v4744
        %v4948 = vunpack.c.l.b16 %v4758
        %v4949 = vunpack.c.l.b16 %v4768
        %v4950 = vunpack.c.l.b16 %v4782
        %v4951 = vunpack.c.l.b16 %v4792
        %v4952 = vunpack.c.l.b16 %v4806
        %v4953 = vunpack.c.l.b16 %v4816
        %v4954 = vunpack.c.l.b16 %v4830
        %v4955 = vunpack.c.l.b16 %v4840
        %v4956 = vunpack.c.l.b16 %v4854
        %v4957 = vunpack.c.l.b16 %v4864
        %v4958 = vunpack.c.l.b16 %v4878
        %v4959 = vunpack.c.l.b16 %v4888
        %v4960 = vunpack.c.l.b16 %v4902
        %v4961 = vunpack.c.l.b16 %v4912
        %v4962 = vpack.c.b16 %v4931, %v4930
        %v4963 = vpack.c.b16 %v4933, %v4932
        %v4964 = vpack.c.b16 %v4935, %v4934
        %v4965 = vpack.c.b16 %v4937, %v4936
        %v4966 = vpack.c.b16 %v4939, %v4938
        %v4967 = vpack.c.b16 %v4941, %v4940
        %v4968 = vpack.c.b16 %v4943, %v4942
        %v4969 = vpack.c.b16 %v4945, %v4944
        %v4970 = vpack.c.b16 %v4947, %v4946
        %v4971 = vpack.c.b16 %v4949, %v4948
        %v4972 = vpack.c.b16 %v4951, %v4950
        %v4973 = vpack.c.b16 %v4953, %v4952
        %v4974 = vpack.c.b16 %v4955, %v4954
        %v4975 = vpack.c.b16 %v4957, %v4956
        %v4976 = vpack.c.b16 %v4959, %v4958
        %v4977 = vpack.c.b16 %v4961, %v4960
        %v5010 = vunpack.c.l.b16 %v4914
        %v5011 = vunpack.c.l.b16 %v4915
        %v5012 = vunpack.c.l.b16 %v4916
        %v5013 = vunpack.c.l.b16 %v4917
        %v5014 = vunpack.c.l.b16 %v4918
        %v5015 = vunpack.c.l.b16 %v4919
        %v5016 = vunpack.c.l.b16 %v4920
        %v5017 = vunpack.c.l.b16 %v4921
        %v5018 = vunpack.c.l.b16 %v4922
        %v5019 = vunpack.c.l.b16 %v4923
        %v5020 = vunpack.c.l.b16 %v4924
        %v5021 = vunpack.c.l.b16 %v4925
        %v5022 = vunpack.c.l.b16 %v4926
        %v5023 = vunpack.c.l.b16 %v4927
        %v5024 = vunpack.c.l.b16 %v4928
        %v5025 = vunpack.c.l.b16 %v4929
        %v5026 = vpack.c.b16 %v5011, %v5010
        %v5027 = vpack.c.b16 %v5013, %v5012
        %v5028 = vpack.c.b16 %v5015, %v5014
        %v5029 = vpack.c.b16 %v5017, %v5016
        %v5030 = vpack.c.b16 %v5019, %v5018
        %v5031 = vpack.c.b16 %v5021, %v5020
        %v5032 = vpack.c.b16 %v5023, %v5022
        %v5033 = vpack.c.b16 %v5025, %v5024
        %5042 = vmatprep.subr.bf16.mxu0 0
        %5043 = vmatpush1.bf16.msra.mxu0 %v5026
        %5044 = vmatprep.subr.bf16.mxu0 0
        %5045 = vmatpush1.bf16.msra.mxu0 %v5027
        %5046 = vmatprep.subr.bf16.mxu0 0
        %5047 = vmatpush1.bf16.msra.mxu0 %v5028
        %5048 = vmatprep.subr.bf16.mxu0 0
        %5049 = vmatpush1.bf16.msra.mxu0 %v5029
        %5050 = vmatprep.subr.bf16.mxu0 0
        %5051 = vmatpush1.bf16.msra.mxu0 %v5030
        %5052 = vmatprep.subr.bf16.mxu0 0
        %5053 = vmatpush1.bf16.msra.mxu0 %v5031
        %5054 = vmatprep.subr.bf16.mxu0 0
        %5055 = vmatpush1.bf16.msra.mxu0 %v5032
        %5056 = vmatprep.subr.bf16.mxu0 0
        %5057 = vmatpush1.bf16.msra.mxu0 %v5033
        %5058 = vmatprep.subr.bf16.mxu0 0
        %5059 = vmatpush1.bf16.msra.mxu0 0
        %5060 = vmatprep.subr.bf16.mxu0 0
        %5061 = vmatpush1.bf16.msra.mxu0 0
        %5062 = vmatprep.subr.bf16.mxu0 0
        %5063 = vmatpush1.bf16.msra.mxu0 0
        %5064 = vmatprep.subr.bf16.mxu0 0
        %5065 = vmatpush1.bf16.msra.mxu0 0
        %5066 = vmatprep.subr.bf16.mxu0 0
        %5067 = vmatpush1.bf16.msra.mxu0 0
        %5068 = vmatprep.subr.bf16.mxu0 0
        %5069 = vmatpush1.bf16.msra.mxu0 0
        %5070 = vmatprep.subr.bf16.mxu0 0
        %5071 = vmatpush1.bf16.msra.mxu0 0
        %5072 = vmatprep.subr.bf16.mxu0 0
        %5073 = vmatpush1.bf16.msra.mxu0 0
        %5074 = vmatprep.mubr.bf16.mxu0 0
        %5075 = vmatmul.mubr.bf16.gmra.mrb[0].mxu0 %v4962
        %v5076 = vpop.f32.mrb[0].mxu0
        %v5077 = vadd.f32 0.0, %v5076
        %v5078 = vpop.f32.mrb[0].mxu0
        %v5079 = vpop.f32.mrb[0].mxu0
        %v5080 = vadd.f32 0.0, %v5079
        %v5081 = vpop.f32.mrb[0].mxu0
        %5082 = vmatprep.mubr.bf16.mxu0 0
        %5083 = vmatmul.mubr.bf16.gmra.mrb[0].mxu0 %v4963
        %v5084 = vpop.f32.mrb[0].mxu0
        %v5085 = vadd.f32 0.0, %v5084
        %v5086 = vpop.f32.mrb[0].mxu0
        %v5087 = vpop.f32.mrb[0].mxu0
        %v5088 = vadd.f32 0.0, %v5087
        %v5089 = vpop.f32.mrb[0].mxu0
        %5090 = vmatprep.mubr.bf16.mxu0 0
        %5091 = vmatmul.mubr.bf16.gmra.mrb[0].mxu0 %v4964
        %v5092 = vpop.f32.mrb[0].mxu0
        %v5093 = vadd.f32 0.0, %v5092
        %v5094 = vpop.f32.mrb[0].mxu0
        %v5095 = vpop.f32.mrb[0].mxu0
        %v5096 = vadd.f32 0.0, %v5095
        %v5097 = vpop.f32.mrb[0].mxu0
        %5098 = vmatprep.mubr.bf16.mxu0 0
        %5099 = vmatmul.mubr.bf16.gmra.mrb[0].mxu0 %v4965
        %v5100 = vpop.f32.mrb[0].mxu0
        %v5101 = vadd.f32 0.0, %v5100
        %v5102 = vpop.f32.mrb[0].mxu0
        %v5103 = vpop.f32.mrb[0].mxu0
        %v5104 = vadd.f32 0.0, %v5103
        %v5105 = vpop.f32.mrb[0].mxu0
        %5106 = vmatprep.mubr.bf16.mxu0 0
        %5107 = vmatmul.mubr.bf16.gmra.mrb[0].mxu0 %v4966
        %v5108 = vpop.f32.mrb[0].mxu0
        %v5109 = vadd.f32 0.0, %v5108
        %v5110 = vpop.f32.mrb[0].mxu0
        %v5111 = vpop.f32.mrb[0].mxu0
        %v5112 = vadd.f32 0.0, %v5111
        %v5113 = vpop.f32.mrb[0].mxu0
        %5114 = vmatprep.mubr.bf16.mxu0 0
        %5115 = vmatmul.mubr.bf16.gmra.mrb[0].mxu0 %v4967
        %v5116 = vpop.f32.mrb[0].mxu0
        %v5117 = vadd.f32 0.0, %v5116
        %v5118 = vpop.f32.mrb[0].mxu0
        %v5119 = vpop.f32.mrb[0].mxu0
        %v5120 = vadd.f32 0.0, %v5119
        %v5121 = vpop.f32.mrb[0].mxu0
        %5122 = vmatprep.mubr.bf16.mxu0 0
        %5123 = vmatmul.mubr.bf16.gmra.mrb[0].mxu0 %v4968
        %v5124 = vpop.f32.mrb[0].mxu0
        %v5125 = vadd.f32 0.0, %v5124
        %v5126 = vpop.f32.mrb[0].mxu0
        %v5127 = vpop.f32.mrb[0].mxu0
        %v5128 = vadd.f32 0.0, %v5127
        %v5129 = vpop.f32.mrb[0].mxu0
        %5130 = vmatprep.mubr.bf16.mxu0 0
        %5131 = vmatmul.mubr.bf16.gmra.mrb[0].mxu0 %v4969
        %v5132 = vpop.f32.mrb[0].mxu0
        %v5133 = vadd.f32 0.0, %v5132
        %v5134 = vpop.f32.mrb[0].mxu0
        %v5135 = vpop.f32.mrb[0].mxu0
        %v5136 = vadd.f32 0.0, %v5135
        %v5137 = vpop.f32.mrb[0].mxu0
        %5138 = vmatprep.mubr.bf16.mxu0 0
        %5139 = vmatmul.mubr.bf16.gmra.mrb[0].mxu0 %v4970
        %v5140 = vpop.f32.mrb[0].mxu0
        %v5141 = vadd.f32 0.0, %v5140
        %v5142 = vpop.f32.mrb[0].mxu0
        %v5143 = vpop.f32.mrb[0].mxu0
        %v5144 = vadd.f32 0.0, %v5143
        %v5145 = vpop.f32.mrb[0].mxu0
        %5146 = vmatprep.mubr.bf16.mxu0 0
        %5147 = vmatmul.mubr.bf16.gmra.mrb[0].mxu0 %v4971
        %v5148 = vpop.f32.mrb[0].mxu0
        %v5149 = vadd.f32 0.0, %v5148
        %v5150 = vpop.f32.mrb[0].mxu0
        %v5151 = vpop.f32.mrb[0].mxu0
        %v5152 = vadd.f32 0.0, %v5151
        %v5153 = vpop.f32.mrb[0].mxu0
        %5154 = vmatprep.mubr.bf16.mxu0 0
        %5155 = vmatmul.mubr.bf16.gmra.mrb[0].mxu0 %v4972
        %v5156 = vpop.f32.mrb[0].mxu0
        %v5157 = vadd.f32 0.0, %v5156
        %v5158 = vpop.f32.mrb[0].mxu0
        %v5159 = vpop.f32.mrb[0].mxu0
        %v5160 = vadd.f32 0.0, %v5159
        %v5161 = vpop.f32.mrb[0].mxu0
        %5162 = vmatprep.mubr.bf16.mxu0 0
        %5163 = vmatmul.mubr.bf16.gmra.mrb[0].mxu0 %v4973
        %v5164 = vpop.f32.mrb[0].mxu0
        %v5165 = vadd.f32 0.0, %v5164
        %v5166 = vpop.f32.mrb[0].mxu0
        %v5167 = vpop.f32.mrb[0].mxu0
        %v5168 = vadd.f32 0.0, %v5167
        %v5169 = vpop.f32.mrb[0].mxu0
        %5170 = vmatprep.mubr.bf16.mxu0 0
        %5171 = vmatmul.mubr.bf16.gmra.mrb[0].mxu0 %v4974
        %v5172 = vpop.f32.mrb[0].mxu0
        %v5173 = vadd.f32 0.0, %v5172
        %v5174 = vpop.f32.mrb[0].mxu0
        %v5175 = vpop.f32.mrb[0].mxu0
        %v5176 = vadd.f32 0.0, %v5175
        %v5177 = vpop.f32.mrb[0].mxu0
        %5178 = vmatprep.mubr.bf16.mxu0 0
        %5179 = vmatmul.mubr.bf16.gmra.mrb[0].mxu0 %v4975
        %v5180 = vpop.f32.mrb[0].mxu0
        %v5181 = vadd.f32 0.0, %v5180
        %v5182 = vpop.f32.mrb[0].mxu0
        %v5183 = vpop.f32.mrb[0].mxu0
        %v5184 = vadd.f32 0.0, %v5183
        %v5185 = vpop.f32.mrb[0].mxu0
        %5186 = vmatprep.mubr.bf16.mxu0 0
        %5187 = vmatmul.mubr.bf16.gmra.mrb[0].mxu0 %v4976
        %v5188 = vpop.f32.mrb[0].mxu0
        %v5189 = vadd.f32 0.0, %v5188
        %v5190 = vpop.f32.mrb[0].mxu0
        %v5191 = vpop.f32.mrb[0].mxu0
        %v5192 = vadd.f32 0.0, %v5191
        %v5193 = vpop.f32.mrb[0].mxu0
        %5194 = vmatprep.mubr.bf16.mxu0 0
        %5195 = vmatmul.mubr.bf16.gmra.mrb[0].mxu0 %v4977
        %v5196 = vpop.f32.mrb[0].mxu0
        %v5197 = vadd.f32 0.0, %v5196
        %v5198 = vpop.f32.mrb[0].mxu0
        %v5199 = vpop.f32.mrb[0].mxu0
        %v5200 = vadd.f32 0.0, %v5199
        %v5201 = vpop.f32.mrb[0].mxu0
        %5202 = vdwg.mxu0
        %v5203 = vadd.f32 %v4448, %v5077
        %v5204 = vadd.f32 %v4449, %v5080
        %v5205 = vadd.f32 %v4450, %v5085
        %v5206 = vadd.f32 %v4451, %v5088
        %v5207 = vadd.f32 %v4452, %v5093
        %v5208 = vadd.f32 %v4453, %v5096
        %v5209 = vadd.f32 %v4454, %v5101
        %v5210 = vadd.f32 %v4455, %v5104
        %v5211 = vadd.f32 %v4456, %v5109
        %v5212 = vadd.f32 %v4457, %v5112
        %v5213 = vadd.f32 %v4458, %v5117
        %v5214 = vadd.f32 %v4459, %v5120
        %v5215 = vadd.f32 %v4460, %v5125
        %v5216 = vadd.f32 %v4461, %v5128
        %v5217 = vadd.f32 %v4462, %v5133
        %v5218 = vadd.f32 %v4463, %v5136
        %v5219 = vadd.f32 %v4464, %v5141
        %v5220 = vadd.f32 %v4465, %v5144
        %v5221 = vadd.f32 %v4466, %v5149
        %v5222 = vadd.f32 %v4467, %v5152
        %v5223 = vadd.f32 %v4468, %v5157
        %v5224 = vadd.f32 %v4469, %v5160
        %v5225 = vadd.f32 %v4470, %v5165
        %v5226 = vadd.f32 %v4471, %v5168
        %v5227 = vadd.f32 %v4472, %v5173
        %v5228 = vadd.f32 %v4473, %v5176
        %v5229 = vadd.f32 %v4474, %v5181
        %v5230 = vadd.f32 %v4475, %v5184
        %v5231 = vadd.f32 %v4476, %v5189
        %v5232 = vadd.f32 %v4477, %v5192
        %v5233 = vadd.f32 %v4478, %v5197
        %v5234 = vadd.f32 %v4479, %v5200
        %v5235 = vld [vmem:[%s4480] sm:$0xe]
        %v5236 = vld [vmem:[%s4480 + $0xc] sm:$0xe]
        %v5237 = vld [vmem:[%s4480 + $0x18] sm:$0xe]
        %v5238 = vld [vmem:[%s4480 + $0x24] sm:$0xe]
        %v5239 = vld [vmem:[%s4480 + $0x30] sm:$0xe]
        %v5240 = vld [vmem:[%s4480 + $0x3c] sm:$0xe]
        %v5241 = vld [vmem:[%s4480 + $0x48] sm:$0xe]
        %v5242 = vld [vmem:[%s4480 + $0x54] sm:$0xe]
        %v5243 = vld [vmem:[%s4480 + $0x60] sm:$0xe]
        %v5244 = vld [vmem:[%s4480 + $0x6c] sm:$0xe]
        %v5245 = vld [vmem:[%s4480 + $0x78] sm:$0xe]
        %v5246 = vld [vmem:[%s4480 + $0x84] sm:$0xe]
        %v5247 = vld [vmem:[%s4480 + $0x90] sm:$0xe]
        %v5248 = vld [vmem:[%s4480 + $0x9c] sm:$0xe]
        %v5249 = vld [vmem:[%s4480 + $0xa8] sm:$0xe]
        %v5250 = vld [vmem:[%s4480 + $0xb4] sm:$0xe]
        %v5299 = vrot.slane %v5235, 5
        %v5300 = vrot.slane %v5299, 4
        %v5301 = vrot.slane %v4482, 5
        %v5302 = vsel %vm1137, %v5300, %v5301
        %v5303 = vrot.slane %v5301, 4
        %v5304 = vrot.slane %v4483, 5
        %v5305 = vsel %vm1137, %v5303, %v5304
        %v5306 = vrot.slane %v5236, 5
        %v5307 = vrot.slane %v5306, 4
        %v5308 = vrot.slane %v4485, 5
        %v5309 = vsel %vm1137, %v5307, %v5308
        %v5310 = vrot.slane %v5308, 4
        %v5311 = vrot.slane %v4486, 5
        %v5312 = vsel %vm1137, %v5310, %v5311
        %v5313 = vrot.slane %v5237, 5
        %v5314 = vrot.slane %v5313, 4
        %v5315 = vrot.slane %v4488, 5
        %v5316 = vsel %vm1137, %v5314, %v5315
        %v5317 = vrot.slane %v5315, 4
        %v5318 = vrot.slane %v4489, 5
        %v5319 = vsel %vm1137, %v5317, %v5318
        %v5320 = vrot.slane %v5238, 5
        %v5321 = vrot.slane %v5320, 4
        %v5322 = vrot.slane %v4491, 5
        %v5323 = vsel %vm1137, %v5321, %v5322
        %v5324 = vrot.slane %v5322, 4
        %v5325 = vrot.slane %v4492, 5
        %v5326 = vsel %vm1137, %v5324, %v5325
        %v5327 = vrot.slane %v5239, 5
        %v5328 = vrot.slane %v5327, 4
        %v5329 = vrot.slane %v4494, 5
        %v5330 = vsel %vm1137, %v5328, %v5329
        %v5331 = vrot.slane %v5329, 4
        %v5332 = vrot.slane %v4495, 5
        %v5333 = vsel %vm1137, %v5331, %v5332
        %v5334 = vrot.slane %v5240, 5
        %v5335 = vrot.slane %v5334, 4
        %v5336 = vrot.slane %v4497, 5
        %v5337 = vsel %vm1137, %v5335, %v5336
        %v5338 = vrot.slane %v5336, 4
        %v5339 = vrot.slane %v4498, 5
        %v5340 = vsel %vm1137, %v5338, %v5339
        %v5341 = vrot.slane %v5241, 5
        %v5342 = vrot.slane %v5341, 4
        %v5343 = vrot.slane %v4500, 5
        %v5344 = vsel %vm1137, %v5342, %v5343
        %v5345 = vrot.slane %v5343, 4
        %v5346 = vrot.slane %v4501, 5
        %v5347 = vsel %vm1137, %v5345, %v5346
        %v5348 = vrot.slane %v5242, 5
        %v5349 = vrot.slane %v5348, 4
        %v5350 = vrot.slane %v4503, 5
        %v5351 = vsel %vm1137, %v5349, %v5350
        %v5352 = vrot.slane %v5350, 4
        %v5353 = vrot.slane %v4504, 5
        %v5354 = vsel %vm1137, %v5352, %v5353
        %v5355 = vrot.slane %v5243, 5
        %v5356 = vrot.slane %v5355, 4
        %v5357 = vrot.slane %v4506, 5
        %v5358 = vsel %vm1137, %v5356, %v5357
        %v5359 = vrot.slane %v5357, 4
        %v5360 = vrot.slane %v4507, 5
        %v5361 = vsel %vm1137, %v5359, %v5360
        %v5362 = vrot.slane %v5244, 5
        %v5363 = vrot.slane %v5362, 4
        %v5364 = vrot.slane %v4509, 5
        %v5365 = vsel %vm1137, %v5363, %v5364
        %v5366 = vrot.slane %v5364, 4
        %v5367 = vrot.slane %v4510, 5
        %v5368 = vsel %vm1137, %v5366, %v5367
        %v5369 = vrot.slane %v5245, 5
        %v5370 = vrot.slane %v5369, 4
        %v5371 = vrot.slane %v4512, 5
        %v5372 = vsel %vm1137, %v5370, %v5371
        %v5373 = vrot.slane %v5371, 4
        %v5374 = vrot.slane %v4513, 5
        %v5375 = vsel %vm1137, %v5373, %v5374
        %v5376 = vrot.slane %v5246, 5
        %v5377 = vrot.slane %v5376, 4
        %v5378 = vrot.slane %v4515, 5
        %v5379 = vsel %vm1137, %v5377, %v5378
        %v5380 = vrot.slane %v5378, 4
        %v5381 = vrot.slane %v4516, 5
        %v5382 = vsel %vm1137, %v5380, %v5381
        %v5383 = vrot.slane %v5247, 5
        %v5384 = vrot.slane %v5383, 4
        %v5385 = vrot.slane %v4518, 5
        %v5386 = vsel %vm1137, %v5384, %v5385
        %v5387 = vrot.slane %v5385, 4
        %v5388 = vrot.slane %v4519, 5
        %v5389 = vsel %vm1137, %v5387, %v5388
        %v5390 = vrot.slane %v5248, 5
        %v5391 = vrot.slane %v5390, 4
        %v5392 = vrot.slane %v4521, 5
        %v5393 = vsel %vm1137, %v5391, %v5392
        %v5394 = vrot.slane %v5392, 4
        %v5395 = vrot.slane %v4522, 5
        %v5396 = vsel %vm1137, %v5394, %v5395
        %v5397 = vrot.slane %v5249, 5
        %v5398 = vrot.slane %v5397, 4
        %v5399 = vrot.slane %v4524, 5
        %v5400 = vsel %vm1137, %v5398, %v5399
        %v5401 = vrot.slane %v5399, 4
        %v5402 = vrot.slane %v4525, 5
        %v5403 = vsel %vm1137, %v5401, %v5402
        %v5404 = vrot.slane %v5250, 5
        %v5405 = vrot.slane %v5404, 4
        %v5406 = vrot.slane %v4527, 5
        %v5407 = vsel %vm1137, %v5405, %v5406
        %v5408 = vrot.slane %v5406, 4
        %v5409 = vrot.slane %v4528, 5
        %v5410 = vsel %vm1137, %v5408, %v5409
        %s5411 = scalar_lea.vmem [#allocation7], 448
        %v5412 = vld [vmem:[%s5411] sm:$0xf]
        %v5413 = vld [vmem:[%s5411 + $0x4] sm:$0xf]
        %v5414 = vld [vmem:[%s5411 + $0x8] sm:$0xf]
        %v5415 = vld [vmem:[%s5411 + $0xc] sm:$0xf]
        %v5416 = vld [vmem:[%s5411 + $0x10] sm:$0xf]
        %v5417 = vld [vmem:[%s5411 + $0x14] sm:$0xf]
        %v5418 = vld [vmem:[%s5411 + $0x18] sm:$0xf]
        %v5419 = vld [vmem:[%s5411 + $0x1c] sm:$0xf]
        %v5420 = vld [vmem:[%s5411 + $0x20] sm:$0xf]
        %v5421 = vld [vmem:[%s5411 + $0x24] sm:$0xf]
        %v5422 = vld [vmem:[%s5411 + $0x28] sm:$0xf]
        %v5423 = vld [vmem:[%s5411 + $0x2c] sm:$0xf]
        %v5424 = vld [vmem:[%s5411 + $0x30] sm:$0xf]
        %v5425 = vld [vmem:[%s5411 + $0x34] sm:$0xf]
        %v5426 = vld [vmem:[%s5411 + $0x38] sm:$0xf]
        %v5427 = vld [vmem:[%s5411 + $0x3c] sm:$0xf]
        %v5428 = vunpack.c.l.b16 %v5302
        %v5429 = vunpack.c.l.b16 %v5305
        %v5430 = vunpack.c.l.b16 %v5309
        %v5431 = vunpack.c.l.b16 %v5312
        %v5432 = vunpack.c.l.b16 %v5316
        %v5433 = vunpack.c.l.b16 %v5319
        %v5434 = vunpack.c.l.b16 %v5323
        %v5435 = vunpack.c.l.b16 %v5326
        %v5436 = vunpack.c.l.b16 %v5330
        %v5437 = vunpack.c.l.b16 %v5333
        %v5438 = vunpack.c.l.b16 %v5337
        %v5439 = vunpack.c.l.b16 %v5340
        %v5440 = vunpack.c.l.b16 %v5344
        %v5441 = vunpack.c.l.b16 %v5347
        %v5442 = vunpack.c.l.b16 %v5351
        %v5443 = vunpack.c.l.b16 %v5354
        %v5444 = vunpack.c.l.b16 %v5358
        %v5445 = vunpack.c.l.b16 %v5361
        %v5446 = vunpack.c.l.b16 %v5365
        %v5447 = vunpack.c.l.b16 %v5368
        %v5448 = vunpack.c.l.b16 %v5372
        %v5449 = vunpack.c.l.b16 %v5375
        %v5450 = vunpack.c.l.b16 %v5379
        %v5451 = vunpack.c.l.b16 %v5382
        %v5452 = vunpack.c.l.b16 %v5386
        %v5453 = vunpack.c.l.b16 %v5389
        %v5454 = vunpack.c.l.b16 %v5393
        %v5455 = vunpack.c.l.b16 %v5396
        %v5456 = vunpack.c.l.b16 %v5400
        %v5457 = vunpack.c.l.b16 %v5403
        %v5458 = vunpack.c.l.b16 %v5407
        %v5459 = vunpack.c.l.b16 %v5410
        %v5460 = vpack.c.b16 %v5429, %v5428
        %v5461 = vpack.c.b16 %v5431, %v5430
        %v5462 = vpack.c.b16 %v5433, %v5432
        %v5463 = vpack.c.b16 %v5435, %v5434
        %v5464 = vpack.c.b16 %v5437, %v5436
        %v5465 = vpack.c.b16 %v5439, %v5438
        %v5466 = vpack.c.b16 %v5441, %v5440
        %v5467 = vpack.c.b16 %v5443, %v5442
        %v5468 = vpack.c.b16 %v5445, %v5444
        %v5469 = vpack.c.b16 %v5447, %v5446
        %v5470 = vpack.c.b16 %v5449, %v5448
        %v5471 = vpack.c.b16 %v5451, %v5450
        %v5472 = vpack.c.b16 %v5453, %v5452
        %v5473 = vpack.c.b16 %v5455, %v5454
        %v5474 = vpack.c.b16 %v5457, %v5456
        %v5475 = vpack.c.b16 %v5459, %v5458
        %v5508 = vunpack.c.l.b16 %v5412
        %v5509 = vunpack.c.l.b16 %v5413
        %v5510 = vunpack.c.l.b16 %v5414
        %v5511 = vunpack.c.l.b16 %v5415
        %v5512 = vunpack.c.l.b16 %v5416
        %v5513 = vunpack.c.l.b16 %v5417
        %v5514 = vunpack.c.l.b16 %v5418
        %v5515 = vunpack.c.l.b16 %v5419
        %v5516 = vunpack.c.l.b16 %v5420
        %v5517 = vunpack.c.l.b16 %v5421
        %v5518 = vunpack.c.l.b16 %v5422
        %v5519 = vunpack.c.l.b16 %v5423
        %v5520 = vunpack.c.l.b16 %v5424
        %v5521 = vunpack.c.l.b16 %v5425
        %v5522 = vunpack.c.l.b16 %v5426
        %v5523 = vunpack.c.l.b16 %v5427
        %v5524 = vpack.c.b16 %v5509, %v5508
        %v5525 = vpack.c.b16 %v5511, %v5510
        %v5526 = vpack.c.b16 %v5513, %v5512
        %v5527 = vpack.c.b16 %v5515, %v5514
        %v5528 = vpack.c.b16 %v5517, %v5516
        %v5529 = vpack.c.b16 %v5519, %v5518
        %v5530 = vpack.c.b16 %v5521, %v5520
        %v5531 = vpack.c.b16 %v5523, %v5522
        %5540 = vmatprep.subr.bf16.mxu0 0
        %5541 = vmatpush1.bf16.msra.mxu0 %v5524
        %5542 = vmatprep.subr.bf16.mxu0 0
        %5543 = vmatpush1.bf16.msra.mxu0 %v5525
        %5544 = vmatprep.subr.bf16.mxu0 0
        %5545 = vmatpush1.bf16.msra.mxu0 %v5526
        %5546 = vmatprep.subr.bf16.mxu0 0
        %5547 = vmatpush1.bf16.msra.mxu0 %v5527
        %5548 = vmatprep.subr.bf16.mxu0 0
        %5549 = vmatpush1.bf16.msra.mxu0 %v5528
        %5550 = vmatprep.subr.bf16.mxu0 0
        %5551 = vmatpush1.bf16.msra.mxu0 %v5529
        %5552 = vmatprep.subr.bf16.mxu0 0
        %5553 = vmatpush1.bf16.msra.mxu0 %v5530
        %5554 = vmatprep.subr.bf16.mxu0 0
        %5555 = vmatpush1.bf16.msra.mxu0 %v5531
        %5556 = vmatprep.subr.bf16.mxu0 0
        %5557 = vmatpush1.bf16.msra.mxu0 0
        %5558 = vmatprep.subr.bf16.mxu0 0
        %5559 = vmatpush1.bf16.msra.mxu0 0
        %5560 = vmatprep.subr.bf16.mxu0 0
        %5561 = vmatpush1.bf16.msra.mxu0 0
        %5562 = vmatprep.subr.bf16.mxu0 0
        %5563 = vmatpush1.bf16.msra.mxu0 0
        %5564 = vmatprep.subr.bf16.mxu0 0
        %5565 = vmatpush1.bf16.msra.mxu0 0
        %5566 = vmatprep.subr.bf16.mxu0 0
        %5567 = vmatpush1.bf16.msra.mxu0 0
        %5568 = vmatprep.subr.bf16.mxu0 0
        %5569 = vmatpush1.bf16.msra.mxu0 0
        %5570 = vmatprep.subr.bf16.mxu0 0
        %5571 = vmatpush1.bf16.msra.mxu0 0
        %5572 = vmatprep.mubr.bf16.mxu0 0
        %5573 = vmatmul.mubr.bf16.gmra.mrb[0].mxu0 %v5460
        %v5574 = vpop.f32.mrb[0].mxu0
        %v5575 = vadd.f32 0.0, %v5574
        %v5576 = vpop.f32.mrb[0].mxu0
        %v5577 = vpop.f32.mrb[0].mxu0
        %v5578 = vadd.f32 0.0, %v5577
        %v5579 = vpop.f32.mrb[0].mxu0
        %5580 = vmatprep.mubr.bf16.mxu0 0
        %5581 = vmatmul.mubr.bf16.gmra.mrb[0].mxu0 %v5461
        %v5582 = vpop.f32.mrb[0].mxu0
        %v5583 = vadd.f32 0.0, %v5582
        %v5584 = vpop.f32.mrb[0].mxu0
        %v5585 = vpop.f32.mrb[0].mxu0
        %v5586 = vadd.f32 0.0, %v5585
        %v5587 = vpop.f32.mrb[0].mxu0
        %5588 = vmatprep.mubr.bf16.mxu0 0
        %5589 = vmatmul.mubr.bf16.gmra.mrb[0].mxu0 %v5462
        %v5590 = vpop.f32.mrb[0].mxu0
        %v5591 = vadd.f32 0.0, %v5590
        %v5592 = vpop.f32.mrb[0].mxu0
        %v5593 = vpop.f32.mrb[0].mxu0
        %v5594 = vadd.f32 0.0, %v5593
        %v5595 = vpop.f32.mrb[0].mxu0
        %5596 = vmatprep.mubr.bf16.mxu0 0
        %5597 = vmatmul.mubr.bf16.gmra.mrb[0].mxu0 %v5463
        %v5598 = vpop.f32.mrb[0].mxu0
        %v5599 = vadd.f32 0.0, %v5598
        %v5600 = vpop.f32.mrb[0].mxu0
        %v5601 = vpop.f32.mrb[0].mxu0
        %v5602 = vadd.f32 0.0, %v5601
        %v5603 = vpop.f32.mrb[0].mxu0
        %5604 = vmatprep.mubr.bf16.mxu0 0
        %5605 = vmatmul.mubr.bf16.gmra.mrb[0].mxu0 %v5464
        %v5606 = vpop.f32.mrb[0].mxu0
        %v5607 = vadd.f32 0.0, %v5606
        %v5608 = vpop.f32.mrb[0].mxu0
        %v5609 = vpop.f32.mrb[0].mxu0
        %v5610 = vadd.f32 0.0, %v5609
        %v5611 = vpop.f32.mrb[0].mxu0
        %5612 = vmatprep.mubr.bf16.mxu0 0
        %5613 = vmatmul.mubr.bf16.gmra.mrb[0].mxu0 %v5465
        %v5614 = vpop.f32.mrb[0].mxu0
        %v5615 = vadd.f32 0.0, %v5614
        %v5616 = vpop.f32.mrb[0].mxu0
        %v5617 = vpop.f32.mrb[0].mxu0
        %v5618 = vadd.f32 0.0, %v5617
        %v5619 = vpop.f32.mrb[0].mxu0
        %5620 = vmatprep.mubr.bf16.mxu0 0
        %5621 = vmatmul.mubr.bf16.gmra.mrb[0].mxu0 %v5466
        %v5622 = vpop.f32.mrb[0].mxu0
        %v5623 = vadd.f32 0.0, %v5622
        %v5624 = vpop.f32.mrb[0].mxu0
        %v5625 = vpop.f32.mrb[0].mxu0
        %v5626 = vadd.f32 0.0, %v5625
        %v5627 = vpop.f32.mrb[0].mxu0
        %5628 = vmatprep.mubr.bf16.mxu0 0
        %5629 = vmatmul.mubr.bf16.gmra.mrb[0].mxu0 %v5467
        %v5630 = vpop.f32.mrb[0].mxu0
        %v5631 = vadd.f32 0.0, %v5630
        %v5632 = vpop.f32.mrb[0].mxu0
        %v5633 = vpop.f32.mrb[0].mxu0
        %v5634 = vadd.f32 0.0, %v5633
        %v5635 = vpop.f32.mrb[0].mxu0
        %5636 = vmatprep.mubr.bf16.mxu0 0
        %5637 = vmatmul.mubr.bf16.gmra.mrb[0].mxu0 %v5468
        %v5638 = vpop.f32.mrb[0].mxu0
        %v5639 = vadd.f32 0.0, %v5638
        %v5640 = vpop.f32.mrb[0].mxu0
        %v5641 = vpop.f32.mrb[0].mxu0
        %v5642 = vadd.f32 0.0, %v5641
        %v5643 = vpop.f32.mrb[0].mxu0
        %5644 = vmatprep.mubr.bf16.mxu0 0
        %5645 = vmatmul.mubr.bf16.gmra.mrb[0].mxu0 %v5469
        %v5646 = vpop.f32.mrb[0].mxu0
        %v5647 = vadd.f32 0.0, %v5646
        %v5648 = vpop.f32.mrb[0].mxu0
        %v5649 = vpop.f32.mrb[0].mxu0
        %v5650 = vadd.f32 0.0, %v5649
        %v5651 = vpop.f32.mrb[0].mxu0
        %5652 = vmatprep.mubr.bf16.mxu0 0
        %5653 = vmatmul.mubr.bf16.gmra.mrb[0].mxu0 %v5470
        %v5654 = vpop.f32.mrb[0].mxu0
        %v5655 = vadd.f32 0.0, %v5654
        %v5656 = vpop.f32.mrb[0].mxu0
        %v5657 = vpop.f32.mrb[0].mxu0
        %v5658 = vadd.f32 0.0, %v5657
        %v5659 = vpop.f32.mrb[0].mxu0
        %5660 = vmatprep.mubr.bf16.mxu0 0
        %5661 = vmatmul.mubr.bf16.gmra.mrb[0].mxu0 %v5471
        %v5662 = vpop.f32.mrb[0].mxu0
        %v5663 = vadd.f32 0.0, %v5662
        %v5664 = vpop.f32.mrb[0].mxu0
        %v5665 = vpop.f32.mrb[0].mxu0
        %v5666 = vadd.f32 0.0, %v5665
        %v5667 = vpop.f32.mrb[0].mxu0
        %5668 = vmatprep.mubr.bf16.mxu0 0
        %5669 = vmatmul.mubr.bf16.gmra.mrb[0].mxu0 %v5472
        %v5670 = vpop.f32.mrb[0].mxu0
        %v5671 = vadd.f32 0.0, %v5670
        %v5672 = vpop.f32.mrb[0].mxu0
        %v5673 = vpop.f32.mrb[0].mxu0
        %v5674 = vadd.f32 0.0, %v5673
        %v5675 = vpop.f32.mrb[0].mxu0
        %5676 = vmatprep.mubr.bf16.mxu0 0
        %5677 = vmatmul.mubr.bf16.gmra.mrb[0].mxu0 %v5473
        %v5678 = vpop.f32.mrb[0].mxu0
        %v5679 = vadd.f32 0.0, %v5678
        %v5680 = vpop.f32.mrb[0].mxu0
        %v5681 = vpop.f32.mrb[0].mxu0
        %v5682 = vadd.f32 0.0, %v5681
        %v5683 = vpop.f32.mrb[0].mxu0
        %5684 = vmatprep.mubr.bf16.mxu0 0
        %5685 = vmatmul.mubr.bf16.gmra.mrb[0].mxu0 %v5474
        %v5686 = vpop.f32.mrb[0].mxu0
        %v5687 = vadd.f32 0.0, %v5686
        %v5688 = vpop.f32.mrb[0].mxu0
        %v5689 = vpop.f32.mrb[0].mxu0
        %v5690 = vadd.f32 0.0, %v5689
        %v5691 = vpop.f32.mrb[0].mxu0
        %5692 = vmatprep.mubr.bf16.mxu0 0
        %5693 = vmatmul.mubr.bf16.gmra.mrb[0].mxu0 %v5475
        %v5694 = vpop.f32.mrb[0].mxu0
        %v5695 = vadd.f32 0.0, %v5694
        %v5696 = vpop.f32.mrb[0].mxu0
        %v5697 = vpop.f32.mrb[0].mxu0
        %v5698 = vadd.f32 0.0, %v5697
        %v5699 = vpop.f32.mrb[0].mxu0
        %5700 = vdwg.mxu0
        %v5701 = vadd.f32 %v5203, %v5575
        %v5702 = vadd.f32 %v5204, %v5578
        %v5703 = vadd.f32 %v5205, %v5583
        %v5704 = vadd.f32 %v5206, %v5586
        %v5705 = vadd.f32 %v5207, %v5591
        %v5706 = vadd.f32 %v5208, %v5594
        %v5707 = vadd.f32 %v5209, %v5599
        %v5708 = vadd.f32 %v5210, %v5602
        %v5709 = vadd.f32 %v5211, %v5607
        %v5710 = vadd.f32 %v5212, %v5610
        %v5711 = vadd.f32 %v5213, %v5615
        %v5712 = vadd.f32 %v5214, %v5618
        %v5713 = vadd.f32 %v5215, %v5623
        %v5714 = vadd.f32 %v5216, %v5626
        %v5715 = vadd.f32 %v5217, %v5631
        %v5716 = vadd.f32 %v5218, %v5634
        %v5717 = vadd.f32 %v5219, %v5639
        %v5718 = vadd.f32 %v5220, %v5642
        %v5719 = vadd.f32 %v5221, %v5647
        %v5720 = vadd.f32 %v5222, %v5650
        %v5721 = vadd.f32 %v5223, %v5655
        %v5722 = vadd.f32 %v5224, %v5658
        %v5723 = vadd.f32 %v5225, %v5663
        %v5724 = vadd.f32 %v5226, %v5666
        %v5725 = vadd.f32 %v5227, %v5671
        %v5726 = vadd.f32 %v5228, %v5674
        %v5727 = vadd.f32 %v5229, %v5679
        %v5728 = vadd.f32 %v5230, %v5682
        %v5729 = vadd.f32 %v5231, %v5687
        %v5730 = vadd.f32 %v5232, %v5690
        %v5731 = vadd.f32 %v5233, %v5695
        %v5732 = vadd.f32 %v5234, %v5698
        %v5733 = vld [vmem:[%s4480 + $0x8] sm:$0x3]
        %v5734 = vld [vmem:[%s4480 + $0x14] sm:$0x3]
        %v5735 = vld [vmem:[%s4480 + $0x20] sm:$0x3]
        %v5736 = vld [vmem:[%s4480 + $0x2c] sm:$0x3]
        %v5737 = vld [vmem:[%s4480 + $0x38] sm:$0x3]
        %v5738 = vld [vmem:[%s4480 + $0x44] sm:$0x3]
        %v5739 = vld [vmem:[%s4480 + $0x50] sm:$0x3]
        %v5740 = vld [vmem:[%s4480 + $0x5c] sm:$0x3]
        %v5741 = vld [vmem:[%s4480 + $0x68] sm:$0x3]
        %v5742 = vld [vmem:[%s4480 + $0x74] sm:$0x3]
        %v5743 = vld [vmem:[%s4480 + $0x80] sm:$0x3]
        %v5744 = vld [vmem:[%s4480 + $0x8c] sm:$0x3]
        %v5745 = vld [vmem:[%s4480 + $0x98] sm:$0x3]
        %v5746 = vld [vmem:[%s4480 + $0xa4] sm:$0x3]
        %v5747 = vld [vmem:[%s4480 + $0xb0] sm:$0x3]
        %v5748 = vld [vmem:[%s4480 + $0xbc] sm:$0x3]
        %v5750 = vshrl.u32 %v5235, 16
        %v5752 = vrot.slane %v5750, 5
        %v5753 = vshll.u32 %v5235, 16
        %v5755 = vrot.slane %v5753, 6
        %v5756 = vor.u32 %v5752, %v5755
        %v5757 = vrot.slane %v5756, 4
        %v5758 = vrot.slane %v4543, 5
        %v5759 = vrot.slane %v4539, 6
        %v5760 = vor.u32 %v5758, %v5759
        %v5761 = vsel %vm1831, %v5757, %v5760
        %v5762 = vrot.slane %v5760, 4
        %v5764 = vshrl.u32 %v5733, 16
        %v5766 = vrot.slane %v5764, 5
        %v5767 = vshll.u32 %v5733, 16
        %v5769 = vrot.slane %v5767, 6
        %v5770 = vor.u32 %v5766, %v5769
        %v5771 = vsel %vm1831, %v5762, %v5770
        %v5773 = vshrl.u32 %v5236, 16
        %v5775 = vrot.slane %v5773, 5
        %v5776 = vshll.u32 %v5236, 16
        %v5778 = vrot.slane %v5776, 6
        %v5779 = vor.u32 %v5775, %v5778
        %v5780 = vrot.slane %v5779, 4
        %v5781 = vrot.slane %v4567, 5
        %v5782 = vrot.slane %v4563, 6
        %v5783 = vor.u32 %v5781, %v5782
        %v5784 = vsel %vm1831, %v5780, %v5783
        %v5785 = vrot.slane %v5783, 4
        %v5787 = vshrl.u32 %v5734, 16
        %v5789 = vrot.slane %v5787, 5
        %v5790 = vshll.u32 %v5734, 16
        %v5792 = vrot.slane %v5790, 6
        %v5793 = vor.u32 %v5789, %v5792
        %v5794 = vsel %vm1831, %v5785, %v5793
        %v5796 = vshrl.u32 %v5237, 16
        %v5798 = vrot.slane %v5796, 5
        %v5799 = vshll.u32 %v5237, 16
        %v5801 = vrot.slane %v5799, 6
        %v5802 = vor.u32 %v5798, %v5801
        %v5803 = vrot.slane %v5802, 4
        %v5804 = vrot.slane %v4591, 5
        %v5805 = vrot.slane %v4587, 6
        %v5806 = vor.u32 %v5804, %v5805
        %v5807 = vsel %vm1831, %v5803, %v5806
        %v5808 = vrot.slane %v5806, 4
        %v5810 = vshrl.u32 %v5735, 16
        %v5812 = vrot.slane %v5810, 5
        %v5813 = vshll.u32 %v5735, 16
        %v5815 = vrot.slane %v5813, 6
        %v5816 = vor.u32 %v5812, %v5815
        %v5817 = vsel %vm1831, %v5808, %v5816
        %v5819 = vshrl.u32 %v5238, 16
        %v5821 = vrot.slane %v5819, 5
        %v5822 = vshll.u32 %v5238, 16
        %v5824 = vrot.slane %v5822, 6
        %v5825 = vor.u32 %v5821, %v5824
        %v5826 = vrot.slane %v5825, 4
        %v5827 = vrot.slane %v4615, 5
        %v5828 = vrot.slane %v4611, 6
        %v5829 = vor.u32 %v5827, %v5828
        %v5830 = vsel %vm1831, %v5826, %v5829
        %v5831 = vrot.slane %v5829, 4
        %v5833 = vshrl.u32 %v5736, 16
        %v5835 = vrot.slane %v5833, 5
        %v5836 = vshll.u32 %v5736, 16
        %v5838 = vrot.slane %v5836, 6
        %v5839 = vor.u32 %v5835, %v5838
        %v5840 = vsel %vm1831, %v5831, %v5839
        %v5842 = vshrl.u32 %v5239, 16
        %v5844 = vrot.slane %v5842, 5
        %v5845 = vshll.u32 %v5239, 16
        %v5847 = vrot.slane %v5845, 6
        %v5848 = vor.u32 %v5844, %v5847
        %v5849 = vrot.slane %v5848, 4
        %v5850 = vrot.slane %v4639, 5
        %v5851 = vrot.slane %v4635, 6
        %v5852 = vor.u32 %v5850, %v5851
        %v5853 = vsel %vm1831, %v5849, %v5852
        %v5854 = vrot.slane %v5852, 4
        %v5856 = vshrl.u32 %v5737, 16
        %v5858 = vrot.slane %v5856, 5
        %v5859 = vshll.u32 %v5737, 16
        %v5861 = vrot.slane %v5859, 6
        %v5862 = vor.u32 %v5858, %v5861
        %v5863 = vsel %vm1831, %v5854, %v5862
        %v5865 = vshrl.u32 %v5240, 16
        %v5867 = vrot.slane %v5865, 5
        %v5868 = vshll.u32 %v5240, 16
        %v5870 = vrot.slane %v5868, 6
        %v5871 = vor.u32 %v5867, %v5870
        %v5872 = vrot.slane %v5871, 4
        %v5873 = vrot.slane %v4663, 5
        %v5874 = vrot.slane %v4659, 6
        %v5875 = vor.u32 %v5873, %v5874
        %v5876 = vsel %vm1831, %v5872, %v5875
        %v5877 = vrot.slane %v5875, 4
        %v5879 = vshrl.u32 %v5738, 16
        %v5881 = vrot.slane %v5879, 5
        %v5882 = vshll.u32 %v5738, 16
        %v5884 = vrot.slane %v5882, 6
        %v5885 = vor.u32 %v5881, %v5884
        %v5886 = vsel %vm1831, %v5877, %v5885
        %v5888 = vshrl.u32 %v5241, 16
        %v5890 = vrot.slane %v5888, 5
        %v5891 = vshll.u32 %v5241, 16
        %v5893 = vrot.slane %v5891, 6
        %v5894 = vor.u32 %v5890, %v5893
        %v5895 = vrot.slane %v5894, 4
        %v5896 = vrot.slane %v4687, 5
        %v5897 = vrot.slane %v4683, 6
        %v5898 = vor.u32 %v5896, %v5897
        %v5899 = vsel %vm1831, %v5895, %v5898
        %v5900 = vrot.slane %v5898, 4
        %v5902 = vshrl.u32 %v5739, 16
        %v5904 = vrot.slane %v5902, 5
        %v5905 = vshll.u32 %v5739, 16
        %v5907 = vrot.slane %v5905, 6
        %v5908 = vor.u32 %v5904, %v5907
        %v5909 = vsel %vm1831, %v5900, %v5908
        %v5911 = vshrl.u32 %v5242, 16
        %v5913 = vrot.slane %v5911, 5
        %v5914 = vshll.u32 %v5242, 16
        %v5916 = vrot.slane %v5914, 6
        %v5917 = vor.u32 %v5913, %v5916
        %v5918 = vrot.slane %v5917, 4
        %v5919 = vrot.slane %v4711, 5
        %v5920 = vrot.slane %v4707, 6
        %v5921 = vor.u32 %v5919, %v5920
        %v5922 = vsel %vm1831, %v5918, %v5921
        %v5923 = vrot.slane %v5921, 4
        %v5925 = vshrl.u32 %v5740, 16
        %v5927 = vrot.slane %v5925, 5
        %v5928 = vshll.u32 %v5740, 16
        %v5930 = vrot.slane %v5928, 6
        %v5931 = vor.u32 %v5927, %v5930
        %v5932 = vsel %vm1831, %v5923, %v5931
        %v5934 = vshrl.u32 %v5243, 16
        %v5936 = vrot.slane %v5934, 5
        %v5937 = vshll.u32 %v5243, 16
        %v5939 = vrot.slane %v5937, 6
        %v5940 = vor.u32 %v5936, %v5939
        %v5941 = vrot.slane %v5940, 4
        %v5942 = vrot.slane %v4735, 5
        %v5943 = vrot.slane %v4731, 6
        %v5944 = vor.u32 %v5942, %v5943
        %v5945 = vsel %vm1831, %v5941, %v5944
        %v5946 = vrot.slane %v5944, 4
        %v5948 = vshrl.u32 %v5741, 16
        %v5950 = vrot.slane %v5948, 5
        %v5951 = vshll.u32 %v5741, 16
        %v5953 = vrot.slane %v5951, 6
        %v5954 = vor.u32 %v5950, %v5953
        %v5955 = vsel %vm1831, %v5946, %v5954
        %v5957 = vshrl.u32 %v5244, 16
        %v5959 = vrot.slane %v5957, 5
        %v5960 = vshll.u32 %v5244, 16
        %v5962 = vrot.slane %v5960, 6
        %v5963 = vor.u32 %v5959, %v5962
        %v5964 = vrot.slane %v5963, 4
        %v5965 = vrot.slane %v4759, 5
        %v5966 = vrot.slane %v4755, 6
        %v5967 = vor.u32 %v5965, %v5966
        %v5968 = vsel %vm1831, %v5964, %v5967
        %v5969 = vrot.slane %v5967, 4
        %v5971 = vshrl.u32 %v5742, 16
        %v5973 = vrot.slane %v5971, 5
        %v5974 = vshll.u32 %v5742, 16
        %v5976 = vrot.slane %v5974, 6
        %v5977 = vor.u32 %v5973, %v5976
        %v5978 = vsel %vm1831, %v5969, %v5977
        %v5980 = vshrl.u32 %v5245, 16
        %v5982 = vrot.slane %v5980, 5
        %v5983 = vshll.u32 %v5245, 16
        %v5985 = vrot.slane %v5983, 6
        %v5986 = vor.u32 %v5982, %v5985
        %v5987 = vrot.slane %v5986, 4
        %v5988 = vrot.slane %v4783, 5
        %v5989 = vrot.slane %v4779, 6
        %v5990 = vor.u32 %v5988, %v5989
        %v5991 = vsel %vm1831, %v5987, %v5990
        %v5992 = vrot.slane %v5990, 4
        %v5994 = vshrl.u32 %v5743, 16
        %v5996 = vrot.slane %v5994, 5
        %v5997 = vshll.u32 %v5743, 16
        %v5999 = vrot.slane %v5997, 6
        %v6000 = vor.u32 %v5996, %v5999
        %v6001 = vsel %vm1831, %v5992, %v6000
        %v6003 = vshrl.u32 %v5246, 16
        %v6005 = vrot.slane %v6003, 5
        %v6006 = vshll.u32 %v5246, 16
        %v6008 = vrot.slane %v6006, 6
        %v6009 = vor.u32 %v6005, %v6008
        %v6010 = vrot.slane %v6009, 4
        %v6011 = vrot.slane %v4807, 5
        %v6012 = vrot.slane %v4803, 6
        %v6013 = vor.u32 %v6011, %v6012
        %v6014 = vsel %vm1831, %v6010, %v6013
        %v6015 = vrot.slane %v6013, 4
        %v6017 = vshrl.u32 %v5744, 16
        %v6019 = vrot.slane %v6017, 5
        %v6020 = vshll.u32 %v5744, 16
        %v6022 = vrot.slane %v6020, 6
        %v6023 = vor.u32 %v6019, %v6022
        %v6024 = vsel %vm1831, %v6015, %v6023
        %v6026 = vshrl.u32 %v5247, 16
        %v6028 = vrot.slane %v6026, 5
        %v6029 = vshll.u32 %v5247, 16
        %v6031 = vrot.slane %v6029, 6
        %v6032 = vor.u32 %v6028, %v6031
        %v6033 = vrot.slane %v6032, 4
        %v6034 = vrot.slane %v4831, 5
        %v6035 = vrot.slane %v4827, 6
        %v6036 = vor.u32 %v6034, %v6035
        %v6037 = vsel %vm1831, %v6033, %v6036
        %v6038 = vrot.slane %v6036, 4
        %v6040 = vshrl.u32 %v5745, 16
        %v6042 = vrot.slane %v6040, 5
        %v6043 = vshll.u32 %v5745, 16
        %v6045 = vrot.slane %v6043, 6
        %v6046 = vor.u32 %v6042, %v6045
        %v6047 = vsel %vm1831, %v6038, %v6046
        %v6049 = vshrl.u32 %v5248, 16
        %v6051 = vrot.slane %v6049, 5
        %v6052 = vshll.u32 %v5248, 16
        %v6054 = vrot.slane %v6052, 6
        %v6055 = vor.u32 %v6051, %v6054
        %v6056 = vrot.slane %v6055, 4
        %v6057 = vrot.slane %v4855, 5
        %v6058 = vrot.slane %v4851, 6
        %v6059 = vor.u32 %v6057, %v6058
        %v6060 = vsel %vm1831, %v6056, %v6059
        %v6061 = vrot.slane %v6059, 4
        %v6063 = vshrl.u32 %v5746, 16
        %v6065 = vrot.slane %v6063, 5
        %v6066 = vshll.u32 %v5746, 16
        %v6068 = vrot.slane %v6066, 6
        %v6069 = vor.u32 %v6065, %v6068
        %v6070 = vsel %vm1831, %v6061, %v6069
        %v6072 = vshrl.u32 %v5249, 16
        %v6074 = vrot.slane %v6072, 5
        %v6075 = vshll.u32 %v5249, 16
        %v6077 = vrot.slane %v6075, 6
        %v6078 = vor.u32 %v6074, %v6077
        %v6079 = vrot.slane %v6078, 4
        %v6080 = vrot.slane %v4879, 5
        %v6081 = vrot.slane %v4875, 6
        %v6082 = vor.u32 %v6080, %v6081
        %v6083 = vsel %vm1831, %v6079, %v6082
        %v6084 = vrot.slane %v6082, 4
        %v6086 = vshrl.u32 %v5747, 16
        %v6088 = vrot.slane %v6086, 5
        %v6089 = vshll.u32 %v5747, 16
        %v6091 = vrot.slane %v6089, 6
        %v6092 = vor.u32 %v6088, %v6091
        %v6093 = vsel %vm1831, %v6084, %v6092
        %v6095 = vshrl.u32 %v5250, 16
        %v6097 = vrot.slane %v6095, 5
        %v6098 = vshll.u32 %v5250, 16
        %v6100 = vrot.slane %v6098, 6
        %v6101 = vor.u32 %v6097, %v6100
        %v6102 = vrot.slane %v6101, 4
        %v6103 = vrot.slane %v4903, 5
        %v6104 = vrot.slane %v4899, 6
        %v6105 = vor.u32 %v6103, %v6104
        %v6106 = vsel %vm1831, %v6102, %v6105
        %v6107 = vrot.slane %v6105, 4
        %v6109 = vshrl.u32 %v5748, 16
        %v6111 = vrot.slane %v6109, 5
        %v6112 = vshll.u32 %v5748, 16
        %v6114 = vrot.slane %v6112, 6
        %v6115 = vor.u32 %v6111, %v6114
        %v6116 = vsel %vm1831, %v6107, %v6115
        %s6117 = scalar_lea.vmem [#allocation7], 512
        %v6118 = vld [vmem:[%s6117] sm:$0xf]
        %v6119 = vld [vmem:[%s6117 + $0x4] sm:$0xf]
        %v6120 = vld [vmem:[%s6117 + $0x8] sm:$0xf]
        %v6121 = vld [vmem:[%s6117 + $0xc] sm:$0xf]
        %v6122 = vld [vmem:[%s6117 + $0x10] sm:$0xf]
        %v6123 = vld [vmem:[%s6117 + $0x14] sm:$0xf]
        %v6124 = vld [vmem:[%s6117 + $0x18] sm:$0xf]
        %v6125 = vld [vmem:[%s6117 + $0x1c] sm:$0xf]
        %v6126 = vld [vmem:[%s6117 + $0x20] sm:$0xf]
        %v6127 = vld [vmem:[%s6117 + $0x24] sm:$0xf]
        %v6128 = vld [vmem:[%s6117 + $0x28] sm:$0xf]
        %v6129 = vld [vmem:[%s6117 + $0x2c] sm:$0xf]
        %v6130 = vld [vmem:[%s6117 + $0x30] sm:$0xf]
        %v6131 = vld [vmem:[%s6117 + $0x34] sm:$0xf]
        %v6132 = vld [vmem:[%s6117 + $0x38] sm:$0xf]
        %v6133 = vld [vmem:[%s6117 + $0x3c] sm:$0xf]
        %v6134 = vunpack.c.l.b16 %v5761
        %v6135 = vunpack.c.l.b16 %v5771
        %v6136 = vunpack.c.l.b16 %v5784
        %v6137 = vunpack.c.l.b16 %v5794
        %v6138 = vunpack.c.l.b16 %v5807
        %v6139 = vunpack.c.l.b16 %v5817
        %v6140 = vunpack.c.l.b16 %v5830
        %v6141 = vunpack.c.l.b16 %v5840
        %v6142 = vunpack.c.l.b16 %v5853
        %v6143 = vunpack.c.l.b16 %v5863
        %v6144 = vunpack.c.l.b16 %v5876
        %v6145 = vunpack.c.l.b16 %v5886
        %v6146 = vunpack.c.l.b16 %v5899
        %v6147 = vunpack.c.l.b16 %v5909
        %v6148 = vunpack.c.l.b16 %v5922
        %v6149 = vunpack.c.l.b16 %v5932
        %v6150 = vunpack.c.l.b16 %v5945
        %v6151 = vunpack.c.l.b16 %v5955
        %v6152 = vunpack.c.l.b16 %v5968
        %v6153 = vunpack.c.l.b16 %v5978
        %v6154 = vunpack.c.l.b16 %v5991
        %v6155 = vunpack.c.l.b16 %v6001
        %v6156 = vunpack.c.l.b16 %v6014
        %v6157 = vunpack.c.l.b16 %v6024
        %v6158 = vunpack.c.l.b16 %v6037
        %v6159 = vunpack.c.l.b16 %v6047
        %v6160 = vunpack.c.l.b16 %v6060
        %v6161 = vunpack.c.l.b16 %v6070
        %v6162 = vunpack.c.l.b16 %v6083
        %v6163 = vunpack.c.l.b16 %v6093
        %v6164 = vunpack.c.l.b16 %v6106
        %v6165 = vunpack.c.l.b16 %v6116
        %v6166 = vpack.c.b16 %v6135, %v6134
        %v6167 = vpack.c.b16 %v6137, %v6136
        %v6168 = vpack.c.b16 %v6139, %v6138
        %v6169 = vpack.c.b16 %v6141, %v6140
        %v6170 = vpack.c.b16 %v6143, %v6142
        %v6171 = vpack.c.b16 %v6145, %v6144
        %v6172 = vpack.c.b16 %v6147, %v6146
        %v6173 = vpack.c.b16 %v6149, %v6148
        %v6174 = vpack.c.b16 %v6151, %v6150
        %v6175 = vpack.c.b16 %v6153, %v6152
        %v6176 = vpack.c.b16 %v6155, %v6154
        %v6177 = vpack.c.b16 %v6157, %v6156
        %v6178 = vpack.c.b16 %v6159, %v6158
        %v6179 = vpack.c.b16 %v6161, %v6160
        %v6180 = vpack.c.b16 %v6163, %v6162
        %v6181 = vpack.c.b16 %v6165, %v6164
        %v6214 = vunpack.c.l.b16 %v6118
        %v6215 = vunpack.c.l.b16 %v6119
        %v6216 = vunpack.c.l.b16 %v6120
        %v6217 = vunpack.c.l.b16 %v6121
        %v6218 = vunpack.c.l.b16 %v6122
        %v6219 = vunpack.c.l.b16 %v6123
        %v6220 = vunpack.c.l.b16 %v6124
        %v6221 = vunpack.c.l.b16 %v6125
        %v6222 = vunpack.c.l.b16 %v6126
        %v6223 = vunpack.c.l.b16 %v6127
        %v6224 = vunpack.c.l.b16 %v6128
        %v6225 = vunpack.c.l.b16 %v6129
        %v6226 = vunpack.c.l.b16 %v6130
        %v6227 = vunpack.c.l.b16 %v6131
        %v6228 = vunpack.c.l.b16 %v6132
        %v6229 = vunpack.c.l.b16 %v6133
        %v6230 = vpack.c.b16 %v6215, %v6214
        %v6231 = vpack.c.b16 %v6217, %v6216
        %v6232 = vpack.c.b16 %v6219, %v6218
        %v6233 = vpack.c.b16 %v6221, %v6220
        %v6234 = vpack.c.b16 %v6223, %v6222
        %v6235 = vpack.c.b16 %v6225, %v6224
        %v6236 = vpack.c.b16 %v6227, %v6226
        %v6237 = vpack.c.b16 %v6229, %v6228
        %6246 = vmatprep.subr.bf16.mxu0 0
        %6247 = vmatpush1.bf16.msra.mxu0 %v6230
        %6248 = vmatprep.subr.bf16.mxu0 0
        %6249 = vmatpush1.bf16.msra.mxu0 %v6231
        %6250 = vmatprep.subr.bf16.mxu0 0
        %6251 = vmatpush1.bf16.msra.mxu0 %v6232
        %6252 = vmatprep.subr.bf16.mxu0 0
        %6253 = vmatpush1.bf16.msra.mxu0 %v6233
        %6254 = vmatprep.subr.bf16.mxu0 0
        %6255 = vmatpush1.bf16.msra.mxu0 %v6234
        %6256 = vmatprep.subr.bf16.mxu0 0
        %6257 = vmatpush1.bf16.msra.mxu0 %v6235
        %6258 = vmatprep.subr.bf16.mxu0 0
        %6259 = vmatpush1.bf16.msra.mxu0 %v6236
        %6260 = vmatprep.subr.bf16.mxu0 0
        %6261 = vmatpush1.bf16.msra.mxu0 %v6237
        %6262 = vmatprep.subr.bf16.mxu0 0
        %6263 = vmatpush1.bf16.msra.mxu0 0
        %6264 = vmatprep.subr.bf16.mxu0 0
        %6265 = vmatpush1.bf16.msra.mxu0 0
        %6266 = vmatprep.subr.bf16.mxu0 0
        %6267 = vmatpush1.bf16.msra.mxu0 0
        %6268 = vmatprep.subr.bf16.mxu0 0
        %6269 = vmatpush1.bf16.msra.mxu0 0
        %6270 = vmatprep.subr.bf16.mxu0 0
        %6271 = vmatpush1.bf16.msra.mxu0 0
        %6272 = vmatprep.subr.bf16.mxu0 0
        %6273 = vmatpush1.bf16.msra.mxu0 0
        %6274 = vmatprep.subr.bf16.mxu0 0
        %6275 = vmatpush1.bf16.msra.mxu0 0
        %6276 = vmatprep.subr.bf16.mxu0 0
        %6277 = vmatpush1.bf16.msra.mxu0 0
        %6278 = vmatprep.mubr.bf16.mxu0 0
        %6279 = vmatmul.mubr.bf16.gmra.mrb[0].mxu0 %v6166
        %v6280 = vpop.f32.mrb[0].mxu0
        %v6281 = vadd.f32 0.0, %v6280
        %v6282 = vpop.f32.mrb[0].mxu0
        %v6283 = vpop.f32.mrb[0].mxu0
        %v6284 = vadd.f32 0.0, %v6283
        %v6285 = vpop.f32.mrb[0].mxu0
        %6286 = vmatprep.mubr.bf16.mxu0 0
        %6287 = vmatmul.mubr.bf16.gmra.mrb[0].mxu0 %v6167
        %v6288 = vpop.f32.mrb[0].mxu0
        %v6289 = vadd.f32 0.0, %v6288
        %v6290 = vpop.f32.mrb[0].mxu0
        %v6291 = vpop.f32.mrb[0].mxu0
        %v6292 = vadd.f32 0.0, %v6291
        %v6293 = vpop.f32.mrb[0].mxu0
        %6294 = vmatprep.mubr.bf16.mxu0 0
        %6295 = vmatmul.mubr.bf16.gmra.mrb[0].mxu0 %v6168
        %v6296 = vpop.f32.mrb[0].mxu0
        %v6297 = vadd.f32 0.0, %v6296
        %v6298 = vpop.f32.mrb[0].mxu0
        %v6299 = vpop.f32.mrb[0].mxu0
        %v6300 = vadd.f32 0.0, %v6299
        %v6301 = vpop.f32.mrb[0].mxu0
        %6302 = vmatprep.mubr.bf16.mxu0 0
        %6303 = vmatmul.mubr.bf16.gmra.mrb[0].mxu0 %v6169
        %v6304 = vpop.f32.mrb[0].mxu0
        %v6305 = vadd.f32 0.0, %v6304
        %v6306 = vpop.f32.mrb[0].mxu0
        %v6307 = vpop.f32.mrb[0].mxu0
        %v6308 = vadd.f32 0.0, %v6307
        %v6309 = vpop.f32.mrb[0].mxu0
        %6310 = vmatprep.mubr.bf16.mxu0 0
        %6311 = vmatmul.mubr.bf16.gmra.mrb[0].mxu0 %v6170
        %v6312 = vpop.f32.mrb[0].mxu0
        %v6313 = vadd.f32 0.0, %v6312
        %v6314 = vpop.f32.mrb[0].mxu0
        %v6315 = vpop.f32.mrb[0].mxu0
        %v6316 = vadd.f32 0.0, %v6315
        %v6317 = vpop.f32.mrb[0].mxu0
        %6318 = vmatprep.mubr.bf16.mxu0 0
        %6319 = vmatmul.mubr.bf16.gmra.mrb[0].mxu0 %v6171
        %v6320 = vpop.f32.mrb[0].mxu0
        %v6321 = vadd.f32 0.0, %v6320
        %v6322 = vpop.f32.mrb[0].mxu0
        %v6323 = vpop.f32.mrb[0].mxu0
        %v6324 = vadd.f32 0.0, %v6323
        %v6325 = vpop.f32.mrb[0].mxu0
        %6326 = vmatprep.mubr.bf16.mxu0 0
        %6327 = vmatmul.mubr.bf16.gmra.mrb[0].mxu0 %v6172
        %v6328 = vpop.f32.mrb[0].mxu0
        %v6329 = vadd.f32 0.0, %v6328
        %v6330 = vpop.f32.mrb[0].mxu0
        %v6331 = vpop.f32.mrb[0].mxu0
        %v6332 = vadd.f32 0.0, %v6331
        %v6333 = vpop.f32.mrb[0].mxu0
        %6334 = vmatprep.mubr.bf16.mxu0 0
        %6335 = vmatmul.mubr.bf16.gmra.mrb[0].mxu0 %v6173
        %v6336 = vpop.f32.mrb[0].mxu0
        %v6337 = vadd.f32 0.0, %v6336
        %v6338 = vpop.f32.mrb[0].mxu0
        %v6339 = vpop.f32.mrb[0].mxu0
        %v6340 = vadd.f32 0.0, %v6339
        %v6341 = vpop.f32.mrb[0].mxu0
        %6342 = vmatprep.mubr.bf16.mxu0 0
        %6343 = vmatmul.mubr.bf16.gmra.mrb[0].mxu0 %v6174
        %v6344 = vpop.f32.mrb[0].mxu0
        %v6345 = vadd.f32 0.0, %v6344
        %v6346 = vpop.f32.mrb[0].mxu0
        %v6347 = vpop.f32.mrb[0].mxu0
        %v6348 = vadd.f32 0.0, %v6347
        %v6349 = vpop.f32.mrb[0].mxu0
        %6350 = vmatprep.mubr.bf16.mxu0 0
        %6351 = vmatmul.mubr.bf16.gmra.mrb[0].mxu0 %v6175
        %v6352 = vpop.f32.mrb[0].mxu0
        %v6353 = vadd.f32 0.0, %v6352
        %v6354 = vpop.f32.mrb[0].mxu0
        %v6355 = vpop.f32.mrb[0].mxu0
        %v6356 = vadd.f32 0.0, %v6355
        %v6357 = vpop.f32.mrb[0].mxu0
        %6358 = vmatprep.mubr.bf16.mxu0 0
        %6359 = vmatmul.mubr.bf16.gmra.mrb[0].mxu0 %v6176
        %v6360 = vpop.f32.mrb[0].mxu0
        %v6361 = vadd.f32 0.0, %v6360
        %v6362 = vpop.f32.mrb[0].mxu0
        %v6363 = vpop.f32.mrb[0].mxu0
        %v6364 = vadd.f32 0.0, %v6363
        %v6365 = vpop.f32.mrb[0].mxu0
        %6366 = vmatprep.mubr.bf16.mxu0 0
        %6367 = vmatmul.mubr.bf16.gmra.mrb[0].mxu0 %v6177
        %v6368 = vpop.f32.mrb[0].mxu0
        %v6369 = vadd.f32 0.0, %v6368
        %v6370 = vpop.f32.mrb[0].mxu0
        %v6371 = vpop.f32.mrb[0].mxu0
        %v6372 = vadd.f32 0.0, %v6371
        %v6373 = vpop.f32.mrb[0].mxu0
        %6374 = vmatprep.mubr.bf16.mxu0 0
        %6375 = vmatmul.mubr.bf16.gmra.mrb[0].mxu0 %v6178
        %v6376 = vpop.f32.mrb[0].mxu0
        %v6377 = vadd.f32 0.0, %v6376
        %v6378 = vpop.f32.mrb[0].mxu0
        %v6379 = vpop.f32.mrb[0].mxu0
        %v6380 = vadd.f32 0.0, %v6379
        %v6381 = vpop.f32.mrb[0].mxu0
        %6382 = vmatprep.mubr.bf16.mxu0 0
        %6383 = vmatmul.mubr.bf16.gmra.mrb[0].mxu0 %v6179
        %v6384 = vpop.f32.mrb[0].mxu0
        %v6385 = vadd.f32 0.0, %v6384
        %v6386 = vpop.f32.mrb[0].mxu0
        %v6387 = vpop.f32.mrb[0].mxu0
        %v6388 = vadd.f32 0.0, %v6387
        %v6389 = vpop.f32.mrb[0].mxu0
        %6390 = vmatprep.mubr.bf16.mxu0 0
        %6391 = vmatmul.mubr.bf16.gmra.mrb[0].mxu0 %v6180
        %v6392 = vpop.f32.mrb[0].mxu0
        %v6393 = vadd.f32 0.0, %v6392
        %v6394 = vpop.f32.mrb[0].mxu0
        %v6395 = vpop.f32.mrb[0].mxu0
        %v6396 = vadd.f32 0.0, %v6395
        %v6397 = vpop.f32.mrb[0].mxu0
        %6398 = vmatprep.mubr.bf16.mxu0 0
        %6399 = vmatmul.mubr.bf16.gmra.mrb[0].mxu0 %v6181
        %v6400 = vpop.f32.mrb[0].mxu0
        %v6401 = vadd.f32 0.0, %v6400
        %v6402 = vpop.f32.mrb[0].mxu0
        %v6403 = vpop.f32.mrb[0].mxu0
        %v6404 = vadd.f32 0.0, %v6403
        %v6405 = vpop.f32.mrb[0].mxu0
        %6406 = vdwg.mxu0
        %v6407 = vadd.f32 %v5701, %v6281
        %v6408 = vadd.f32 %v5702, %v6284
        %v6409 = vadd.f32 %v5703, %v6289
        %v6410 = vadd.f32 %v5704, %v6292
        %v6411 = vadd.f32 %v5705, %v6297
        %v6412 = vadd.f32 %v5706, %v6300
        %v6413 = vadd.f32 %v5707, %v6305
        %v6414 = vadd.f32 %v5708, %v6308
        %v6415 = vadd.f32 %v5709, %v6313
        %v6416 = vadd.f32 %v5710, %v6316
        %v6417 = vadd.f32 %v5711, %v6321
        %v6418 = vadd.f32 %v5712, %v6324
        %v6419 = vadd.f32 %v5713, %v6329
        %v6420 = vadd.f32 %v5714, %v6332
        %v6421 = vadd.f32 %v5715, %v6337
        %v6422 = vadd.f32 %v5716, %v6340
        %v6423 = vadd.f32 %v5717, %v6345
        %v6424 = vadd.f32 %v5718, %v6348
        %v6425 = vadd.f32 %v5719, %v6353
        %v6426 = vadd.f32 %v5720, %v6356
        %v6427 = vadd.f32 %v5721, %v6361
        %v6428 = vadd.f32 %v5722, %v6364
        %v6429 = vadd.f32 %v5723, %v6369
        %v6430 = vadd.f32 %v5724, %v6372
        %v6431 = vadd.f32 %v5725, %v6377
        %v6432 = vadd.f32 %v5726, %v6380
        %v6433 = vadd.f32 %v5727, %v6385
        %v6434 = vadd.f32 %v5728, %v6388
        %v6435 = vadd.f32 %v5729, %v6393
        %v6436 = vadd.f32 %v5730, %v6396
        %v6437 = vadd.f32 %v5731, %v6401
        %v6438 = vadd.f32 %v5732, %v6404
        %v6439 = vld [vmem:[%s2] sm:$0x1]
        %v6441 = vlaneseq
        %v6442 = vshrl.u32 %v6441, 7
        %v6443 = vsub.s32 0, %v6442
        %v6444 = vrot.slane %v6439, %v6443
        %v6446 = vadd.f32 %v6407, %v6444
        %v6447 = vadd.f32 %v6408, %v6444
        %v6448 = vadd.f32 %v6409, %v6444
        %v6449 = vadd.f32 %v6410, %v6444
        %v6450 = vadd.f32 %v6411, %v6444
        %v6451 = vadd.f32 %v6412, %v6444
        %v6452 = vadd.f32 %v6413, %v6444
        %v6453 = vadd.f32 %v6414, %v6444
        %v6454 = vadd.f32 %v6415, %v6444
        %v6455 = vadd.f32 %v6416, %v6444
        %v6456 = vadd.f32 %v6417, %v6444
        %v6457 = vadd.f32 %v6418, %v6444
        %v6458 = vadd.f32 %v6419, %v6444
        %v6459 = vadd.f32 %v6420, %v6444
        %v6460 = vadd.f32 %v6421, %v6444
        %v6461 = vadd.f32 %v6422, %v6444
        %v6462 = vadd.f32 %v6423, %v6444
        %v6463 = vadd.f32 %v6424, %v6444
        %v6464 = vadd.f32 %v6425, %v6444
        %v6465 = vadd.f32 %v6426, %v6444
        %v6466 = vadd.f32 %v6427, %v6444
        %v6467 = vadd.f32 %v6428, %v6444
        %v6468 = vadd.f32 %v6429, %v6444
        %v6469 = vadd.f32 %v6430, %v6444
        %v6470 = vadd.f32 %v6431, %v6444
        %v6471 = vadd.f32 %v6432, %v6444
        %v6472 = vadd.f32 %v6433, %v6444
        %v6473 = vadd.f32 %v6434, %v6444
        %v6474 = vadd.f32 %v6435, %v6444
        %v6475 = vadd.f32 %v6436, %v6444
        %v6476 = vadd.f32 %v6437, %v6444
        %v6477 = vadd.f32 %v6438, %v6444
        %v6478 = vmax.f32 %v6446, 0.0
        %v6479 = vmax.f32 %v6447, 0.0
        %v6480 = vmax.f32 %v6448, 0.0
        %v6481 = vmax.f32 %v6449, 0.0
        %v6482 = vmax.f32 %v6450, 0.0
        %v6483 = vmax.f32 %v6451, 0.0
        %v6484 = vmax.f32 %v6452, 0.0
        %v6485 = vmax.f32 %v6453, 0.0
        %v6486 = vmax.f32 %v6454, 0.0
        %v6487 = vmax.f32 %v6455, 0.0
        %v6488 = vmax.f32 %v6456, 0.0
        %v6489 = vmax.f32 %v6457, 0.0
        %v6490 = vmax.f32 %v6458, 0.0
        %v6491 = vmax.f32 %v6459, 0.0
        %v6492 = vmax.f32 %v6460, 0.0
        %v6493 = vmax.f32 %v6461, 0.0
        %v6494 = vmax.f32 %v6462, 0.0
        %v6495 = vmax.f32 %v6463, 0.0
        %v6496 = vmax.f32 %v6464, 0.0
        %v6497 = vmax.f32 %v6465, 0.0
        %v6498 = vmax.f32 %v6466, 0.0
        %v6499 = vmax.f32 %v6467, 0.0
        %v6500 = vmax.f32 %v6468, 0.0
        %v6501 = vmax.f32 %v6469, 0.0
        %v6502 = vmax.f32 %v6470, 0.0
        %v6503 = vmax.f32 %v6471, 0.0
        %v6504 = vmax.f32 %v6472, 0.0
        %v6505 = vmax.f32 %v6473, 0.0
        %v6506 = vmax.f32 %v6474, 0.0
        %v6507 = vmax.f32 %v6475, 0.0
        %v6508 = vmax.f32 %v6476, 0.0
        %v6509 = vmax.f32 %v6477, 0.0
        %6510 = vst [vmem:[#allocation3] sm:$0xf] 0
        %6511 = vst [vmem:[#allocation3 + $0x4] sm:$0xf] 0
        %6512 = vst [vmem:[#allocation3 + $0x8] sm:$0x3] 0
        %s6513 = scalar_lea.vmem [#allocation3], 204
        %6514 = vst [vmem:[%s6513] sm:$0xf] 0
        %6515 = vst [vmem:[%s6513 + $0x4] sm:$0xf] 0
        %6516 = vst [vmem:[%s6513 + $0x8] sm:$0x3] 0
        %s6517 = scalar_lea.vmem [#allocation3], 12
        %6518 = vst [vmem:[%s6517] sm:$0x1] 0
        %6519 = vst [vmem:[%s6517 + $0xc] sm:$0x1] 0
        %6520 = vst [vmem:[%s6517 + $0x18] sm:$0x1] 0
        %6521 = vst [vmem:[%s6517 + $0x24] sm:$0x1] 0
        %6522 = vst [vmem:[%s6517 + $0x30] sm:$0x1] 0
        %6523 = vst [vmem:[%s6517 + $0x3c] sm:$0x1] 0
        %6524 = vst [vmem:[%s6517 + $0x48] sm:$0x1] 0
        %6525 = vst [vmem:[%s6517 + $0x54] sm:$0x1] 0
        %6526 = vst [vmem:[%s6517 + $0x60] sm:$0x1] 0
        %6527 = vst [vmem:[%s6517 + $0x6c] sm:$0x1] 0
        %6528 = vst [vmem:[%s6517 + $0x78] sm:$0x1] 0
        %6529 = vst [vmem:[%s6517 + $0x84] sm:$0x1] 0
        %6530 = vst [vmem:[%s6517 + $0x90] sm:$0x1] 0
        %6531 = vst [vmem:[%s6517 + $0x9c] sm:$0x1] 0
        %6532 = vst [vmem:[%s6517 + $0xa8] sm:$0x1] 0
        %6533 = vst [vmem:[%s6517 + $0xb4] sm:$0x1] 0
        %6534 = vst [vmem:[%s6517 + $0x8] sm:$0x2] 0
        %6535 = vst [vmem:[%s6517 + $0x14] sm:$0x2] 0
        %6536 = vst [vmem:[%s6517 + $0x20] sm:$0x2] 0
        %6537 = vst [vmem:[%s6517 + $0x2c] sm:$0x2] 0
        %6538 = vst [vmem:[%s6517 + $0x38] sm:$0x2] 0
        %6539 = vst [vmem:[%s6517 + $0x44] sm:$0x2] 0
        %6540 = vst [vmem:[%s6517 + $0x50] sm:$0x2] 0
        %6541 = vst [vmem:[%s6517 + $0x5c] sm:$0x2] 0
        %6542 = vst [vmem:[%s6517 + $0x68] sm:$0x2] 0
        %6543 = vst [vmem:[%s6517 + $0x74] sm:$0x2] 0
        %6544 = vst [vmem:[%s6517 + $0x80] sm:$0x2] 0
        %6545 = vst [vmem:[%s6517 + $0x8c] sm:$0x2] 0
        %6546 = vst [vmem:[%s6517 + $0x98] sm:$0x2] 0
        %6547 = vst [vmem:[%s6517 + $0xa4] sm:$0x2] 0
        %6548 = vst [vmem:[%s6517 + $0xb0] sm:$0x2] 0
        %6549 = vst [vmem:[%s6517 + $0xbc] sm:$0x2] 0
        %v6550 = vpack.c.bf16 %v6479, %v6478
        %v6551 = vpack.c.bf16 %v6481, %v6480
        %v6552 = vpack.c.bf16 %v6483, %v6482
        %v6553 = vpack.c.bf16 %v6485, %v6484
        %v6554 = vpack.c.bf16 %v6487, %v6486
        %v6555 = vpack.c.bf16 %v6489, %v6488
        %v6556 = vpack.c.bf16 %v6491, %v6490
        %v6557 = vpack.c.bf16 %v6493, %v6492
        %v6558 = vpack.c.bf16 %v6495, %v6494
        %v6559 = vpack.c.bf16 %v6497, %v6496
        %v6560 = vpack.c.bf16 %v6499, %v6498
        %v6561 = vpack.c.bf16 %v6501, %v6500
        %v6562 = vpack.c.bf16 %v6503, %v6502
        %v6563 = vpack.c.bf16 %v6505, %v6504
        %v6564 = vpack.c.bf16 %v6507, %v6506
        %v6565 = vpack.c.bf16 %v6509, %v6508
        %v6582 = vunpack.c.l.b16 %v6550
        %v6583 = vunpack.c.h.b16 %v6550
        %v6584 = vunpack.c.l.b16 %v6551
        %v6585 = vunpack.c.h.b16 %v6551
        %v6586 = vunpack.c.l.b16 %v6552
        %v6587 = vunpack.c.h.b16 %v6552
        %v6588 = vunpack.c.l.b16 %v6553
        %v6589 = vunpack.c.h.b16 %v6553
        %v6590 = vunpack.c.l.b16 %v6554
        %v6591 = vunpack.c.h.b16 %v6554
        %v6592 = vunpack.c.l.b16 %v6555
        %v6593 = vunpack.c.h.b16 %v6555
        %v6594 = vunpack.c.l.b16 %v6556
        %v6595 = vunpack.c.h.b16 %v6556
        %v6596 = vunpack.c.l.b16 %v6557
        %v6597 = vunpack.c.h.b16 %v6557
        %v6598 = vunpack.c.l.b16 %v6558
        %v6599 = vunpack.c.h.b16 %v6558
        %v6600 = vunpack.c.l.b16 %v6559
        %v6601 = vunpack.c.h.b16 %v6559
        %v6602 = vunpack.c.l.b16 %v6560
        %v6603 = vunpack.c.h.b16 %v6560
        %v6604 = vunpack.c.l.b16 %v6561
        %v6605 = vunpack.c.h.b16 %v6561
        %v6606 = vunpack.c.l.b16 %v6562
        %v6607 = vunpack.c.h.b16 %v6562
        %v6608 = vunpack.c.l.b16 %v6563
        %v6609 = vunpack.c.h.b16 %v6563
        %v6610 = vunpack.c.l.b16 %v6564
        %v6611 = vunpack.c.h.b16 %v6564
        %v6612 = vunpack.c.l.b16 %v6565
        %v6613 = vunpack.c.h.b16 %v6565
        %v6614 = vpack.c.b16 %v6582, %v6582
        %v6615 = vpack.c.b16 %v6583, %v6583
        %v6616 = vpack.c.b16 %v6584, %v6584
        %v6617 = vpack.c.b16 %v6585, %v6585
        %v6618 = vpack.c.b16 %v6586, %v6586
        %v6619 = vpack.c.b16 %v6587, %v6587
        %v6620 = vpack.c.b16 %v6588, %v6588
        %v6621 = vpack.c.b16 %v6589, %v6589
        %v6622 = vpack.c.b16 %v6590, %v6590
        %v6623 = vpack.c.b16 %v6591, %v6591
        %v6624 = vpack.c.b16 %v6592, %v6592
        %v6625 = vpack.c.b16 %v6593, %v6593
        %v6626 = vpack.c.b16 %v6594, %v6594
        %v6627 = vpack.c.b16 %v6595, %v6595
        %v6628 = vpack.c.b16 %v6596, %v6596
        %v6629 = vpack.c.b16 %v6597, %v6597
        %v6630 = vpack.c.b16 %v6598, %v6598
        %v6631 = vpack.c.b16 %v6599, %v6599
        %v6632 = vpack.c.b16 %v6600, %v6600
        %v6633 = vpack.c.b16 %v6601, %v6601
        %v6634 = vpack.c.b16 %v6602, %v6602
        %v6635 = vpack.c.b16 %v6603, %v6603
        %v6636 = vpack.c.b16 %v6604, %v6604
        %v6637 = vpack.c.b16 %v6605, %v6605
        %v6638 = vpack.c.b16 %v6606, %v6606
        %v6639 = vpack.c.b16 %v6607, %v6607
        %v6640 = vpack.c.b16 %v6608, %v6608
        %v6641 = vpack.c.b16 %v6609, %v6609
        %v6642 = vpack.c.b16 %v6610, %v6610
        %v6643 = vpack.c.b16 %v6611, %v6611
        %v6644 = vpack.c.b16 %v6612, %v6612
        %v6645 = vpack.c.b16 %v6613, %v6613
        %v6646 = vrot.slane %v6614, 7
        %v6647 = vrot.slane %v6646, 4
        %v6648 = vrot.slane %v6615, 7
        %v6649 = vsel %vm443, %v6647, %v6648
        %v6650 = vrot.slane %v6648, 4
        %v6651 = vrot.slane %v6616, 7
        %v6652 = vrot.slane %v6651, 4
        %v6653 = vrot.slane %v6617, 7
        %v6654 = vsel %vm443, %v6652, %v6653
        %v6655 = vrot.slane %v6653, 4
        %v6656 = vrot.slane %v6618, 7
        %v6657 = vrot.slane %v6656, 4
        %v6658 = vrot.slane %v6619, 7
        %v6659 = vsel %vm443, %v6657, %v6658
        %v6660 = vrot.slane %v6658, 4
        %v6661 = vrot.slane %v6620, 7
        %v6662 = vrot.slane %v6661, 4
        %v6663 = vrot.slane %v6621, 7
        %v6664 = vsel %vm443, %v6662, %v6663
        %v6665 = vrot.slane %v6663, 4
        %v6666 = vrot.slane %v6622, 7
        %v6667 = vrot.slane %v6666, 4
        %v6668 = vrot.slane %v6623, 7
        %v6669 = vsel %vm443, %v6667, %v6668
        %v6670 = vrot.slane %v6668, 4
        %v6671 = vrot.slane %v6624, 7
        %v6672 = vrot.slane %v6671, 4
        %v6673 = vrot.slane %v6625, 7
        %v6674 = vsel %vm443, %v6672, %v6673
        %v6675 = vrot.slane %v6673, 4
        %v6676 = vrot.slane %v6626, 7
        %v6677 = vrot.slane %v6676, 4
        %v6678 = vrot.slane %v6627, 7
        %v6679 = vsel %vm443, %v6677, %v6678
        %v6680 = vrot.slane %v6678, 4
        %v6681 = vrot.slane %v6628, 7
        %v6682 = vrot.slane %v6681, 4
        %v6683 = vrot.slane %v6629, 7
        %v6684 = vsel %vm443, %v6682, %v6683
        %v6685 = vrot.slane %v6683, 4
        %v6686 = vrot.slane %v6630, 7
        %v6687 = vrot.slane %v6686, 4
        %v6688 = vrot.slane %v6631, 7
        %v6689 = vsel %vm443, %v6687, %v6688
        %v6690 = vrot.slane %v6688, 4
        %v6691 = vrot.slane %v6632, 7
        %v6692 = vrot.slane %v6691, 4
        %v6693 = vrot.slane %v6633, 7
        %v6694 = vsel %vm443, %v6692, %v6693
        %v6695 = vrot.slane %v6693, 4
        %v6696 = vrot.slane %v6634, 7
        %v6697 = vrot.slane %v6696, 4
        %v6698 = vrot.slane %v6635, 7
        %v6699 = vsel %vm443, %v6697, %v6698
        %v6700 = vrot.slane %v6698, 4
        %v6701 = vrot.slane %v6636, 7
        %v6702 = vrot.slane %v6701, 4
        %v6703 = vrot.slane %v6637, 7
        %v6704 = vsel %vm443, %v6702, %v6703
        %v6705 = vrot.slane %v6703, 4
        %v6706 = vrot.slane %v6638, 7
        %v6707 = vrot.slane %v6706, 4
        %v6708 = vrot.slane %v6639, 7
        %v6709 = vsel %vm443, %v6707, %v6708
        %v6710 = vrot.slane %v6708, 4
        %v6711 = vrot.slane %v6640, 7
        %v6712 = vrot.slane %v6711, 4
        %v6713 = vrot.slane %v6641, 7
        %v6714 = vsel %vm443, %v6712, %v6713
        %v6715 = vrot.slane %v6713, 4
        %v6716 = vrot.slane %v6642, 7
        %v6717 = vrot.slane %v6716, 4
        %v6718 = vrot.slane %v6643, 7
        %v6719 = vsel %vm443, %v6717, %v6718
        %v6720 = vrot.slane %v6718, 4
        %v6721 = vrot.slane %v6644, 7
        %v6722 = vrot.slane %v6721, 4
        %v6723 = vrot.slane %v6645, 7
        %v6724 = vsel %vm443, %v6722, %v6723
        %v6725 = vrot.slane %v6723, 4
        %6774 = vst [vmem:[%s6517] sm:$0xe] %v6646
        %6775 = vst [vmem:[%s6517 + $0x4] sm:$0xf] %v6649
        %6776 = vst [vmem:[%s6517 + $0x8] sm:$0x1] %v6650
        %6777 = vst [vmem:[%s6517 + $0xc] sm:$0xe] %v6651
        %6778 = vst [vmem:[%s6517 + $0x10] sm:$0xf] %v6654
        %6779 = vst [vmem:[%s6517 + $0x14] sm:$0x1] %v6655
        %6780 = vst [vmem:[%s6517 + $0x18] sm:$0xe] %v6656
        %6781 = vst [vmem:[%s6517 + $0x1c] sm:$0xf] %v6659
        %6782 = vst [vmem:[%s6517 + $0x20] sm:$0x1] %v6660
        %6783 = vst [vmem:[%s6517 + $0x24] sm:$0xe] %v6661
        %6784 = vst [vmem:[%s6517 + $0x28] sm:$0xf] %v6664
        %6785 = vst [vmem:[%s6517 + $0x2c] sm:$0x1] %v6665
        %6786 = vst [vmem:[%s6517 + $0x30] sm:$0xe] %v6666
        %6787 = vst [vmem:[%s6517 + $0x34] sm:$0xf] %v6669
        %6788 = vst [vmem:[%s6517 + $0x38] sm:$0x1] %v6670
        %6789 = vst [vmem:[%s6517 + $0x3c] sm:$0xe] %v6671
        %6790 = vst [vmem:[%s6517 + $0x40] sm:$0xf] %v6674
        %6791 = vst [vmem:[%s6517 + $0x44] sm:$0x1] %v6675
        %6792 = vst [vmem:[%s6517 + $0x48] sm:$0xe] %v6676
        %6793 = vst [vmem:[%s6517 + $0x4c] sm:$0xf] %v6679
        %6794 = vst [vmem:[%s6517 + $0x50] sm:$0x1] %v6680
        %6795 = vst [vmem:[%s6517 + $0x54] sm:$0xe] %v6681
        %6796 = vst [vmem:[%s6517 + $0x58] sm:$0xf] %v6684
        %6797 = vst [vmem:[%s6517 + $0x5c] sm:$0x1] %v6685
        %6798 = vst [vmem:[%s6517 + $0x60] sm:$0xe] %v6686
        %6799 = vst [vmem:[%s6517 + $0x64] sm:$0xf] %v6689
        %6800 = vst [vmem:[%s6517 + $0x68] sm:$0x1] %v6690
        %6801 = vst [vmem:[%s6517 + $0x6c] sm:$0xe] %v6691
        %6802 = vst [vmem:[%s6517 + $0x70] sm:$0xf] %v6694
        %6803 = vst [vmem:[%s6517 + $0x74] sm:$0x1] %v6695
        %6804 = vst [vmem:[%s6517 + $0x78] sm:$0xe] %v6696
        %6805 = vst [vmem:[%s6517 + $0x7c] sm:$0xf] %v6699
        %6806 = vst [vmem:[%s6517 + $0x80] sm:$0x1] %v6700
        %6807 = vst [vmem:[%s6517 + $0x84] sm:$0xe] %v6701
        %6808 = vst [vmem:[%s6517 + $0x88] sm:$0xf] %v6704
        %6809 = vst [vmem:[%s6517 + $0x8c] sm:$0x1] %v6705
        %6810 = vst [vmem:[%s6517 + $0x90] sm:$0xe] %v6706
        %6811 = vst [vmem:[%s6517 + $0x94] sm:$0xf] %v6709
        %6812 = vst [vmem:[%s6517 + $0x98] sm:$0x1] %v6710
        %6813 = vst [vmem:[%s6517 + $0x9c] sm:$0xe] %v6711
        %6814 = vst [vmem:[%s6517 + $0xa0] sm:$0xf] %v6714
        %6815 = vst [vmem:[%s6517 + $0xa4] sm:$0x1] %v6715
        %6816 = vst [vmem:[%s6517 + $0xa8] sm:$0xe] %v6716
        %6817 = vst [vmem:[%s6517 + $0xac] sm:$0xf] %v6719
        %6818 = vst [vmem:[%s6517 + $0xb0] sm:$0x1] %v6720
        %6819 = vst [vmem:[%s6517 + $0xb4] sm:$0xe] %v6721
        %6820 = vst [vmem:[%s6517 + $0xb8] sm:$0xf] %v6724
        %6821 = vst [vmem:[%s6517 + $0xbc] sm:$0x1] %v6725
        %v6822 = vld [vmem:[#allocation3] sm:$0xf]
        %v6823 = vld [vmem:[#allocation3 + $0x4] sm:$0xf]
        %v6824 = vld [vmem:[#allocation3 + $0x8] sm:$0x1]
        %v6825 = vld [vmem:[#allocation3 + $0xc] sm:$0xf]
        %v6826 = vld [vmem:[#allocation3 + $0x10] sm:$0xf]
        %v6827 = vld [vmem:[#allocation3 + $0x14] sm:$0x1]
        %v6828 = vld [vmem:[#allocation3 + $0x18] sm:$0xf]
        %v6829 = vld [vmem:[#allocation3 + $0x1c] sm:$0xf]
        %v6830 = vld [vmem:[#allocation3 + $0x20] sm:$0x1]
        %v6831 = vld [vmem:[#allocation3 + $0x24] sm:$0xf]
        %v6832 = vld [vmem:[#allocation3 + $0x28] sm:$0xf]
        %v6833 = vld [vmem:[#allocation3 + $0x2c] sm:$0x1]
        %v6834 = vld [vmem:[#allocation3 + $0x30] sm:$0xf]
        %v6835 = vld [vmem:[#allocation3 + $0x34] sm:$0xf]
        %v6836 = vld [vmem:[#allocation3 + $0x38] sm:$0x1]
        %v6837 = vld [vmem:[#allocation3 + $0x3c] sm:$0xf]
        %v6838 = vld [vmem:[#allocation3 + $0x40] sm:$0xf]
        %v6839 = vld [vmem:[#allocation3 + $0x44] sm:$0x1]
        %v6840 = vld [vmem:[#allocation3 + $0x48] sm:$0xf]
        %v6841 = vld [vmem:[#allocation3 + $0x4c] sm:$0xf]
        %v6842 = vld [vmem:[#allocation3 + $0x50] sm:$0x1]
        %v6843 = vld [vmem:[#allocation3 + $0x54] sm:$0xf]
        %v6844 = vld [vmem:[#allocation3 + $0x58] sm:$0xf]
        %v6845 = vld [vmem:[#allocation3 + $0x5c] sm:$0x1]
        %v6846 = vld [vmem:[#allocation3 + $0x60] sm:$0xf]
        %v6847 = vld [vmem:[#allocation3 + $0x64] sm:$0xf]
        %v6848 = vld [vmem:[#allocation3 + $0x68] sm:$0x1]
        %v6849 = vld [vmem:[#allocation3 + $0x6c] sm:$0xf]
        %v6850 = vld [vmem:[#allocation3 + $0x70] sm:$0xf]
        %v6851 = vld [vmem:[#allocation3 + $0x74] sm:$0x1]
        %v6852 = vld [vmem:[#allocation3 + $0x78] sm:$0xf]
        %v6853 = vld [vmem:[#allocation3 + $0x7c] sm:$0xf]
        %v6854 = vld [vmem:[#allocation3 + $0x80] sm:$0x1]
        %v6855 = vld [vmem:[#allocation3 + $0x84] sm:$0xf]
        %v6856 = vld [vmem:[#allocation3 + $0x88] sm:$0xf]
        %v6857 = vld [vmem:[#allocation3 + $0x8c] sm:$0x1]
        %v6858 = vld [vmem:[#allocation3 + $0x90] sm:$0xf]
        %v6859 = vld [vmem:[#allocation3 + $0x94] sm:$0xf]
        %v6860 = vld [vmem:[#allocation3 + $0x98] sm:$0x1]
        %v6861 = vld [vmem:[#allocation3 + $0x9c] sm:$0xf]
        %v6862 = vld [vmem:[#allocation3 + $0xa0] sm:$0xf]
        %v6863 = vld [vmem:[#allocation3 + $0xa4] sm:$0x1]
        %v6864 = vld [vmem:[#allocation3 + $0xa8] sm:$0xf]
        %v6865 = vld [vmem:[#allocation3 + $0xac] sm:$0xf]
        %v6866 = vld [vmem:[#allocation3 + $0xb0] sm:$0x1]
        %v6867 = vld [vmem:[#allocation3 + $0xb4] sm:$0xf]
        %v6868 = vld [vmem:[#allocation3 + $0xb8] sm:$0xf]
        %v6869 = vld [vmem:[#allocation3 + $0xbc] sm:$0x1]
        %v6871 = vshrl.u32 %v6822, 16
        %v6873 = vrot.slane %v6871, 4
        %v6874 = vshll.u32 %v6822, 16
        %v6876 = vrot.slane %v6874, 5
        %v6877 = vor.u32 %v6873, %v6876
        %v6878 = vrot.slane %v6877, 4
        %v6880 = vshll.u32 %v6823, 16
        %v6882 = vrot.slane %v6880, 5
        %v6883 = vsel %vm670, %v6878, %v6882
        %v6884 = vshrl.u32 %v6823, 16
        %v6886 = vrot.slane %v6884, 4
        %v6887 = vor.u32 %v6886, %v6882
        %v6888 = vrot.slane %v6887, 4
        %v6890 = vshll.u32 %v6824, 16
        %v6892 = vrot.slane %v6890, 5
        %v6893 = vsel %vm670, %v6888, %v6892
        %v6895 = vshrl.u32 %v6825, 16
        %v6897 = vrot.slane %v6895, 4
        %v6898 = vshll.u32 %v6825, 16
        %v6900 = vrot.slane %v6898, 5
        %v6901 = vor.u32 %v6897, %v6900
        %v6902 = vrot.slane %v6901, 4
        %v6904 = vshll.u32 %v6826, 16
        %v6906 = vrot.slane %v6904, 5
        %v6907 = vsel %vm670, %v6902, %v6906
        %v6908 = vshrl.u32 %v6826, 16
        %v6910 = vrot.slane %v6908, 4
        %v6911 = vor.u32 %v6910, %v6906
        %v6912 = vrot.slane %v6911, 4
        %v6914 = vshll.u32 %v6827, 16
        %v6916 = vrot.slane %v6914, 5
        %v6917 = vsel %vm670, %v6912, %v6916
        %v6919 = vshrl.u32 %v6828, 16
        %v6921 = vrot.slane %v6919, 4
        %v6922 = vshll.u32 %v6828, 16
        %v6924 = vrot.slane %v6922, 5
        %v6925 = vor.u32 %v6921, %v6924
        %v6926 = vrot.slane %v6925, 4
        %v6928 = vshll.u32 %v6829, 16
        %v6930 = vrot.slane %v6928, 5
        %v6931 = vsel %vm670, %v6926, %v6930
        %v6932 = vshrl.u32 %v6829, 16
        %v6934 = vrot.slane %v6932, 4
        %v6935 = vor.u32 %v6934, %v6930
        %v6936 = vrot.slane %v6935, 4
        %v6938 = vshll.u32 %v6830, 16
        %v6940 = vrot.slane %v6938, 5
        %v6941 = vsel %vm670, %v6936, %v6940
        %v6943 = vshrl.u32 %v6831, 16
        %v6945 = vrot.slane %v6943, 4
        %v6946 = vshll.u32 %v6831, 16
        %v6948 = vrot.slane %v6946, 5
        %v6949 = vor.u32 %v6945, %v6948
        %v6950 = vrot.slane %v6949, 4
        %v6952 = vshll.u32 %v6832, 16
        %v6954 = vrot.slane %v6952, 5
        %v6955 = vsel %vm670, %v6950, %v6954
        %v6956 = vshrl.u32 %v6832, 16
        %v6958 = vrot.slane %v6956, 4
        %v6959 = vor.u32 %v6958, %v6954
        %v6960 = vrot.slane %v6959, 4
        %v6962 = vshll.u32 %v6833, 16
        %v6964 = vrot.slane %v6962, 5
        %v6965 = vsel %vm670, %v6960, %v6964
        %v6967 = vshrl.u32 %v6834, 16
        %v6969 = vrot.slane %v6967, 4
        %v6970 = vshll.u32 %v6834, 16
        %v6972 = vrot.slane %v6970, 5
        %v6973 = vor.u32 %v6969, %v6972
        %v6974 = vrot.slane %v6973, 4
        %v6976 = vshll.u32 %v6835, 16
        %v6978 = vrot.slane %v6976, 5
        %v6979 = vsel %vm670, %v6974, %v6978
        %v6980 = vshrl.u32 %v6835, 16
        %v6982 = vrot.slane %v6980, 4
        %v6983 = vor.u32 %v6982, %v6978
        %v6984 = vrot.slane %v6983, 4
        %v6986 = vshll.u32 %v6836, 16
        %v6988 = vrot.slane %v6986, 5
        %v6989 = vsel %vm670, %v6984, %v6988
        %v6991 = vshrl.u32 %v6837, 16
        %v6993 = vrot.slane %v6991, 4
        %v6994 = vshll.u32 %v6837, 16
        %v6996 = vrot.slane %v6994, 5
        %v6997 = vor.u32 %v6993, %v6996
        %v6998 = vrot.slane %v6997, 4
        %v7000 = vshll.u32 %v6838, 16
        %v7002 = vrot.slane %v7000, 5
        %v7003 = vsel %vm670, %v6998, %v7002
        %v7004 = vshrl.u32 %v6838, 16
        %v7006 = vrot.slane %v7004, 4
        %v7007 = vor.u32 %v7006, %v7002
        %v7008 = vrot.slane %v7007, 4
        %v7010 = vshll.u32 %v6839, 16
        %v7012 = vrot.slane %v7010, 5
        %v7013 = vsel %vm670, %v7008, %v7012
        %v7015 = vshrl.u32 %v6840, 16
        %v7017 = vrot.slane %v7015, 4
        %v7018 = vshll.u32 %v6840, 16
        %v7020 = vrot.slane %v7018, 5
        %v7021 = vor.u32 %v7017, %v7020
        %v7022 = vrot.slane %v7021, 4
        %v7024 = vshll.u32 %v6841, 16
        %v7026 = vrot.slane %v7024, 5
        %v7027 = vsel %vm670, %v7022, %v7026
        %v7028 = vshrl.u32 %v6841, 16
        %v7030 = vrot.slane %v7028, 4
        %v7031 = vor.u32 %v7030, %v7026
        %v7032 = vrot.slane %v7031, 4
        %v7034 = vshll.u32 %v6842, 16
        %v7036 = vrot.slane %v7034, 5
        %v7037 = vsel %vm670, %v7032, %v7036
        %v7039 = vshrl.u32 %v6843, 16
        %v7041 = vrot.slane %v7039, 4
        %v7042 = vshll.u32 %v6843, 16
        %v7044 = vrot.slane %v7042, 5
        %v7045 = vor.u32 %v7041, %v7044
        %v7046 = vrot.slane %v7045, 4
        %v7048 = vshll.u32 %v6844, 16
        %v7050 = vrot.slane %v7048, 5
        %v7051 = vsel %vm670, %v7046, %v7050
        %v7052 = vshrl.u32 %v6844, 16
        %v7054 = vrot.slane %v7052, 4
        %v7055 = vor.u32 %v7054, %v7050
        %v7056 = vrot.slane %v7055, 4
        %v7058 = vshll.u32 %v6845, 16
        %v7060 = vrot.slane %v7058, 5
        %v7061 = vsel %vm670, %v7056, %v7060
        %v7063 = vshrl.u32 %v6846, 16
        %v7065 = vrot.slane %v7063, 4
        %v7066 = vshll.u32 %v6846, 16
        %v7068 = vrot.slane %v7066, 5
        %v7069 = vor.u32 %v7065, %v7068
        %v7070 = vrot.slane %v7069, 4
        %v7072 = vshll.u32 %v6847, 16
        %v7074 = vrot.slane %v7072, 5
        %v7075 = vsel %vm670, %v7070, %v7074
        %v7076 = vshrl.u32 %v6847, 16
        %v7078 = vrot.slane %v7076, 4
        %v7079 = vor.u32 %v7078, %v7074
        %v7080 = vrot.slane %v7079, 4
        %v7082 = vshll.u32 %v6848, 16
        %v7084 = vrot.slane %v7082, 5
        %v7085 = vsel %vm670, %v7080, %v7084
        %v7087 = vshrl.u32 %v6849, 16
        %v7089 = vrot.slane %v7087, 4
        %v7090 = vshll.u32 %v6849, 16
        %v7092 = vrot.slane %v7090, 5
        %v7093 = vor.u32 %v7089, %v7092
        %v7094 = vrot.slane %v7093, 4
        %v7096 = vshll.u32 %v6850, 16
        %v7098 = vrot.slane %v7096, 5
        %v7099 = vsel %vm670, %v7094, %v7098
        %v7100 = vshrl.u32 %v6850, 16
        %v7102 = vrot.slane %v7100, 4
        %v7103 = vor.u32 %v7102, %v7098
        %v7104 = vrot.slane %v7103, 4
        %v7106 = vshll.u32 %v6851, 16
        %v7108 = vrot.slane %v7106, 5
        %v7109 = vsel %vm670, %v7104, %v7108
        %v7111 = vshrl.u32 %v6852, 16
        %v7113 = vrot.slane %v7111, 4
        %v7114 = vshll.u32 %v6852, 16
        %v7116 = vrot.slane %v7114, 5
        %v7117 = vor.u32 %v7113, %v7116
        %v7118 = vrot.slane %v7117, 4
        %v7120 = vshll.u32 %v6853, 16
        %v7122 = vrot.slane %v7120, 5
        %v7123 = vsel %vm670, %v7118, %v7122
        %v7124 = vshrl.u32 %v6853, 16
        %v7126 = vrot.slane %v7124, 4
        %v7127 = vor.u32 %v7126, %v7122
        %v7128 = vrot.slane %v7127, 4
        %v7130 = vshll.u32 %v6854, 16
        %v7132 = vrot.slane %v7130, 5
        %v7133 = vsel %vm670, %v7128, %v7132
        %v7135 = vshrl.u32 %v6855, 16
        %v7137 = vrot.slane %v7135, 4
        %v7138 = vshll.u32 %v6855, 16
        %v7140 = vrot.slane %v7138, 5
        %v7141 = vor.u32 %v7137, %v7140
        %v7142 = vrot.slane %v7141, 4
        %v7144 = vshll.u32 %v6856, 16
        %v7146 = vrot.slane %v7144, 5
        %v7147 = vsel %vm670, %v7142, %v7146
        %v7148 = vshrl.u32 %v6856, 16
        %v7150 = vrot.slane %v7148, 4
        %v7151 = vor.u32 %v7150, %v7146
        %v7152 = vrot.slane %v7151, 4
        %v7154 = vshll.u32 %v6857, 16
        %v7156 = vrot.slane %v7154, 5
        %v7157 = vsel %vm670, %v7152, %v7156
        %v7159 = vshrl.u32 %v6858, 16
        %v7161 = vrot.slane %v7159, 4
        %v7162 = vshll.u32 %v6858, 16
        %v7164 = vrot.slane %v7162, 5
        %v7165 = vor.u32 %v7161, %v7164
        %v7166 = vrot.slane %v7165, 4
        %v7168 = vshll.u32 %v6859, 16
        %v7170 = vrot.slane %v7168, 5
        %v7171 = vsel %vm670, %v7166, %v7170
        %v7172 = vshrl.u32 %v6859, 16
        %v7174 = vrot.slane %v7172, 4
        %v7175 = vor.u32 %v7174, %v7170
        %v7176 = vrot.slane %v7175, 4
        %v7178 = vshll.u32 %v6860, 16
        %v7180 = vrot.slane %v7178, 5
        %v7181 = vsel %vm670, %v7176, %v7180
        %v7183 = vshrl.u32 %v6861, 16
        %v7185 = vrot.slane %v7183, 4
        %v7186 = vshll.u32 %v6861, 16
        %v7188 = vrot.slane %v7186, 5
        %v7189 = vor.u32 %v7185, %v7188
        %v7190 = vrot.slane %v7189, 4
        %v7192 = vshll.u32 %v6862, 16
        %v7194 = vrot.slane %v7192, 5
        %v7195 = vsel %vm670, %v7190, %v7194
        %v7196 = vshrl.u32 %v6862, 16
        %v7198 = vrot.slane %v7196, 4
        %v7199 = vor.u32 %v7198, %v7194
        %v7200 = vrot.slane %v7199, 4
        %v7202 = vshll.u32 %v6863, 16
        %v7204 = vrot.slane %v7202, 5
        %v7205 = vsel %vm670, %v7200, %v7204
        %v7207 = vshrl.u32 %v6864, 16
        %v7209 = vrot.slane %v7207, 4
        %v7210 = vshll.u32 %v6864, 16
        %v7212 = vrot.slane %v7210, 5
        %v7213 = vor.u32 %v7209, %v7212
        %v7214 = vrot.slane %v7213, 4
        %v7216 = vshll.u32 %v6865, 16
        %v7218 = vrot.slane %v7216, 5
        %v7219 = vsel %vm670, %v7214, %v7218
        %v7220 = vshrl.u32 %v6865, 16
        %v7222 = vrot.slane %v7220, 4
        %v7223 = vor.u32 %v7222, %v7218
        %v7224 = vrot.slane %v7223, 4
        %v7226 = vshll.u32 %v6866, 16
        %v7228 = vrot.slane %v7226, 5
        %v7229 = vsel %vm670, %v7224, %v7228
        %v7231 = vshrl.u32 %v6867, 16
        %v7233 = vrot.slane %v7231, 4
        %v7234 = vshll.u32 %v6867, 16
        %v7236 = vrot.slane %v7234, 5
        %v7237 = vor.u32 %v7233, %v7236
        %v7238 = vrot.slane %v7237, 4
        %v7240 = vshll.u32 %v6868, 16
        %v7242 = vrot.slane %v7240, 5
        %v7243 = vsel %vm670, %v7238, %v7242
        %v7244 = vshrl.u32 %v6868, 16
        %v7246 = vrot.slane %v7244, 4
        %v7247 = vor.u32 %v7246, %v7242
        %v7248 = vrot.slane %v7247, 4
        %v7250 = vshll.u32 %v6869, 16
        %v7252 = vrot.slane %v7250, 5
        %v7253 = vsel %vm670, %v7248, %v7252
        %v7254 = vld [vmem:[#allocation9] sm:$0xf]
        %v7255 = vld [vmem:[#allocation9 + $0x4] sm:$0xf]
        %v7256 = vld [vmem:[#allocation9 + $0x8] sm:$0xf]
        %v7257 = vld [vmem:[#allocation9 + $0xc] sm:$0xf]
        %v7258 = vld [vmem:[#allocation9 + $0x10] sm:$0xf]
        %v7259 = vld [vmem:[#allocation9 + $0x14] sm:$0xf]
        %v7260 = vld [vmem:[#allocation9 + $0x18] sm:$0xf]
        %v7261 = vld [vmem:[#allocation9 + $0x1c] sm:$0xf]
        %v7262 = vld [vmem:[#allocation9 + $0x20] sm:$0xf]
        %v7263 = vld [vmem:[#allocation9 + $0x24] sm:$0xf]
        %v7264 = vld [vmem:[#allocation9 + $0x28] sm:$0xf]
        %v7265 = vld [vmem:[#allocation9 + $0x2c] sm:$0xf]
        %v7266 = vld [vmem:[#allocation9 + $0x30] sm:$0xf]
        %v7267 = vld [vmem:[#allocation9 + $0x34] sm:$0xf]
        %v7268 = vld [vmem:[#allocation9 + $0x38] sm:$0xf]
        %v7269 = vld [vmem:[#allocation9 + $0x3c] sm:$0xf]
        %v7270 = vld [vmem:[#allocation3] sm:$0xe]
        %v7271 = vld [vmem:[#allocation3 + $0xc] sm:$0xe]
        %v7272 = vld [vmem:[#allocation3 + $0x18] sm:$0xe]
        %v7273 = vld [vmem:[#allocation3 + $0x24] sm:$0xe]
        %v7274 = vld [vmem:[#allocation3 + $0x30] sm:$0xe]
        %v7275 = vld [vmem:[#allocation3 + $0x3c] sm:$0xe]
        %v7276 = vld [vmem:[#allocation3 + $0x48] sm:$0xe]
        %v7277 = vld [vmem:[#allocation3 + $0x54] sm:$0xe]
        %v7278 = vld [vmem:[#allocation3 + $0x60] sm:$0xe]
        %v7279 = vld [vmem:[#allocation3 + $0x6c] sm:$0xe]
        %v7280 = vld [vmem:[#allocation3 + $0x78] sm:$0xe]
        %v7281 = vld [vmem:[#allocation3 + $0x84] sm:$0xe]
        %v7282 = vld [vmem:[#allocation3 + $0x90] sm:$0xe]
        %v7283 = vld [vmem:[#allocation3 + $0x9c] sm:$0xe]
        %v7284 = vld [vmem:[#allocation3 + $0xa8] sm:$0xe]
        %v7285 = vld [vmem:[#allocation3 + $0xb4] sm:$0xe]
        %v7334 = vrot.slane %v7270, 5
        %v7335 = vrot.slane %v7334, 4
        %v7336 = vrot.slane %v6823, 5
        %v7337 = vsel %vm1137, %v7335, %v7336
        %v7338 = vrot.slane %v7336, 4
        %v7339 = vrot.slane %v6824, 5
        %v7340 = vsel %vm1137, %v7338, %v7339
        %v7341 = vrot.slane %v7271, 5
        %v7342 = vrot.slane %v7341, 4
        %v7343 = vrot.slane %v6826, 5
        %v7344 = vsel %vm1137, %v7342, %v7343
        %v7345 = vrot.slane %v7343, 4
        %v7346 = vrot.slane %v6827, 5
        %v7347 = vsel %vm1137, %v7345, %v7346
        %v7348 = vrot.slane %v7272, 5
        %v7349 = vrot.slane %v7348, 4
        %v7350 = vrot.slane %v6829, 5
        %v7351 = vsel %vm1137, %v7349, %v7350
        %v7352 = vrot.slane %v7350, 4
        %v7353 = vrot.slane %v6830, 5
        %v7354 = vsel %vm1137, %v7352, %v7353
        %v7355 = vrot.slane %v7273, 5
        %v7356 = vrot.slane %v7355, 4
        %v7357 = vrot.slane %v6832, 5
        %v7358 = vsel %vm1137, %v7356, %v7357
        %v7359 = vrot.slane %v7357, 4
        %v7360 = vrot.slane %v6833, 5
        %v7361 = vsel %vm1137, %v7359, %v7360
        %v7362 = vrot.slane %v7274, 5
        %v7363 = vrot.slane %v7362, 4
        %v7364 = vrot.slane %v6835, 5
        %v7365 = vsel %vm1137, %v7363, %v7364
        %v7366 = vrot.slane %v7364, 4
        %v7367 = vrot.slane %v6836, 5
        %v7368 = vsel %vm1137, %v7366, %v7367
        %v7369 = vrot.slane %v7275, 5
        %v7370 = vrot.slane %v7369, 4
        %v7371 = vrot.slane %v6838, 5
        %v7372 = vsel %vm1137, %v7370, %v7371
        %v7373 = vrot.slane %v7371, 4
        %v7374 = vrot.slane %v6839, 5
        %v7375 = vsel %vm1137, %v7373, %v7374
        %v7376 = vrot.slane %v7276, 5
        %v7377 = vrot.slane %v7376, 4
        %v7378 = vrot.slane %v6841, 5
        %v7379 = vsel %vm1137, %v7377, %v7378
        %v7380 = vrot.slane %v7378, 4
        %v7381 = vrot.slane %v6842, 5
        %v7382 = vsel %vm1137, %v7380, %v7381
        %v7383 = vrot.slane %v7277, 5
        %v7384 = vrot.slane %v7383, 4
        %v7385 = vrot.slane %v6844, 5
        %v7386 = vsel %vm1137, %v7384, %v7385
        %v7387 = vrot.slane %v7385, 4
        %v7388 = vrot.slane %v6845, 5
        %v7389 = vsel %vm1137, %v7387, %v7388
        %v7390 = vrot.slane %v7278, 5
        %v7391 = vrot.slane %v7390, 4
        %v7392 = vrot.slane %v6847, 5
        %v7393 = vsel %vm1137, %v7391, %v7392
        %v7394 = vrot.slane %v7392, 4
        %v7395 = vrot.slane %v6848, 5
        %v7396 = vsel %vm1137, %v7394, %v7395
        %v7397 = vrot.slane %v7279, 5
        %v7398 = vrot.slane %v7397, 4
        %v7399 = vrot.slane %v6850, 5
        %v7400 = vsel %vm1137, %v7398, %v7399
        %v7401 = vrot.slane %v7399, 4
        %v7402 = vrot.slane %v6851, 5
        %v7403 = vsel %vm1137, %v7401, %v7402
        %v7404 = vrot.slane %v7280, 5
        %v7405 = vrot.slane %v7404, 4
        %v7406 = vrot.slane %v6853, 5
        %v7407 = vsel %vm1137, %v7405, %v7406
        %v7408 = vrot.slane %v7406, 4
        %v7409 = vrot.slane %v6854, 5
        %v7410 = vsel %vm1137, %v7408, %v7409
        %v7411 = vrot.slane %v7281, 5
        %v7412 = vrot.slane %v7411, 4
        %v7413 = vrot.slane %v6856, 5
        %v7414 = vsel %vm1137, %v7412, %v7413
        %v7415 = vrot.slane %v7413, 4
        %v7416 = vrot.slane %v6857, 5
        %v7417 = vsel %vm1137, %v7415, %v7416
        %v7418 = vrot.slane %v7282, 5
        %v7419 = vrot.slane %v7418, 4
        %v7420 = vrot.slane %v6859, 5
        %v7421 = vsel %vm1137, %v7419, %v7420
        %v7422 = vrot.slane %v7420, 4
        %v7423 = vrot.slane %v6860, 5
        %v7424 = vsel %vm1137, %v7422, %v7423
        %v7425 = vrot.slane %v7283, 5
        %v7426 = vrot.slane %v7425, 4
        %v7427 = vrot.slane %v6862, 5
        %v7428 = vsel %vm1137, %v7426, %v7427
        %v7429 = vrot.slane %v7427, 4
        %v7430 = vrot.slane %v6863, 5
        %v7431 = vsel %vm1137, %v7429, %v7430
        %v7432 = vrot.slane %v7284, 5
        %v7433 = vrot.slane %v7432, 4
        %v7434 = vrot.slane %v6865, 5
        %v7435 = vsel %vm1137, %v7433, %v7434
        %v7436 = vrot.slane %v7434, 4
        %v7437 = vrot.slane %v6866, 5
        %v7438 = vsel %vm1137, %v7436, %v7437
        %v7439 = vrot.slane %v7285, 5
        %v7440 = vrot.slane %v7439, 4
        %v7441 = vrot.slane %v6868, 5
        %v7442 = vsel %vm1137, %v7440, %v7441
        %v7443 = vrot.slane %v7441, 4
        %v7444 = vrot.slane %v6869, 5
        %v7445 = vsel %vm1137, %v7443, %v7444
        %s7446 = scalar_lea.vmem [#allocation9], 64
        %v7447 = vld [vmem:[%s7446] sm:$0xf]
        %v7448 = vld [vmem:[%s7446 + $0x4] sm:$0xf]
        %v7449 = vld [vmem:[%s7446 + $0x8] sm:$0xf]
        %v7450 = vld [vmem:[%s7446 + $0xc] sm:$0xf]
        %v7451 = vld [vmem:[%s7446 + $0x10] sm:$0xf]
        %v7452 = vld [vmem:[%s7446 + $0x14] sm:$0xf]
        %v7453 = vld [vmem:[%s7446 + $0x18] sm:$0xf]
        %v7454 = vld [vmem:[%s7446 + $0x1c] sm:$0xf]
        %v7455 = vld [vmem:[%s7446 + $0x20] sm:$0xf]
        %v7456 = vld [vmem:[%s7446 + $0x24] sm:$0xf]
        %v7457 = vld [vmem:[%s7446 + $0x28] sm:$0xf]
        %v7458 = vld [vmem:[%s7446 + $0x2c] sm:$0xf]
        %v7459 = vld [vmem:[%s7446 + $0x30] sm:$0xf]
        %v7460 = vld [vmem:[%s7446 + $0x34] sm:$0xf]
        %v7461 = vld [vmem:[%s7446 + $0x38] sm:$0xf]
        %v7462 = vld [vmem:[%s7446 + $0x3c] sm:$0xf]
        %v7463 = vunpack.c.l.b16 %v7337
        %v7464 = vunpack.c.l.b16 %v7340
        %v7465 = vunpack.c.l.b16 %v7344
        %v7466 = vunpack.c.l.b16 %v7347
        %v7467 = vunpack.c.l.b16 %v7351
        %v7468 = vunpack.c.l.b16 %v7354
        %v7469 = vunpack.c.l.b16 %v7358
        %v7470 = vunpack.c.l.b16 %v7361
        %v7471 = vunpack.c.l.b16 %v7365
        %v7472 = vunpack.c.l.b16 %v7368
        %v7473 = vunpack.c.l.b16 %v7372
        %v7474 = vunpack.c.l.b16 %v7375
        %v7475 = vunpack.c.l.b16 %v7379
        %v7476 = vunpack.c.l.b16 %v7382
        %v7477 = vunpack.c.l.b16 %v7386
        %v7478 = vunpack.c.l.b16 %v7389
        %v7479 = vunpack.c.l.b16 %v7393
        %v7480 = vunpack.c.l.b16 %v7396
        %v7481 = vunpack.c.l.b16 %v7400
        %v7482 = vunpack.c.l.b16 %v7403
        %v7483 = vunpack.c.l.b16 %v7407
        %v7484 = vunpack.c.l.b16 %v7410
        %v7485 = vunpack.c.l.b16 %v7414
        %v7486 = vunpack.c.l.b16 %v7417
        %v7487 = vunpack.c.l.b16 %v7421
        %v7488 = vunpack.c.l.b16 %v7424
        %v7489 = vunpack.c.l.b16 %v7428
        %v7490 = vunpack.c.l.b16 %v7431
        %v7491 = vunpack.c.l.b16 %v7435
        %v7492 = vunpack.c.l.b16 %v7438
        %v7493 = vunpack.c.l.b16 %v7442
        %v7494 = vunpack.c.l.b16 %v7445
        %v7495 = vpack.c.b16 %v7464, %v7463
        %v7496 = vpack.c.b16 %v7466, %v7465
        %v7497 = vpack.c.b16 %v7468, %v7467
        %v7498 = vpack.c.b16 %v7470, %v7469
        %v7499 = vpack.c.b16 %v7472, %v7471
        %v7500 = vpack.c.b16 %v7474, %v7473
        %v7501 = vpack.c.b16 %v7476, %v7475
        %v7502 = vpack.c.b16 %v7478, %v7477
        %v7503 = vpack.c.b16 %v7480, %v7479
        %v7504 = vpack.c.b16 %v7482, %v7481
        %v7505 = vpack.c.b16 %v7484, %v7483
        %v7506 = vpack.c.b16 %v7486, %v7485
        %v7507 = vpack.c.b16 %v7488, %v7487
        %v7508 = vpack.c.b16 %v7490, %v7489
        %v7509 = vpack.c.b16 %v7492, %v7491
        %v7510 = vpack.c.b16 %v7494, %v7493
        %v7543 = vunpack.c.l.b16 %v7447
        %v7544 = vunpack.c.l.b16 %v7448
        %v7545 = vunpack.c.l.b16 %v7449
        %v7546 = vunpack.c.l.b16 %v7450
        %v7547 = vunpack.c.l.b16 %v7451
        %v7548 = vunpack.c.l.b16 %v7452
        %v7549 = vunpack.c.l.b16 %v7453
        %v7550 = vunpack.c.l.b16 %v7454
        %v7551 = vunpack.c.l.b16 %v7455
        %v7552 = vunpack.c.l.b16 %v7456
        %v7553 = vunpack.c.l.b16 %v7457
        %v7554 = vunpack.c.l.b16 %v7458
        %v7555 = vunpack.c.l.b16 %v7459
        %v7556 = vunpack.c.l.b16 %v7460
        %v7557 = vunpack.c.l.b16 %v7461
        %v7558 = vunpack.c.l.b16 %v7462
        %v7559 = vpack.c.b16 %v7544, %v7543
        %v7560 = vpack.c.b16 %v7546, %v7545
        %v7561 = vpack.c.b16 %v7548, %v7547
        %v7562 = vpack.c.b16 %v7550, %v7549
        %v7563 = vpack.c.b16 %v7552, %v7551
        %v7564 = vpack.c.b16 %v7554, %v7553
        %v7565 = vpack.c.b16 %v7556, %v7555
        %v7566 = vpack.c.b16 %v7558, %v7557
        %7575 = vmatprep.subr.bf16.mxu0 0
        %7576 = vmatpush1.bf16.msra.mxu0 %v7559
        %7577 = vmatprep.subr.bf16.mxu0 0
        %7578 = vmatpush1.bf16.msra.mxu0 %v7560
        %7579 = vmatprep.subr.bf16.mxu0 0
        %7580 = vmatpush1.bf16.msra.mxu0 %v7561
        %7581 = vmatprep.subr.bf16.mxu0 0
        %7582 = vmatpush1.bf16.msra.mxu0 %v7562
        %7583 = vmatprep.subr.bf16.mxu0 0
        %7584 = vmatpush1.bf16.msra.mxu0 %v7563
        %7585 = vmatprep.subr.bf16.mxu0 0
        %7586 = vmatpush1.bf16.msra.mxu0 %v7564
        %7587 = vmatprep.subr.bf16.mxu0 0
        %7588 = vmatpush1.bf16.msra.mxu0 %v7565
        %7589 = vmatprep.subr.bf16.mxu0 0
        %7590 = vmatpush1.bf16.msra.mxu0 %v7566
        %7591 = vmatprep.subr.bf16.mxu0 0
        %7592 = vmatpush1.bf16.msra.mxu0 0
        %7593 = vmatprep.subr.bf16.mxu0 0
        %7594 = vmatpush1.bf16.msra.mxu0 0
        %7595 = vmatprep.subr.bf16.mxu0 0
        %7596 = vmatpush1.bf16.msra.mxu0 0
        %7597 = vmatprep.subr.bf16.mxu0 0
        %7598 = vmatpush1.bf16.msra.mxu0 0
        %7599 = vmatprep.subr.bf16.mxu0 0
        %7600 = vmatpush1.bf16.msra.mxu0 0
        %7601 = vmatprep.subr.bf16.mxu0 0
        %7602 = vmatpush1.bf16.msra.mxu0 0
        %7603 = vmatprep.subr.bf16.mxu0 0
        %7604 = vmatpush1.bf16.msra.mxu0 0
        %7605 = vmatprep.subr.bf16.mxu0 0
        %7606 = vmatpush1.bf16.msra.mxu0 0
        %7607 = vmatprep.mubr.bf16.mxu0 0
        %7608 = vmatmul.mubr.bf16.gmra.mrb[0].mxu0 %v7495
        %v7609 = vpop.f32.mrb[0].mxu0
        %v7610 = vadd.f32 0.0, %v7609
        %v7611 = vpop.f32.mrb[0].mxu0
        %v7612 = vpop.f32.mrb[0].mxu0
        %v7613 = vadd.f32 0.0, %v7612
        %v7614 = vpop.f32.mrb[0].mxu0
        %7615 = vmatprep.mubr.bf16.mxu0 0
        %7616 = vmatmul.mubr.bf16.gmra.mrb[0].mxu0 %v7496
        %v7617 = vpop.f32.mrb[0].mxu0
        %v7618 = vadd.f32 0.0, %v7617
        %v7619 = vpop.f32.mrb[0].mxu0
        %v7620 = vpop.f32.mrb[0].mxu0
        %v7621 = vadd.f32 0.0, %v7620
        %v7622 = vpop.f32.mrb[0].mxu0
        %7623 = vmatprep.mubr.bf16.mxu0 0
        %7624 = vmatmul.mubr.bf16.gmra.mrb[0].mxu0 %v7497
        %v7625 = vpop.f32.mrb[0].mxu0
        %v7626 = vadd.f32 0.0, %v7625
        %v7627 = vpop.f32.mrb[0].mxu0
        %v7628 = vpop.f32.mrb[0].mxu0
        %v7629 = vadd.f32 0.0, %v7628
        %v7630 = vpop.f32.mrb[0].mxu0
        %7631 = vmatprep.mubr.bf16.mxu0 0
        %7632 = vmatmul.mubr.bf16.gmra.mrb[0].mxu0 %v7498
        %v7633 = vpop.f32.mrb[0].mxu0
        %v7634 = vadd.f32 0.0, %v7633
        %v7635 = vpop.f32.mrb[0].mxu0
        %v7636 = vpop.f32.mrb[0].mxu0
        %v7637 = vadd.f32 0.0, %v7636
        %v7638 = vpop.f32.mrb[0].mxu0
        %7639 = vmatprep.mubr.bf16.mxu0 0
        %7640 = vmatmul.mubr.bf16.gmra.mrb[0].mxu0 %v7499
        %v7641 = vpop.f32.mrb[0].mxu0
        %v7642 = vadd.f32 0.0, %v7641
        %v7643 = vpop.f32.mrb[0].mxu0
        %v7644 = vpop.f32.mrb[0].mxu0
        %v7645 = vadd.f32 0.0, %v7644
        %v7646 = vpop.f32.mrb[0].mxu0
        %7647 = vmatprep.mubr.bf16.mxu0 0
        %7648 = vmatmul.mubr.bf16.gmra.mrb[0].mxu0 %v7500
        %v7649 = vpop.f32.mrb[0].mxu0
        %v7650 = vadd.f32 0.0, %v7649
        %v7651 = vpop.f32.mrb[0].mxu0
        %v7652 = vpop.f32.mrb[0].mxu0
        %v7653 = vadd.f32 0.0, %v7652
        %v7654 = vpop.f32.mrb[0].mxu0
        %7655 = vmatprep.mubr.bf16.mxu0 0
        %7656 = vmatmul.mubr.bf16.gmra.mrb[0].mxu0 %v7501
        %v7657 = vpop.f32.mrb[0].mxu0
        %v7658 = vadd.f32 0.0, %v7657
        %v7659 = vpop.f32.mrb[0].mxu0
        %v7660 = vpop.f32.mrb[0].mxu0
        %v7661 = vadd.f32 0.0, %v7660
        %v7662 = vpop.f32.mrb[0].mxu0
        %7663 = vmatprep.mubr.bf16.mxu0 0
        %7664 = vmatmul.mubr.bf16.gmra.mrb[0].mxu0 %v7502
        %v7665 = vpop.f32.mrb[0].mxu0
        %v7666 = vadd.f32 0.0, %v7665
        %v7667 = vpop.f32.mrb[0].mxu0
        %v7668 = vpop.f32.mrb[0].mxu0
        %v7669 = vadd.f32 0.0, %v7668
        %v7670 = vpop.f32.mrb[0].mxu0
        %7671 = vmatprep.mubr.bf16.mxu0 0
        %7672 = vmatmul.mubr.bf16.gmra.mrb[0].mxu0 %v7503
        %v7673 = vpop.f32.mrb[0].mxu0
        %v7674 = vadd.f32 0.0, %v7673
        %v7675 = vpop.f32.mrb[0].mxu0
        %v7676 = vpop.f32.mrb[0].mxu0
        %v7677 = vadd.f32 0.0, %v7676
        %v7678 = vpop.f32.mrb[0].mxu0
        %7679 = vmatprep.mubr.bf16.mxu0 0
        %7680 = vmatmul.mubr.bf16.gmra.mrb[0].mxu0 %v7504
        %v7681 = vpop.f32.mrb[0].mxu0
        %v7682 = vadd.f32 0.0, %v7681
        %v7683 = vpop.f32.mrb[0].mxu0
        %v7684 = vpop.f32.mrb[0].mxu0
        %v7685 = vadd.f32 0.0, %v7684
        %v7686 = vpop.f32.mrb[0].mxu0
        %7687 = vmatprep.mubr.bf16.mxu0 0
        %7688 = vmatmul.mubr.bf16.gmra.mrb[0].mxu0 %v7505
        %v7689 = vpop.f32.mrb[0].mxu0
        %v7690 = vadd.f32 0.0, %v7689
        %v7691 = vpop.f32.mrb[0].mxu0
        %v7692 = vpop.f32.mrb[0].mxu0
        %v7693 = vadd.f32 0.0, %v7692
        %v7694 = vpop.f32.mrb[0].mxu0
        %7695 = vmatprep.mubr.bf16.mxu0 0
        %7696 = vmatmul.mubr.bf16.gmra.mrb[0].mxu0 %v7506
        %v7697 = vpop.f32.mrb[0].mxu0
        %v7698 = vadd.f32 0.0, %v7697
        %v7699 = vpop.f32.mrb[0].mxu0
        %v7700 = vpop.f32.mrb[0].mxu0
        %v7701 = vadd.f32 0.0, %v7700
        %v7702 = vpop.f32.mrb[0].mxu0
        %7703 = vmatprep.mubr.bf16.mxu0 0
        %7704 = vmatmul.mubr.bf16.gmra.mrb[0].mxu0 %v7507
        %v7705 = vpop.f32.mrb[0].mxu0
        %v7706 = vadd.f32 0.0, %v7705
        %v7707 = vpop.f32.mrb[0].mxu0
        %v7708 = vpop.f32.mrb[0].mxu0
        %v7709 = vadd.f32 0.0, %v7708
        %v7710 = vpop.f32.mrb[0].mxu0
        %7711 = vmatprep.mubr.bf16.mxu0 0
        %7712 = vmatmul.mubr.bf16.gmra.mrb[0].mxu0 %v7508
        %v7713 = vpop.f32.mrb[0].mxu0
        %v7714 = vadd.f32 0.0, %v7713
        %v7715 = vpop.f32.mrb[0].mxu0
        %v7716 = vpop.f32.mrb[0].mxu0
        %v7717 = vadd.f32 0.0, %v7716
        %v7718 = vpop.f32.mrb[0].mxu0
        %7719 = vmatprep.mubr.bf16.mxu0 0
        %7720 = vmatmul.mubr.bf16.gmra.mrb[0].mxu0 %v7509
        %v7721 = vpop.f32.mrb[0].mxu0
        %v7722 = vadd.f32 0.0, %v7721
        %v7723 = vpop.f32.mrb[0].mxu0
        %v7724 = vpop.f32.mrb[0].mxu0
        %v7725 = vadd.f32 0.0, %v7724
        %v7726 = vpop.f32.mrb[0].mxu0
        %7727 = vmatprep.mubr.bf16.mxu0 0
        %7728 = vmatmul.mubr.bf16.gmra.mrb[0].mxu0 %v7510
        %v7729 = vpop.f32.mrb[0].mxu0
        %v7730 = vadd.f32 0.0, %v7729
        %v7731 = vpop.f32.mrb[0].mxu0
        %v7732 = vpop.f32.mrb[0].mxu0
        %v7733 = vadd.f32 0.0, %v7732
        %v7734 = vpop.f32.mrb[0].mxu0
        %7735 = vdwg.mxu0
        %v7736 = vunpack.c.l.b16 %v6883
        %v7737 = vunpack.c.l.b16 %v6893
        %v7738 = vunpack.c.l.b16 %v6907
        %v7739 = vunpack.c.l.b16 %v6917
        %v7740 = vunpack.c.l.b16 %v6931
        %v7741 = vunpack.c.l.b16 %v6941
        %v7742 = vunpack.c.l.b16 %v6955
        %v7743 = vunpack.c.l.b16 %v6965
        %v7744 = vunpack.c.l.b16 %v6979
        %v7745 = vunpack.c.l.b16 %v6989
        %v7746 = vunpack.c.l.b16 %v7003
        %v7747 = vunpack.c.l.b16 %v7013
        %v7748 = vunpack.c.l.b16 %v7027
        %v7749 = vunpack.c.l.b16 %v7037
        %v7750 = vunpack.c.l.b16 %v7051
        %v7751 = vunpack.c.l.b16 %v7061
        %v7752 = vunpack.c.l.b16 %v7075
        %v7753 = vunpack.c.l.b16 %v7085
        %v7754 = vunpack.c.l.b16 %v7099
        %v7755 = vunpack.c.l.b16 %v7109
        %v7756 = vunpack.c.l.b16 %v7123
        %v7757 = vunpack.c.l.b16 %v7133
        %v7758 = vunpack.c.l.b16 %v7147
        %v7759 = vunpack.c.l.b16 %v7157
        %v7760 = vunpack.c.l.b16 %v7171
        %v7761 = vunpack.c.l.b16 %v7181
        %v7762 = vunpack.c.l.b16 %v7195
        %v7763 = vunpack.c.l.b16 %v7205
        %v7764 = vunpack.c.l.b16 %v7219
        %v7765 = vunpack.c.l.b16 %v7229
        %v7766 = vunpack.c.l.b16 %v7243
        %v7767 = vunpack.c.l.b16 %v7253
        %v7768 = vpack.c.b16 %v7737, %v7736
        %v7769 = vpack.c.b16 %v7739, %v7738
        %v7770 = vpack.c.b16 %v7741, %v7740
        %v7771 = vpack.c.b16 %v7743, %v7742
        %v7772 = vpack.c.b16 %v7745, %v7744
        %v7773 = vpack.c.b16 %v7747, %v7746
        %v7774 = vpack.c.b16 %v7749, %v7748
        %v7775 = vpack.c.b16 %v7751, %v7750
        %v7776 = vpack.c.b16 %v7753, %v7752
        %v7777 = vpack.c.b16 %v7755, %v7754
        %v7778 = vpack.c.b16 %v7757, %v7756
        %v7779 = vpack.c.b16 %v7759, %v7758
        %v7780 = vpack.c.b16 %v7761, %v7760
        %v7781 = vpack.c.b16 %v7763, %v7762
        %v7782 = vpack.c.b16 %v7765, %v7764
        %v7783 = vpack.c.b16 %v7767, %v7766
        %v7816 = vunpack.c.l.b16 %v7254
        %v7817 = vunpack.c.l.b16 %v7255
        %v7818 = vunpack.c.l.b16 %v7256
        %v7819 = vunpack.c.l.b16 %v7257
        %v7820 = vunpack.c.l.b16 %v7258
        %v7821 = vunpack.c.l.b16 %v7259
        %v7822 = vunpack.c.l.b16 %v7260
        %v7823 = vunpack.c.l.b16 %v7261
        %v7824 = vunpack.c.l.b16 %v7262
        %v7825 = vunpack.c.l.b16 %v7263
        %v7826 = vunpack.c.l.b16 %v7264
        %v7827 = vunpack.c.l.b16 %v7265
        %v7828 = vunpack.c.l.b16 %v7266
        %v7829 = vunpack.c.l.b16 %v7267
        %v7830 = vunpack.c.l.b16 %v7268
        %v7831 = vunpack.c.l.b16 %v7269
        %v7832 = vpack.c.b16 %v7817, %v7816
        %v7833 = vpack.c.b16 %v7819, %v7818
        %v7834 = vpack.c.b16 %v7821, %v7820
        %v7835 = vpack.c.b16 %v7823, %v7822
        %v7836 = vpack.c.b16 %v7825, %v7824
        %v7837 = vpack.c.b16 %v7827, %v7826
        %v7838 = vpack.c.b16 %v7829, %v7828
        %v7839 = vpack.c.b16 %v7831, %v7830
        %7848 = vmatprep.subr.bf16.mxu0 0
        %7849 = vmatpush1.bf16.msra.mxu0 %v7832
        %7850 = vmatprep.subr.bf16.mxu0 0
        %7851 = vmatpush1.bf16.msra.mxu0 %v7833
        %7852 = vmatprep.subr.bf16.mxu0 0
        %7853 = vmatpush1.bf16.msra.mxu0 %v7834
        %7854 = vmatprep.subr.bf16.mxu0 0
        %7855 = vmatpush1.bf16.msra.mxu0 %v7835
        %7856 = vmatprep.subr.bf16.mxu0 0
        %7857 = vmatpush1.bf16.msra.mxu0 %v7836
        %7858 = vmatprep.subr.bf16.mxu0 0
        %7859 = vmatpush1.bf16.msra.mxu0 %v7837
        %7860 = vmatprep.subr.bf16.mxu0 0
        %7861 = vmatpush1.bf16.msra.mxu0 %v7838
        %7862 = vmatprep.subr.bf16.mxu0 0
        %7863 = vmatpush1.bf16.msra.mxu0 %v7839
        %7864 = vmatprep.subr.bf16.mxu0 0
        %7865 = vmatpush1.bf16.msra.mxu0 0
        %7866 = vmatprep.subr.bf16.mxu0 0
        %7867 = vmatpush1.bf16.msra.mxu0 0
        %7868 = vmatprep.subr.bf16.mxu0 0
        %7869 = vmatpush1.bf16.msra.mxu0 0
        %7870 = vmatprep.subr.bf16.mxu0 0
        %7871 = vmatpush1.bf16.msra.mxu0 0
        %7872 = vmatprep.subr.bf16.mxu0 0
        %7873 = vmatpush1.bf16.msra.mxu0 0
        %7874 = vmatprep.subr.bf16.mxu0 0
        %7875 = vmatpush1.bf16.msra.mxu0 0
        %7876 = vmatprep.subr.bf16.mxu0 0
        %7877 = vmatpush1.bf16.msra.mxu0 0
        %7878 = vmatprep.subr.bf16.mxu0 0
        %7879 = vmatpush1.bf16.msra.mxu0 0
        %7880 = vmatprep.mubr.bf16.mxu0 0
        %7881 = vmatmul.mubr.bf16.gmra.mrb[0].mxu0 %v7768
        %v7882 = vpop.f32.mrb[0].mxu0
        %v7883 = vadd.f32 %v7610, %v7882
        %v7884 = vpop.f32.mrb[0].mxu0
        %v7885 = vpop.f32.mrb[0].mxu0
        %v7886 = vadd.f32 %v7613, %v7885
        %v7887 = vpop.f32.mrb[0].mxu0
        %7888 = vmatprep.mubr.bf16.mxu0 0
        %7889 = vmatmul.mubr.bf16.gmra.mrb[0].mxu0 %v7769
        %v7890 = vpop.f32.mrb[0].mxu0
        %v7891 = vadd.f32 %v7618, %v7890
        %v7892 = vpop.f32.mrb[0].mxu0
        %v7893 = vpop.f32.mrb[0].mxu0
        %v7894 = vadd.f32 %v7621, %v7893
        %v7895 = vpop.f32.mrb[0].mxu0
        %7896 = vmatprep.mubr.bf16.mxu0 0
        %7897 = vmatmul.mubr.bf16.gmra.mrb[0].mxu0 %v7770
        %v7898 = vpop.f32.mrb[0].mxu0
        %v7899 = vadd.f32 %v7626, %v7898
        %v7900 = vpop.f32.mrb[0].mxu0
        %v7901 = vpop.f32.mrb[0].mxu0
        %v7902 = vadd.f32 %v7629, %v7901
        %v7903 = vpop.f32.mrb[0].mxu0
        %7904 = vmatprep.mubr.bf16.mxu0 0
        %7905 = vmatmul.mubr.bf16.gmra.mrb[0].mxu0 %v7771
        %v7906 = vpop.f32.mrb[0].mxu0
        %v7907 = vadd.f32 %v7634, %v7906
        %v7908 = vpop.f32.mrb[0].mxu0
        %v7909 = vpop.f32.mrb[0].mxu0
        %v7910 = vadd.f32 %v7637, %v7909
        %v7911 = vpop.f32.mrb[0].mxu0
        %7912 = vmatprep.mubr.bf16.mxu0 0
        %7913 = vmatmul.mubr.bf16.gmra.mrb[0].mxu0 %v7772
        %v7914 = vpop.f32.mrb[0].mxu0
        %v7915 = vadd.f32 %v7642, %v7914
        %v7916 = vpop.f32.mrb[0].mxu0
        %v7917 = vpop.f32.mrb[0].mxu0
        %v7918 = vadd.f32 %v7645, %v7917
        %v7919 = vpop.f32.mrb[0].mxu0
        %7920 = vmatprep.mubr.bf16.mxu0 0
        %7921 = vmatmul.mubr.bf16.gmra.mrb[0].mxu0 %v7773
        %v7922 = vpop.f32.mrb[0].mxu0
        %v7923 = vadd.f32 %v7650, %v7922
        %v7924 = vpop.f32.mrb[0].mxu0
        %v7925 = vpop.f32.mrb[0].mxu0
        %v7926 = vadd.f32 %v7653, %v7925
        %v7927 = vpop.f32.mrb[0].mxu0
        %7928 = vmatprep.mubr.bf16.mxu0 0
        %7929 = vmatmul.mubr.bf16.gmra.mrb[0].mxu0 %v7774
        %v7930 = vpop.f32.mrb[0].mxu0
        %v7931 = vadd.f32 %v7658, %v7930
        %v7932 = vpop.f32.mrb[0].mxu0
        %v7933 = vpop.f32.mrb[0].mxu0
        %v7934 = vadd.f32 %v7661, %v7933
        %v7935 = vpop.f32.mrb[0].mxu0
        %7936 = vmatprep.mubr.bf16.mxu0 0
        %7937 = vmatmul.mubr.bf16.gmra.mrb[0].mxu0 %v7775
        %v7938 = vpop.f32.mrb[0].mxu0
        %v7939 = vadd.f32 %v7666, %v7938
        %v7940 = vpop.f32.mrb[0].mxu0
        %v7941 = vpop.f32.mrb[0].mxu0
        %v7942 = vadd.f32 %v7669, %v7941
        %v7943 = vpop.f32.mrb[0].mxu0
        %7944 = vmatprep.mubr.bf16.mxu0 0
        %7945 = vmatmul.mubr.bf16.gmra.mrb[0].mxu0 %v7776
        %v7946 = vpop.f32.mrb[0].mxu0
        %v7947 = vadd.f32 %v7674, %v7946
        %v7948 = vpop.f32.mrb[0].mxu0
        %v7949 = vpop.f32.mrb[0].mxu0
        %v7950 = vadd.f32 %v7677, %v7949
        %v7951 = vpop.f32.mrb[0].mxu0
        %7952 = vmatprep.mubr.bf16.mxu0 0
        %7953 = vmatmul.mubr.bf16.gmra.mrb[0].mxu0 %v7777
        %v7954 = vpop.f32.mrb[0].mxu0
        %v7955 = vadd.f32 %v7682, %v7954
        %v7956 = vpop.f32.mrb[0].mxu0
        %v7957 = vpop.f32.mrb[0].mxu0
        %v7958 = vadd.f32 %v7685, %v7957
        %v7959 = vpop.f32.mrb[0].mxu0
        %7960 = vmatprep.mubr.bf16.mxu0 0
        %7961 = vmatmul.mubr.bf16.gmra.mrb[0].mxu0 %v7778
        %v7962 = vpop.f32.mrb[0].mxu0
        %v7963 = vadd.f32 %v7690, %v7962
        %v7964 = vpop.f32.mrb[0].mxu0
        %v7965 = vpop.f32.mrb[0].mxu0
        %v7966 = vadd.f32 %v7693, %v7965
        %v7967 = vpop.f32.mrb[0].mxu0
        %7968 = vmatprep.mubr.bf16.mxu0 0
        %7969 = vmatmul.mubr.bf16.gmra.mrb[0].mxu0 %v7779
        %v7970 = vpop.f32.mrb[0].mxu0
        %v7971 = vadd.f32 %v7698, %v7970
        %v7972 = vpop.f32.mrb[0].mxu0
        %v7973 = vpop.f32.mrb[0].mxu0
        %v7974 = vadd.f32 %v7701, %v7973
        %v7975 = vpop.f32.mrb[0].mxu0
        %7976 = vmatprep.mubr.bf16.mxu0 0
        %7977 = vmatmul.mubr.bf16.gmra.mrb[0].mxu0 %v7780
        %v7978 = vpop.f32.mrb[0].mxu0
        %v7979 = vadd.f32 %v7706, %v7978
        %v7980 = vpop.f32.mrb[0].mxu0
        %v7981 = vpop.f32.mrb[0].mxu0
        %v7982 = vadd.f32 %v7709, %v7981
        %v7983 = vpop.f32.mrb[0].mxu0
        %7984 = vmatprep.mubr.bf16.mxu0 0
        %7985 = vmatmul.mubr.bf16.gmra.mrb[0].mxu0 %v7781
        %v7986 = vpop.f32.mrb[0].mxu0
        %v7987 = vadd.f32 %v7714, %v7986
        %v7988 = vpop.f32.mrb[0].mxu0
        %v7989 = vpop.f32.mrb[0].mxu0
        %v7990 = vadd.f32 %v7717, %v7989
        %v7991 = vpop.f32.mrb[0].mxu0
        %7992 = vmatprep.mubr.bf16.mxu0 0
        %7993 = vmatmul.mubr.bf16.gmra.mrb[0].mxu0 %v7782
        %v7994 = vpop.f32.mrb[0].mxu0
        %v7995 = vadd.f32 %v7722, %v7994
        %v7996 = vpop.f32.mrb[0].mxu0
        %v7997 = vpop.f32.mrb[0].mxu0
        %v7998 = vadd.f32 %v7725, %v7997
        %v7999 = vpop.f32.mrb[0].mxu0
        %8000 = vmatprep.mubr.bf16.mxu0 0
        %8001 = vmatmul.mubr.bf16.gmra.mrb[0].mxu0 %v7783
        %v8002 = vpop.f32.mrb[0].mxu0
        %v8003 = vadd.f32 %v7730, %v8002
        %v8004 = vpop.f32.mrb[0].mxu0
        %v8005 = vpop.f32.mrb[0].mxu0
        %v8006 = vadd.f32 %v7733, %v8005
        %v8007 = vpop.f32.mrb[0].mxu0
        %8008 = vdwg.mxu0
        %v8009 = vld [vmem:[#allocation3 + $0x8] sm:$0x3]
        %v8010 = vld [vmem:[#allocation3 + $0x14] sm:$0x3]
        %v8011 = vld [vmem:[#allocation3 + $0x20] sm:$0x3]
        %v8012 = vld [vmem:[#allocation3 + $0x2c] sm:$0x3]
        %v8013 = vld [vmem:[#allocation3 + $0x38] sm:$0x3]
        %v8014 = vld [vmem:[#allocation3 + $0x44] sm:$0x3]
        %v8015 = vld [vmem:[#allocation3 + $0x50] sm:$0x3]
        %v8016 = vld [vmem:[#allocation3 + $0x5c] sm:$0x3]
        %v8017 = vld [vmem:[#allocation3 + $0x68] sm:$0x3]
        %v8018 = vld [vmem:[#allocation3 + $0x74] sm:$0x3]
        %v8019 = vld [vmem:[#allocation3 + $0x80] sm:$0x3]
        %v8020 = vld [vmem:[#allocation3 + $0x8c] sm:$0x3]
        %v8021 = vld [vmem:[#allocation3 + $0x98] sm:$0x3]
        %v8022 = vld [vmem:[#allocation3 + $0xa4] sm:$0x3]
        %v8023 = vld [vmem:[#allocation3 + $0xb0] sm:$0x3]
        %v8024 = vld [vmem:[#allocation3 + $0xbc] sm:$0x3]
        %v8026 = vshrl.u32 %v7270, 16
        %v8028 = vrot.slane %v8026, 5
        %v8029 = vshll.u32 %v7270, 16
        %v8031 = vrot.slane %v8029, 6
        %v8032 = vor.u32 %v8028, %v8031
        %v8033 = vrot.slane %v8032, 4
        %v8034 = vrot.slane %v6884, 5
        %v8035 = vrot.slane %v6880, 6
        %v8036 = vor.u32 %v8034, %v8035
        %v8037 = vsel %vm1831, %v8033, %v8036
        %v8038 = vrot.slane %v8036, 4
        %v8040 = vshrl.u32 %v8009, 16
        %v8042 = vrot.slane %v8040, 5
        %v8043 = vshll.u32 %v8009, 16
        %v8045 = vrot.slane %v8043, 6
        %v8046 = vor.u32 %v8042, %v8045
        %v8047 = vsel %vm1831, %v8038, %v8046
        %v8049 = vshrl.u32 %v7271, 16
        %v8051 = vrot.slane %v8049, 5
        %v8052 = vshll.u32 %v7271, 16
        %v8054 = vrot.slane %v8052, 6
        %v8055 = vor.u32 %v8051, %v8054
        %v8056 = vrot.slane %v8055, 4
        %v8057 = vrot.slane %v6908, 5
        %v8058 = vrot.slane %v6904, 6
        %v8059 = vor.u32 %v8057, %v8058
        %v8060 = vsel %vm1831, %v8056, %v8059
        %v8061 = vrot.slane %v8059, 4
        %v8063 = vshrl.u32 %v8010, 16
        %v8065 = vrot.slane %v8063, 5
        %v8066 = vshll.u32 %v8010, 16
        %v8068 = vrot.slane %v8066, 6
        %v8069 = vor.u32 %v8065, %v8068
        %v8070 = vsel %vm1831, %v8061, %v8069
        %v8072 = vshrl.u32 %v7272, 16
        %v8074 = vrot.slane %v8072, 5
        %v8075 = vshll.u32 %v7272, 16
        %v8077 = vrot.slane %v8075, 6
        %v8078 = vor.u32 %v8074, %v8077
        %v8079 = vrot.slane %v8078, 4
        %v8080 = vrot.slane %v6932, 5
        %v8081 = vrot.slane %v6928, 6
        %v8082 = vor.u32 %v8080, %v8081
        %v8083 = vsel %vm1831, %v8079, %v8082
        %v8084 = vrot.slane %v8082, 4
        %v8086 = vshrl.u32 %v8011, 16
        %v8088 = vrot.slane %v8086, 5
        %v8089 = vshll.u32 %v8011, 16
        %v8091 = vrot.slane %v8089, 6
        %v8092 = vor.u32 %v8088, %v8091
        %v8093 = vsel %vm1831, %v8084, %v8092
        %v8095 = vshrl.u32 %v7273, 16
        %v8097 = vrot.slane %v8095, 5
        %v8098 = vshll.u32 %v7273, 16
        %v8100 = vrot.slane %v8098, 6
        %v8101 = vor.u32 %v8097, %v8100
        %v8102 = vrot.slane %v8101, 4
        %v8103 = vrot.slane %v6956, 5
        %v8104 = vrot.slane %v6952, 6
        %v8105 = vor.u32 %v8103, %v8104
        %v8106 = vsel %vm1831, %v8102, %v8105
        %v8107 = vrot.slane %v8105, 4
        %v8109 = vshrl.u32 %v8012, 16
        %v8111 = vrot.slane %v8109, 5
        %v8112 = vshll.u32 %v8012, 16
        %v8114 = vrot.slane %v8112, 6
        %v8115 = vor.u32 %v8111, %v8114
        %v8116 = vsel %vm1831, %v8107, %v8115
        %v8118 = vshrl.u32 %v7274, 16
        %v8120 = vrot.slane %v8118, 5
        %v8121 = vshll.u32 %v7274, 16
        %v8123 = vrot.slane %v8121, 6
        %v8124 = vor.u32 %v8120, %v8123
        %v8125 = vrot.slane %v8124, 4
        %v8126 = vrot.slane %v6980, 5
        %v8127 = vrot.slane %v6976, 6
        %v8128 = vor.u32 %v8126, %v8127
        %v8129 = vsel %vm1831, %v8125, %v8128
        %v8130 = vrot.slane %v8128, 4
        %v8132 = vshrl.u32 %v8013, 16
        %v8134 = vrot.slane %v8132, 5
        %v8135 = vshll.u32 %v8013, 16
        %v8137 = vrot.slane %v8135, 6
        %v8138 = vor.u32 %v8134, %v8137
        %v8139 = vsel %vm1831, %v8130, %v8138
        %v8141 = vshrl.u32 %v7275, 16
        %v8143 = vrot.slane %v8141, 5
        %v8144 = vshll.u32 %v7275, 16
        %v8146 = vrot.slane %v8144, 6
        %v8147 = vor.u32 %v8143, %v8146
        %v8148 = vrot.slane %v8147, 4
        %v8149 = vrot.slane %v7004, 5
        %v8150 = vrot.slane %v7000, 6
        %v8151 = vor.u32 %v8149, %v8150
        %v8152 = vsel %vm1831, %v8148, %v8151
        %v8153 = vrot.slane %v8151, 4
        %v8155 = vshrl.u32 %v8014, 16
        %v8157 = vrot.slane %v8155, 5
        %v8158 = vshll.u32 %v8014, 16
        %v8160 = vrot.slane %v8158, 6
        %v8161 = vor.u32 %v8157, %v8160
        %v8162 = vsel %vm1831, %v8153, %v8161
        %v8164 = vshrl.u32 %v7276, 16
        %v8166 = vrot.slane %v8164, 5
        %v8167 = vshll.u32 %v7276, 16
        %v8169 = vrot.slane %v8167, 6
        %v8170 = vor.u32 %v8166, %v8169
        %v8171 = vrot.slane %v8170, 4
        %v8172 = vrot.slane %v7028, 5
        %v8173 = vrot.slane %v7024, 6
        %v8174 = vor.u32 %v8172, %v8173
        %v8175 = vsel %vm1831, %v8171, %v8174
        %v8176 = vrot.slane %v8174, 4
        %v8178 = vshrl.u32 %v8015, 16
        %v8180 = vrot.slane %v8178, 5
        %v8181 = vshll.u32 %v8015, 16
        %v8183 = vrot.slane %v8181, 6
        %v8184 = vor.u32 %v8180, %v8183
        %v8185 = vsel %vm1831, %v8176, %v8184
        %v8187 = vshrl.u32 %v7277, 16
        %v8189 = vrot.slane %v8187, 5
        %v8190 = vshll.u32 %v7277, 16
        %v8192 = vrot.slane %v8190, 6
        %v8193 = vor.u32 %v8189, %v8192
        %v8194 = vrot.slane %v8193, 4
        %v8195 = vrot.slane %v7052, 5
        %v8196 = vrot.slane %v7048, 6
        %v8197 = vor.u32 %v8195, %v8196
        %v8198 = vsel %vm1831, %v8194, %v8197
        %v8199 = vrot.slane %v8197, 4
        %v8201 = vshrl.u32 %v8016, 16
        %v8203 = vrot.slane %v8201, 5
        %v8204 = vshll.u32 %v8016, 16
        %v8206 = vrot.slane %v8204, 6
        %v8207 = vor.u32 %v8203, %v8206
        %v8208 = vsel %vm1831, %v8199, %v8207
        %v8210 = vshrl.u32 %v7278, 16
        %v8212 = vrot.slane %v8210, 5
        %v8213 = vshll.u32 %v7278, 16
        %v8215 = vrot.slane %v8213, 6
        %v8216 = vor.u32 %v8212, %v8215
        %v8217 = vrot.slane %v8216, 4
        %v8218 = vrot.slane %v7076, 5
        %v8219 = vrot.slane %v7072, 6
        %v8220 = vor.u32 %v8218, %v8219
        %v8221 = vsel %vm1831, %v8217, %v8220
        %v8222 = vrot.slane %v8220, 4
        %v8224 = vshrl.u32 %v8017, 16
        %v8226 = vrot.slane %v8224, 5
        %v8227 = vshll.u32 %v8017, 16
        %v8229 = vrot.slane %v8227, 6
        %v8230 = vor.u32 %v8226, %v8229
        %v8231 = vsel %vm1831, %v8222, %v8230
        %v8233 = vshrl.u32 %v7279, 16
        %v8235 = vrot.slane %v8233, 5
        %v8236 = vshll.u32 %v7279, 16
        %v8238 = vrot.slane %v8236, 6
        %v8239 = vor.u32 %v8235, %v8238
        %v8240 = vrot.slane %v8239, 4
        %v8241 = vrot.slane %v7100, 5
        %v8242 = vrot.slane %v7096, 6
        %v8243 = vor.u32 %v8241, %v8242
        %v8244 = vsel %vm1831, %v8240, %v8243
        %v8245 = vrot.slane %v8243, 4
        %v8247 = vshrl.u32 %v8018, 16
        %v8249 = vrot.slane %v8247, 5
        %v8250 = vshll.u32 %v8018, 16
        %v8252 = vrot.slane %v8250, 6
        %v8253 = vor.u32 %v8249, %v8252
        %v8254 = vsel %vm1831, %v8245, %v8253
        %v8256 = vshrl.u32 %v7280, 16
        %v8258 = vrot.slane %v8256, 5
        %v8259 = vshll.u32 %v7280, 16
        %v8261 = vrot.slane %v8259, 6
        %v8262 = vor.u32 %v8258, %v8261
        %v8263 = vrot.slane %v8262, 4
        %v8264 = vrot.slane %v7124, 5
        %v8265 = vrot.slane %v7120, 6
        %v8266 = vor.u32 %v8264, %v8265
        %v8267 = vsel %vm1831, %v8263, %v8266
        %v8268 = vrot.slane %v8266, 4
        %v8270 = vshrl.u32 %v8019, 16
        %v8272 = vrot.slane %v8270, 5
        %v8273 = vshll.u32 %v8019, 16
        %v8275 = vrot.slane %v8273, 6
        %v8276 = vor.u32 %v8272, %v8275
        %v8277 = vsel %vm1831, %v8268, %v8276
        %v8279 = vshrl.u32 %v7281, 16
        %v8281 = vrot.slane %v8279, 5
        %v8282 = vshll.u32 %v7281, 16
        %v8284 = vrot.slane %v8282, 6
        %v8285 = vor.u32 %v8281, %v8284
        %v8286 = vrot.slane %v8285, 4
        %v8287 = vrot.slane %v7148, 5
        %v8288 = vrot.slane %v7144, 6
        %v8289 = vor.u32 %v8287, %v8288
        %v8290 = vsel %vm1831, %v8286, %v8289
        %v8291 = vrot.slane %v8289, 4
        %v8293 = vshrl.u32 %v8020, 16
        %v8295 = vrot.slane %v8293, 5
        %v8296 = vshll.u32 %v8020, 16
        %v8298 = vrot.slane %v8296, 6
        %v8299 = vor.u32 %v8295, %v8298
        %v8300 = vsel %vm1831, %v8291, %v8299
        %v8302 = vshrl.u32 %v7282, 16
        %v8304 = vrot.slane %v8302, 5
        %v8305 = vshll.u32 %v7282, 16
        %v8307 = vrot.slane %v8305, 6
        %v8308 = vor.u32 %v8304, %v8307
        %v8309 = vrot.slane %v8308, 4
        %v8310 = vrot.slane %v7172, 5
        %v8311 = vrot.slane %v7168, 6
        %v8312 = vor.u32 %v8310, %v8311
        %v8313 = vsel %vm1831, %v8309, %v8312
        %v8314 = vrot.slane %v8312, 4
        %v8316 = vshrl.u32 %v8021, 16
        %v8318 = vrot.slane %v8316, 5
        %v8319 = vshll.u32 %v8021, 16
        %v8321 = vrot.slane %v8319, 6
        %v8322 = vor.u32 %v8318, %v8321
        %v8323 = vsel %vm1831, %v8314, %v8322
        %v8325 = vshrl.u32 %v7283, 16
        %v8327 = vrot.slane %v8325, 5
        %v8328 = vshll.u32 %v7283, 16
        %v8330 = vrot.slane %v8328, 6
        %v8331 = vor.u32 %v8327, %v8330
        %v8332 = vrot.slane %v8331, 4
        %v8333 = vrot.slane %v7196, 5
        %v8334 = vrot.slane %v7192, 6
        %v8335 = vor.u32 %v8333, %v8334
        %v8336 = vsel %vm1831, %v8332, %v8335
        %v8337 = vrot.slane %v8335, 4
        %v8339 = vshrl.u32 %v8022, 16
        %v8341 = vrot.slane %v8339, 5
        %v8342 = vshll.u32 %v8022, 16
        %v8344 = vrot.slane %v8342, 6
        %v8345 = vor.u32 %v8341, %v8344
        %v8346 = vsel %vm1831, %v8337, %v8345
        %v8348 = vshrl.u32 %v7284, 16
        %v8350 = vrot.slane %v8348, 5
        %v8351 = vshll.u32 %v7284, 16
        %v8353 = vrot.slane %v8351, 6
        %v8354 = vor.u32 %v8350, %v8353
        %v8355 = vrot.slane %v8354, 4
        %v8356 = vrot.slane %v7220, 5
        %v8357 = vrot.slane %v7216, 6
        %v8358 = vor.u32 %v8356, %v8357
        %v8359 = vsel %vm1831, %v8355, %v8358
        %v8360 = vrot.slane %v8358, 4
        %v8362 = vshrl.u32 %v8023, 16
        %v8364 = vrot.slane %v8362, 5
        %v8365 = vshll.u32 %v8023, 16
        %v8367 = vrot.slane %v8365, 6
        %v8368 = vor.u32 %v8364, %v8367
        %v8369 = vsel %vm1831, %v8360, %v8368
        %v8371 = vshrl.u32 %v7285, 16
        %v8373 = vrot.slane %v8371, 5
        %v8374 = vshll.u32 %v7285, 16
        %v8376 = vrot.slane %v8374, 6
        %v8377 = vor.u32 %v8373, %v8376
        %v8378 = vrot.slane %v8377, 4
        %v8379 = vrot.slane %v7244, 5
        %v8380 = vrot.slane %v7240, 6
        %v8381 = vor.u32 %v8379, %v8380
        %v8382 = vsel %vm1831, %v8378, %v8381
        %v8383 = vrot.slane %v8381, 4
        %v8385 = vshrl.u32 %v8024, 16
        %v8387 = vrot.slane %v8385, 5
        %v8388 = vshll.u32 %v8024, 16
        %v8390 = vrot.slane %v8388, 6
        %v8391 = vor.u32 %v8387, %v8390
        %v8392 = vsel %vm1831, %v8383, %v8391
        %s8393 = scalar_lea.vmem [#allocation9], 128
        %v8394 = vld [vmem:[%s8393] sm:$0xf]
        %v8395 = vld [vmem:[%s8393 + $0x4] sm:$0xf]
        %v8396 = vld [vmem:[%s8393 + $0x8] sm:$0xf]
        %v8397 = vld [vmem:[%s8393 + $0xc] sm:$0xf]
        %v8398 = vld [vmem:[%s8393 + $0x10] sm:$0xf]
        %v8399 = vld [vmem:[%s8393 + $0x14] sm:$0xf]
        %v8400 = vld [vmem:[%s8393 + $0x18] sm:$0xf]
        %v8401 = vld [vmem:[%s8393 + $0x1c] sm:$0xf]
        %v8402 = vld [vmem:[%s8393 + $0x20] sm:$0xf]
        %v8403 = vld [vmem:[%s8393 + $0x24] sm:$0xf]
        %v8404 = vld [vmem:[%s8393 + $0x28] sm:$0xf]
        %v8405 = vld [vmem:[%s8393 + $0x2c] sm:$0xf]
        %v8406 = vld [vmem:[%s8393 + $0x30] sm:$0xf]
        %v8407 = vld [vmem:[%s8393 + $0x34] sm:$0xf]
        %v8408 = vld [vmem:[%s8393 + $0x38] sm:$0xf]
        %v8409 = vld [vmem:[%s8393 + $0x3c] sm:$0xf]
        %v8410 = vunpack.c.l.b16 %v8037
        %v8411 = vunpack.c.l.b16 %v8047
        %v8412 = vunpack.c.l.b16 %v8060
        %v8413 = vunpack.c.l.b16 %v8070
        %v8414 = vunpack.c.l.b16 %v8083
        %v8415 = vunpack.c.l.b16 %v8093
        %v8416 = vunpack.c.l.b16 %v8106
        %v8417 = vunpack.c.l.b16 %v8116
        %v8418 = vunpack.c.l.b16 %v8129
        %v8419 = vunpack.c.l.b16 %v8139
        %v8420 = vunpack.c.l.b16 %v8152
        %v8421 = vunpack.c.l.b16 %v8162
        %v8422 = vunpack.c.l.b16 %v8175
        %v8423 = vunpack.c.l.b16 %v8185
        %v8424 = vunpack.c.l.b16 %v8198
        %v8425 = vunpack.c.l.b16 %v8208
        %v8426 = vunpack.c.l.b16 %v8221
        %v8427 = vunpack.c.l.b16 %v8231
        %v8428 = vunpack.c.l.b16 %v8244
        %v8429 = vunpack.c.l.b16 %v8254
        %v8430 = vunpack.c.l.b16 %v8267
        %v8431 = vunpack.c.l.b16 %v8277
        %v8432 = vunpack.c.l.b16 %v8290
        %v8433 = vunpack.c.l.b16 %v8300
        %v8434 = vunpack.c.l.b16 %v8313
        %v8435 = vunpack.c.l.b16 %v8323
        %v8436 = vunpack.c.l.b16 %v8336
        %v8437 = vunpack.c.l.b16 %v8346
        %v8438 = vunpack.c.l.b16 %v8359
        %v8439 = vunpack.c.l.b16 %v8369
        %v8440 = vunpack.c.l.b16 %v8382
        %v8441 = vunpack.c.l.b16 %v8392
        %v8442 = vpack.c.b16 %v8411, %v8410
        %v8443 = vpack.c.b16 %v8413, %v8412
        %v8444 = vpack.c.b16 %v8415, %v8414
        %v8445 = vpack.c.b16 %v8417, %v8416
        %v8446 = vpack.c.b16 %v8419, %v8418
        %v8447 = vpack.c.b16 %v8421, %v8420
        %v8448 = vpack.c.b16 %v8423, %v8422
        %v8449 = vpack.c.b16 %v8425, %v8424
        %v8450 = vpack.c.b16 %v8427, %v8426
        %v8451 = vpack.c.b16 %v8429, %v8428
        %v8452 = vpack.c.b16 %v8431, %v8430
        %v8453 = vpack.c.b16 %v8433, %v8432
        %v8454 = vpack.c.b16 %v8435, %v8434
        %v8455 = vpack.c.b16 %v8437, %v8436
        %v8456 = vpack.c.b16 %v8439, %v8438
        %v8457 = vpack.c.b16 %v8441, %v8440
        %v8490 = vunpack.c.l.b16 %v8394
        %v8491 = vunpack.c.l.b16 %v8395
        %v8492 = vunpack.c.l.b16 %v8396
        %v8493 = vunpack.c.l.b16 %v8397
        %v8494 = vunpack.c.l.b16 %v8398
        %v8495 = vunpack.c.l.b16 %v8399
        %v8496 = vunpack.c.l.b16 %v8400
        %v8497 = vunpack.c.l.b16 %v8401
        %v8498 = vunpack.c.l.b16 %v8402
        %v8499 = vunpack.c.l.b16 %v8403
        %v8500 = vunpack.c.l.b16 %v8404
        %v8501 = vunpack.c.l.b16 %v8405
        %v8502 = vunpack.c.l.b16 %v8406
        %v8503 = vunpack.c.l.b16 %v8407
        %v8504 = vunpack.c.l.b16 %v8408
        %v8505 = vunpack.c.l.b16 %v8409
        %v8506 = vpack.c.b16 %v8491, %v8490
        %v8507 = vpack.c.b16 %v8493, %v8492
        %v8508 = vpack.c.b16 %v8495, %v8494
        %v8509 = vpack.c.b16 %v8497, %v8496
        %v8510 = vpack.c.b16 %v8499, %v8498
        %v8511 = vpack.c.b16 %v8501, %v8500
        %v8512 = vpack.c.b16 %v8503, %v8502
        %v8513 = vpack.c.b16 %v8505, %v8504
        %8522 = vmatprep.subr.bf16.mxu0 0
        %8523 = vmatpush1.bf16.msra.mxu0 %v8506
        %8524 = vmatprep.subr.bf16.mxu0 0
        %8525 = vmatpush1.bf16.msra.mxu0 %v8507
        %8526 = vmatprep.subr.bf16.mxu0 0
        %8527 = vmatpush1.bf16.msra.mxu0 %v8508
        %8528 = vmatprep.subr.bf16.mxu0 0
        %8529 = vmatpush1.bf16.msra.mxu0 %v8509
        %8530 = vmatprep.subr.bf16.mxu0 0
        %8531 = vmatpush1.bf16.msra.mxu0 %v8510
        %8532 = vmatprep.subr.bf16.mxu0 0
        %8533 = vmatpush1.bf16.msra.mxu0 %v8511
        %8534 = vmatprep.subr.bf16.mxu0 0
        %8535 = vmatpush1.bf16.msra.mxu0 %v8512
        %8536 = vmatprep.subr.bf16.mxu0 0
        %8537 = vmatpush1.bf16.msra.mxu0 %v8513
        %8538 = vmatprep.subr.bf16.mxu0 0
        %8539 = vmatpush1.bf16.msra.mxu0 0
        %8540 = vmatprep.subr.bf16.mxu0 0
        %8541 = vmatpush1.bf16.msra.mxu0 0
        %8542 = vmatprep.subr.bf16.mxu0 0
        %8543 = vmatpush1.bf16.msra.mxu0 0
        %8544 = vmatprep.subr.bf16.mxu0 0
        %8545 = vmatpush1.bf16.msra.mxu0 0
        %8546 = vmatprep.subr.bf16.mxu0 0
        %8547 = vmatpush1.bf16.msra.mxu0 0
        %8548 = vmatprep.subr.bf16.mxu0 0
        %8549 = vmatpush1.bf16.msra.mxu0 0
        %8550 = vmatprep.subr.bf16.mxu0 0
        %8551 = vmatpush1.bf16.msra.mxu0 0
        %8552 = vmatprep.subr.bf16.mxu0 0
        %8553 = vmatpush1.bf16.msra.mxu0 0
        %8554 = vmatprep.mubr.bf16.mxu0 0
        %8555 = vmatmul.mubr.bf16.gmra.mrb[0].mxu0 %v8442
        %v8556 = vpop.f32.mrb[0].mxu0
        %v8557 = vadd.f32 0.0, %v8556
        %v8558 = vpop.f32.mrb[0].mxu0
        %v8559 = vpop.f32.mrb[0].mxu0
        %v8560 = vadd.f32 0.0, %v8559
        %v8561 = vpop.f32.mrb[0].mxu0
        %8562 = vmatprep.mubr.bf16.mxu0 0
        %8563 = vmatmul.mubr.bf16.gmra.mrb[0].mxu0 %v8443
        %v8564 = vpop.f32.mrb[0].mxu0
        %v8565 = vadd.f32 0.0, %v8564
        %v8566 = vpop.f32.mrb[0].mxu0
        %v8567 = vpop.f32.mrb[0].mxu0
        %v8568 = vadd.f32 0.0, %v8567
        %v8569 = vpop.f32.mrb[0].mxu0
        %8570 = vmatprep.mubr.bf16.mxu0 0
        %8571 = vmatmul.mubr.bf16.gmra.mrb[0].mxu0 %v8444
        %v8572 = vpop.f32.mrb[0].mxu0
        %v8573 = vadd.f32 0.0, %v8572
        %v8574 = vpop.f32.mrb[0].mxu0
        %v8575 = vpop.f32.mrb[0].mxu0
        %v8576 = vadd.f32 0.0, %v8575
        %v8577 = vpop.f32.mrb[0].mxu0
        %8578 = vmatprep.mubr.bf16.mxu0 0
        %8579 = vmatmul.mubr.bf16.gmra.mrb[0].mxu0 %v8445
        %v8580 = vpop.f32.mrb[0].mxu0
        %v8581 = vadd.f32 0.0, %v8580
        %v8582 = vpop.f32.mrb[0].mxu0
        %v8583 = vpop.f32.mrb[0].mxu0
        %v8584 = vadd.f32 0.0, %v8583
        %v8585 = vpop.f32.mrb[0].mxu0
        %8586 = vmatprep.mubr.bf16.mxu0 0
        %8587 = vmatmul.mubr.bf16.gmra.mrb[0].mxu0 %v8446
        %v8588 = vpop.f32.mrb[0].mxu0
        %v8589 = vadd.f32 0.0, %v8588
        %v8590 = vpop.f32.mrb[0].mxu0
        %v8591 = vpop.f32.mrb[0].mxu0
        %v8592 = vadd.f32 0.0, %v8591
        %v8593 = vpop.f32.mrb[0].mxu0
        %8594 = vmatprep.mubr.bf16.mxu0 0
        %8595 = vmatmul.mubr.bf16.gmra.mrb[0].mxu0 %v8447
        %v8596 = vpop.f32.mrb[0].mxu0
        %v8597 = vadd.f32 0.0, %v8596
        %v8598 = vpop.f32.mrb[0].mxu0
        %v8599 = vpop.f32.mrb[0].mxu0
        %v8600 = vadd.f32 0.0, %v8599
        %v8601 = vpop.f32.mrb[0].mxu0
        %8602 = vmatprep.mubr.bf16.mxu0 0
        %8603 = vmatmul.mubr.bf16.gmra.mrb[0].mxu0 %v8448
        %v8604 = vpop.f32.mrb[0].mxu0
        %v8605 = vadd.f32 0.0, %v8604
        %v8606 = vpop.f32.mrb[0].mxu0
        %v8607 = vpop.f32.mrb[0].mxu0
        %v8608 = vadd.f32 0.0, %v8607
        %v8609 = vpop.f32.mrb[0].mxu0
        %8610 = vmatprep.mubr.bf16.mxu0 0
        %8611 = vmatmul.mubr.bf16.gmra.mrb[0].mxu0 %v8449
        %v8612 = vpop.f32.mrb[0].mxu0
        %v8613 = vadd.f32 0.0, %v8612
        %v8614 = vpop.f32.mrb[0].mxu0
        %v8615 = vpop.f32.mrb[0].mxu0
        %v8616 = vadd.f32 0.0, %v8615
        %v8617 = vpop.f32.mrb[0].mxu0
        %8618 = vmatprep.mubr.bf16.mxu0 0
        %8619 = vmatmul.mubr.bf16.gmra.mrb[0].mxu0 %v8450
        %v8620 = vpop.f32.mrb[0].mxu0
        %v8621 = vadd.f32 0.0, %v8620
        %v8622 = vpop.f32.mrb[0].mxu0
        %v8623 = vpop.f32.mrb[0].mxu0
        %v8624 = vadd.f32 0.0, %v8623
        %v8625 = vpop.f32.mrb[0].mxu0
        %8626 = vmatprep.mubr.bf16.mxu0 0
        %8627 = vmatmul.mubr.bf16.gmra.mrb[0].mxu0 %v8451
        %v8628 = vpop.f32.mrb[0].mxu0
        %v8629 = vadd.f32 0.0, %v8628
        %v8630 = vpop.f32.mrb[0].mxu0
        %v8631 = vpop.f32.mrb[0].mxu0
        %v8632 = vadd.f32 0.0, %v8631
        %v8633 = vpop.f32.mrb[0].mxu0
        %8634 = vmatprep.mubr.bf16.mxu0 0
        %8635 = vmatmul.mubr.bf16.gmra.mrb[0].mxu0 %v8452
        %v8636 = vpop.f32.mrb[0].mxu0
        %v8637 = vadd.f32 0.0, %v8636
        %v8638 = vpop.f32.mrb[0].mxu0
        %v8639 = vpop.f32.mrb[0].mxu0
        %v8640 = vadd.f32 0.0, %v8639
        %v8641 = vpop.f32.mrb[0].mxu0
        %8642 = vmatprep.mubr.bf16.mxu0 0
        %8643 = vmatmul.mubr.bf16.gmra.mrb[0].mxu0 %v8453
        %v8644 = vpop.f32.mrb[0].mxu0
        %v8645 = vadd.f32 0.0, %v8644
        %v8646 = vpop.f32.mrb[0].mxu0
        %v8647 = vpop.f32.mrb[0].mxu0
        %v8648 = vadd.f32 0.0, %v8647
        %v8649 = vpop.f32.mrb[0].mxu0
        %8650 = vmatprep.mubr.bf16.mxu0 0
        %8651 = vmatmul.mubr.bf16.gmra.mrb[0].mxu0 %v8454
        %v8652 = vpop.f32.mrb[0].mxu0
        %v8653 = vadd.f32 0.0, %v8652
        %v8654 = vpop.f32.mrb[0].mxu0
        %v8655 = vpop.f32.mrb[0].mxu0
        %v8656 = vadd.f32 0.0, %v8655
        %v8657 = vpop.f32.mrb[0].mxu0
        %8658 = vmatprep.mubr.bf16.mxu0 0
        %8659 = vmatmul.mubr.bf16.gmra.mrb[0].mxu0 %v8455
        %v8660 = vpop.f32.mrb[0].mxu0
        %v8661 = vadd.f32 0.0, %v8660
        %v8662 = vpop.f32.mrb[0].mxu0
        %v8663 = vpop.f32.mrb[0].mxu0
        %v8664 = vadd.f32 0.0, %v8663
        %v8665 = vpop.f32.mrb[0].mxu0
        %8666 = vmatprep.mubr.bf16.mxu0 0
        %8667 = vmatmul.mubr.bf16.gmra.mrb[0].mxu0 %v8456
        %v8668 = vpop.f32.mrb[0].mxu0
        %v8669 = vadd.f32 0.0, %v8668
        %v8670 = vpop.f32.mrb[0].mxu0
        %v8671 = vpop.f32.mrb[0].mxu0
        %v8672 = vadd.f32 0.0, %v8671
        %v8673 = vpop.f32.mrb[0].mxu0
        %8674 = vmatprep.mubr.bf16.mxu0 0
        %8675 = vmatmul.mubr.bf16.gmra.mrb[0].mxu0 %v8457
        %v8676 = vpop.f32.mrb[0].mxu0
        %v8677 = vadd.f32 0.0, %v8676
        %v8678 = vpop.f32.mrb[0].mxu0
        %v8679 = vpop.f32.mrb[0].mxu0
        %v8680 = vadd.f32 0.0, %v8679
        %v8681 = vpop.f32.mrb[0].mxu0
        %8682 = vdwg.mxu0
        %v8683 = vadd.f32 %v7883, %v8557
        %v8684 = vadd.f32 %v7886, %v8560
        %v8685 = vadd.f32 %v7891, %v8565
        %v8686 = vadd.f32 %v7894, %v8568
        %v8687 = vadd.f32 %v7899, %v8573
        %v8688 = vadd.f32 %v7902, %v8576
        %v8689 = vadd.f32 %v7907, %v8581
        %v8690 = vadd.f32 %v7910, %v8584
        %v8691 = vadd.f32 %v7915, %v8589
        %v8692 = vadd.f32 %v7918, %v8592
        %v8693 = vadd.f32 %v7923, %v8597
        %v8694 = vadd.f32 %v7926, %v8600
        %v8695 = vadd.f32 %v7931, %v8605
        %v8696 = vadd.f32 %v7934, %v8608
        %v8697 = vadd.f32 %v7939, %v8613
        %v8698 = vadd.f32 %v7942, %v8616
        %v8699 = vadd.f32 %v7947, %v8621
        %v8700 = vadd.f32 %v7950, %v8624
        %v8701 = vadd.f32 %v7955, %v8629
        %v8702 = vadd.f32 %v7958, %v8632
        %v8703 = vadd.f32 %v7963, %v8637
        %v8704 = vadd.f32 %v7966, %v8640
        %v8705 = vadd.f32 %v7971, %v8645
        %v8706 = vadd.f32 %v7974, %v8648
        %v8707 = vadd.f32 %v7979, %v8653
        %v8708 = vadd.f32 %v7982, %v8656
        %v8709 = vadd.f32 %v7987, %v8661
        %v8710 = vadd.f32 %v7990, %v8664
        %v8711 = vadd.f32 %v7995, %v8669
        %v8712 = vadd.f32 %v7998, %v8672
        %v8713 = vadd.f32 %v8003, %v8677
        %v8714 = vadd.f32 %v8006, %v8680
        %v8715 = vld [vmem:[%s6517] sm:$0xf]
        %v8716 = vld [vmem:[%s6517 + $0x4] sm:$0xf]
        %v8717 = vld [vmem:[%s6517 + $0x8] sm:$0x1]
        %v8718 = vld [vmem:[%s6517 + $0xc] sm:$0xf]
        %v8719 = vld [vmem:[%s6517 + $0x10] sm:$0xf]
        %v8720 = vld [vmem:[%s6517 + $0x14] sm:$0x1]
        %v8721 = vld [vmem:[%s6517 + $0x18] sm:$0xf]
        %v8722 = vld [vmem:[%s6517 + $0x1c] sm:$0xf]
        %v8723 = vld [vmem:[%s6517 + $0x20] sm:$0x1]
        %v8724 = vld [vmem:[%s6517 + $0x24] sm:$0xf]
        %v8725 = vld [vmem:[%s6517 + $0x28] sm:$0xf]
        %v8726 = vld [vmem:[%s6517 + $0x2c] sm:$0x1]
        %v8727 = vld [vmem:[%s6517 + $0x30] sm:$0xf]
        %v8728 = vld [vmem:[%s6517 + $0x34] sm:$0xf]
        %v8729 = vld [vmem:[%s6517 + $0x38] sm:$0x1]
        %v8730 = vld [vmem:[%s6517 + $0x3c] sm:$0xf]
        %v8731 = vld [vmem:[%s6517 + $0x40] sm:$0xf]
        %v8732 = vld [vmem:[%s6517 + $0x44] sm:$0x1]
        %v8733 = vld [vmem:[%s6517 + $0x48] sm:$0xf]
        %v8734 = vld [vmem:[%s6517 + $0x4c] sm:$0xf]
        %v8735 = vld [vmem:[%s6517 + $0x50] sm:$0x1]
        %v8736 = vld [vmem:[%s6517 + $0x54] sm:$0xf]
        %v8737 = vld [vmem:[%s6517 + $0x58] sm:$0xf]
        %v8738 = vld [vmem:[%s6517 + $0x5c] sm:$0x1]
        %v8739 = vld [vmem:[%s6517 + $0x60] sm:$0xf]
        %v8740 = vld [vmem:[%s6517 + $0x64] sm:$0xf]
        %v8741 = vld [vmem:[%s6517 + $0x68] sm:$0x1]
        %v8742 = vld [vmem:[%s6517 + $0x6c] sm:$0xf]
        %v8743 = vld [vmem:[%s6517 + $0x70] sm:$0xf]
        %v8744 = vld [vmem:[%s6517 + $0x74] sm:$0x1]
        %v8745 = vld [vmem:[%s6517 + $0x78] sm:$0xf]
        %v8746 = vld [vmem:[%s6517 + $0x7c] sm:$0xf]
        %v8747 = vld [vmem:[%s6517 + $0x80] sm:$0x1]
        %v8748 = vld [vmem:[%s6517 + $0x84] sm:$0xf]
        %v8749 = vld [vmem:[%s6517 + $0x88] sm:$0xf]
        %v8750 = vld [vmem:[%s6517 + $0x8c] sm:$0x1]
        %v8751 = vld [vmem:[%s6517 + $0x90] sm:$0xf]
        %v8752 = vld [vmem:[%s6517 + $0x94] sm:$0xf]
        %v8753 = vld [vmem:[%s6517 + $0x98] sm:$0x1]
        %v8754 = vld [vmem:[%s6517 + $0x9c] sm:$0xf]
        %v8755 = vld [vmem:[%s6517 + $0xa0] sm:$0xf]
        %v8756 = vld [vmem:[%s6517 + $0xa4] sm:$0x1]
        %v8757 = vld [vmem:[%s6517 + $0xa8] sm:$0xf]
        %v8758 = vld [vmem:[%s6517 + $0xac] sm:$0xf]
        %v8759 = vld [vmem:[%s6517 + $0xb0] sm:$0x1]
        %v8760 = vld [vmem:[%s6517 + $0xb4] sm:$0xf]
        %v8761 = vld [vmem:[%s6517 + $0xb8] sm:$0xf]
        %v8762 = vld [vmem:[%s6517 + $0xbc] sm:$0x1]
        %v8764 = vshrl.u32 %v8715, 16
        %v8766 = vrot.slane %v8764, 4
        %v8767 = vshll.u32 %v8715, 16
        %v8769 = vrot.slane %v8767, 5
        %v8770 = vor.u32 %v8766, %v8769
        %v8771 = vrot.slane %v8770, 4
        %v8773 = vshll.u32 %v8716, 16
        %v8775 = vrot.slane %v8773, 5
        %v8776 = vsel %vm670, %v8771, %v8775
        %v8777 = vshrl.u32 %v8716, 16
        %v8779 = vrot.slane %v8777, 4
        %v8780 = vor.u32 %v8779, %v8775
        %v8781 = vrot.slane %v8780, 4
        %v8783 = vshll.u32 %v8717, 16
        %v8785 = vrot.slane %v8783, 5
        %v8786 = vsel %vm670, %v8781, %v8785
        %v8788 = vshrl.u32 %v8718, 16
        %v8790 = vrot.slane %v8788, 4
        %v8791 = vshll.u32 %v8718, 16
        %v8793 = vrot.slane %v8791, 5
        %v8794 = vor.u32 %v8790, %v8793
        %v8795 = vrot.slane %v8794, 4
        %v8797 = vshll.u32 %v8719, 16
        %v8799 = vrot.slane %v8797, 5
        %v8800 = vsel %vm670, %v8795, %v8799
        %v8801 = vshrl.u32 %v8719, 16
        %v8803 = vrot.slane %v8801, 4
        %v8804 = vor.u32 %v8803, %v8799
        %v8805 = vrot.slane %v8804, 4
        %v8807 = vshll.u32 %v8720, 16
        %v8809 = vrot.slane %v8807, 5
        %v8810 = vsel %vm670, %v8805, %v8809
        %v8812 = vshrl.u32 %v8721, 16
        %v8814 = vrot.slane %v8812, 4
        %v8815 = vshll.u32 %v8721, 16
        %v8817 = vrot.slane %v8815, 5
        %v8818 = vor.u32 %v8814, %v8817
        %v8819 = vrot.slane %v8818, 4
        %v8821 = vshll.u32 %v8722, 16
        %v8823 = vrot.slane %v8821, 5
        %v8824 = vsel %vm670, %v8819, %v8823
        %v8825 = vshrl.u32 %v8722, 16
        %v8827 = vrot.slane %v8825, 4
        %v8828 = vor.u32 %v8827, %v8823
        %v8829 = vrot.slane %v8828, 4
        %v8831 = vshll.u32 %v8723, 16
        %v8833 = vrot.slane %v8831, 5
        %v8834 = vsel %vm670, %v8829, %v8833
        %v8836 = vshrl.u32 %v8724, 16
        %v8838 = vrot.slane %v8836, 4
        %v8839 = vshll.u32 %v8724, 16
        %v8841 = vrot.slane %v8839, 5
        %v8842 = vor.u32 %v8838, %v8841
        %v8843 = vrot.slane %v8842, 4
        %v8845 = vshll.u32 %v8725, 16
        %v8847 = vrot.slane %v8845, 5
        %v8848 = vsel %vm670, %v8843, %v8847
        %v8849 = vshrl.u32 %v8725, 16
        %v8851 = vrot.slane %v8849, 4
        %v8852 = vor.u32 %v8851, %v8847
        %v8853 = vrot.slane %v8852, 4
        %v8855 = vshll.u32 %v8726, 16
        %v8857 = vrot.slane %v8855, 5
        %v8858 = vsel %vm670, %v8853, %v8857
        %v8860 = vshrl.u32 %v8727, 16
        %v8862 = vrot.slane %v8860, 4
        %v8863 = vshll.u32 %v8727, 16
        %v8865 = vrot.slane %v8863, 5
        %v8866 = vor.u32 %v8862, %v8865
        %v8867 = vrot.slane %v8866, 4
        %v8869 = vshll.u32 %v8728, 16
        %v8871 = vrot.slane %v8869, 5
        %v8872 = vsel %vm670, %v8867, %v8871
        %v8873 = vshrl.u32 %v8728, 16
        %v8875 = vrot.slane %v8873, 4
        %v8876 = vor.u32 %v8875, %v8871
        %v8877 = vrot.slane %v8876, 4
        %v8879 = vshll.u32 %v8729, 16
        %v8881 = vrot.slane %v8879, 5
        %v8882 = vsel %vm670, %v8877, %v8881
        %v8884 = vshrl.u32 %v8730, 16
        %v8886 = vrot.slane %v8884, 4
        %v8887 = vshll.u32 %v8730, 16
        %v8889 = vrot.slane %v8887, 5
        %v8890 = vor.u32 %v8886, %v8889
        %v8891 = vrot.slane %v8890, 4
        %v8893 = vshll.u32 %v8731, 16
        %v8895 = vrot.slane %v8893, 5
        %v8896 = vsel %vm670, %v8891, %v8895
        %v8897 = vshrl.u32 %v8731, 16
        %v8899 = vrot.slane %v8897, 4
        %v8900 = vor.u32 %v8899, %v8895
        %v8901 = vrot.slane %v8900, 4
        %v8903 = vshll.u32 %v8732, 16
        %v8905 = vrot.slane %v8903, 5
        %v8906 = vsel %vm670, %v8901, %v8905
        %v8908 = vshrl.u32 %v8733, 16
        %v8910 = vrot.slane %v8908, 4
        %v8911 = vshll.u32 %v8733, 16
        %v8913 = vrot.slane %v8911, 5
        %v8914 = vor.u32 %v8910, %v8913
        %v8915 = vrot.slane %v8914, 4
        %v8917 = vshll.u32 %v8734, 16
        %v8919 = vrot.slane %v8917, 5
        %v8920 = vsel %vm670, %v8915, %v8919
        %v8921 = vshrl.u32 %v8734, 16
        %v8923 = vrot.slane %v8921, 4
        %v8924 = vor.u32 %v8923, %v8919
        %v8925 = vrot.slane %v8924, 4
        %v8927 = vshll.u32 %v8735, 16
        %v8929 = vrot.slane %v8927, 5
        %v8930 = vsel %vm670, %v8925, %v8929
        %v8932 = vshrl.u32 %v8736, 16
        %v8934 = vrot.slane %v8932, 4
        %v8935 = vshll.u32 %v8736, 16
        %v8937 = vrot.slane %v8935, 5
        %v8938 = vor.u32 %v8934, %v8937
        %v8939 = vrot.slane %v8938, 4
        %v8941 = vshll.u32 %v8737, 16
        %v8943 = vrot.slane %v8941, 5
        %v8944 = vsel %vm670, %v8939, %v8943
        %v8945 = vshrl.u32 %v8737, 16
        %v8947 = vrot.slane %v8945, 4
        %v8948 = vor.u32 %v8947, %v8943
        %v8949 = vrot.slane %v8948, 4
        %v8951 = vshll.u32 %v8738, 16
        %v8953 = vrot.slane %v8951, 5
        %v8954 = vsel %vm670, %v8949, %v8953
        %v8956 = vshrl.u32 %v8739, 16
        %v8958 = vrot.slane %v8956, 4
        %v8959 = vshll.u32 %v8739, 16
        %v8961 = vrot.slane %v8959, 5
        %v8962 = vor.u32 %v8958, %v8961
        %v8963 = vrot.slane %v8962, 4
        %v8965 = vshll.u32 %v8740, 16
        %v8967 = vrot.slane %v8965, 5
        %v8968 = vsel %vm670, %v8963, %v8967
        %v8969 = vshrl.u32 %v8740, 16
        %v8971 = vrot.slane %v8969, 4
        %v8972 = vor.u32 %v8971, %v8967
        %v8973 = vrot.slane %v8972, 4
        %v8975 = vshll.u32 %v8741, 16
        %v8977 = vrot.slane %v8975, 5
        %v8978 = vsel %vm670, %v8973, %v8977
        %v8980 = vshrl.u32 %v8742, 16
        %v8982 = vrot.slane %v8980, 4
        %v8983 = vshll.u32 %v8742, 16
        %v8985 = vrot.slane %v8983, 5
        %v8986 = vor.u32 %v8982, %v8985
        %v8987 = vrot.slane %v8986, 4
        %v8989 = vshll.u32 %v8743, 16
        %v8991 = vrot.slane %v8989, 5
        %v8992 = vsel %vm670, %v8987, %v8991
        %v8993 = vshrl.u32 %v8743, 16
        %v8995 = vrot.slane %v8993, 4
        %v8996 = vor.u32 %v8995, %v8991
        %v8997 = vrot.slane %v8996, 4
        %v8999 = vshll.u32 %v8744, 16
        %v9001 = vrot.slane %v8999, 5
        %v9002 = vsel %vm670, %v8997, %v9001
        %v9004 = vshrl.u32 %v8745, 16
        %v9006 = vrot.slane %v9004, 4
        %v9007 = vshll.u32 %v8745, 16
        %v9009 = vrot.slane %v9007, 5
        %v9010 = vor.u32 %v9006, %v9009
        %v9011 = vrot.slane %v9010, 4
        %v9013 = vshll.u32 %v8746, 16
        %v9015 = vrot.slane %v9013, 5
        %v9016 = vsel %vm670, %v9011, %v9015
        %v9017 = vshrl.u32 %v8746, 16
        %v9019 = vrot.slane %v9017, 4
        %v9020 = vor.u32 %v9019, %v9015
        %v9021 = vrot.slane %v9020, 4
        %v9023 = vshll.u32 %v8747, 16
        %v9025 = vrot.slane %v9023, 5
        %v9026 = vsel %vm670, %v9021, %v9025
        %v9028 = vshrl.u32 %v8748, 16
        %v9030 = vrot.slane %v9028, 4
        %v9031 = vshll.u32 %v8748, 16
        %v9033 = vrot.slane %v9031, 5
        %v9034 = vor.u32 %v9030, %v9033
        %v9035 = vrot.slane %v9034, 4
        %v9037 = vshll.u32 %v8749, 16
        %v9039 = vrot.slane %v9037, 5
        %v9040 = vsel %vm670, %v9035, %v9039
        %v9041 = vshrl.u32 %v8749, 16
        %v9043 = vrot.slane %v9041, 4
        %v9044 = vor.u32 %v9043, %v9039
        %v9045 = vrot.slane %v9044, 4
        %v9047 = vshll.u32 %v8750, 16
        %v9049 = vrot.slane %v9047, 5
        %v9050 = vsel %vm670, %v9045, %v9049
        %v9052 = vshrl.u32 %v8751, 16
        %v9054 = vrot.slane %v9052, 4
        %v9055 = vshll.u32 %v8751, 16
        %v9057 = vrot.slane %v9055, 5
        %v9058 = vor.u32 %v9054, %v9057
        %v9059 = vrot.slane %v9058, 4
        %v9061 = vshll.u32 %v8752, 16
        %v9063 = vrot.slane %v9061, 5
        %v9064 = vsel %vm670, %v9059, %v9063
        %v9065 = vshrl.u32 %v8752, 16
        %v9067 = vrot.slane %v9065, 4
        %v9068 = vor.u32 %v9067, %v9063
        %v9069 = vrot.slane %v9068, 4
        %v9071 = vshll.u32 %v8753, 16
        %v9073 = vrot.slane %v9071, 5
        %v9074 = vsel %vm670, %v9069, %v9073
        %v9076 = vshrl.u32 %v8754, 16
        %v9078 = vrot.slane %v9076, 4
        %v9079 = vshll.u32 %v8754, 16
        %v9081 = vrot.slane %v9079, 5
        %v9082 = vor.u32 %v9078, %v9081
        %v9083 = vrot.slane %v9082, 4
        %v9085 = vshll.u32 %v8755, 16
        %v9087 = vrot.slane %v9085, 5
        %v9088 = vsel %vm670, %v9083, %v9087
        %v9089 = vshrl.u32 %v8755, 16
        %v9091 = vrot.slane %v9089, 4
        %v9092 = vor.u32 %v9091, %v9087
        %v9093 = vrot.slane %v9092, 4
        %v9095 = vshll.u32 %v8756, 16
        %v9097 = vrot.slane %v9095, 5
        %v9098 = vsel %vm670, %v9093, %v9097
        %v9100 = vshrl.u32 %v8757, 16
        %v9102 = vrot.slane %v9100, 4
        %v9103 = vshll.u32 %v8757, 16
        %v9105 = vrot.slane %v9103, 5
        %v9106 = vor.u32 %v9102, %v9105
        %v9107 = vrot.slane %v9106, 4
        %v9109 = vshll.u32 %v8758, 16
        %v9111 = vrot.slane %v9109, 5
        %v9112 = vsel %vm670, %v9107, %v9111
        %v9113 = vshrl.u32 %v8758, 16
        %v9115 = vrot.slane %v9113, 4
        %v9116 = vor.u32 %v9115, %v9111
        %v9117 = vrot.slane %v9116, 4
        %v9119 = vshll.u32 %v8759, 16
        %v9121 = vrot.slane %v9119, 5
        %v9122 = vsel %vm670, %v9117, %v9121
        %v9124 = vshrl.u32 %v8760, 16
        %v9126 = vrot.slane %v9124, 4
        %v9127 = vshll.u32 %v8760, 16
        %v9129 = vrot.slane %v9127, 5
        %v9130 = vor.u32 %v9126, %v9129
        %v9131 = vrot.slane %v9130, 4
        %v9133 = vshll.u32 %v8761, 16
        %v9135 = vrot.slane %v9133, 5
        %v9136 = vsel %vm670, %v9131, %v9135
        %v9137 = vshrl.u32 %v8761, 16
        %v9139 = vrot.slane %v9137, 4
        %v9140 = vor.u32 %v9139, %v9135
        %v9141 = vrot.slane %v9140, 4
        %v9143 = vshll.u32 %v8762, 16
        %v9145 = vrot.slane %v9143, 5
        %v9146 = vsel %vm670, %v9141, %v9145
        %s9147 = scalar_lea.vmem [#allocation9], 192
        %v9148 = vld [vmem:[%s9147] sm:$0xf]
        %v9149 = vld [vmem:[%s9147 + $0x4] sm:$0xf]
        %v9150 = vld [vmem:[%s9147 + $0x8] sm:$0xf]
        %v9151 = vld [vmem:[%s9147 + $0xc] sm:$0xf]
        %v9152 = vld [vmem:[%s9147 + $0x10] sm:$0xf]
        %v9153 = vld [vmem:[%s9147 + $0x14] sm:$0xf]
        %v9154 = vld [vmem:[%s9147 + $0x18] sm:$0xf]
        %v9155 = vld [vmem:[%s9147 + $0x1c] sm:$0xf]
        %v9156 = vld [vmem:[%s9147 + $0x20] sm:$0xf]
        %v9157 = vld [vmem:[%s9147 + $0x24] sm:$0xf]
        %v9158 = vld [vmem:[%s9147 + $0x28] sm:$0xf]
        %v9159 = vld [vmem:[%s9147 + $0x2c] sm:$0xf]
        %v9160 = vld [vmem:[%s9147 + $0x30] sm:$0xf]
        %v9161 = vld [vmem:[%s9147 + $0x34] sm:$0xf]
        %v9162 = vld [vmem:[%s9147 + $0x38] sm:$0xf]
        %v9163 = vld [vmem:[%s9147 + $0x3c] sm:$0xf]
        %v9164 = vunpack.c.l.b16 %v8776
        %v9165 = vunpack.c.l.b16 %v8786
        %v9166 = vunpack.c.l.b16 %v8800
        %v9167 = vunpack.c.l.b16 %v8810
        %v9168 = vunpack.c.l.b16 %v8824
        %v9169 = vunpack.c.l.b16 %v8834
        %v9170 = vunpack.c.l.b16 %v8848
        %v9171 = vunpack.c.l.b16 %v8858
        %v9172 = vunpack.c.l.b16 %v8872
        %v9173 = vunpack.c.l.b16 %v8882
        %v9174 = vunpack.c.l.b16 %v8896
        %v9175 = vunpack.c.l.b16 %v8906
        %v9176 = vunpack.c.l.b16 %v8920
        %v9177 = vunpack.c.l.b16 %v8930
        %v9178 = vunpack.c.l.b16 %v8944
        %v9179 = vunpack.c.l.b16 %v8954
        %v9180 = vunpack.c.l.b16 %v8968
        %v9181 = vunpack.c.l.b16 %v8978
        %v9182 = vunpack.c.l.b16 %v8992
        %v9183 = vunpack.c.l.b16 %v9002
        %v9184 = vunpack.c.l.b16 %v9016
        %v9185 = vunpack.c.l.b16 %v9026
        %v9186 = vunpack.c.l.b16 %v9040
        %v9187 = vunpack.c.l.b16 %v9050
        %v9188 = vunpack.c.l.b16 %v9064
        %v9189 = vunpack.c.l.b16 %v9074
        %v9190 = vunpack.c.l.b16 %v9088
        %v9191 = vunpack.c.l.b16 %v9098
        %v9192 = vunpack.c.l.b16 %v9112
        %v9193 = vunpack.c.l.b16 %v9122
        %v9194 = vunpack.c.l.b16 %v9136
        %v9195 = vunpack.c.l.b16 %v9146
        %v9196 = vpack.c.b16 %v9165, %v9164
        %v9197 = vpack.c.b16 %v9167, %v9166
        %v9198 = vpack.c.b16 %v9169, %v9168
        %v9199 = vpack.c.b16 %v9171, %v9170
        %v9200 = vpack.c.b16 %v9173, %v9172
        %v9201 = vpack.c.b16 %v9175, %v9174
        %v9202 = vpack.c.b16 %v9177, %v9176
        %v9203 = vpack.c.b16 %v9179, %v9178
        %v9204 = vpack.c.b16 %v9181, %v9180
        %v9205 = vpack.c.b16 %v9183, %v9182
        %v9206 = vpack.c.b16 %v9185, %v9184
        %v9207 = vpack.c.b16 %v9187, %v9186
        %v9208 = vpack.c.b16 %v9189, %v9188
        %v9209 = vpack.c.b16 %v9191, %v9190
        %v9210 = vpack.c.b16 %v9193, %v9192
        %v9211 = vpack.c.b16 %v9195, %v9194
        %v9244 = vunpack.c.l.b16 %v9148
        %v9245 = vunpack.c.l.b16 %v9149
        %v9246 = vunpack.c.l.b16 %v9150
        %v9247 = vunpack.c.l.b16 %v9151
        %v9248 = vunpack.c.l.b16 %v9152
        %v9249 = vunpack.c.l.b16 %v9153
        %v9250 = vunpack.c.l.b16 %v9154
        %v9251 = vunpack.c.l.b16 %v9155
        %v9252 = vunpack.c.l.b16 %v9156
        %v9253 = vunpack.c.l.b16 %v9157
        %v9254 = vunpack.c.l.b16 %v9158
        %v9255 = vunpack.c.l.b16 %v9159
        %v9256 = vunpack.c.l.b16 %v9160
        %v9257 = vunpack.c.l.b16 %v9161
        %v9258 = vunpack.c.l.b16 %v9162
        %v9259 = vunpack.c.l.b16 %v9163
        %v9260 = vpack.c.b16 %v9245, %v9244
        %v9261 = vpack.c.b16 %v9247, %v9246
        %v9262 = vpack.c.b16 %v9249, %v9248
        %v9263 = vpack.c.b16 %v9251, %v9250
        %v9264 = vpack.c.b16 %v9253, %v9252
        %v9265 = vpack.c.b16 %v9255, %v9254
        %v9266 = vpack.c.b16 %v9257, %v9256
        %v9267 = vpack.c.b16 %v9259, %v9258
        %9276 = vmatprep.subr.bf16.mxu0 0
        %9277 = vmatpush1.bf16.msra.mxu0 %v9260
        %9278 = vmatprep.subr.bf16.mxu0 0
        %9279 = vmatpush1.bf16.msra.mxu0 %v9261
        %9280 = vmatprep.subr.bf16.mxu0 0
        %9281 = vmatpush1.bf16.msra.mxu0 %v9262
        %9282 = vmatprep.subr.bf16.mxu0 0
        %9283 = vmatpush1.bf16.msra.mxu0 %v9263
        %9284 = vmatprep.subr.bf16.mxu0 0
        %9285 = vmatpush1.bf16.msra.mxu0 %v9264
        %9286 = vmatprep.subr.bf16.mxu0 0
        %9287 = vmatpush1.bf16.msra.mxu0 %v9265
        %9288 = vmatprep.subr.bf16.mxu0 0
        %9289 = vmatpush1.bf16.msra.mxu0 %v9266
        %9290 = vmatprep.subr.bf16.mxu0 0
        %9291 = vmatpush1.bf16.msra.mxu0 %v9267
        %9292 = vmatprep.subr.bf16.mxu0 0
        %9293 = vmatpush1.bf16.msra.mxu0 0
        %9294 = vmatprep.subr.bf16.mxu0 0
        %9295 = vmatpush1.bf16.msra.mxu0 0
        %9296 = vmatprep.subr.bf16.mxu0 0
        %9297 = vmatpush1.bf16.msra.mxu0 0
        %9298 = vmatprep.subr.bf16.mxu0 0
        %9299 = vmatpush1.bf16.msra.mxu0 0
        %9300 = vmatprep.subr.bf16.mxu0 0
        %9301 = vmatpush1.bf16.msra.mxu0 0
        %9302 = vmatprep.subr.bf16.mxu0 0
        %9303 = vmatpush1.bf16.msra.mxu0 0
        %9304 = vmatprep.subr.bf16.mxu0 0
        %9305 = vmatpush1.bf16.msra.mxu0 0
        %9306 = vmatprep.subr.bf16.mxu0 0
        %9307 = vmatpush1.bf16.msra.mxu0 0
        %9308 = vmatprep.mubr.bf16.mxu0 0
        %9309 = vmatmul.mubr.bf16.gmra.mrb[0].mxu0 %v9196
        %v9310 = vpop.f32.mrb[0].mxu0
        %v9311 = vadd.f32 0.0, %v9310
        %v9312 = vpop.f32.mrb[0].mxu0
        %v9313 = vpop.f32.mrb[0].mxu0
        %v9314 = vadd.f32 0.0, %v9313
        %v9315 = vpop.f32.mrb[0].mxu0
        %9316 = vmatprep.mubr.bf16.mxu0 0
        %9317 = vmatmul.mubr.bf16.gmra.mrb[0].mxu0 %v9197
        %v9318 = vpop.f32.mrb[0].mxu0
        %v9319 = vadd.f32 0.0, %v9318
        %v9320 = vpop.f32.mrb[0].mxu0
        %v9321 = vpop.f32.mrb[0].mxu0
        %v9322 = vadd.f32 0.0, %v9321
        %v9323 = vpop.f32.mrb[0].mxu0
        %9324 = vmatprep.mubr.bf16.mxu0 0
        %9325 = vmatmul.mubr.bf16.gmra.mrb[0].mxu0 %v9198
        %v9326 = vpop.f32.mrb[0].mxu0
        %v9327 = vadd.f32 0.0, %v9326
        %v9328 = vpop.f32.mrb[0].mxu0
        %v9329 = vpop.f32.mrb[0].mxu0
        %v9330 = vadd.f32 0.0, %v9329
        %v9331 = vpop.f32.mrb[0].mxu0
        %9332 = vmatprep.mubr.bf16.mxu0 0
        %9333 = vmatmul.mubr.bf16.gmra.mrb[0].mxu0 %v9199
        %v9334 = vpop.f32.mrb[0].mxu0
        %v9335 = vadd.f32 0.0, %v9334
        %v9336 = vpop.f32.mrb[0].mxu0
        %v9337 = vpop.f32.mrb[0].mxu0
        %v9338 = vadd.f32 0.0, %v9337
        %v9339 = vpop.f32.mrb[0].mxu0
        %9340 = vmatprep.mubr.bf16.mxu0 0
        %9341 = vmatmul.mubr.bf16.gmra.mrb[0].mxu0 %v9200
        %v9342 = vpop.f32.mrb[0].mxu0
        %v9343 = vadd.f32 0.0, %v9342
        %v9344 = vpop.f32.mrb[0].mxu0
        %v9345 = vpop.f32.mrb[0].mxu0
        %v9346 = vadd.f32 0.0, %v9345
        %v9347 = vpop.f32.mrb[0].mxu0
        %9348 = vmatprep.mubr.bf16.mxu0 0
        %9349 = vmatmul.mubr.bf16.gmra.mrb[0].mxu0 %v9201
        %v9350 = vpop.f32.mrb[0].mxu0
        %v9351 = vadd.f32 0.0, %v9350
        %v9352 = vpop.f32.mrb[0].mxu0
        %v9353 = vpop.f32.mrb[0].mxu0
        %v9354 = vadd.f32 0.0, %v9353
        %v9355 = vpop.f32.mrb[0].mxu0
        %9356 = vmatprep.mubr.bf16.mxu0 0
        %9357 = vmatmul.mubr.bf16.gmra.mrb[0].mxu0 %v9202
        %v9358 = vpop.f32.mrb[0].mxu0
        %v9359 = vadd.f32 0.0, %v9358
        %v9360 = vpop.f32.mrb[0].mxu0
        %v9361 = vpop.f32.mrb[0].mxu0
        %v9362 = vadd.f32 0.0, %v9361
        %v9363 = vpop.f32.mrb[0].mxu0
        %9364 = vmatprep.mubr.bf16.mxu0 0
        %9365 = vmatmul.mubr.bf16.gmra.mrb[0].mxu0 %v9203
        %v9366 = vpop.f32.mrb[0].mxu0
        %v9367 = vadd.f32 0.0, %v9366
        %v9368 = vpop.f32.mrb[0].mxu0
        %v9369 = vpop.f32.mrb[0].mxu0
        %v9370 = vadd.f32 0.0, %v9369
        %v9371 = vpop.f32.mrb[0].mxu0
        %9372 = vmatprep.mubr.bf16.mxu0 0
        %9373 = vmatmul.mubr.bf16.gmra.mrb[0].mxu0 %v9204
        %v9374 = vpop.f32.mrb[0].mxu0
        %v9375 = vadd.f32 0.0, %v9374
        %v9376 = vpop.f32.mrb[0].mxu0
        %v9377 = vpop.f32.mrb[0].mxu0
        %v9378 = vadd.f32 0.0, %v9377
        %v9379 = vpop.f32.mrb[0].mxu0
        %9380 = vmatprep.mubr.bf16.mxu0 0
        %9381 = vmatmul.mubr.bf16.gmra.mrb[0].mxu0 %v9205
        %v9382 = vpop.f32.mrb[0].mxu0
        %v9383 = vadd.f32 0.0, %v9382
        %v9384 = vpop.f32.mrb[0].mxu0
        %v9385 = vpop.f32.mrb[0].mxu0
        %v9386 = vadd.f32 0.0, %v9385
        %v9387 = vpop.f32.mrb[0].mxu0
        %9388 = vmatprep.mubr.bf16.mxu0 0
        %9389 = vmatmul.mubr.bf16.gmra.mrb[0].mxu0 %v9206
        %v9390 = vpop.f32.mrb[0].mxu0
        %v9391 = vadd.f32 0.0, %v9390
        %v9392 = vpop.f32.mrb[0].mxu0
        %v9393 = vpop.f32.mrb[0].mxu0
        %v9394 = vadd.f32 0.0, %v9393
        %v9395 = vpop.f32.mrb[0].mxu0
        %9396 = vmatprep.mubr.bf16.mxu0 0
        %9397 = vmatmul.mubr.bf16.gmra.mrb[0].mxu0 %v9207
        %v9398 = vpop.f32.mrb[0].mxu0
        %v9399 = vadd.f32 0.0, %v9398
        %v9400 = vpop.f32.mrb[0].mxu0
        %v9401 = vpop.f32.mrb[0].mxu0
        %v9402 = vadd.f32 0.0, %v9401
        %v9403 = vpop.f32.mrb[0].mxu0
        %9404 = vmatprep.mubr.bf16.mxu0 0
        %9405 = vmatmul.mubr.bf16.gmra.mrb[0].mxu0 %v9208
        %v9406 = vpop.f32.mrb[0].mxu0
        %v9407 = vadd.f32 0.0, %v9406
        %v9408 = vpop.f32.mrb[0].mxu0
        %v9409 = vpop.f32.mrb[0].mxu0
        %v9410 = vadd.f32 0.0, %v9409
        %v9411 = vpop.f32.mrb[0].mxu0
        %9412 = vmatprep.mubr.bf16.mxu0 0
        %9413 = vmatmul.mubr.bf16.gmra.mrb[0].mxu0 %v9209
        %v9414 = vpop.f32.mrb[0].mxu0
        %v9415 = vadd.f32 0.0, %v9414
        %v9416 = vpop.f32.mrb[0].mxu0
        %v9417 = vpop.f32.mrb[0].mxu0
        %v9418 = vadd.f32 0.0, %v9417
        %v9419 = vpop.f32.mrb[0].mxu0
        %9420 = vmatprep.mubr.bf16.mxu0 0
        %9421 = vmatmul.mubr.bf16.gmra.mrb[0].mxu0 %v9210
        %v9422 = vpop.f32.mrb[0].mxu0
        %v9423 = vadd.f32 0.0, %v9422
        %v9424 = vpop.f32.mrb[0].mxu0
        %v9425 = vpop.f32.mrb[0].mxu0
        %v9426 = vadd.f32 0.0, %v9425
        %v9427 = vpop.f32.mrb[0].mxu0
        %9428 = vmatprep.mubr.bf16.mxu0 0
        %9429 = vmatmul.mubr.bf16.gmra.mrb[0].mxu0 %v9211
        %v9430 = vpop.f32.mrb[0].mxu0
        %v9431 = vadd.f32 0.0, %v9430
        %v9432 = vpop.f32.mrb[0].mxu0
        %v9433 = vpop.f32.mrb[0].mxu0
        %v9434 = vadd.f32 0.0, %v9433
        %v9435 = vpop.f32.mrb[0].mxu0
        %9436 = vdwg.mxu0
        %v9437 = vadd.f32 %v8683, %v9311
        %v9438 = vadd.f32 %v8684, %v9314
        %v9439 = vadd.f32 %v8685, %v9319
        %v9440 = vadd.f32 %v8686, %v9322
        %v9441 = vadd.f32 %v8687, %v9327
        %v9442 = vadd.f32 %v8688, %v9330
        %v9443 = vadd.f32 %v8689, %v9335
        %v9444 = vadd.f32 %v8690, %v9338
        %v9445 = vadd.f32 %v8691, %v9343
        %v9446 = vadd.f32 %v8692, %v9346
        %v9447 = vadd.f32 %v8693, %v9351
        %v9448 = vadd.f32 %v8694, %v9354
        %v9449 = vadd.f32 %v8695, %v9359
        %v9450 = vadd.f32 %v8696, %v9362
        %v9451 = vadd.f32 %v8697, %v9367
        %v9452 = vadd.f32 %v8698, %v9370
        %v9453 = vadd.f32 %v8699, %v9375
        %v9454 = vadd.f32 %v8700, %v9378
        %v9455 = vadd.f32 %v8701, %v9383
        %v9456 = vadd.f32 %v8702, %v9386
        %v9457 = vadd.f32 %v8703, %v9391
        %v9458 = vadd.f32 %v8704, %v9394
        %v9459 = vadd.f32 %v8705, %v9399
        %v9460 = vadd.f32 %v8706, %v9402
        %v9461 = vadd.f32 %v8707, %v9407
        %v9462 = vadd.f32 %v8708, %v9410
        %v9463 = vadd.f32 %v8709, %v9415
        %v9464 = vadd.f32 %v8710, %v9418
        %v9465 = vadd.f32 %v8711, %v9423
        %v9466 = vadd.f32 %v8712, %v9426
        %v9467 = vadd.f32 %v8713, %v9431
        %v9468 = vadd.f32 %v8714, %v9434
        %v9469 = vld [vmem:[%s6517] sm:$0xe]
        %v9470 = vld [vmem:[%s6517 + $0xc] sm:$0xe]
        %v9471 = vld [vmem:[%s6517 + $0x18] sm:$0xe]
        %v9472 = vld [vmem:[%s6517 + $0x24] sm:$0xe]
        %v9473 = vld [vmem:[%s6517 + $0x30] sm:$0xe]
        %v9474 = vld [vmem:[%s6517 + $0x3c] sm:$0xe]
        %v9475 = vld [vmem:[%s6517 + $0x48] sm:$0xe]
        %v9476 = vld [vmem:[%s6517 + $0x54] sm:$0xe]
        %v9477 = vld [vmem:[%s6517 + $0x60] sm:$0xe]
        %v9478 = vld [vmem:[%s6517 + $0x6c] sm:$0xe]
        %v9479 = vld [vmem:[%s6517 + $0x78] sm:$0xe]
        %v9480 = vld [vmem:[%s6517 + $0x84] sm:$0xe]
        %v9481 = vld [vmem:[%s6517 + $0x90] sm:$0xe]
        %v9482 = vld [vmem:[%s6517 + $0x9c] sm:$0xe]
        %v9483 = vld [vmem:[%s6517 + $0xa8] sm:$0xe]
        %v9484 = vld [vmem:[%s6517 + $0xb4] sm:$0xe]
        %v9533 = vrot.slane %v9469, 5
        %v9534 = vrot.slane %v9533, 4
        %v9535 = vrot.slane %v8716, 5
        %v9536 = vsel %vm1137, %v9534, %v9535
        %v9537 = vrot.slane %v9535, 4
        %v9538 = vrot.slane %v8717, 5
        %v9539 = vsel %vm1137, %v9537, %v9538
        %v9540 = vrot.slane %v9470, 5
        %v9541 = vrot.slane %v9540, 4
        %v9542 = vrot.slane %v8719, 5
        %v9543 = vsel %vm1137, %v9541, %v9542
        %v9544 = vrot.slane %v9542, 4
        %v9545 = vrot.slane %v8720, 5
        %v9546 = vsel %vm1137, %v9544, %v9545
        %v9547 = vrot.slane %v9471, 5
        %v9548 = vrot.slane %v9547, 4
        %v9549 = vrot.slane %v8722, 5
        %v9550 = vsel %vm1137, %v9548, %v9549
        %v9551 = vrot.slane %v9549, 4
        %v9552 = vrot.slane %v8723, 5
        %v9553 = vsel %vm1137, %v9551, %v9552
        %v9554 = vrot.slane %v9472, 5
        %v9555 = vrot.slane %v9554, 4
        %v9556 = vrot.slane %v8725, 5
        %v9557 = vsel %vm1137, %v9555, %v9556
        %v9558 = vrot.slane %v9556, 4
        %v9559 = vrot.slane %v8726, 5
        %v9560 = vsel %vm1137, %v9558, %v9559
        %v9561 = vrot.slane %v9473, 5
        %v9562 = vrot.slane %v9561, 4
        %v9563 = vrot.slane %v8728, 5
        %v9564 = vsel %vm1137, %v9562, %v9563
        %v9565 = vrot.slane %v9563, 4
        %v9566 = vrot.slane %v8729, 5
        %v9567 = vsel %vm1137, %v9565, %v9566
        %v9568 = vrot.slane %v9474, 5
        %v9569 = vrot.slane %v9568, 4
        %v9570 = vrot.slane %v8731, 5
        %v9571 = vsel %vm1137, %v9569, %v9570
        %v9572 = vrot.slane %v9570, 4
        %v9573 = vrot.slane %v8732, 5
        %v9574 = vsel %vm1137, %v9572, %v9573
        %v9575 = vrot.slane %v9475, 5
        %v9576 = vrot.slane %v9575, 4
        %v9577 = vrot.slane %v8734, 5
        %v9578 = vsel %vm1137, %v9576, %v9577
        %v9579 = vrot.slane %v9577, 4
        %v9580 = vrot.slane %v8735, 5
        %v9581 = vsel %vm1137, %v9579, %v9580
        %v9582 = vrot.slane %v9476, 5
        %v9583 = vrot.slane %v9582, 4
        %v9584 = vrot.slane %v8737, 5
        %v9585 = vsel %vm1137, %v9583, %v9584
        %v9586 = vrot.slane %v9584, 4
        %v9587 = vrot.slane %v8738, 5
        %v9588 = vsel %vm1137, %v9586, %v9587
        %v9589 = vrot.slane %v9477, 5
        %v9590 = vrot.slane %v9589, 4
        %v9591 = vrot.slane %v8740, 5
        %v9592 = vsel %vm1137, %v9590, %v9591
        %v9593 = vrot.slane %v9591, 4
        %v9594 = vrot.slane %v8741, 5
        %v9595 = vsel %vm1137, %v9593, %v9594
        %v9596 = vrot.slane %v9478, 5
        %v9597 = vrot.slane %v9596, 4
        %v9598 = vrot.slane %v8743, 5
        %v9599 = vsel %vm1137, %v9597, %v9598
        %v9600 = vrot.slane %v9598, 4
        %v9601 = vrot.slane %v8744, 5
        %v9602 = vsel %vm1137, %v9600, %v9601
        %v9603 = vrot.slane %v9479, 5
        %v9604 = vrot.slane %v9603, 4
        %v9605 = vrot.slane %v8746, 5
        %v9606 = vsel %vm1137, %v9604, %v9605
        %v9607 = vrot.slane %v9605, 4
        %v9608 = vrot.slane %v8747, 5
        %v9609 = vsel %vm1137, %v9607, %v9608
        %v9610 = vrot.slane %v9480, 5
        %v9611 = vrot.slane %v9610, 4
        %v9612 = vrot.slane %v8749, 5
        %v9613 = vsel %vm1137, %v9611, %v9612
        %v9614 = vrot.slane %v9612, 4
        %v9615 = vrot.slane %v8750, 5
        %v9616 = vsel %vm1137, %v9614, %v9615
        %v9617 = vrot.slane %v9481, 5
        %v9618 = vrot.slane %v9617, 4
        %v9619 = vrot.slane %v8752, 5
        %v9620 = vsel %vm1137, %v9618, %v9619
        %v9621 = vrot.slane %v9619, 4
        %v9622 = vrot.slane %v8753, 5
        %v9623 = vsel %vm1137, %v9621, %v9622
        %v9624 = vrot.slane %v9482, 5
        %v9625 = vrot.slane %v9624, 4
        %v9626 = vrot.slane %v8755, 5
        %v9627 = vsel %vm1137, %v9625, %v9626
        %v9628 = vrot.slane %v9626, 4
        %v9629 = vrot.slane %v8756, 5
        %v9630 = vsel %vm1137, %v9628, %v9629
        %v9631 = vrot.slane %v9483, 5
        %v9632 = vrot.slane %v9631, 4
        %v9633 = vrot.slane %v8758, 5
        %v9634 = vsel %vm1137, %v9632, %v9633
        %v9635 = vrot.slane %v9633, 4
        %v9636 = vrot.slane %v8759, 5
        %v9637 = vsel %vm1137, %v9635, %v9636
        %v9638 = vrot.slane %v9484, 5
        %v9639 = vrot.slane %v9638, 4
        %v9640 = vrot.slane %v8761, 5
        %v9641 = vsel %vm1137, %v9639, %v9640
        %v9642 = vrot.slane %v9640, 4
        %v9643 = vrot.slane %v8762, 5
        %v9644 = vsel %vm1137, %v9642, %v9643
        %s9645 = scalar_lea.vmem [#allocation9], 256
        %v9646 = vld [vmem:[%s9645] sm:$0xf]
        %v9647 = vld [vmem:[%s9645 + $0x4] sm:$0xf]
        %v9648 = vld [vmem:[%s9645 + $0x8] sm:$0xf]
        %v9649 = vld [vmem:[%s9645 + $0xc] sm:$0xf]
        %v9650 = vld [vmem:[%s9645 + $0x10] sm:$0xf]
        %v9651 = vld [vmem:[%s9645 + $0x14] sm:$0xf]
        %v9652 = vld [vmem:[%s9645 + $0x18] sm:$0xf]
        %v9653 = vld [vmem:[%s9645 + $0x1c] sm:$0xf]
        %v9654 = vld [vmem:[%s9645 + $0x20] sm:$0xf]
        %v9655 = vld [vmem:[%s9645 + $0x24] sm:$0xf]
        %v9656 = vld [vmem:[%s9645 + $0x28] sm:$0xf]
        %v9657 = vld [vmem:[%s9645 + $0x2c] sm:$0xf]
        %v9658 = vld [vmem:[%s9645 + $0x30] sm:$0xf]
        %v9659 = vld [vmem:[%s9645 + $0x34] sm:$0xf]
        %v9660 = vld [vmem:[%s9645 + $0x38] sm:$0xf]
        %v9661 = vld [vmem:[%s9645 + $0x3c] sm:$0xf]
        %v9662 = vunpack.c.l.b16 %v9536
        %v9663 = vunpack.c.l.b16 %v9539
        %v9664 = vunpack.c.l.b16 %v9543
        %v9665 = vunpack.c.l.b16 %v9546
        %v9666 = vunpack.c.l.b16 %v9550
        %v9667 = vunpack.c.l.b16 %v9553
        %v9668 = vunpack.c.l.b16 %v9557
        %v9669 = vunpack.c.l.b16 %v9560
        %v9670 = vunpack.c.l.b16 %v9564
        %v9671 = vunpack.c.l.b16 %v9567
        %v9672 = vunpack.c.l.b16 %v9571
        %v9673 = vunpack.c.l.b16 %v9574
        %v9674 = vunpack.c.l.b16 %v9578
        %v9675 = vunpack.c.l.b16 %v9581
        %v9676 = vunpack.c.l.b16 %v9585
        %v9677 = vunpack.c.l.b16 %v9588
        %v9678 = vunpack.c.l.b16 %v9592
        %v9679 = vunpack.c.l.b16 %v9595
        %v9680 = vunpack.c.l.b16 %v9599
        %v9681 = vunpack.c.l.b16 %v9602
        %v9682 = vunpack.c.l.b16 %v9606
        %v9683 = vunpack.c.l.b16 %v9609
        %v9684 = vunpack.c.l.b16 %v9613
        %v9685 = vunpack.c.l.b16 %v9616
        %v9686 = vunpack.c.l.b16 %v9620
        %v9687 = vunpack.c.l.b16 %v9623
        %v9688 = vunpack.c.l.b16 %v9627
        %v9689 = vunpack.c.l.b16 %v9630
        %v9690 = vunpack.c.l.b16 %v9634
        %v9691 = vunpack.c.l.b16 %v9637
        %v9692 = vunpack.c.l.b16 %v9641
        %v9693 = vunpack.c.l.b16 %v9644
        %v9694 = vpack.c.b16 %v9663, %v9662
        %v9695 = vpack.c.b16 %v9665, %v9664
        %v9696 = vpack.c.b16 %v9667, %v9666
        %v9697 = vpack.c.b16 %v9669, %v9668
        %v9698 = vpack.c.b16 %v9671, %v9670
        %v9699 = vpack.c.b16 %v9673, %v9672
        %v9700 = vpack.c.b16 %v9675, %v9674
        %v9701 = vpack.c.b16 %v9677, %v9676
        %v9702 = vpack.c.b16 %v9679, %v9678
        %v9703 = vpack.c.b16 %v9681, %v9680
        %v9704 = vpack.c.b16 %v9683, %v9682
        %v9705 = vpack.c.b16 %v9685, %v9684
        %v9706 = vpack.c.b16 %v9687, %v9686
        %v9707 = vpack.c.b16 %v9689, %v9688
        %v9708 = vpack.c.b16 %v9691, %v9690
        %v9709 = vpack.c.b16 %v9693, %v9692
        %v9742 = vunpack.c.l.b16 %v9646
        %v9743 = vunpack.c.l.b16 %v9647
        %v9744 = vunpack.c.l.b16 %v9648
        %v9745 = vunpack.c.l.b16 %v9649
        %v9746 = vunpack.c.l.b16 %v9650
        %v9747 = vunpack.c.l.b16 %v9651
        %v9748 = vunpack.c.l.b16 %v9652
        %v9749 = vunpack.c.l.b16 %v9653
        %v9750 = vunpack.c.l.b16 %v9654
        %v9751 = vunpack.c.l.b16 %v9655
        %v9752 = vunpack.c.l.b16 %v9656
        %v9753 = vunpack.c.l.b16 %v9657
        %v9754 = vunpack.c.l.b16 %v9658
        %v9755 = vunpack.c.l.b16 %v9659
        %v9756 = vunpack.c.l.b16 %v9660
        %v9757 = vunpack.c.l.b16 %v9661
        %v9758 = vpack.c.b16 %v9743, %v9742
        %v9759 = vpack.c.b16 %v9745, %v9744
        %v9760 = vpack.c.b16 %v9747, %v9746
        %v9761 = vpack.c.b16 %v9749, %v9748
        %v9762 = vpack.c.b16 %v9751, %v9750
        %v9763 = vpack.c.b16 %v9753, %v9752
        %v9764 = vpack.c.b16 %v9755, %v9754
        %v9765 = vpack.c.b16 %v9757, %v9756
        %9774 = vmatprep.subr.bf16.mxu0 0
        %9775 = vmatpush1.bf16.msra.mxu0 %v9758
        %9776 = vmatprep.subr.bf16.mxu0 0
        %9777 = vmatpush1.bf16.msra.mxu0 %v9759
        %9778 = vmatprep.subr.bf16.mxu0 0
        %9779 = vmatpush1.bf16.msra.mxu0 %v9760
        %9780 = vmatprep.subr.bf16.mxu0 0
        %9781 = vmatpush1.bf16.msra.mxu0 %v9761
        %9782 = vmatprep.subr.bf16.mxu0 0
        %9783 = vmatpush1.bf16.msra.mxu0 %v9762
        %9784 = vmatprep.subr.bf16.mxu0 0
        %9785 = vmatpush1.bf16.msra.mxu0 %v9763
        %9786 = vmatprep.subr.bf16.mxu0 0
        %9787 = vmatpush1.bf16.msra.mxu0 %v9764
        %9788 = vmatprep.subr.bf16.mxu0 0
        %9789 = vmatpush1.bf16.msra.mxu0 %v9765
        %9790 = vmatprep.subr.bf16.mxu0 0
        %9791 = vmatpush1.bf16.msra.mxu0 0
        %9792 = vmatprep.subr.bf16.mxu0 0
        %9793 = vmatpush1.bf16.msra.mxu0 0
        %9794 = vmatprep.subr.bf16.mxu0 0
        %9795 = vmatpush1.bf16.msra.mxu0 0
        %9796 = vmatprep.subr.bf16.mxu0 0
        %9797 = vmatpush1.bf16.msra.mxu0 0
        %9798 = vmatprep.subr.bf16.mxu0 0
        %9799 = vmatpush1.bf16.msra.mxu0 0
        %9800 = vmatprep.subr.bf16.mxu0 0
        %9801 = vmatpush1.bf16.msra.mxu0 0
        %9802 = vmatprep.subr.bf16.mxu0 0
        %9803 = vmatpush1.bf16.msra.mxu0 0
        %9804 = vmatprep.subr.bf16.mxu0 0
        %9805 = vmatpush1.bf16.msra.mxu0 0
        %9806 = vmatprep.mubr.bf16.mxu0 0
        %9807 = vmatmul.mubr.bf16.gmra.mrb[0].mxu0 %v9694
        %v9808 = vpop.f32.mrb[0].mxu0
        %v9809 = vadd.f32 0.0, %v9808
        %v9810 = vpop.f32.mrb[0].mxu0
        %v9811 = vpop.f32.mrb[0].mxu0
        %v9812 = vadd.f32 0.0, %v9811
        %v9813 = vpop.f32.mrb[0].mxu0
        %9814 = vmatprep.mubr.bf16.mxu0 0
        %9815 = vmatmul.mubr.bf16.gmra.mrb[0].mxu0 %v9695
        %v9816 = vpop.f32.mrb[0].mxu0
        %v9817 = vadd.f32 0.0, %v9816
        %v9818 = vpop.f32.mrb[0].mxu0
        %v9819 = vpop.f32.mrb[0].mxu0
        %v9820 = vadd.f32 0.0, %v9819
        %v9821 = vpop.f32.mrb[0].mxu0
        %9822 = vmatprep.mubr.bf16.mxu0 0
        %9823 = vmatmul.mubr.bf16.gmra.mrb[0].mxu0 %v9696
        %v9824 = vpop.f32.mrb[0].mxu0
        %v9825 = vadd.f32 0.0, %v9824
        %v9826 = vpop.f32.mrb[0].mxu0
        %v9827 = vpop.f32.mrb[0].mxu0
        %v9828 = vadd.f32 0.0, %v9827
        %v9829 = vpop.f32.mrb[0].mxu0
        %9830 = vmatprep.mubr.bf16.mxu0 0
        %9831 = vmatmul.mubr.bf16.gmra.mrb[0].mxu0 %v9697
        %v9832 = vpop.f32.mrb[0].mxu0
        %v9833 = vadd.f32 0.0, %v9832
        %v9834 = vpop.f32.mrb[0].mxu0
        %v9835 = vpop.f32.mrb[0].mxu0
        %v9836 = vadd.f32 0.0, %v9835
        %v9837 = vpop.f32.mrb[0].mxu0
        %9838 = vmatprep.mubr.bf16.mxu0 0
        %9839 = vmatmul.mubr.bf16.gmra.mrb[0].mxu0 %v9698
        %v9840 = vpop.f32.mrb[0].mxu0
        %v9841 = vadd.f32 0.0, %v9840
        %v9842 = vpop.f32.mrb[0].mxu0
        %v9843 = vpop.f32.mrb[0].mxu0
        %v9844 = vadd.f32 0.0, %v9843
        %v9845 = vpop.f32.mrb[0].mxu0
        %9846 = vmatprep.mubr.bf16.mxu0 0
        %9847 = vmatmul.mubr.bf16.gmra.mrb[0].mxu0 %v9699
        %v9848 = vpop.f32.mrb[0].mxu0
        %v9849 = vadd.f32 0.0, %v9848
        %v9850 = vpop.f32.mrb[0].mxu0
        %v9851 = vpop.f32.mrb[0].mxu0
        %v9852 = vadd.f32 0.0, %v9851
        %v9853 = vpop.f32.mrb[0].mxu0
        %9854 = vmatprep.mubr.bf16.mxu0 0
        %9855 = vmatmul.mubr.bf16.gmra.mrb[0].mxu0 %v9700
        %v9856 = vpop.f32.mrb[0].mxu0
        %v9857 = vadd.f32 0.0, %v9856
        %v9858 = vpop.f32.mrb[0].mxu0
        %v9859 = vpop.f32.mrb[0].mxu0
        %v9860 = vadd.f32 0.0, %v9859
        %v9861 = vpop.f32.mrb[0].mxu0
        %9862 = vmatprep.mubr.bf16.mxu0 0
        %9863 = vmatmul.mubr.bf16.gmra.mrb[0].mxu0 %v9701
        %v9864 = vpop.f32.mrb[0].mxu0
        %v9865 = vadd.f32 0.0, %v9864
        %v9866 = vpop.f32.mrb[0].mxu0
        %v9867 = vpop.f32.mrb[0].mxu0
        %v9868 = vadd.f32 0.0, %v9867
        %v9869 = vpop.f32.mrb[0].mxu0
        %9870 = vmatprep.mubr.bf16.mxu0 0
        %9871 = vmatmul.mubr.bf16.gmra.mrb[0].mxu0 %v9702
        %v9872 = vpop.f32.mrb[0].mxu0
        %v9873 = vadd.f32 0.0, %v9872
        %v9874 = vpop.f32.mrb[0].mxu0
        %v9875 = vpop.f32.mrb[0].mxu0
        %v9876 = vadd.f32 0.0, %v9875
        %v9877 = vpop.f32.mrb[0].mxu0
        %9878 = vmatprep.mubr.bf16.mxu0 0
        %9879 = vmatmul.mubr.bf16.gmra.mrb[0].mxu0 %v9703
        %v9880 = vpop.f32.mrb[0].mxu0
        %v9881 = vadd.f32 0.0, %v9880
        %v9882 = vpop.f32.mrb[0].mxu0
        %v9883 = vpop.f32.mrb[0].mxu0
        %v9884 = vadd.f32 0.0, %v9883
        %v9885 = vpop.f32.mrb[0].mxu0
        %9886 = vmatprep.mubr.bf16.mxu0 0
        %9887 = vmatmul.mubr.bf16.gmra.mrb[0].mxu0 %v9704
        %v9888 = vpop.f32.mrb[0].mxu0
        %v9889 = vadd.f32 0.0, %v9888
        %v9890 = vpop.f32.mrb[0].mxu0
        %v9891 = vpop.f32.mrb[0].mxu0
        %v9892 = vadd.f32 0.0, %v9891
        %v9893 = vpop.f32.mrb[0].mxu0
        %9894 = vmatprep.mubr.bf16.mxu0 0
        %9895 = vmatmul.mubr.bf16.gmra.mrb[0].mxu0 %v9705
        %v9896 = vpop.f32.mrb[0].mxu0
        %v9897 = vadd.f32 0.0, %v9896
        %v9898 = vpop.f32.mrb[0].mxu0
        %v9899 = vpop.f32.mrb[0].mxu0
        %v9900 = vadd.f32 0.0, %v9899
        %v9901 = vpop.f32.mrb[0].mxu0
        %9902 = vmatprep.mubr.bf16.mxu0 0
        %9903 = vmatmul.mubr.bf16.gmra.mrb[0].mxu0 %v9706
        %v9904 = vpop.f32.mrb[0].mxu0
        %v9905 = vadd.f32 0.0, %v9904
        %v9906 = vpop.f32.mrb[0].mxu0
        %v9907 = vpop.f32.mrb[0].mxu0
        %v9908 = vadd.f32 0.0, %v9907
        %v9909 = vpop.f32.mrb[0].mxu0
        %9910 = vmatprep.mubr.bf16.mxu0 0
        %9911 = vmatmul.mubr.bf16.gmra.mrb[0].mxu0 %v9707
        %v9912 = vpop.f32.mrb[0].mxu0
        %v9913 = vadd.f32 0.0, %v9912
        %v9914 = vpop.f32.mrb[0].mxu0
        %v9915 = vpop.f32.mrb[0].mxu0
        %v9916 = vadd.f32 0.0, %v9915
        %v9917 = vpop.f32.mrb[0].mxu0
        %9918 = vmatprep.mubr.bf16.mxu0 0
        %9919 = vmatmul.mubr.bf16.gmra.mrb[0].mxu0 %v9708
        %v9920 = vpop.f32.mrb[0].mxu0
        %v9921 = vadd.f32 0.0, %v9920
        %v9922 = vpop.f32.mrb[0].mxu0
        %v9923 = vpop.f32.mrb[0].mxu0
        %v9924 = vadd.f32 0.0, %v9923
        %v9925 = vpop.f32.mrb[0].mxu0
        %9926 = vmatprep.mubr.bf16.mxu0 0
        %9927 = vmatmul.mubr.bf16.gmra.mrb[0].mxu0 %v9709
        %v9928 = vpop.f32.mrb[0].mxu0
        %v9929 = vadd.f32 0.0, %v9928
        %v9930 = vpop.f32.mrb[0].mxu0
        %v9931 = vpop.f32.mrb[0].mxu0
        %v9932 = vadd.f32 0.0, %v9931
        %v9933 = vpop.f32.mrb[0].mxu0
        %9934 = vdwg.mxu0
        %v9935 = vadd.f32 %v9437, %v9809
        %v9936 = vadd.f32 %v9438, %v9812
        %v9937 = vadd.f32 %v9439, %v9817
        %v9938 = vadd.f32 %v9440, %v9820
        %v9939 = vadd.f32 %v9441, %v9825
        %v9940 = vadd.f32 %v9442, %v9828
        %v9941 = vadd.f32 %v9443, %v9833
        %v9942 = vadd.f32 %v9444, %v9836
        %v9943 = vadd.f32 %v9445, %v9841
        %v9944 = vadd.f32 %v9446, %v9844
        %v9945 = vadd.f32 %v9447, %v9849
        %v9946 = vadd.f32 %v9448, %v9852
        %v9947 = vadd.f32 %v9449, %v9857
        %v9948 = vadd.f32 %v9450, %v9860
        %v9949 = vadd.f32 %v9451, %v9865
        %v9950 = vadd.f32 %v9452, %v9868
        %v9951 = vadd.f32 %v9453, %v9873
        %v9952 = vadd.f32 %v9454, %v9876
        %v9953 = vadd.f32 %v9455, %v9881
        %v9954 = vadd.f32 %v9456, %v9884
        %v9955 = vadd.f32 %v9457, %v9889
        %v9956 = vadd.f32 %v9458, %v9892
        %v9957 = vadd.f32 %v9459, %v9897
        %v9958 = vadd.f32 %v9460, %v9900
        %v9959 = vadd.f32 %v9461, %v9905
        %v9960 = vadd.f32 %v9462, %v9908
        %v9961 = vadd.f32 %v9463, %v9913
        %v9962 = vadd.f32 %v9464, %v9916
        %v9963 = vadd.f32 %v9465, %v9921
        %v9964 = vadd.f32 %v9466, %v9924
        %v9965 = vadd.f32 %v9467, %v9929
        %v9966 = vadd.f32 %v9468, %v9932
        %v9967 = vld [vmem:[%s6517 + $0x8] sm:$0x3]
        %v9968 = vld [vmem:[%s6517 + $0x14] sm:$0x3]
        %v9969 = vld [vmem:[%s6517 + $0x20] sm:$0x3]
        %v9970 = vld [vmem:[%s6517 + $0x2c] sm:$0x3]
        %v9971 = vld [vmem:[%s6517 + $0x38] sm:$0x3]
        %v9972 = vld [vmem:[%s6517 + $0x44] sm:$0x3]
        %v9973 = vld [vmem:[%s6517 + $0x50] sm:$0x3]
        %v9974 = vld [vmem:[%s6517 + $0x5c] sm:$0x3]
        %v9975 = vld [vmem:[%s6517 + $0x68] sm:$0x3]
        %v9976 = vld [vmem:[%s6517 + $0x74] sm:$0x3]
        %v9977 = vld [vmem:[%s6517 + $0x80] sm:$0x3]
        %v9978 = vld [vmem:[%s6517 + $0x8c] sm:$0x3]
        %v9979 = vld [vmem:[%s6517 + $0x98] sm:$0x3]
        %v9980 = vld [vmem:[%s6517 + $0xa4] sm:$0x3]
        %v9981 = vld [vmem:[%s6517 + $0xb0] sm:$0x3]
        %v9982 = vld [vmem:[%s6517 + $0xbc] sm:$0x3]
        %v9984 = vshrl.u32 %v9469, 16
        %v9986 = vrot.slane %v9984, 5
        %v9987 = vshll.u32 %v9469, 16
        %v9989 = vrot.slane %v9987, 6
        %v9990 = vor.u32 %v9986, %v9989
        %v9991 = vrot.slane %v9990, 4
        %v9992 = vrot.slane %v8777, 5
        %v9993 = vrot.slane %v8773, 6
        %v9994 = vor.u32 %v9992, %v9993
        %v9995 = vsel %vm1831, %v9991, %v9994
        %v9996 = vrot.slane %v9994, 4
        %v9998 = vshrl.u32 %v9967, 16
        %v10000 = vrot.slane %v9998, 5
        %v10001 = vshll.u32 %v9967, 16
        %v10003 = vrot.slane %v10001, 6
        %v10004 = vor.u32 %v10000, %v10003
        %v10005 = vsel %vm1831, %v9996, %v10004
        %v10007 = vshrl.u32 %v9470, 16
        %v10009 = vrot.slane %v10007, 5
        %v10010 = vshll.u32 %v9470, 16
        %v10012 = vrot.slane %v10010, 6
        %v10013 = vor.u32 %v10009, %v10012
        %v10014 = vrot.slane %v10013, 4
        %v10015 = vrot.slane %v8801, 5
        %v10016 = vrot.slane %v8797, 6
        %v10017 = vor.u32 %v10015, %v10016
        %v10018 = vsel %vm1831, %v10014, %v10017
        %v10019 = vrot.slane %v10017, 4
        %v10021 = vshrl.u32 %v9968, 16
        %v10023 = vrot.slane %v10021, 5
        %v10024 = vshll.u32 %v9968, 16
        %v10026 = vrot.slane %v10024, 6
        %v10027 = vor.u32 %v10023, %v10026
        %v10028 = vsel %vm1831, %v10019, %v10027
        %v10030 = vshrl.u32 %v9471, 16
        %v10032 = vrot.slane %v10030, 5
        %v10033 = vshll.u32 %v9471, 16
        %v10035 = vrot.slane %v10033, 6
        %v10036 = vor.u32 %v10032, %v10035
        %v10037 = vrot.slane %v10036, 4
        %v10038 = vrot.slane %v8825, 5
        %v10039 = vrot.slane %v8821, 6
        %v10040 = vor.u32 %v10038, %v10039
        %v10041 = vsel %vm1831, %v10037, %v10040
        %v10042 = vrot.slane %v10040, 4
        %v10044 = vshrl.u32 %v9969, 16
        %v10046 = vrot.slane %v10044, 5
        %v10047 = vshll.u32 %v9969, 16
        %v10049 = vrot.slane %v10047, 6
        %v10050 = vor.u32 %v10046, %v10049
        %v10051 = vsel %vm1831, %v10042, %v10050
        %v10053 = vshrl.u32 %v9472, 16
        %v10055 = vrot.slane %v10053, 5
        %v10056 = vshll.u32 %v9472, 16
        %v10058 = vrot.slane %v10056, 6
        %v10059 = vor.u32 %v10055, %v10058
        %v10060 = vrot.slane %v10059, 4
        %v10061 = vrot.slane %v8849, 5
        %v10062 = vrot.slane %v8845, 6
        %v10063 = vor.u32 %v10061, %v10062
        %v10064 = vsel %vm1831, %v10060, %v10063
        %v10065 = vrot.slane %v10063, 4
        %v10067 = vshrl.u32 %v9970, 16
        %v10069 = vrot.slane %v10067, 5
        %v10070 = vshll.u32 %v9970, 16
        %v10072 = vrot.slane %v10070, 6
        %v10073 = vor.u32 %v10069, %v10072
        %v10074 = vsel %vm1831, %v10065, %v10073
        %v10076 = vshrl.u32 %v9473, 16
        %v10078 = vrot.slane %v10076, 5
        %v10079 = vshll.u32 %v9473, 16
        %v10081 = vrot.slane %v10079, 6
        %v10082 = vor.u32 %v10078, %v10081
        %v10083 = vrot.slane %v10082, 4
        %v10084 = vrot.slane %v8873, 5
        %v10085 = vrot.slane %v8869, 6
        %v10086 = vor.u32 %v10084, %v10085
        %v10087 = vsel %vm1831, %v10083, %v10086
        %v10088 = vrot.slane %v10086, 4
        %v10090 = vshrl.u32 %v9971, 16
        %v10092 = vrot.slane %v10090, 5
        %v10093 = vshll.u32 %v9971, 16
        %v10095 = vrot.slane %v10093, 6
        %v10096 = vor.u32 %v10092, %v10095
        %v10097 = vsel %vm1831, %v10088, %v10096
        %v10099 = vshrl.u32 %v9474, 16
        %v10101 = vrot.slane %v10099, 5
        %v10102 = vshll.u32 %v9474, 16
        %v10104 = vrot.slane %v10102, 6
        %v10105 = vor.u32 %v10101, %v10104
        %v10106 = vrot.slane %v10105, 4
        %v10107 = vrot.slane %v8897, 5
        %v10108 = vrot.slane %v8893, 6
        %v10109 = vor.u32 %v10107, %v10108
        %v10110 = vsel %vm1831, %v10106, %v10109
        %v10111 = vrot.slane %v10109, 4
        %v10113 = vshrl.u32 %v9972, 16
        %v10115 = vrot.slane %v10113, 5
        %v10116 = vshll.u32 %v9972, 16
        %v10118 = vrot.slane %v10116, 6
        %v10119 = vor.u32 %v10115, %v10118
        %v10120 = vsel %vm1831, %v10111, %v10119
        %v10122 = vshrl.u32 %v9475, 16
        %v10124 = vrot.slane %v10122, 5
        %v10125 = vshll.u32 %v9475, 16
        %v10127 = vrot.slane %v10125, 6
        %v10128 = vor.u32 %v10124, %v10127
        %v10129 = vrot.slane %v10128, 4
        %v10130 = vrot.slane %v8921, 5
        %v10131 = vrot.slane %v8917, 6
        %v10132 = vor.u32 %v10130, %v10131
        %v10133 = vsel %vm1831, %v10129, %v10132
        %v10134 = vrot.slane %v10132, 4
        %v10136 = vshrl.u32 %v9973, 16
        %v10138 = vrot.slane %v10136, 5
        %v10139 = vshll.u32 %v9973, 16
        %v10141 = vrot.slane %v10139, 6
        %v10142 = vor.u32 %v10138, %v10141
        %v10143 = vsel %vm1831, %v10134, %v10142
        %v10145 = vshrl.u32 %v9476, 16
        %v10147 = vrot.slane %v10145, 5
        %v10148 = vshll.u32 %v9476, 16
        %v10150 = vrot.slane %v10148, 6
        %v10151 = vor.u32 %v10147, %v10150
        %v10152 = vrot.slane %v10151, 4
        %v10153 = vrot.slane %v8945, 5
        %v10154 = vrot.slane %v8941, 6
        %v10155 = vor.u32 %v10153, %v10154
        %v10156 = vsel %vm1831, %v10152, %v10155
        %v10157 = vrot.slane %v10155, 4
        %v10159 = vshrl.u32 %v9974, 16
        %v10161 = vrot.slane %v10159, 5
        %v10162 = vshll.u32 %v9974, 16
        %v10164 = vrot.slane %v10162, 6
        %v10165 = vor.u32 %v10161, %v10164
        %v10166 = vsel %vm1831, %v10157, %v10165
        %v10168 = vshrl.u32 %v9477, 16
        %v10170 = vrot.slane %v10168, 5
        %v10171 = vshll.u32 %v9477, 16
        %v10173 = vrot.slane %v10171, 6
        %v10174 = vor.u32 %v10170, %v10173
        %v10175 = vrot.slane %v10174, 4
        %v10176 = vrot.slane %v8969, 5
        %v10177 = vrot.slane %v8965, 6
        %v10178 = vor.u32 %v10176, %v10177
        %v10179 = vsel %vm1831, %v10175, %v10178
        %v10180 = vrot.slane %v10178, 4
        %v10182 = vshrl.u32 %v9975, 16
        %v10184 = vrot.slane %v10182, 5
        %v10185 = vshll.u32 %v9975, 16
        %v10187 = vrot.slane %v10185, 6
        %v10188 = vor.u32 %v10184, %v10187
        %v10189 = vsel %vm1831, %v10180, %v10188
        %v10191 = vshrl.u32 %v9478, 16
        %v10193 = vrot.slane %v10191, 5
        %v10194 = vshll.u32 %v9478, 16
        %v10196 = vrot.slane %v10194, 6
        %v10197 = vor.u32 %v10193, %v10196
        %v10198 = vrot.slane %v10197, 4
        %v10199 = vrot.slane %v8993, 5
        %v10200 = vrot.slane %v8989, 6
        %v10201 = vor.u32 %v10199, %v10200
        %v10202 = vsel %vm1831, %v10198, %v10201
        %v10203 = vrot.slane %v10201, 4
        %v10205 = vshrl.u32 %v9976, 16
        %v10207 = vrot.slane %v10205, 5
        %v10208 = vshll.u32 %v9976, 16
        %v10210 = vrot.slane %v10208, 6
        %v10211 = vor.u32 %v10207, %v10210
        %v10212 = vsel %vm1831, %v10203, %v10211
        %v10214 = vshrl.u32 %v9479, 16
        %v10216 = vrot.slane %v10214, 5
        %v10217 = vshll.u32 %v9479, 16
        %v10219 = vrot.slane %v10217, 6
        %v10220 = vor.u32 %v10216, %v10219
        %v10221 = vrot.slane %v10220, 4
        %v10222 = vrot.slane %v9017, 5
        %v10223 = vrot.slane %v9013, 6
        %v10224 = vor.u32 %v10222, %v10223
        %v10225 = vsel %vm1831, %v10221, %v10224
        %v10226 = vrot.slane %v10224, 4
        %v10228 = vshrl.u32 %v9977, 16
        %v10230 = vrot.slane %v10228, 5
        %v10231 = vshll.u32 %v9977, 16
        %v10233 = vrot.slane %v10231, 6
        %v10234 = vor.u32 %v10230, %v10233
        %v10235 = vsel %vm1831, %v10226, %v10234
        %v10237 = vshrl.u32 %v9480, 16
        %v10239 = vrot.slane %v10237, 5
        %v10240 = vshll.u32 %v9480, 16
        %v10242 = vrot.slane %v10240, 6
        %v10243 = vor.u32 %v10239, %v10242
        %v10244 = vrot.slane %v10243, 4
        %v10245 = vrot.slane %v9041, 5
        %v10246 = vrot.slane %v9037, 6
        %v10247 = vor.u32 %v10245, %v10246
        %v10248 = vsel %vm1831, %v10244, %v10247
        %v10249 = vrot.slane %v10247, 4
        %v10251 = vshrl.u32 %v9978, 16
        %v10253 = vrot.slane %v10251, 5
        %v10254 = vshll.u32 %v9978, 16
        %v10256 = vrot.slane %v10254, 6
        %v10257 = vor.u32 %v10253, %v10256
        %v10258 = vsel %vm1831, %v10249, %v10257
        %v10260 = vshrl.u32 %v9481, 16
        %v10262 = vrot.slane %v10260, 5
        %v10263 = vshll.u32 %v9481, 16
        %v10265 = vrot.slane %v10263, 6
        %v10266 = vor.u32 %v10262, %v10265
        %v10267 = vrot.slane %v10266, 4
        %v10268 = vrot.slane %v9065, 5
        %v10269 = vrot.slane %v9061, 6
        %v10270 = vor.u32 %v10268, %v10269
        %v10271 = vsel %vm1831, %v10267, %v10270
        %v10272 = vrot.slane %v10270, 4
        %v10274 = vshrl.u32 %v9979, 16
        %v10276 = vrot.slane %v10274, 5
        %v10277 = vshll.u32 %v9979, 16
        %v10279 = vrot.slane %v10277, 6
        %v10280 = vor.u32 %v10276, %v10279
        %v10281 = vsel %vm1831, %v10272, %v10280
        %v10283 = vshrl.u32 %v9482, 16
        %v10285 = vrot.slane %v10283, 5
        %v10286 = vshll.u32 %v9482, 16
        %v10288 = vrot.slane %v10286, 6
        %v10289 = vor.u32 %v10285, %v10288
        %v10290 = vrot.slane %v10289, 4
        %v10291 = vrot.slane %v9089, 5
        %v10292 = vrot.slane %v9085, 6
        %v10293 = vor.u32 %v10291, %v10292
        %v10294 = vsel %vm1831, %v10290, %v10293
        %v10295 = vrot.slane %v10293, 4
        %v10297 = vshrl.u32 %v9980, 16
        %v10299 = vrot.slane %v10297, 5
        %v10300 = vshll.u32 %v9980, 16
        %v10302 = vrot.slane %v10300, 6
        %v10303 = vor.u32 %v10299, %v10302
        %v10304 = vsel %vm1831, %v10295, %v10303
        %v10306 = vshrl.u32 %v9483, 16
        %v10308 = vrot.slane %v10306, 5
        %v10309 = vshll.u32 %v9483, 16
        %v10311 = vrot.slane %v10309, 6
        %v10312 = vor.u32 %v10308, %v10311
        %v10313 = vrot.slane %v10312, 4
        %v10314 = vrot.slane %v9113, 5
        %v10315 = vrot.slane %v9109, 6
        %v10316 = vor.u32 %v10314, %v10315
        %v10317 = vsel %vm1831, %v10313, %v10316
        %v10318 = vrot.slane %v10316, 4
        %v10320 = vshrl.u32 %v9981, 16
        %v10322 = vrot.slane %v10320, 5
        %v10323 = vshll.u32 %v9981, 16
        %v10325 = vrot.slane %v10323, 6
        %v10326 = vor.u32 %v10322, %v10325
        %v10327 = vsel %vm1831, %v10318, %v10326
        %v10329 = vshrl.u32 %v9484, 16
        %v10331 = vrot.slane %v10329, 5
        %v10332 = vshll.u32 %v9484, 16
        %v10334 = vrot.slane %v10332, 6
        %v10335 = vor.u32 %v10331, %v10334
        %v10336 = vrot.slane %v10335, 4
        %v10337 = vrot.slane %v9137, 5
        %v10338 = vrot.slane %v9133, 6
        %v10339 = vor.u32 %v10337, %v10338
        %v10340 = vsel %vm1831, %v10336, %v10339
        %v10341 = vrot.slane %v10339, 4
        %v10343 = vshrl.u32 %v9982, 16
        %v10345 = vrot.slane %v10343, 5
        %v10346 = vshll.u32 %v9982, 16
        %v10348 = vrot.slane %v10346, 6
        %v10349 = vor.u32 %v10345, %v10348
        %v10350 = vsel %vm1831, %v10341, %v10349
        %s10351 = scalar_lea.vmem [#allocation9], 320
        %v10352 = vld [vmem:[%s10351] sm:$0xf]
        %v10353 = vld [vmem:[%s10351 + $0x4] sm:$0xf]
        %v10354 = vld [vmem:[%s10351 + $0x8] sm:$0xf]
        %v10355 = vld [vmem:[%s10351 + $0xc] sm:$0xf]
        %v10356 = vld [vmem:[%s10351 + $0x10] sm:$0xf]
        %v10357 = vld [vmem:[%s10351 + $0x14] sm:$0xf]
        %v10358 = vld [vmem:[%s10351 + $0x18] sm:$0xf]
        %v10359 = vld [vmem:[%s10351 + $0x1c] sm:$0xf]
        %v10360 = vld [vmem:[%s10351 + $0x20] sm:$0xf]
        %v10361 = vld [vmem:[%s10351 + $0x24] sm:$0xf]
        %v10362 = vld [vmem:[%s10351 + $0x28] sm:$0xf]
        %v10363 = vld [vmem:[%s10351 + $0x2c] sm:$0xf]
        %v10364 = vld [vmem:[%s10351 + $0x30] sm:$0xf]
        %v10365 = vld [vmem:[%s10351 + $0x34] sm:$0xf]
        %v10366 = vld [vmem:[%s10351 + $0x38] sm:$0xf]
        %v10367 = vld [vmem:[%s10351 + $0x3c] sm:$0xf]
        %v10368 = vunpack.c.l.b16 %v9995
        %v10369 = vunpack.c.l.b16 %v10005
        %v10370 = vunpack.c.l.b16 %v10018
        %v10371 = vunpack.c.l.b16 %v10028
        %v10372 = vunpack.c.l.b16 %v10041
        %v10373 = vunpack.c.l.b16 %v10051
        %v10374 = vunpack.c.l.b16 %v10064
        %v10375 = vunpack.c.l.b16 %v10074
        %v10376 = vunpack.c.l.b16 %v10087
        %v10377 = vunpack.c.l.b16 %v10097
        %v10378 = vunpack.c.l.b16 %v10110
        %v10379 = vunpack.c.l.b16 %v10120
        %v10380 = vunpack.c.l.b16 %v10133
        %v10381 = vunpack.c.l.b16 %v10143
        %v10382 = vunpack.c.l.b16 %v10156
        %v10383 = vunpack.c.l.b16 %v10166
        %v10384 = vunpack.c.l.b16 %v10179
        %v10385 = vunpack.c.l.b16 %v10189
        %v10386 = vunpack.c.l.b16 %v10202
        %v10387 = vunpack.c.l.b16 %v10212
        %v10388 = vunpack.c.l.b16 %v10225
        %v10389 = vunpack.c.l.b16 %v10235
        %v10390 = vunpack.c.l.b16 %v10248
        %v10391 = vunpack.c.l.b16 %v10258
        %v10392 = vunpack.c.l.b16 %v10271
        %v10393 = vunpack.c.l.b16 %v10281
        %v10394 = vunpack.c.l.b16 %v10294
        %v10395 = vunpack.c.l.b16 %v10304
        %v10396 = vunpack.c.l.b16 %v10317
        %v10397 = vunpack.c.l.b16 %v10327
        %v10398 = vunpack.c.l.b16 %v10340
        %v10399 = vunpack.c.l.b16 %v10350
        %v10400 = vpack.c.b16 %v10369, %v10368
        %v10401 = vpack.c.b16 %v10371, %v10370
        %v10402 = vpack.c.b16 %v10373, %v10372
        %v10403 = vpack.c.b16 %v10375, %v10374
        %v10404 = vpack.c.b16 %v10377, %v10376
        %v10405 = vpack.c.b16 %v10379, %v10378
        %v10406 = vpack.c.b16 %v10381, %v10380
        %v10407 = vpack.c.b16 %v10383, %v10382
        %v10408 = vpack.c.b16 %v10385, %v10384
        %v10409 = vpack.c.b16 %v10387, %v10386
        %v10410 = vpack.c.b16 %v10389, %v10388
        %v10411 = vpack.c.b16 %v10391, %v10390
        %v10412 = vpack.c.b16 %v10393, %v10392
        %v10413 = vpack.c.b16 %v10395, %v10394
        %v10414 = vpack.c.b16 %v10397, %v10396
        %v10415 = vpack.c.b16 %v10399, %v10398
        %v10448 = vunpack.c.l.b16 %v10352
        %v10449 = vunpack.c.l.b16 %v10353
        %v10450 = vunpack.c.l.b16 %v10354
        %v10451 = vunpack.c.l.b16 %v10355
        %v10452 = vunpack.c.l.b16 %v10356
        %v10453 = vunpack.c.l.b16 %v10357
        %v10454 = vunpack.c.l.b16 %v10358
        %v10455 = vunpack.c.l.b16 %v10359
        %v10456 = vunpack.c.l.b16 %v10360
        %v10457 = vunpack.c.l.b16 %v10361
        %v10458 = vunpack.c.l.b16 %v10362
        %v10459 = vunpack.c.l.b16 %v10363
        %v10460 = vunpack.c.l.b16 %v10364
        %v10461 = vunpack.c.l.b16 %v10365
        %v10462 = vunpack.c.l.b16 %v10366
        %v10463 = vunpack.c.l.b16 %v10367
        %v10464 = vpack.c.b16 %v10449, %v10448
        %v10465 = vpack.c.b16 %v10451, %v10450
        %v10466 = vpack.c.b16 %v10453, %v10452
        %v10467 = vpack.c.b16 %v10455, %v10454
        %v10468 = vpack.c.b16 %v10457, %v10456
        %v10469 = vpack.c.b16 %v10459, %v10458
        %v10470 = vpack.c.b16 %v10461, %v10460
        %v10471 = vpack.c.b16 %v10463, %v10462
        %10480 = vmatprep.subr.bf16.mxu0 0
        %10481 = vmatpush1.bf16.msra.mxu0 %v10464
        %10482 = vmatprep.subr.bf16.mxu0 0
        %10483 = vmatpush1.bf16.msra.mxu0 %v10465
        %10484 = vmatprep.subr.bf16.mxu0 0
        %10485 = vmatpush1.bf16.msra.mxu0 %v10466
        %10486 = vmatprep.subr.bf16.mxu0 0
        %10487 = vmatpush1.bf16.msra.mxu0 %v10467
        %10488 = vmatprep.subr.bf16.mxu0 0
        %10489 = vmatpush1.bf16.msra.mxu0 %v10468
        %10490 = vmatprep.subr.bf16.mxu0 0
        %10491 = vmatpush1.bf16.msra.mxu0 %v10469
        %10492 = vmatprep.subr.bf16.mxu0 0
        %10493 = vmatpush1.bf16.msra.mxu0 %v10470
        %10494 = vmatprep.subr.bf16.mxu0 0
        %10495 = vmatpush1.bf16.msra.mxu0 %v10471
        %10496 = vmatprep.subr.bf16.mxu0 0
        %10497 = vmatpush1.bf16.msra.mxu0 0
        %10498 = vmatprep.subr.bf16.mxu0 0
        %10499 = vmatpush1.bf16.msra.mxu0 0
        %10500 = vmatprep.subr.bf16.mxu0 0
        %10501 = vmatpush1.bf16.msra.mxu0 0
        %10502 = vmatprep.subr.bf16.mxu0 0
        %10503 = vmatpush1.bf16.msra.mxu0 0
        %10504 = vmatprep.subr.bf16.mxu0 0
        %10505 = vmatpush1.bf16.msra.mxu0 0
        %10506 = vmatprep.subr.bf16.mxu0 0
        %10507 = vmatpush1.bf16.msra.mxu0 0
        %10508 = vmatprep.subr.bf16.mxu0 0
        %10509 = vmatpush1.bf16.msra.mxu0 0
        %10510 = vmatprep.subr.bf16.mxu0 0
        %10511 = vmatpush1.bf16.msra.mxu0 0
        %10512 = vmatprep.mubr.bf16.mxu0 0
        %10513 = vmatmul.mubr.bf16.gmra.mrb[0].mxu0 %v10400
        %v10514 = vpop.f32.mrb[0].mxu0
        %v10515 = vadd.f32 0.0, %v10514
        %v10516 = vpop.f32.mrb[0].mxu0
        %v10517 = vpop.f32.mrb[0].mxu0
        %v10518 = vadd.f32 0.0, %v10517
        %v10519 = vpop.f32.mrb[0].mxu0
        %10520 = vmatprep.mubr.bf16.mxu0 0
        %10521 = vmatmul.mubr.bf16.gmra.mrb[0].mxu0 %v10401
        %v10522 = vpop.f32.mrb[0].mxu0
        %v10523 = vadd.f32 0.0, %v10522
        %v10524 = vpop.f32.mrb[0].mxu0
        %v10525 = vpop.f32.mrb[0].mxu0
        %v10526 = vadd.f32 0.0, %v10525
        %v10527 = vpop.f32.mrb[0].mxu0
        %10528 = vmatprep.mubr.bf16.mxu0 0
        %10529 = vmatmul.mubr.bf16.gmra.mrb[0].mxu0 %v10402
        %v10530 = vpop.f32.mrb[0].mxu0
        %v10531 = vadd.f32 0.0, %v10530
        %v10532 = vpop.f32.mrb[0].mxu0
        %v10533 = vpop.f32.mrb[0].mxu0
        %v10534 = vadd.f32 0.0, %v10533
        %v10535 = vpop.f32.mrb[0].mxu0
        %10536 = vmatprep.mubr.bf16.mxu0 0
        %10537 = vmatmul.mubr.bf16.gmra.mrb[0].mxu0 %v10403
        %v10538 = vpop.f32.mrb[0].mxu0
        %v10539 = vadd.f32 0.0, %v10538
        %v10540 = vpop.f32.mrb[0].mxu0
        %v10541 = vpop.f32.mrb[0].mxu0
        %v10542 = vadd.f32 0.0, %v10541
        %v10543 = vpop.f32.mrb[0].mxu0
        %10544 = vmatprep.mubr.bf16.mxu0 0
        %10545 = vmatmul.mubr.bf16.gmra.mrb[0].mxu0 %v10404
        %v10546 = vpop.f32.mrb[0].mxu0
        %v10547 = vadd.f32 0.0, %v10546
        %v10548 = vpop.f32.mrb[0].mxu0
        %v10549 = vpop.f32.mrb[0].mxu0
        %v10550 = vadd.f32 0.0, %v10549
        %v10551 = vpop.f32.mrb[0].mxu0
        %10552 = vmatprep.mubr.bf16.mxu0 0
        %10553 = vmatmul.mubr.bf16.gmra.mrb[0].mxu0 %v10405
        %v10554 = vpop.f32.mrb[0].mxu0
        %v10555 = vadd.f32 0.0, %v10554
        %v10556 = vpop.f32.mrb[0].mxu0
        %v10557 = vpop.f32.mrb[0].mxu0
        %v10558 = vadd.f32 0.0, %v10557
        %v10559 = vpop.f32.mrb[0].mxu0
        %10560 = vmatprep.mubr.bf16.mxu0 0
        %10561 = vmatmul.mubr.bf16.gmra.mrb[0].mxu0 %v10406
        %v10562 = vpop.f32.mrb[0].mxu0
        %v10563 = vadd.f32 0.0, %v10562
        %v10564 = vpop.f32.mrb[0].mxu0
        %v10565 = vpop.f32.mrb[0].mxu0
        %v10566 = vadd.f32 0.0, %v10565
        %v10567 = vpop.f32.mrb[0].mxu0
        %10568 = vmatprep.mubr.bf16.mxu0 0
        %10569 = vmatmul.mubr.bf16.gmra.mrb[0].mxu0 %v10407
        %v10570 = vpop.f32.mrb[0].mxu0
        %v10571 = vadd.f32 0.0, %v10570
        %v10572 = vpop.f32.mrb[0].mxu0
        %v10573 = vpop.f32.mrb[0].mxu0
        %v10574 = vadd.f32 0.0, %v10573
        %v10575 = vpop.f32.mrb[0].mxu0
        %10576 = vmatprep.mubr.bf16.mxu0 0
        %10577 = vmatmul.mubr.bf16.gmra.mrb[0].mxu0 %v10408
        %v10578 = vpop.f32.mrb[0].mxu0
        %v10579 = vadd.f32 0.0, %v10578
        %v10580 = vpop.f32.mrb[0].mxu0
        %v10581 = vpop.f32.mrb[0].mxu0
        %v10582 = vadd.f32 0.0, %v10581
        %v10583 = vpop.f32.mrb[0].mxu0
        %10584 = vmatprep.mubr.bf16.mxu0 0
        %10585 = vmatmul.mubr.bf16.gmra.mrb[0].mxu0 %v10409
        %v10586 = vpop.f32.mrb[0].mxu0
        %v10587 = vadd.f32 0.0, %v10586
        %v10588 = vpop.f32.mrb[0].mxu0
        %v10589 = vpop.f32.mrb[0].mxu0
        %v10590 = vadd.f32 0.0, %v10589
        %v10591 = vpop.f32.mrb[0].mxu0
        %10592 = vmatprep.mubr.bf16.mxu0 0
        %10593 = vmatmul.mubr.bf16.gmra.mrb[0].mxu0 %v10410
        %v10594 = vpop.f32.mrb[0].mxu0
        %v10595 = vadd.f32 0.0, %v10594
        %v10596 = vpop.f32.mrb[0].mxu0
        %v10597 = vpop.f32.mrb[0].mxu0
        %v10598 = vadd.f32 0.0, %v10597
        %v10599 = vpop.f32.mrb[0].mxu0
        %10600 = vmatprep.mubr.bf16.mxu0 0
        %10601 = vmatmul.mubr.bf16.gmra.mrb[0].mxu0 %v10411
        %v10602 = vpop.f32.mrb[0].mxu0
        %v10603 = vadd.f32 0.0, %v10602
        %v10604 = vpop.f32.mrb[0].mxu0
        %v10605 = vpop.f32.mrb[0].mxu0
        %v10606 = vadd.f32 0.0, %v10605
        %v10607 = vpop.f32.mrb[0].mxu0
        %10608 = vmatprep.mubr.bf16.mxu0 0
        %10609 = vmatmul.mubr.bf16.gmra.mrb[0].mxu0 %v10412
        %v10610 = vpop.f32.mrb[0].mxu0
        %v10611 = vadd.f32 0.0, %v10610
        %v10612 = vpop.f32.mrb[0].mxu0
        %v10613 = vpop.f32.mrb[0].mxu0
        %v10614 = vadd.f32 0.0, %v10613
        %v10615 = vpop.f32.mrb[0].mxu0
        %10616 = vmatprep.mubr.bf16.mxu0 0
        %10617 = vmatmul.mubr.bf16.gmra.mrb[0].mxu0 %v10413
        %v10618 = vpop.f32.mrb[0].mxu0
        %v10619 = vadd.f32 0.0, %v10618
        %v10620 = vpop.f32.mrb[0].mxu0
        %v10621 = vpop.f32.mrb[0].mxu0
        %v10622 = vadd.f32 0.0, %v10621
        %v10623 = vpop.f32.mrb[0].mxu0
        %10624 = vmatprep.mubr.bf16.mxu0 0
        %10625 = vmatmul.mubr.bf16.gmra.mrb[0].mxu0 %v10414
        %v10626 = vpop.f32.mrb[0].mxu0
        %v10627 = vadd.f32 0.0, %v10626
        %v10628 = vpop.f32.mrb[0].mxu0
        %v10629 = vpop.f32.mrb[0].mxu0
        %v10630 = vadd.f32 0.0, %v10629
        %v10631 = vpop.f32.mrb[0].mxu0
        %10632 = vmatprep.mubr.bf16.mxu0 0
        %10633 = vmatmul.mubr.bf16.gmra.mrb[0].mxu0 %v10415
        %v10634 = vpop.f32.mrb[0].mxu0
        %v10635 = vadd.f32 0.0, %v10634
        %v10636 = vpop.f32.mrb[0].mxu0
        %v10637 = vpop.f32.mrb[0].mxu0
        %v10638 = vadd.f32 0.0, %v10637
        %v10639 = vpop.f32.mrb[0].mxu0
        %10640 = vdwg.mxu0
        %v10641 = vadd.f32 %v9935, %v10515
        %v10642 = vadd.f32 %v9936, %v10518
        %v10643 = vadd.f32 %v9937, %v10523
        %v10644 = vadd.f32 %v9938, %v10526
        %v10645 = vadd.f32 %v9939, %v10531
        %v10646 = vadd.f32 %v9940, %v10534
        %v10647 = vadd.f32 %v9941, %v10539
        %v10648 = vadd.f32 %v9942, %v10542
        %v10649 = vadd.f32 %v9943, %v10547
        %v10650 = vadd.f32 %v9944, %v10550
        %v10651 = vadd.f32 %v9945, %v10555
        %v10652 = vadd.f32 %v9946, %v10558
        %v10653 = vadd.f32 %v9947, %v10563
        %v10654 = vadd.f32 %v9948, %v10566
        %v10655 = vadd.f32 %v9949, %v10571
        %v10656 = vadd.f32 %v9950, %v10574
        %v10657 = vadd.f32 %v9951, %v10579
        %v10658 = vadd.f32 %v9952, %v10582
        %v10659 = vadd.f32 %v9953, %v10587
        %v10660 = vadd.f32 %v9954, %v10590
        %v10661 = vadd.f32 %v9955, %v10595
        %v10662 = vadd.f32 %v9956, %v10598
        %v10663 = vadd.f32 %v9957, %v10603
        %v10664 = vadd.f32 %v9958, %v10606
        %v10665 = vadd.f32 %v9959, %v10611
        %v10666 = vadd.f32 %v9960, %v10614
        %v10667 = vadd.f32 %v9961, %v10619
        %v10668 = vadd.f32 %v9962, %v10622
        %v10669 = vadd.f32 %v9963, %v10627
        %v10670 = vadd.f32 %v9964, %v10630
        %v10671 = vadd.f32 %v9965, %v10635
        %v10672 = vadd.f32 %v9966, %v10638
        %s10673 = scalar_lea.vmem [#allocation3], 24
        %v10674 = vld [vmem:[%s10673] sm:$0xf]
        %v10675 = vld [vmem:[%s10673 + $0x4] sm:$0xf]
        %v10676 = vld [vmem:[%s10673 + $0x8] sm:$0x1]
        %v10677 = vld [vmem:[%s10673 + $0xc] sm:$0xf]
        %v10678 = vld [vmem:[%s10673 + $0x10] sm:$0xf]
        %v10679 = vld [vmem:[%s10673 + $0x14] sm:$0x1]
        %v10680 = vld [vmem:[%s10673 + $0x18] sm:$0xf]
        %v10681 = vld [vmem:[%s10673 + $0x1c] sm:$0xf]
        %v10682 = vld [vmem:[%s10673 + $0x20] sm:$0x1]
        %v10683 = vld [vmem:[%s10673 + $0x24] sm:$0xf]
        %v10684 = vld [vmem:[%s10673 + $0x28] sm:$0xf]
        %v10685 = vld [vmem:[%s10673 + $0x2c] sm:$0x1]
        %v10686 = vld [vmem:[%s10673 + $0x30] sm:$0xf]
        %v10687 = vld [vmem:[%s10673 + $0x34] sm:$0xf]
        %v10688 = vld [vmem:[%s10673 + $0x38] sm:$0x1]
        %v10689 = vld [vmem:[%s10673 + $0x3c] sm:$0xf]
        %v10690 = vld [vmem:[%s10673 + $0x40] sm:$0xf]
        %v10691 = vld [vmem:[%s10673 + $0x44] sm:$0x1]
        %v10692 = vld [vmem:[%s10673 + $0x48] sm:$0xf]
        %v10693 = vld [vmem:[%s10673 + $0x4c] sm:$0xf]
        %v10694 = vld [vmem:[%s10673 + $0x50] sm:$0x1]
        %v10695 = vld [vmem:[%s10673 + $0x54] sm:$0xf]
        %v10696 = vld [vmem:[%s10673 + $0x58] sm:$0xf]
        %v10697 = vld [vmem:[%s10673 + $0x5c] sm:$0x1]
        %v10698 = vld [vmem:[%s10673 + $0x60] sm:$0xf]
        %v10699 = vld [vmem:[%s10673 + $0x64] sm:$0xf]
        %v10700 = vld [vmem:[%s10673 + $0x68] sm:$0x1]
        %v10701 = vld [vmem:[%s10673 + $0x6c] sm:$0xf]
        %v10702 = vld [vmem:[%s10673 + $0x70] sm:$0xf]
        %v10703 = vld [vmem:[%s10673 + $0x74] sm:$0x1]
        %v10704 = vld [vmem:[%s10673 + $0x78] sm:$0xf]
        %v10705 = vld [vmem:[%s10673 + $0x7c] sm:$0xf]
        %v10706 = vld [vmem:[%s10673 + $0x80] sm:$0x1]
        %v10707 = vld [vmem:[%s10673 + $0x84] sm:$0xf]
        %v10708 = vld [vmem:[%s10673 + $0x88] sm:$0xf]
        %v10709 = vld [vmem:[%s10673 + $0x8c] sm:$0x1]
        %v10710 = vld [vmem:[%s10673 + $0x90] sm:$0xf]
        %v10711 = vld [vmem:[%s10673 + $0x94] sm:$0xf]
        %v10712 = vld [vmem:[%s10673 + $0x98] sm:$0x1]
        %v10713 = vld [vmem:[%s10673 + $0x9c] sm:$0xf]
        %v10714 = vld [vmem:[%s10673 + $0xa0] sm:$0xf]
        %v10715 = vld [vmem:[%s10673 + $0xa4] sm:$0x1]
        %v10716 = vld [vmem:[%s10673 + $0xa8] sm:$0xf]
        %v10717 = vld [vmem:[%s10673 + $0xac] sm:$0xf]
        %v10718 = vld [vmem:[%s10673 + $0xb0] sm:$0x1]
        %v10719 = vld [vmem:[%s10673 + $0xb4] sm:$0xf]
        %v10720 = vld [vmem:[%s10673 + $0xb8] sm:$0xf]
        %v10721 = vld [vmem:[%s10673 + $0xbc] sm:$0x1]
        %v10723 = vshrl.u32 %v10674, 16
        %v10725 = vrot.slane %v10723, 4
        %v10726 = vshll.u32 %v10674, 16
        %v10728 = vrot.slane %v10726, 5
        %v10729 = vor.u32 %v10725, %v10728
        %v10730 = vrot.slane %v10729, 4
        %v10732 = vshll.u32 %v10675, 16
        %v10734 = vrot.slane %v10732, 5
        %v10735 = vsel %vm670, %v10730, %v10734
        %v10736 = vshrl.u32 %v10675, 16
        %v10738 = vrot.slane %v10736, 4
        %v10739 = vor.u32 %v10738, %v10734
        %v10740 = vrot.slane %v10739, 4
        %v10742 = vshll.u32 %v10676, 16
        %v10744 = vrot.slane %v10742, 5
        %v10745 = vsel %vm670, %v10740, %v10744
        %v10747 = vshrl.u32 %v10677, 16
        %v10749 = vrot.slane %v10747, 4
        %v10750 = vshll.u32 %v10677, 16
        %v10752 = vrot.slane %v10750, 5
        %v10753 = vor.u32 %v10749, %v10752
        %v10754 = vrot.slane %v10753, 4
        %v10756 = vshll.u32 %v10678, 16
        %v10758 = vrot.slane %v10756, 5
        %v10759 = vsel %vm670, %v10754, %v10758
        %v10760 = vshrl.u32 %v10678, 16
        %v10762 = vrot.slane %v10760, 4
        %v10763 = vor.u32 %v10762, %v10758
        %v10764 = vrot.slane %v10763, 4
        %v10766 = vshll.u32 %v10679, 16
        %v10768 = vrot.slane %v10766, 5
        %v10769 = vsel %vm670, %v10764, %v10768
        %v10771 = vshrl.u32 %v10680, 16
        %v10773 = vrot.slane %v10771, 4
        %v10774 = vshll.u32 %v10680, 16
        %v10776 = vrot.slane %v10774, 5
        %v10777 = vor.u32 %v10773, %v10776
        %v10778 = vrot.slane %v10777, 4
        %v10780 = vshll.u32 %v10681, 16
        %v10782 = vrot.slane %v10780, 5
        %v10783 = vsel %vm670, %v10778, %v10782
        %v10784 = vshrl.u32 %v10681, 16
        %v10786 = vrot.slane %v10784, 4
        %v10787 = vor.u32 %v10786, %v10782
        %v10788 = vrot.slane %v10787, 4
        %v10790 = vshll.u32 %v10682, 16
        %v10792 = vrot.slane %v10790, 5
        %v10793 = vsel %vm670, %v10788, %v10792
        %v10795 = vshrl.u32 %v10683, 16
        %v10797 = vrot.slane %v10795, 4
        %v10798 = vshll.u32 %v10683, 16
        %v10800 = vrot.slane %v10798, 5
        %v10801 = vor.u32 %v10797, %v10800
        %v10802 = vrot.slane %v10801, 4
        %v10804 = vshll.u32 %v10684, 16
        %v10806 = vrot.slane %v10804, 5
        %v10807 = vsel %vm670, %v10802, %v10806
        %v10808 = vshrl.u32 %v10684, 16
        %v10810 = vrot.slane %v10808, 4
        %v10811 = vor.u32 %v10810, %v10806
        %v10812 = vrot.slane %v10811, 4
        %v10814 = vshll.u32 %v10685, 16
        %v10816 = vrot.slane %v10814, 5
        %v10817 = vsel %vm670, %v10812, %v10816
        %v10819 = vshrl.u32 %v10686, 16
        %v10821 = vrot.slane %v10819, 4
        %v10822 = vshll.u32 %v10686, 16
        %v10824 = vrot.slane %v10822, 5
        %v10825 = vor.u32 %v10821, %v10824
        %v10826 = vrot.slane %v10825, 4
        %v10828 = vshll.u32 %v10687, 16
        %v10830 = vrot.slane %v10828, 5
        %v10831 = vsel %vm670, %v10826, %v10830
        %v10832 = vshrl.u32 %v10687, 16
        %v10834 = vrot.slane %v10832, 4
        %v10835 = vor.u32 %v10834, %v10830
        %v10836 = vrot.slane %v10835, 4
        %v10838 = vshll.u32 %v10688, 16
        %v10840 = vrot.slane %v10838, 5
        %v10841 = vsel %vm670, %v10836, %v10840
        %v10843 = vshrl.u32 %v10689, 16
        %v10845 = vrot.slane %v10843, 4
        %v10846 = vshll.u32 %v10689, 16
        %v10848 = vrot.slane %v10846, 5
        %v10849 = vor.u32 %v10845, %v10848
        %v10850 = vrot.slane %v10849, 4
        %v10852 = vshll.u32 %v10690, 16
        %v10854 = vrot.slane %v10852, 5
        %v10855 = vsel %vm670, %v10850, %v10854
        %v10856 = vshrl.u32 %v10690, 16
        %v10858 = vrot.slane %v10856, 4
        %v10859 = vor.u32 %v10858, %v10854
        %v10860 = vrot.slane %v10859, 4
        %v10862 = vshll.u32 %v10691, 16
        %v10864 = vrot.slane %v10862, 5
        %v10865 = vsel %vm670, %v10860, %v10864
        %v10867 = vshrl.u32 %v10692, 16
        %v10869 = vrot.slane %v10867, 4
        %v10870 = vshll.u32 %v10692, 16
        %v10872 = vrot.slane %v10870, 5
        %v10873 = vor.u32 %v10869, %v10872
        %v10874 = vrot.slane %v10873, 4
        %v10876 = vshll.u32 %v10693, 16
        %v10878 = vrot.slane %v10876, 5
        %v10879 = vsel %vm670, %v10874, %v10878
        %v10880 = vshrl.u32 %v10693, 16
        %v10882 = vrot.slane %v10880, 4
        %v10883 = vor.u32 %v10882, %v10878
        %v10884 = vrot.slane %v10883, 4
        %v10886 = vshll.u32 %v10694, 16
        %v10888 = vrot.slane %v10886, 5
        %v10889 = vsel %vm670, %v10884, %v10888
        %v10891 = vshrl.u32 %v10695, 16
        %v10893 = vrot.slane %v10891, 4
        %v10894 = vshll.u32 %v10695, 16
        %v10896 = vrot.slane %v10894, 5
        %v10897 = vor.u32 %v10893, %v10896
        %v10898 = vrot.slane %v10897, 4
        %v10900 = vshll.u32 %v10696, 16
        %v10902 = vrot.slane %v10900, 5
        %v10903 = vsel %vm670, %v10898, %v10902
        %v10904 = vshrl.u32 %v10696, 16
        %v10906 = vrot.slane %v10904, 4
        %v10907 = vor.u32 %v10906, %v10902
        %v10908 = vrot.slane %v10907, 4
        %v10910 = vshll.u32 %v10697, 16
        %v10912 = vrot.slane %v10910, 5
        %v10913 = vsel %vm670, %v10908, %v10912
        %v10915 = vshrl.u32 %v10698, 16
        %v10917 = vrot.slane %v10915, 4
        %v10918 = vshll.u32 %v10698, 16
        %v10920 = vrot.slane %v10918, 5
        %v10921 = vor.u32 %v10917, %v10920
        %v10922 = vrot.slane %v10921, 4
        %v10924 = vshll.u32 %v10699, 16
        %v10926 = vrot.slane %v10924, 5
        %v10927 = vsel %vm670, %v10922, %v10926
        %v10928 = vshrl.u32 %v10699, 16
        %v10930 = vrot.slane %v10928, 4
        %v10931 = vor.u32 %v10930, %v10926
        %v10932 = vrot.slane %v10931, 4
        %v10934 = vshll.u32 %v10700, 16
        %v10936 = vrot.slane %v10934, 5
        %v10937 = vsel %vm670, %v10932, %v10936
        %v10939 = vshrl.u32 %v10701, 16
        %v10941 = vrot.slane %v10939, 4
        %v10942 = vshll.u32 %v10701, 16
        %v10944 = vrot.slane %v10942, 5
        %v10945 = vor.u32 %v10941, %v10944
        %v10946 = vrot.slane %v10945, 4
        %v10948 = vshll.u32 %v10702, 16
        %v10950 = vrot.slane %v10948, 5
        %v10951 = vsel %vm670, %v10946, %v10950
        %v10952 = vshrl.u32 %v10702, 16
        %v10954 = vrot.slane %v10952, 4
        %v10955 = vor.u32 %v10954, %v10950
        %v10956 = vrot.slane %v10955, 4
        %v10958 = vshll.u32 %v10703, 16
        %v10960 = vrot.slane %v10958, 5
        %v10961 = vsel %vm670, %v10956, %v10960
        %v10963 = vshrl.u32 %v10704, 16
        %v10965 = vrot.slane %v10963, 4
        %v10966 = vshll.u32 %v10704, 16
        %v10968 = vrot.slane %v10966, 5
        %v10969 = vor.u32 %v10965, %v10968
        %v10970 = vrot.slane %v10969, 4
        %v10972 = vshll.u32 %v10705, 16
        %v10974 = vrot.slane %v10972, 5
        %v10975 = vsel %vm670, %v10970, %v10974
        %v10976 = vshrl.u32 %v10705, 16
        %v10978 = vrot.slane %v10976, 4
        %v10979 = vor.u32 %v10978, %v10974
        %v10980 = vrot.slane %v10979, 4
        %v10982 = vshll.u32 %v10706, 16
        %v10984 = vrot.slane %v10982, 5
        %v10985 = vsel %vm670, %v10980, %v10984
        %v10987 = vshrl.u32 %v10707, 16
        %v10989 = vrot.slane %v10987, 4
        %v10990 = vshll.u32 %v10707, 16
        %v10992 = vrot.slane %v10990, 5
        %v10993 = vor.u32 %v10989, %v10992
        %v10994 = vrot.slane %v10993, 4
        %v10996 = vshll.u32 %v10708, 16
        %v10998 = vrot.slane %v10996, 5
        %v10999 = vsel %vm670, %v10994, %v10998
        %v11000 = vshrl.u32 %v10708, 16
        %v11002 = vrot.slane %v11000, 4
        %v11003 = vor.u32 %v11002, %v10998
        %v11004 = vrot.slane %v11003, 4
        %v11006 = vshll.u32 %v10709, 16
        %v11008 = vrot.slane %v11006, 5
        %v11009 = vsel %vm670, %v11004, %v11008
        %v11011 = vshrl.u32 %v10710, 16
        %v11013 = vrot.slane %v11011, 4
        %v11014 = vshll.u32 %v10710, 16
        %v11016 = vrot.slane %v11014, 5
        %v11017 = vor.u32 %v11013, %v11016
        %v11018 = vrot.slane %v11017, 4
        %v11020 = vshll.u32 %v10711, 16
        %v11022 = vrot.slane %v11020, 5
        %v11023 = vsel %vm670, %v11018, %v11022
        %v11024 = vshrl.u32 %v10711, 16
        %v11026 = vrot.slane %v11024, 4
        %v11027 = vor.u32 %v11026, %v11022
        %v11028 = vrot.slane %v11027, 4
        %v11030 = vshll.u32 %v10712, 16
        %v11032 = vrot.slane %v11030, 5
        %v11033 = vsel %vm670, %v11028, %v11032
        %v11035 = vshrl.u32 %v10713, 16
        %v11037 = vrot.slane %v11035, 4
        %v11038 = vshll.u32 %v10713, 16
        %v11040 = vrot.slane %v11038, 5
        %v11041 = vor.u32 %v11037, %v11040
        %v11042 = vrot.slane %v11041, 4
        %v11044 = vshll.u32 %v10714, 16
        %v11046 = vrot.slane %v11044, 5
        %v11047 = vsel %vm670, %v11042, %v11046
        %v11048 = vshrl.u32 %v10714, 16
        %v11050 = vrot.slane %v11048, 4
        %v11051 = vor.u32 %v11050, %v11046
        %v11052 = vrot.slane %v11051, 4
        %v11054 = vshll.u32 %v10715, 16
        %v11056 = vrot.slane %v11054, 5
        %v11057 = vsel %vm670, %v11052, %v11056
        %v11059 = vshrl.u32 %v10716, 16
        %v11061 = vrot.slane %v11059, 4
        %v11062 = vshll.u32 %v10716, 16
        %v11064 = vrot.slane %v11062, 5
        %v11065 = vor.u32 %v11061, %v11064
        %v11066 = vrot.slane %v11065, 4
        %v11068 = vshll.u32 %v10717, 16
        %v11070 = vrot.slane %v11068, 5
        %v11071 = vsel %vm670, %v11066, %v11070
        %v11072 = vshrl.u32 %v10717, 16
        %v11074 = vrot.slane %v11072, 4
        %v11075 = vor.u32 %v11074, %v11070
        %v11076 = vrot.slane %v11075, 4
        %v11078 = vshll.u32 %v10718, 16
        %v11080 = vrot.slane %v11078, 5
        %v11081 = vsel %vm670, %v11076, %v11080
        %v11083 = vshrl.u32 %v10719, 16
        %v11085 = vrot.slane %v11083, 4
        %v11086 = vshll.u32 %v10719, 16
        %v11088 = vrot.slane %v11086, 5
        %v11089 = vor.u32 %v11085, %v11088
        %v11090 = vrot.slane %v11089, 4
        %v11092 = vshll.u32 %v10720, 16
        %v11094 = vrot.slane %v11092, 5
        %v11095 = vsel %vm670, %v11090, %v11094
        %v11096 = vshrl.u32 %v10720, 16
        %v11098 = vrot.slane %v11096, 4
        %v11099 = vor.u32 %v11098, %v11094
        %v11100 = vrot.slane %v11099, 4
        %v11102 = vshll.u32 %v10721, 16
        %v11104 = vrot.slane %v11102, 5
        %v11105 = vsel %vm670, %v11100, %v11104
        %s11106 = scalar_lea.vmem [#allocation9], 384
        %v11107 = vld [vmem:[%s11106] sm:$0xf]
        %v11108 = vld [vmem:[%s11106 + $0x4] sm:$0xf]
        %v11109 = vld [vmem:[%s11106 + $0x8] sm:$0xf]
        %v11110 = vld [vmem:[%s11106 + $0xc] sm:$0xf]
        %v11111 = vld [vmem:[%s11106 + $0x10] sm:$0xf]
        %v11112 = vld [vmem:[%s11106 + $0x14] sm:$0xf]
        %v11113 = vld [vmem:[%s11106 + $0x18] sm:$0xf]
        %v11114 = vld [vmem:[%s11106 + $0x1c] sm:$0xf]
        %v11115 = vld [vmem:[%s11106 + $0x20] sm:$0xf]
        %v11116 = vld [vmem:[%s11106 + $0x24] sm:$0xf]
        %v11117 = vld [vmem:[%s11106 + $0x28] sm:$0xf]
        %v11118 = vld [vmem:[%s11106 + $0x2c] sm:$0xf]
        %v11119 = vld [vmem:[%s11106 + $0x30] sm:$0xf]
        %v11120 = vld [vmem:[%s11106 + $0x34] sm:$0xf]
        %v11121 = vld [vmem:[%s11106 + $0x38] sm:$0xf]
        %v11122 = vld [vmem:[%s11106 + $0x3c] sm:$0xf]
        %v11123 = vunpack.c.l.b16 %v10735
        %v11124 = vunpack.c.l.b16 %v10745
        %v11125 = vunpack.c.l.b16 %v10759
        %v11126 = vunpack.c.l.b16 %v10769
        %v11127 = vunpack.c.l.b16 %v10783
        %v11128 = vunpack.c.l.b16 %v10793
        %v11129 = vunpack.c.l.b16 %v10807
        %v11130 = vunpack.c.l.b16 %v10817
        %v11131 = vunpack.c.l.b16 %v10831
        %v11132 = vunpack.c.l.b16 %v10841
        %v11133 = vunpack.c.l.b16 %v10855
        %v11134 = vunpack.c.l.b16 %v10865
        %v11135 = vunpack.c.l.b16 %v10879
        %v11136 = vunpack.c.l.b16 %v10889
        %v11137 = vunpack.c.l.b16 %v10903
        %v11138 = vunpack.c.l.b16 %v10913
        %v11139 = vunpack.c.l.b16 %v10927
        %v11140 = vunpack.c.l.b16 %v10937
        %v11141 = vunpack.c.l.b16 %v10951
        %v11142 = vunpack.c.l.b16 %v10961
        %v11143 = vunpack.c.l.b16 %v10975
        %v11144 = vunpack.c.l.b16 %v10985
        %v11145 = vunpack.c.l.b16 %v10999
        %v11146 = vunpack.c.l.b16 %v11009
        %v11147 = vunpack.c.l.b16 %v11023
        %v11148 = vunpack.c.l.b16 %v11033
        %v11149 = vunpack.c.l.b16 %v11047
        %v11150 = vunpack.c.l.b16 %v11057
        %v11151 = vunpack.c.l.b16 %v11071
        %v11152 = vunpack.c.l.b16 %v11081
        %v11153 = vunpack.c.l.b16 %v11095
        %v11154 = vunpack.c.l.b16 %v11105
        %v11155 = vpack.c.b16 %v11124, %v11123
        %v11156 = vpack.c.b16 %v11126, %v11125
        %v11157 = vpack.c.b16 %v11128, %v11127
        %v11158 = vpack.c.b16 %v11130, %v11129
        %v11159 = vpack.c.b16 %v11132, %v11131
        %v11160 = vpack.c.b16 %v11134, %v11133
        %v11161 = vpack.c.b16 %v11136, %v11135
        %v11162 = vpack.c.b16 %v11138, %v11137
        %v11163 = vpack.c.b16 %v11140, %v11139
        %v11164 = vpack.c.b16 %v11142, %v11141
        %v11165 = vpack.c.b16 %v11144, %v11143
        %v11166 = vpack.c.b16 %v11146, %v11145
        %v11167 = vpack.c.b16 %v11148, %v11147
        %v11168 = vpack.c.b16 %v11150, %v11149
        %v11169 = vpack.c.b16 %v11152, %v11151
        %v11170 = vpack.c.b16 %v11154, %v11153
        %v11203 = vunpack.c.l.b16 %v11107
        %v11204 = vunpack.c.l.b16 %v11108
        %v11205 = vunpack.c.l.b16 %v11109
        %v11206 = vunpack.c.l.b16 %v11110
        %v11207 = vunpack.c.l.b16 %v11111
        %v11208 = vunpack.c.l.b16 %v11112
        %v11209 = vunpack.c.l.b16 %v11113
        %v11210 = vunpack.c.l.b16 %v11114
        %v11211 = vunpack.c.l.b16 %v11115
        %v11212 = vunpack.c.l.b16 %v11116
        %v11213 = vunpack.c.l.b16 %v11117
        %v11214 = vunpack.c.l.b16 %v11118
        %v11215 = vunpack.c.l.b16 %v11119
        %v11216 = vunpack.c.l.b16 %v11120
        %v11217 = vunpack.c.l.b16 %v11121
        %v11218 = vunpack.c.l.b16 %v11122
        %v11219 = vpack.c.b16 %v11204, %v11203
        %v11220 = vpack.c.b16 %v11206, %v11205
        %v11221 = vpack.c.b16 %v11208, %v11207
        %v11222 = vpack.c.b16 %v11210, %v11209
        %v11223 = vpack.c.b16 %v11212, %v11211
        %v11224 = vpack.c.b16 %v11214, %v11213
        %v11225 = vpack.c.b16 %v11216, %v11215
        %v11226 = vpack.c.b16 %v11218, %v11217
        %11235 = vmatprep.subr.bf16.mxu0 0
        %11236 = vmatpush1.bf16.msra.mxu0 %v11219
        %11237 = vmatprep.subr.bf16.mxu0 0
        %11238 = vmatpush1.bf16.msra.mxu0 %v11220
        %11239 = vmatprep.subr.bf16.mxu0 0
        %11240 = vmatpush1.bf16.msra.mxu0 %v11221
        %11241 = vmatprep.subr.bf16.mxu0 0
        %11242 = vmatpush1.bf16.msra.mxu0 %v11222
        %11243 = vmatprep.subr.bf16.mxu0 0
        %11244 = vmatpush1.bf16.msra.mxu0 %v11223
        %11245 = vmatprep.subr.bf16.mxu0 0
        %11246 = vmatpush1.bf16.msra.mxu0 %v11224
        %11247 = vmatprep.subr.bf16.mxu0 0
        %11248 = vmatpush1.bf16.msra.mxu0 %v11225
        %11249 = vmatprep.subr.bf16.mxu0 0
        %11250 = vmatpush1.bf16.msra.mxu0 %v11226
        %11251 = vmatprep.subr.bf16.mxu0 0
        %11252 = vmatpush1.bf16.msra.mxu0 0
        %11253 = vmatprep.subr.bf16.mxu0 0
        %11254 = vmatpush1.bf16.msra.mxu0 0
        %11255 = vmatprep.subr.bf16.mxu0 0
        %11256 = vmatpush1.bf16.msra.mxu0 0
        %11257 = vmatprep.subr.bf16.mxu0 0
        %11258 = vmatpush1.bf16.msra.mxu0 0
        %11259 = vmatprep.subr.bf16.mxu0 0
        %11260 = vmatpush1.bf16.msra.mxu0 0
        %11261 = vmatprep.subr.bf16.mxu0 0
        %11262 = vmatpush1.bf16.msra.mxu0 0
        %11263 = vmatprep.subr.bf16.mxu0 0
        %11264 = vmatpush1.bf16.msra.mxu0 0
        %11265 = vmatprep.subr.bf16.mxu0 0
        %11266 = vmatpush1.bf16.msra.mxu0 0
        %11267 = vmatprep.mubr.bf16.mxu0 0
        %11268 = vmatmul.mubr.bf16.gmra.mrb[0].mxu0 %v11155
        %v11269 = vpop.f32.mrb[0].mxu0
        %v11270 = vadd.f32 0.0, %v11269
        %v11271 = vpop.f32.mrb[0].mxu0
        %v11272 = vpop.f32.mrb[0].mxu0
        %v11273 = vadd.f32 0.0, %v11272
        %v11274 = vpop.f32.mrb[0].mxu0
        %11275 = vmatprep.mubr.bf16.mxu0 0
        %11276 = vmatmul.mubr.bf16.gmra.mrb[0].mxu0 %v11156
        %v11277 = vpop.f32.mrb[0].mxu0
        %v11278 = vadd.f32 0.0, %v11277
        %v11279 = vpop.f32.mrb[0].mxu0
        %v11280 = vpop.f32.mrb[0].mxu0
        %v11281 = vadd.f32 0.0, %v11280
        %v11282 = vpop.f32.mrb[0].mxu0
        %11283 = vmatprep.mubr.bf16.mxu0 0
        %11284 = vmatmul.mubr.bf16.gmra.mrb[0].mxu0 %v11157
        %v11285 = vpop.f32.mrb[0].mxu0
        %v11286 = vadd.f32 0.0, %v11285
        %v11287 = vpop.f32.mrb[0].mxu0
        %v11288 = vpop.f32.mrb[0].mxu0
        %v11289 = vadd.f32 0.0, %v11288
        %v11290 = vpop.f32.mrb[0].mxu0
        %11291 = vmatprep.mubr.bf16.mxu0 0
        %11292 = vmatmul.mubr.bf16.gmra.mrb[0].mxu0 %v11158
        %v11293 = vpop.f32.mrb[0].mxu0
        %v11294 = vadd.f32 0.0, %v11293
        %v11295 = vpop.f32.mrb[0].mxu0
        %v11296 = vpop.f32.mrb[0].mxu0
        %v11297 = vadd.f32 0.0, %v11296
        %v11298 = vpop.f32.mrb[0].mxu0
        %11299 = vmatprep.mubr.bf16.mxu0 0
        %11300 = vmatmul.mubr.bf16.gmra.mrb[0].mxu0 %v11159
        %v11301 = vpop.f32.mrb[0].mxu0
        %v11302 = vadd.f32 0.0, %v11301
        %v11303 = vpop.f32.mrb[0].mxu0
        %v11304 = vpop.f32.mrb[0].mxu0
        %v11305 = vadd.f32 0.0, %v11304
        %v11306 = vpop.f32.mrb[0].mxu0
        %11307 = vmatprep.mubr.bf16.mxu0 0
        %11308 = vmatmul.mubr.bf16.gmra.mrb[0].mxu0 %v11160
        %v11309 = vpop.f32.mrb[0].mxu0
        %v11310 = vadd.f32 0.0, %v11309
        %v11311 = vpop.f32.mrb[0].mxu0
        %v11312 = vpop.f32.mrb[0].mxu0
        %v11313 = vadd.f32 0.0, %v11312
        %v11314 = vpop.f32.mrb[0].mxu0
        %11315 = vmatprep.mubr.bf16.mxu0 0
        %11316 = vmatmul.mubr.bf16.gmra.mrb[0].mxu0 %v11161
        %v11317 = vpop.f32.mrb[0].mxu0
        %v11318 = vadd.f32 0.0, %v11317
        %v11319 = vpop.f32.mrb[0].mxu0
        %v11320 = vpop.f32.mrb[0].mxu0
        %v11321 = vadd.f32 0.0, %v11320
        %v11322 = vpop.f32.mrb[0].mxu0
        %11323 = vmatprep.mubr.bf16.mxu0 0
        %11324 = vmatmul.mubr.bf16.gmra.mrb[0].mxu0 %v11162
        %v11325 = vpop.f32.mrb[0].mxu0
        %v11326 = vadd.f32 0.0, %v11325
        %v11327 = vpop.f32.mrb[0].mxu0
        %v11328 = vpop.f32.mrb[0].mxu0
        %v11329 = vadd.f32 0.0, %v11328
        %v11330 = vpop.f32.mrb[0].mxu0
        %11331 = vmatprep.mubr.bf16.mxu0 0
        %11332 = vmatmul.mubr.bf16.gmra.mrb[0].mxu0 %v11163
        %v11333 = vpop.f32.mrb[0].mxu0
        %v11334 = vadd.f32 0.0, %v11333
        %v11335 = vpop.f32.mrb[0].mxu0
        %v11336 = vpop.f32.mrb[0].mxu0
        %v11337 = vadd.f32 0.0, %v11336
        %v11338 = vpop.f32.mrb[0].mxu0
        %11339 = vmatprep.mubr.bf16.mxu0 0
        %11340 = vmatmul.mubr.bf16.gmra.mrb[0].mxu0 %v11164
        %v11341 = vpop.f32.mrb[0].mxu0
        %v11342 = vadd.f32 0.0, %v11341
        %v11343 = vpop.f32.mrb[0].mxu0
        %v11344 = vpop.f32.mrb[0].mxu0
        %v11345 = vadd.f32 0.0, %v11344
        %v11346 = vpop.f32.mrb[0].mxu0
        %11347 = vmatprep.mubr.bf16.mxu0 0
        %11348 = vmatmul.mubr.bf16.gmra.mrb[0].mxu0 %v11165
        %v11349 = vpop.f32.mrb[0].mxu0
        %v11350 = vadd.f32 0.0, %v11349
        %v11351 = vpop.f32.mrb[0].mxu0
        %v11352 = vpop.f32.mrb[0].mxu0
        %v11353 = vadd.f32 0.0, %v11352
        %v11354 = vpop.f32.mrb[0].mxu0
        %11355 = vmatprep.mubr.bf16.mxu0 0
        %11356 = vmatmul.mubr.bf16.gmra.mrb[0].mxu0 %v11166
        %v11357 = vpop.f32.mrb[0].mxu0
        %v11358 = vadd.f32 0.0, %v11357
        %v11359 = vpop.f32.mrb[0].mxu0
        %v11360 = vpop.f32.mrb[0].mxu0
        %v11361 = vadd.f32 0.0, %v11360
        %v11362 = vpop.f32.mrb[0].mxu0
        %11363 = vmatprep.mubr.bf16.mxu0 0
        %11364 = vmatmul.mubr.bf16.gmra.mrb[0].mxu0 %v11167
        %v11365 = vpop.f32.mrb[0].mxu0
        %v11366 = vadd.f32 0.0, %v11365
        %v11367 = vpop.f32.mrb[0].mxu0
        %v11368 = vpop.f32.mrb[0].mxu0
        %v11369 = vadd.f32 0.0, %v11368
        %v11370 = vpop.f32.mrb[0].mxu0
        %11371 = vmatprep.mubr.bf16.mxu0 0
        %11372 = vmatmul.mubr.bf16.gmra.mrb[0].mxu0 %v11168
        %v11373 = vpop.f32.mrb[0].mxu0
        %v11374 = vadd.f32 0.0, %v11373
        %v11375 = vpop.f32.mrb[0].mxu0
        %v11376 = vpop.f32.mrb[0].mxu0
        %v11377 = vadd.f32 0.0, %v11376
        %v11378 = vpop.f32.mrb[0].mxu0
        %11379 = vmatprep.mubr.bf16.mxu0 0
        %11380 = vmatmul.mubr.bf16.gmra.mrb[0].mxu0 %v11169
        %v11381 = vpop.f32.mrb[0].mxu0
        %v11382 = vadd.f32 0.0, %v11381
        %v11383 = vpop.f32.mrb[0].mxu0
        %v11384 = vpop.f32.mrb[0].mxu0
        %v11385 = vadd.f32 0.0, %v11384
        %v11386 = vpop.f32.mrb[0].mxu0
        %11387 = vmatprep.mubr.bf16.mxu0 0
        %11388 = vmatmul.mubr.bf16.gmra.mrb[0].mxu0 %v11170
        %v11389 = vpop.f32.mrb[0].mxu0
        %v11390 = vadd.f32 0.0, %v11389
        %v11391 = vpop.f32.mrb[0].mxu0
        %v11392 = vpop.f32.mrb[0].mxu0
        %v11393 = vadd.f32 0.0, %v11392
        %v11394 = vpop.f32.mrb[0].mxu0
        %11395 = vdwg.mxu0
        %v11396 = vadd.f32 %v10641, %v11270
        %v11397 = vadd.f32 %v10642, %v11273
        %v11398 = vadd.f32 %v10643, %v11278
        %v11399 = vadd.f32 %v10644, %v11281
        %v11400 = vadd.f32 %v10645, %v11286
        %v11401 = vadd.f32 %v10646, %v11289
        %v11402 = vadd.f32 %v10647, %v11294
        %v11403 = vadd.f32 %v10648, %v11297
        %v11404 = vadd.f32 %v10649, %v11302
        %v11405 = vadd.f32 %v10650, %v11305
        %v11406 = vadd.f32 %v10651, %v11310
        %v11407 = vadd.f32 %v10652, %v11313
        %v11408 = vadd.f32 %v10653, %v11318
        %v11409 = vadd.f32 %v10654, %v11321
        %v11410 = vadd.f32 %v10655, %v11326
        %v11411 = vadd.f32 %v10656, %v11329
        %v11412 = vadd.f32 %v10657, %v11334
        %v11413 = vadd.f32 %v10658, %v11337
        %v11414 = vadd.f32 %v10659, %v11342
        %v11415 = vadd.f32 %v10660, %v11345
        %v11416 = vadd.f32 %v10661, %v11350
        %v11417 = vadd.f32 %v10662, %v11353
        %v11418 = vadd.f32 %v10663, %v11358
        %v11419 = vadd.f32 %v10664, %v11361
        %v11420 = vadd.f32 %v10665, %v11366
        %v11421 = vadd.f32 %v10666, %v11369
        %v11422 = vadd.f32 %v10667, %v11374
        %v11423 = vadd.f32 %v10668, %v11377
        %v11424 = vadd.f32 %v10669, %v11382
        %v11425 = vadd.f32 %v10670, %v11385
        %v11426 = vadd.f32 %v10671, %v11390
        %v11427 = vadd.f32 %v10672, %v11393
        %v11428 = vld [vmem:[%s10673] sm:$0xe]
        %v11429 = vld [vmem:[%s10673 + $0xc] sm:$0xe]
        %v11430 = vld [vmem:[%s10673 + $0x18] sm:$0xe]
        %v11431 = vld [vmem:[%s10673 + $0x24] sm:$0xe]
        %v11432 = vld [vmem:[%s10673 + $0x30] sm:$0xe]
        %v11433 = vld [vmem:[%s10673 + $0x3c] sm:$0xe]
        %v11434 = vld [vmem:[%s10673 + $0x48] sm:$0xe]
        %v11435 = vld [vmem:[%s10673 + $0x54] sm:$0xe]
        %v11436 = vld [vmem:[%s10673 + $0x60] sm:$0xe]
        %v11437 = vld [vmem:[%s10673 + $0x6c] sm:$0xe]
        %v11438 = vld [vmem:[%s10673 + $0x78] sm:$0xe]
        %v11439 = vld [vmem:[%s10673 + $0x84] sm:$0xe]
        %v11440 = vld [vmem:[%s10673 + $0x90] sm:$0xe]
        %v11441 = vld [vmem:[%s10673 + $0x9c] sm:$0xe]
        %v11442 = vld [vmem:[%s10673 + $0xa8] sm:$0xe]
        %v11443 = vld [vmem:[%s10673 + $0xb4] sm:$0xe]
        %v11492 = vrot.slane %v11428, 5
        %v11493 = vrot.slane %v11492, 4
        %v11494 = vrot.slane %v10675, 5
        %v11495 = vsel %vm1137, %v11493, %v11494
        %v11496 = vrot.slane %v11494, 4
        %v11497 = vrot.slane %v10676, 5
        %v11498 = vsel %vm1137, %v11496, %v11497
        %v11499 = vrot.slane %v11429, 5
        %v11500 = vrot.slane %v11499, 4
        %v11501 = vrot.slane %v10678, 5
        %v11502 = vsel %vm1137, %v11500, %v11501
        %v11503 = vrot.slane %v11501, 4
        %v11504 = vrot.slane %v10679, 5
        %v11505 = vsel %vm1137, %v11503, %v11504
        %v11506 = vrot.slane %v11430, 5
        %v11507 = vrot.slane %v11506, 4
        %v11508 = vrot.slane %v10681, 5
        %v11509 = vsel %vm1137, %v11507, %v11508
        %v11510 = vrot.slane %v11508, 4
        %v11511 = vrot.slane %v10682, 5
        %v11512 = vsel %vm1137, %v11510, %v11511
        %v11513 = vrot.slane %v11431, 5
        %v11514 = vrot.slane %v11513, 4
        %v11515 = vrot.slane %v10684, 5
        %v11516 = vsel %vm1137, %v11514, %v11515
        %v11517 = vrot.slane %v11515, 4
        %v11518 = vrot.slane %v10685, 5
        %v11519 = vsel %vm1137, %v11517, %v11518
        %v11520 = vrot.slane %v11432, 5
        %v11521 = vrot.slane %v11520, 4
        %v11522 = vrot.slane %v10687, 5
        %v11523 = vsel %vm1137, %v11521, %v11522
        %v11524 = vrot.slane %v11522, 4
        %v11525 = vrot.slane %v10688, 5
        %v11526 = vsel %vm1137, %v11524, %v11525
        %v11527 = vrot.slane %v11433, 5
        %v11528 = vrot.slane %v11527, 4
        %v11529 = vrot.slane %v10690, 5
        %v11530 = vsel %vm1137, %v11528, %v11529
        %v11531 = vrot.slane %v11529, 4
        %v11532 = vrot.slane %v10691, 5
        %v11533 = vsel %vm1137, %v11531, %v11532
        %v11534 = vrot.slane %v11434, 5
        %v11535 = vrot.slane %v11534, 4
        %v11536 = vrot.slane %v10693, 5
        %v11537 = vsel %vm1137, %v11535, %v11536
        %v11538 = vrot.slane %v11536, 4
        %v11539 = vrot.slane %v10694, 5
        %v11540 = vsel %vm1137, %v11538, %v11539
        %v11541 = vrot.slane %v11435, 5
        %v11542 = vrot.slane %v11541, 4
        %v11543 = vrot.slane %v10696, 5
        %v11544 = vsel %vm1137, %v11542, %v11543
        %v11545 = vrot.slane %v11543, 4
        %v11546 = vrot.slane %v10697, 5
        %v11547 = vsel %vm1137, %v11545, %v11546
        %v11548 = vrot.slane %v11436, 5
        %v11549 = vrot.slane %v11548, 4
        %v11550 = vrot.slane %v10699, 5
        %v11551 = vsel %vm1137, %v11549, %v11550
        %v11552 = vrot.slane %v11550, 4
        %v11553 = vrot.slane %v10700, 5
        %v11554 = vsel %vm1137, %v11552, %v11553
        %v11555 = vrot.slane %v11437, 5
        %v11556 = vrot.slane %v11555, 4
        %v11557 = vrot.slane %v10702, 5
        %v11558 = vsel %vm1137, %v11556, %v11557
        %v11559 = vrot.slane %v11557, 4
        %v11560 = vrot.slane %v10703, 5
        %v11561 = vsel %vm1137, %v11559, %v11560
        %v11562 = vrot.slane %v11438, 5
        %v11563 = vrot.slane %v11562, 4
        %v11564 = vrot.slane %v10705, 5
        %v11565 = vsel %vm1137, %v11563, %v11564
        %v11566 = vrot.slane %v11564, 4
        %v11567 = vrot.slane %v10706, 5
        %v11568 = vsel %vm1137, %v11566, %v11567
        %v11569 = vrot.slane %v11439, 5
        %v11570 = vrot.slane %v11569, 4
        %v11571 = vrot.slane %v10708, 5
        %v11572 = vsel %vm1137, %v11570, %v11571
        %v11573 = vrot.slane %v11571, 4
        %v11574 = vrot.slane %v10709, 5
        %v11575 = vsel %vm1137, %v11573, %v11574
        %v11576 = vrot.slane %v11440, 5
        %v11577 = vrot.slane %v11576, 4
        %v11578 = vrot.slane %v10711, 5
        %v11579 = vsel %vm1137, %v11577, %v11578
        %v11580 = vrot.slane %v11578, 4
        %v11581 = vrot.slane %v10712, 5
        %v11582 = vsel %vm1137, %v11580, %v11581
        %v11583 = vrot.slane %v11441, 5
        %v11584 = vrot.slane %v11583, 4
        %v11585 = vrot.slane %v10714, 5
        %v11586 = vsel %vm1137, %v11584, %v11585
        %v11587 = vrot.slane %v11585, 4
        %v11588 = vrot.slane %v10715, 5
        %v11589 = vsel %vm1137, %v11587, %v11588
        %v11590 = vrot.slane %v11442, 5
        %v11591 = vrot.slane %v11590, 4
        %v11592 = vrot.slane %v10717, 5
        %v11593 = vsel %vm1137, %v11591, %v11592
        %v11594 = vrot.slane %v11592, 4
        %v11595 = vrot.slane %v10718, 5
        %v11596 = vsel %vm1137, %v11594, %v11595
        %v11597 = vrot.slane %v11443, 5
        %v11598 = vrot.slane %v11597, 4
        %v11599 = vrot.slane %v10720, 5
        %v11600 = vsel %vm1137, %v11598, %v11599
        %v11601 = vrot.slane %v11599, 4
        %v11602 = vrot.slane %v10721, 5
        %v11603 = vsel %vm1137, %v11601, %v11602
        %s11604 = scalar_lea.vmem [#allocation9], 448
        %v11605 = vld [vmem:[%s11604] sm:$0xf]
        %v11606 = vld [vmem:[%s11604 + $0x4] sm:$0xf]
        %v11607 = vld [vmem:[%s11604 + $0x8] sm:$0xf]
        %v11608 = vld [vmem:[%s11604 + $0xc] sm:$0xf]
        %v11609 = vld [vmem:[%s11604 + $0x10] sm:$0xf]
        %v11610 = vld [vmem:[%s11604 + $0x14] sm:$0xf]
        %v11611 = vld [vmem:[%s11604 + $0x18] sm:$0xf]
        %v11612 = vld [vmem:[%s11604 + $0x1c] sm:$0xf]
        %v11613 = vld [vmem:[%s11604 + $0x20] sm:$0xf]
        %v11614 = vld [vmem:[%s11604 + $0x24] sm:$0xf]
        %v11615 = vld [vmem:[%s11604 + $0x28] sm:$0xf]
        %v11616 = vld [vmem:[%s11604 + $0x2c] sm:$0xf]
        %v11617 = vld [vmem:[%s11604 + $0x30] sm:$0xf]
        %v11618 = vld [vmem:[%s11604 + $0x34] sm:$0xf]
        %v11619 = vld [vmem:[%s11604 + $0x38] sm:$0xf]
        %v11620 = vld [vmem:[%s11604 + $0x3c] sm:$0xf]
        %v11621 = vunpack.c.l.b16 %v11495
        %v11622 = vunpack.c.l.b16 %v11498
        %v11623 = vunpack.c.l.b16 %v11502
        %v11624 = vunpack.c.l.b16 %v11505
        %v11625 = vunpack.c.l.b16 %v11509
        %v11626 = vunpack.c.l.b16 %v11512
        %v11627 = vunpack.c.l.b16 %v11516
        %v11628 = vunpack.c.l.b16 %v11519
        %v11629 = vunpack.c.l.b16 %v11523
        %v11630 = vunpack.c.l.b16 %v11526
        %v11631 = vunpack.c.l.b16 %v11530
        %v11632 = vunpack.c.l.b16 %v11533
        %v11633 = vunpack.c.l.b16 %v11537
        %v11634 = vunpack.c.l.b16 %v11540
        %v11635 = vunpack.c.l.b16 %v11544
        %v11636 = vunpack.c.l.b16 %v11547
        %v11637 = vunpack.c.l.b16 %v11551
        %v11638 = vunpack.c.l.b16 %v11554
        %v11639 = vunpack.c.l.b16 %v11558
        %v11640 = vunpack.c.l.b16 %v11561
        %v11641 = vunpack.c.l.b16 %v11565
        %v11642 = vunpack.c.l.b16 %v11568
        %v11643 = vunpack.c.l.b16 %v11572
        %v11644 = vunpack.c.l.b16 %v11575
        %v11645 = vunpack.c.l.b16 %v11579
        %v11646 = vunpack.c.l.b16 %v11582
        %v11647 = vunpack.c.l.b16 %v11586
        %v11648 = vunpack.c.l.b16 %v11589
        %v11649 = vunpack.c.l.b16 %v11593
        %v11650 = vunpack.c.l.b16 %v11596
        %v11651 = vunpack.c.l.b16 %v11600
        %v11652 = vunpack.c.l.b16 %v11603
        %v11653 = vpack.c.b16 %v11622, %v11621
        %v11654 = vpack.c.b16 %v11624, %v11623
        %v11655 = vpack.c.b16 %v11626, %v11625
        %v11656 = vpack.c.b16 %v11628, %v11627
        %v11657 = vpack.c.b16 %v11630, %v11629
        %v11658 = vpack.c.b16 %v11632, %v11631
        %v11659 = vpack.c.b16 %v11634, %v11633
        %v11660 = vpack.c.b16 %v11636, %v11635
        %v11661 = vpack.c.b16 %v11638, %v11637
        %v11662 = vpack.c.b16 %v11640, %v11639
        %v11663 = vpack.c.b16 %v11642, %v11641
        %v11664 = vpack.c.b16 %v11644, %v11643
        %v11665 = vpack.c.b16 %v11646, %v11645
        %v11666 = vpack.c.b16 %v11648, %v11647
        %v11667 = vpack.c.b16 %v11650, %v11649
        %v11668 = vpack.c.b16 %v11652, %v11651
        %v11701 = vunpack.c.l.b16 %v11605
        %v11702 = vunpack.c.l.b16 %v11606
        %v11703 = vunpack.c.l.b16 %v11607
        %v11704 = vunpack.c.l.b16 %v11608
        %v11705 = vunpack.c.l.b16 %v11609
        %v11706 = vunpack.c.l.b16 %v11610
        %v11707 = vunpack.c.l.b16 %v11611
        %v11708 = vunpack.c.l.b16 %v11612
        %v11709 = vunpack.c.l.b16 %v11613
        %v11710 = vunpack.c.l.b16 %v11614
        %v11711 = vunpack.c.l.b16 %v11615
        %v11712 = vunpack.c.l.b16 %v11616
        %v11713 = vunpack.c.l.b16 %v11617
        %v11714 = vunpack.c.l.b16 %v11618
        %v11715 = vunpack.c.l.b16 %v11619
        %v11716 = vunpack.c.l.b16 %v11620
        %v11717 = vpack.c.b16 %v11702, %v11701
        %v11718 = vpack.c.b16 %v11704, %v11703
        %v11719 = vpack.c.b16 %v11706, %v11705
        %v11720 = vpack.c.b16 %v11708, %v11707
        %v11721 = vpack.c.b16 %v11710, %v11709
        %v11722 = vpack.c.b16 %v11712, %v11711
        %v11723 = vpack.c.b16 %v11714, %v11713
        %v11724 = vpack.c.b16 %v11716, %v11715
        %11733 = vmatprep.subr.bf16.mxu0 0
        %11734 = vmatpush1.bf16.msra.mxu0 %v11717
        %11735 = vmatprep.subr.bf16.mxu0 0
        %11736 = vmatpush1.bf16.msra.mxu0 %v11718
        %11737 = vmatprep.subr.bf16.mxu0 0
        %11738 = vmatpush1.bf16.msra.mxu0 %v11719
        %11739 = vmatprep.subr.bf16.mxu0 0
        %11740 = vmatpush1.bf16.msra.mxu0 %v11720
        %11741 = vmatprep.subr.bf16.mxu0 0
        %11742 = vmatpush1.bf16.msra.mxu0 %v11721
        %11743 = vmatprep.subr.bf16.mxu0 0
        %11744 = vmatpush1.bf16.msra.mxu0 %v11722
        %11745 = vmatprep.subr.bf16.mxu0 0
        %11746 = vmatpush1.bf16.msra.mxu0 %v11723
        %11747 = vmatprep.subr.bf16.mxu0 0
        %11748 = vmatpush1.bf16.msra.mxu0 %v11724
        %11749 = vmatprep.subr.bf16.mxu0 0
        %11750 = vmatpush1.bf16.msra.mxu0 0
        %11751 = vmatprep.subr.bf16.mxu0 0
        %11752 = vmatpush1.bf16.msra.mxu0 0
        %11753 = vmatprep.subr.bf16.mxu0 0
        %11754 = vmatpush1.bf16.msra.mxu0 0
        %11755 = vmatprep.subr.bf16.mxu0 0
        %11756 = vmatpush1.bf16.msra.mxu0 0
        %11757 = vmatprep.subr.bf16.mxu0 0
        %11758 = vmatpush1.bf16.msra.mxu0 0
        %11759 = vmatprep.subr.bf16.mxu0 0
        %11760 = vmatpush1.bf16.msra.mxu0 0
        %11761 = vmatprep.subr.bf16.mxu0 0
        %11762 = vmatpush1.bf16.msra.mxu0 0
        %11763 = vmatprep.subr.bf16.mxu0 0
        %11764 = vmatpush1.bf16.msra.mxu0 0
        %11765 = vmatprep.mubr.bf16.mxu0 0
        %11766 = vmatmul.mubr.bf16.gmra.mrb[0].mxu0 %v11653
        %v11767 = vpop.f32.mrb[0].mxu0
        %v11768 = vadd.f32 0.0, %v11767
        %v11769 = vpop.f32.mrb[0].mxu0
        %v11770 = vpop.f32.mrb[0].mxu0
        %v11771 = vadd.f32 0.0, %v11770
        %v11772 = vpop.f32.mrb[0].mxu0
        %11773 = vmatprep.mubr.bf16.mxu0 0
        %11774 = vmatmul.mubr.bf16.gmra.mrb[0].mxu0 %v11654
        %v11775 = vpop.f32.mrb[0].mxu0
        %v11776 = vadd.f32 0.0, %v11775
        %v11777 = vpop.f32.mrb[0].mxu0
        %v11778 = vpop.f32.mrb[0].mxu0
        %v11779 = vadd.f32 0.0, %v11778
        %v11780 = vpop.f32.mrb[0].mxu0
        %11781 = vmatprep.mubr.bf16.mxu0 0
        %11782 = vmatmul.mubr.bf16.gmra.mrb[0].mxu0 %v11655
        %v11783 = vpop.f32.mrb[0].mxu0
        %v11784 = vadd.f32 0.0, %v11783
        %v11785 = vpop.f32.mrb[0].mxu0
        %v11786 = vpop.f32.mrb[0].mxu0
        %v11787 = vadd.f32 0.0, %v11786
        %v11788 = vpop.f32.mrb[0].mxu0
        %11789 = vmatprep.mubr.bf16.mxu0 0
        %11790 = vmatmul.mubr.bf16.gmra.mrb[0].mxu0 %v11656
        %v11791 = vpop.f32.mrb[0].mxu0
        %v11792 = vadd.f32 0.0, %v11791
        %v11793 = vpop.f32.mrb[0].mxu0
        %v11794 = vpop.f32.mrb[0].mxu0
        %v11795 = vadd.f32 0.0, %v11794
        %v11796 = vpop.f32.mrb[0].mxu0
        %11797 = vmatprep.mubr.bf16.mxu0 0
        %11798 = vmatmul.mubr.bf16.gmra.mrb[0].mxu0 %v11657
        %v11799 = vpop.f32.mrb[0].mxu0
        %v11800 = vadd.f32 0.0, %v11799
        %v11801 = vpop.f32.mrb[0].mxu0
        %v11802 = vpop.f32.mrb[0].mxu0
        %v11803 = vadd.f32 0.0, %v11802
        %v11804 = vpop.f32.mrb[0].mxu0
        %11805 = vmatprep.mubr.bf16.mxu0 0
        %11806 = vmatmul.mubr.bf16.gmra.mrb[0].mxu0 %v11658
        %v11807 = vpop.f32.mrb[0].mxu0
        %v11808 = vadd.f32 0.0, %v11807
        %v11809 = vpop.f32.mrb[0].mxu0
        %v11810 = vpop.f32.mrb[0].mxu0
        %v11811 = vadd.f32 0.0, %v11810
        %v11812 = vpop.f32.mrb[0].mxu0
        %11813 = vmatprep.mubr.bf16.mxu0 0
        %11814 = vmatmul.mubr.bf16.gmra.mrb[0].mxu0 %v11659
        %v11815 = vpop.f32.mrb[0].mxu0
        %v11816 = vadd.f32 0.0, %v11815
        %v11817 = vpop.f32.mrb[0].mxu0
        %v11818 = vpop.f32.mrb[0].mxu0
        %v11819 = vadd.f32 0.0, %v11818
        %v11820 = vpop.f32.mrb[0].mxu0
        %11821 = vmatprep.mubr.bf16.mxu0 0
        %11822 = vmatmul.mubr.bf16.gmra.mrb[0].mxu0 %v11660
        %v11823 = vpop.f32.mrb[0].mxu0
        %v11824 = vadd.f32 0.0, %v11823
        %v11825 = vpop.f32.mrb[0].mxu0
        %v11826 = vpop.f32.mrb[0].mxu0
        %v11827 = vadd.f32 0.0, %v11826
        %v11828 = vpop.f32.mrb[0].mxu0
        %11829 = vmatprep.mubr.bf16.mxu0 0
        %11830 = vmatmul.mubr.bf16.gmra.mrb[0].mxu0 %v11661
        %v11831 = vpop.f32.mrb[0].mxu0
        %v11832 = vadd.f32 0.0, %v11831
        %v11833 = vpop.f32.mrb[0].mxu0
        %v11834 = vpop.f32.mrb[0].mxu0
        %v11835 = vadd.f32 0.0, %v11834
        %v11836 = vpop.f32.mrb[0].mxu0
        %11837 = vmatprep.mubr.bf16.mxu0 0
        %11838 = vmatmul.mubr.bf16.gmra.mrb[0].mxu0 %v11662
        %v11839 = vpop.f32.mrb[0].mxu0
        %v11840 = vadd.f32 0.0, %v11839
        %v11841 = vpop.f32.mrb[0].mxu0
        %v11842 = vpop.f32.mrb[0].mxu0
        %v11843 = vadd.f32 0.0, %v11842
        %v11844 = vpop.f32.mrb[0].mxu0
        %11845 = vmatprep.mubr.bf16.mxu0 0
        %11846 = vmatmul.mubr.bf16.gmra.mrb[0].mxu0 %v11663
        %v11847 = vpop.f32.mrb[0].mxu0
        %v11848 = vadd.f32 0.0, %v11847
        %v11849 = vpop.f32.mrb[0].mxu0
        %v11850 = vpop.f32.mrb[0].mxu0
        %v11851 = vadd.f32 0.0, %v11850
        %v11852 = vpop.f32.mrb[0].mxu0
        %11853 = vmatprep.mubr.bf16.mxu0 0
        %11854 = vmatmul.mubr.bf16.gmra.mrb[0].mxu0 %v11664
        %v11855 = vpop.f32.mrb[0].mxu0
        %v11856 = vadd.f32 0.0, %v11855
        %v11857 = vpop.f32.mrb[0].mxu0
        %v11858 = vpop.f32.mrb[0].mxu0
        %v11859 = vadd.f32 0.0, %v11858
        %v11860 = vpop.f32.mrb[0].mxu0
        %11861 = vmatprep.mubr.bf16.mxu0 0
        %11862 = vmatmul.mubr.bf16.gmra.mrb[0].mxu0 %v11665
        %v11863 = vpop.f32.mrb[0].mxu0
        %v11864 = vadd.f32 0.0, %v11863
        %v11865 = vpop.f32.mrb[0].mxu0
        %v11866 = vpop.f32.mrb[0].mxu0
        %v11867 = vadd.f32 0.0, %v11866
        %v11868 = vpop.f32.mrb[0].mxu0
        %11869 = vmatprep.mubr.bf16.mxu0 0
        %11870 = vmatmul.mubr.bf16.gmra.mrb[0].mxu0 %v11666
        %v11871 = vpop.f32.mrb[0].mxu0
        %v11872 = vadd.f32 0.0, %v11871
        %v11873 = vpop.f32.mrb[0].mxu0
        %v11874 = vpop.f32.mrb[0].mxu0
        %v11875 = vadd.f32 0.0, %v11874
        %v11876 = vpop.f32.mrb[0].mxu0
        %11877 = vmatprep.mubr.bf16.mxu0 0
        %11878 = vmatmul.mubr.bf16.gmra.mrb[0].mxu0 %v11667
        %v11879 = vpop.f32.mrb[0].mxu0
        %v11880 = vadd.f32 0.0, %v11879
        %v11881 = vpop.f32.mrb[0].mxu0
        %v11882 = vpop.f32.mrb[0].mxu0
        %v11883 = vadd.f32 0.0, %v11882
        %v11884 = vpop.f32.mrb[0].mxu0
        %11885 = vmatprep.mubr.bf16.mxu0 0
        %11886 = vmatmul.mubr.bf16.gmra.mrb[0].mxu0 %v11668
        %v11887 = vpop.f32.mrb[0].mxu0
        %v11888 = vadd.f32 0.0, %v11887
        %v11889 = vpop.f32.mrb[0].mxu0
        %v11890 = vpop.f32.mrb[0].mxu0
        %v11891 = vadd.f32 0.0, %v11890
        %v11892 = vpop.f32.mrb[0].mxu0
        %11893 = vdwg.mxu0
        %v11894 = vadd.f32 %v11396, %v11768
        %v11895 = vadd.f32 %v11397, %v11771
        %v11896 = vadd.f32 %v11398, %v11776
        %v11897 = vadd.f32 %v11399, %v11779
        %v11898 = vadd.f32 %v11400, %v11784
        %v11899 = vadd.f32 %v11401, %v11787
        %v11900 = vadd.f32 %v11402, %v11792
        %v11901 = vadd.f32 %v11403, %v11795
        %v11902 = vadd.f32 %v11404, %v11800
        %v11903 = vadd.f32 %v11405, %v11803
        %v11904 = vadd.f32 %v11406, %v11808
        %v11905 = vadd.f32 %v11407, %v11811
        %v11906 = vadd.f32 %v11408, %v11816
        %v11907 = vadd.f32 %v11409, %v11819
        %v11908 = vadd.f32 %v11410, %v11824
        %v11909 = vadd.f32 %v11411, %v11827
        %v11910 = vadd.f32 %v11412, %v11832
        %v11911 = vadd.f32 %v11413, %v11835
        %v11912 = vadd.f32 %v11414, %v11840
        %v11913 = vadd.f32 %v11415, %v11843
        %v11914 = vadd.f32 %v11416, %v11848
        %v11915 = vadd.f32 %v11417, %v11851
        %v11916 = vadd.f32 %v11418, %v11856
        %v11917 = vadd.f32 %v11419, %v11859
        %v11918 = vadd.f32 %v11420, %v11864
        %v11919 = vadd.f32 %v11421, %v11867
        %v11920 = vadd.f32 %v11422, %v11872
        %v11921 = vadd.f32 %v11423, %v11875
        %v11922 = vadd.f32 %v11424, %v11880
        %v11923 = vadd.f32 %v11425, %v11883
        %v11924 = vadd.f32 %v11426, %v11888
        %v11925 = vadd.f32 %v11427, %v11891
        %v11926 = vld [vmem:[%s10673 + $0x8] sm:$0x3]
        %v11927 = vld [vmem:[%s10673 + $0x14] sm:$0x3]
        %v11928 = vld [vmem:[%s10673 + $0x20] sm:$0x3]
        %v11929 = vld [vmem:[%s10673 + $0x2c] sm:$0x3]
        %v11930 = vld [vmem:[%s10673 + $0x38] sm:$0x3]
        %v11931 = vld [vmem:[%s10673 + $0x44] sm:$0x3]
        %v11932 = vld [vmem:[%s10673 + $0x50] sm:$0x3]
        %v11933 = vld [vmem:[%s10673 + $0x5c] sm:$0x3]
        %v11934 = vld [vmem:[%s10673 + $0x68] sm:$0x3]
        %v11935 = vld [vmem:[%s10673 + $0x74] sm:$0x3]
        %v11936 = vld [vmem:[%s10673 + $0x80] sm:$0x3]
        %v11937 = vld [vmem:[%s10673 + $0x8c] sm:$0x3]
        %v11938 = vld [vmem:[%s10673 + $0x98] sm:$0x3]
        %v11939 = vld [vmem:[%s10673 + $0xa4] sm:$0x3]
        %v11940 = vld [vmem:[%s10673 + $0xb0] sm:$0x3]
        %v11941 = vld [vmem:[%s10673 + $0xbc] sm:$0x3]
        %v11943 = vshrl.u32 %v11428, 16
        %v11945 = vrot.slane %v11943, 5
        %v11946 = vshll.u32 %v11428, 16
        %v11948 = vrot.slane %v11946, 6
        %v11949 = vor.u32 %v11945, %v11948
        %v11950 = vrot.slane %v11949, 4
        %v11951 = vrot.slane %v10736, 5
        %v11952 = vrot.slane %v10732, 6
        %v11953 = vor.u32 %v11951, %v11952
        %v11954 = vsel %vm1831, %v11950, %v11953
        %v11955 = vrot.slane %v11953, 4
        %v11957 = vshrl.u32 %v11926, 16
        %v11959 = vrot.slane %v11957, 5
        %v11960 = vshll.u32 %v11926, 16
        %v11962 = vrot.slane %v11960, 6
        %v11963 = vor.u32 %v11959, %v11962
        %v11964 = vsel %vm1831, %v11955, %v11963
        %v11966 = vshrl.u32 %v11429, 16
        %v11968 = vrot.slane %v11966, 5
        %v11969 = vshll.u32 %v11429, 16
        %v11971 = vrot.slane %v11969, 6
        %v11972 = vor.u32 %v11968, %v11971
        %v11973 = vrot.slane %v11972, 4
        %v11974 = vrot.slane %v10760, 5
        %v11975 = vrot.slane %v10756, 6
        %v11976 = vor.u32 %v11974, %v11975
        %v11977 = vsel %vm1831, %v11973, %v11976
        %v11978 = vrot.slane %v11976, 4
        %v11980 = vshrl.u32 %v11927, 16
        %v11982 = vrot.slane %v11980, 5
        %v11983 = vshll.u32 %v11927, 16
        %v11985 = vrot.slane %v11983, 6
        %v11986 = vor.u32 %v11982, %v11985
        %v11987 = vsel %vm1831, %v11978, %v11986
        %v11989 = vshrl.u32 %v11430, 16
        %v11991 = vrot.slane %v11989, 5
        %v11992 = vshll.u32 %v11430, 16
        %v11994 = vrot.slane %v11992, 6
        %v11995 = vor.u32 %v11991, %v11994
        %v11996 = vrot.slane %v11995, 4
        %v11997 = vrot.slane %v10784, 5
        %v11998 = vrot.slane %v10780, 6
        %v11999 = vor.u32 %v11997, %v11998
        %v12000 = vsel %vm1831, %v11996, %v11999
        %v12001 = vrot.slane %v11999, 4
        %v12003 = vshrl.u32 %v11928, 16
        %v12005 = vrot.slane %v12003, 5
        %v12006 = vshll.u32 %v11928, 16
        %v12008 = vrot.slane %v12006, 6
        %v12009 = vor.u32 %v12005, %v12008
        %v12010 = vsel %vm1831, %v12001, %v12009
        %v12012 = vshrl.u32 %v11431, 16
        %v12014 = vrot.slane %v12012, 5
        %v12015 = vshll.u32 %v11431, 16
        %v12017 = vrot.slane %v12015, 6
        %v12018 = vor.u32 %v12014, %v12017
        %v12019 = vrot.slane %v12018, 4
        %v12020 = vrot.slane %v10808, 5
        %v12021 = vrot.slane %v10804, 6
        %v12022 = vor.u32 %v12020, %v12021
        %v12023 = vsel %vm1831, %v12019, %v12022
        %v12024 = vrot.slane %v12022, 4
        %v12026 = vshrl.u32 %v11929, 16
        %v12028 = vrot.slane %v12026, 5
        %v12029 = vshll.u32 %v11929, 16
        %v12031 = vrot.slane %v12029, 6
        %v12032 = vor.u32 %v12028, %v12031
        %v12033 = vsel %vm1831, %v12024, %v12032
        %v12035 = vshrl.u32 %v11432, 16
        %v12037 = vrot.slane %v12035, 5
        %v12038 = vshll.u32 %v11432, 16
        %v12040 = vrot.slane %v12038, 6
        %v12041 = vor.u32 %v12037, %v12040
        %v12042 = vrot.slane %v12041, 4
        %v12043 = vrot.slane %v10832, 5
        %v12044 = vrot.slane %v10828, 6
        %v12045 = vor.u32 %v12043, %v12044
        %v12046 = vsel %vm1831, %v12042, %v12045
        %v12047 = vrot.slane %v12045, 4
        %v12049 = vshrl.u32 %v11930, 16
        %v12051 = vrot.slane %v12049, 5
        %v12052 = vshll.u32 %v11930, 16
        %v12054 = vrot.slane %v12052, 6
        %v12055 = vor.u32 %v12051, %v12054
        %v12056 = vsel %vm1831, %v12047, %v12055
        %v12058 = vshrl.u32 %v11433, 16
        %v12060 = vrot.slane %v12058, 5
        %v12061 = vshll.u32 %v11433, 16
        %v12063 = vrot.slane %v12061, 6
        %v12064 = vor.u32 %v12060, %v12063
        %v12065 = vrot.slane %v12064, 4
        %v12066 = vrot.slane %v10856, 5
        %v12067 = vrot.slane %v10852, 6
        %v12068 = vor.u32 %v12066, %v12067
        %v12069 = vsel %vm1831, %v12065, %v12068
        %v12070 = vrot.slane %v12068, 4
        %v12072 = vshrl.u32 %v11931, 16
        %v12074 = vrot.slane %v12072, 5
        %v12075 = vshll.u32 %v11931, 16
        %v12077 = vrot.slane %v12075, 6
        %v12078 = vor.u32 %v12074, %v12077
        %v12079 = vsel %vm1831, %v12070, %v12078
        %v12081 = vshrl.u32 %v11434, 16
        %v12083 = vrot.slane %v12081, 5
        %v12084 = vshll.u32 %v11434, 16
        %v12086 = vrot.slane %v12084, 6
        %v12087 = vor.u32 %v12083, %v12086
        %v12088 = vrot.slane %v12087, 4
        %v12089 = vrot.slane %v10880, 5
        %v12090 = vrot.slane %v10876, 6
        %v12091 = vor.u32 %v12089, %v12090
        %v12092 = vsel %vm1831, %v12088, %v12091
        %v12093 = vrot.slane %v12091, 4
        %v12095 = vshrl.u32 %v11932, 16
        %v12097 = vrot.slane %v12095, 5
        %v12098 = vshll.u32 %v11932, 16
        %v12100 = vrot.slane %v12098, 6
        %v12101 = vor.u32 %v12097, %v12100
        %v12102 = vsel %vm1831, %v12093, %v12101
        %v12104 = vshrl.u32 %v11435, 16
        %v12106 = vrot.slane %v12104, 5
        %v12107 = vshll.u32 %v11435, 16
        %v12109 = vrot.slane %v12107, 6
        %v12110 = vor.u32 %v12106, %v12109
        %v12111 = vrot.slane %v12110, 4
        %v12112 = vrot.slane %v10904, 5
        %v12113 = vrot.slane %v10900, 6
        %v12114 = vor.u32 %v12112, %v12113
        %v12115 = vsel %vm1831, %v12111, %v12114
        %v12116 = vrot.slane %v12114, 4
        %v12118 = vshrl.u32 %v11933, 16
        %v12120 = vrot.slane %v12118, 5
        %v12121 = vshll.u32 %v11933, 16
        %v12123 = vrot.slane %v12121, 6
        %v12124 = vor.u32 %v12120, %v12123
        %v12125 = vsel %vm1831, %v12116, %v12124
        %v12127 = vshrl.u32 %v11436, 16
        %v12129 = vrot.slane %v12127, 5
        %v12130 = vshll.u32 %v11436, 16
        %v12132 = vrot.slane %v12130, 6
        %v12133 = vor.u32 %v12129, %v12132
        %v12134 = vrot.slane %v12133, 4
        %v12135 = vrot.slane %v10928, 5
        %v12136 = vrot.slane %v10924, 6
        %v12137 = vor.u32 %v12135, %v12136
        %v12138 = vsel %vm1831, %v12134, %v12137
        %v12139 = vrot.slane %v12137, 4
        %v12141 = vshrl.u32 %v11934, 16
        %v12143 = vrot.slane %v12141, 5
        %v12144 = vshll.u32 %v11934, 16
        %v12146 = vrot.slane %v12144, 6
        %v12147 = vor.u32 %v12143, %v12146
        %v12148 = vsel %vm1831, %v12139, %v12147
        %v12150 = vshrl.u32 %v11437, 16
        %v12152 = vrot.slane %v12150, 5
        %v12153 = vshll.u32 %v11437, 16
        %v12155 = vrot.slane %v12153, 6
        %v12156 = vor.u32 %v12152, %v12155
        %v12157 = vrot.slane %v12156, 4
        %v12158 = vrot.slane %v10952, 5
        %v12159 = vrot.slane %v10948, 6
        %v12160 = vor.u32 %v12158, %v12159
        %v12161 = vsel %vm1831, %v12157, %v12160
        %v12162 = vrot.slane %v12160, 4
        %v12164 = vshrl.u32 %v11935, 16
        %v12166 = vrot.slane %v12164, 5
        %v12167 = vshll.u32 %v11935, 16
        %v12169 = vrot.slane %v12167, 6
        %v12170 = vor.u32 %v12166, %v12169
        %v12171 = vsel %vm1831, %v12162, %v12170
        %v12173 = vshrl.u32 %v11438, 16
        %v12175 = vrot.slane %v12173, 5
        %v12176 = vshll.u32 %v11438, 16
        %v12178 = vrot.slane %v12176, 6
        %v12179 = vor.u32 %v12175, %v12178
        %v12180 = vrot.slane %v12179, 4
        %v12181 = vrot.slane %v10976, 5
        %v12182 = vrot.slane %v10972, 6
        %v12183 = vor.u32 %v12181, %v12182
        %v12184 = vsel %vm1831, %v12180, %v12183
        %v12185 = vrot.slane %v12183, 4
        %v12187 = vshrl.u32 %v11936, 16
        %v12189 = vrot.slane %v12187, 5
        %v12190 = vshll.u32 %v11936, 16
        %v12192 = vrot.slane %v12190, 6
        %v12193 = vor.u32 %v12189, %v12192
        %v12194 = vsel %vm1831, %v12185, %v12193
        %v12196 = vshrl.u32 %v11439, 16
        %v12198 = vrot.slane %v12196, 5
        %v12199 = vshll.u32 %v11439, 16
        %v12201 = vrot.slane %v12199, 6
        %v12202 = vor.u32 %v12198, %v12201
        %v12203 = vrot.slane %v12202, 4
        %v12204 = vrot.slane %v11000, 5
        %v12205 = vrot.slane %v10996, 6
        %v12206 = vor.u32 %v12204, %v12205
        %v12207 = vsel %vm1831, %v12203, %v12206
        %v12208 = vrot.slane %v12206, 4
        %v12210 = vshrl.u32 %v11937, 16
        %v12212 = vrot.slane %v12210, 5
        %v12213 = vshll.u32 %v11937, 16
        %v12215 = vrot.slane %v12213, 6
        %v12216 = vor.u32 %v12212, %v12215
        %v12217 = vsel %vm1831, %v12208, %v12216
        %v12219 = vshrl.u32 %v11440, 16
        %v12221 = vrot.slane %v12219, 5
        %v12222 = vshll.u32 %v11440, 16
        %v12224 = vrot.slane %v12222, 6
        %v12225 = vor.u32 %v12221, %v12224
        %v12226 = vrot.slane %v12225, 4
        %v12227 = vrot.slane %v11024, 5
        %v12228 = vrot.slane %v11020, 6
        %v12229 = vor.u32 %v12227, %v12228
        %v12230 = vsel %vm1831, %v12226, %v12229
        %v12231 = vrot.slane %v12229, 4
        %v12233 = vshrl.u32 %v11938, 16
        %v12235 = vrot.slane %v12233, 5
        %v12236 = vshll.u32 %v11938, 16
        %v12238 = vrot.slane %v12236, 6
        %v12239 = vor.u32 %v12235, %v12238
        %v12240 = vsel %vm1831, %v12231, %v12239
        %v12242 = vshrl.u32 %v11441, 16
        %v12244 = vrot.slane %v12242, 5
        %v12245 = vshll.u32 %v11441, 16
        %v12247 = vrot.slane %v12245, 6
        %v12248 = vor.u32 %v12244, %v12247
        %v12249 = vrot.slane %v12248, 4
        %v12250 = vrot.slane %v11048, 5
        %v12251 = vrot.slane %v11044, 6
        %v12252 = vor.u32 %v12250, %v12251
        %v12253 = vsel %vm1831, %v12249, %v12252
        %v12254 = vrot.slane %v12252, 4
        %v12256 = vshrl.u32 %v11939, 16
        %v12258 = vrot.slane %v12256, 5
        %v12259 = vshll.u32 %v11939, 16
        %v12261 = vrot.slane %v12259, 6
        %v12262 = vor.u32 %v12258, %v12261
        %v12263 = vsel %vm1831, %v12254, %v12262
        %v12265 = vshrl.u32 %v11442, 16
        %v12267 = vrot.slane %v12265, 5
        %v12268 = vshll.u32 %v11442, 16
        %v12270 = vrot.slane %v12268, 6
        %v12271 = vor.u32 %v12267, %v12270
        %v12272 = vrot.slane %v12271, 4
        %v12273 = vrot.slane %v11072, 5
        %v12274 = vrot.slane %v11068, 6
        %v12275 = vor.u32 %v12273, %v12274
        %v12276 = vsel %vm1831, %v12272, %v12275
        %v12277 = vrot.slane %v12275, 4
        %v12279 = vshrl.u32 %v11940, 16
        %v12281 = vrot.slane %v12279, 5
        %v12282 = vshll.u32 %v11940, 16
        %v12284 = vrot.slane %v12282, 6
        %v12285 = vor.u32 %v12281, %v12284
        %v12286 = vsel %vm1831, %v12277, %v12285
        %v12288 = vshrl.u32 %v11443, 16
        %v12290 = vrot.slane %v12288, 5
        %v12291 = vshll.u32 %v11443, 16
        %v12293 = vrot.slane %v12291, 6
        %v12294 = vor.u32 %v12290, %v12293
        %v12295 = vrot.slane %v12294, 4
        %v12296 = vrot.slane %v11096, 5
        %v12297 = vrot.slane %v11092, 6
        %v12298 = vor.u32 %v12296, %v12297
        %v12299 = vsel %vm1831, %v12295, %v12298
        %v12300 = vrot.slane %v12298, 4
        %v12302 = vshrl.u32 %v11941, 16
        %v12304 = vrot.slane %v12302, 5
        %v12305 = vshll.u32 %v11941, 16
        %v12307 = vrot.slane %v12305, 6
        %v12308 = vor.u32 %v12304, %v12307
        %v12309 = vsel %vm1831, %v12300, %v12308
        %s12310 = scalar_lea.vmem [#allocation9], 512
        %v12311 = vld [vmem:[%s12310] sm:$0xf]
        %v12312 = vld [vmem:[%s12310 + $0x4] sm:$0xf]
        %v12313 = vld [vmem:[%s12310 + $0x8] sm:$0xf]
        %v12314 = vld [vmem:[%s12310 + $0xc] sm:$0xf]
        %v12315 = vld [vmem:[%s12310 + $0x10] sm:$0xf]
        %v12316 = vld [vmem:[%s12310 + $0x14] sm:$0xf]
        %v12317 = vld [vmem:[%s12310 + $0x18] sm:$0xf]
        %v12318 = vld [vmem:[%s12310 + $0x1c] sm:$0xf]
        %v12319 = vld [vmem:[%s12310 + $0x20] sm:$0xf]
        %v12320 = vld [vmem:[%s12310 + $0x24] sm:$0xf]
        %v12321 = vld [vmem:[%s12310 + $0x28] sm:$0xf]
        %v12322 = vld [vmem:[%s12310 + $0x2c] sm:$0xf]
        %v12323 = vld [vmem:[%s12310 + $0x30] sm:$0xf]
        %v12324 = vld [vmem:[%s12310 + $0x34] sm:$0xf]
        %v12325 = vld [vmem:[%s12310 + $0x38] sm:$0xf]
        %v12326 = vld [vmem:[%s12310 + $0x3c] sm:$0xf]
        %v12327 = vunpack.c.l.b16 %v11954
        %v12328 = vunpack.c.l.b16 %v11964
        %v12329 = vunpack.c.l.b16 %v11977
        %v12330 = vunpack.c.l.b16 %v11987
        %v12331 = vunpack.c.l.b16 %v12000
        %v12332 = vunpack.c.l.b16 %v12010
        %v12333 = vunpack.c.l.b16 %v12023
        %v12334 = vunpack.c.l.b16 %v12033
        %v12335 = vunpack.c.l.b16 %v12046
        %v12336 = vunpack.c.l.b16 %v12056
        %v12337 = vunpack.c.l.b16 %v12069
        %v12338 = vunpack.c.l.b16 %v12079
        %v12339 = vunpack.c.l.b16 %v12092
        %v12340 = vunpack.c.l.b16 %v12102
        %v12341 = vunpack.c.l.b16 %v12115
        %v12342 = vunpack.c.l.b16 %v12125
        %v12343 = vunpack.c.l.b16 %v12138
        %v12344 = vunpack.c.l.b16 %v12148
        %v12345 = vunpack.c.l.b16 %v12161
        %v12346 = vunpack.c.l.b16 %v12171
        %v12347 = vunpack.c.l.b16 %v12184
        %v12348 = vunpack.c.l.b16 %v12194
        %v12349 = vunpack.c.l.b16 %v12207
        %v12350 = vunpack.c.l.b16 %v12217
        %v12351 = vunpack.c.l.b16 %v12230
        %v12352 = vunpack.c.l.b16 %v12240
        %v12353 = vunpack.c.l.b16 %v12253
        %v12354 = vunpack.c.l.b16 %v12263
        %v12355 = vunpack.c.l.b16 %v12276
        %v12356 = vunpack.c.l.b16 %v12286
        %v12357 = vunpack.c.l.b16 %v12299
        %v12358 = vunpack.c.l.b16 %v12309
        %v12359 = vpack.c.b16 %v12328, %v12327
        %v12360 = vpack.c.b16 %v12330, %v12329
        %v12361 = vpack.c.b16 %v12332, %v12331
        %v12362 = vpack.c.b16 %v12334, %v12333
        %v12363 = vpack.c.b16 %v12336, %v12335
        %v12364 = vpack.c.b16 %v12338, %v12337
        %v12365 = vpack.c.b16 %v12340, %v12339
        %v12366 = vpack.c.b16 %v12342, %v12341
        %v12367 = vpack.c.b16 %v12344, %v12343
        %v12368 = vpack.c.b16 %v12346, %v12345
        %v12369 = vpack.c.b16 %v12348, %v12347
        %v12370 = vpack.c.b16 %v12350, %v12349
        %v12371 = vpack.c.b16 %v12352, %v12351
        %v12372 = vpack.c.b16 %v12354, %v12353
        %v12373 = vpack.c.b16 %v12356, %v12355
        %v12374 = vpack.c.b16 %v12358, %v12357
        %v12407 = vunpack.c.l.b16 %v12311
        %v12408 = vunpack.c.l.b16 %v12312
        %v12409 = vunpack.c.l.b16 %v12313
        %v12410 = vunpack.c.l.b16 %v12314
        %v12411 = vunpack.c.l.b16 %v12315
        %v12412 = vunpack.c.l.b16 %v12316
        %v12413 = vunpack.c.l.b16 %v12317
        %v12414 = vunpack.c.l.b16 %v12318
        %v12415 = vunpack.c.l.b16 %v12319
        %v12416 = vunpack.c.l.b16 %v12320
        %v12417 = vunpack.c.l.b16 %v12321
        %v12418 = vunpack.c.l.b16 %v12322
        %v12419 = vunpack.c.l.b16 %v12323
        %v12420 = vunpack.c.l.b16 %v12324
        %v12421 = vunpack.c.l.b16 %v12325
        %v12422 = vunpack.c.l.b16 %v12326
        %v12423 = vpack.c.b16 %v12408, %v12407
        %v12424 = vpack.c.b16 %v12410, %v12409
        %v12425 = vpack.c.b16 %v12412, %v12411
        %v12426 = vpack.c.b16 %v12414, %v12413
        %v12427 = vpack.c.b16 %v12416, %v12415
        %v12428 = vpack.c.b16 %v12418, %v12417
        %v12429 = vpack.c.b16 %v12420, %v12419
        %v12430 = vpack.c.b16 %v12422, %v12421
        %12439 = vmatprep.subr.bf16.mxu0 0
        %12440 = vmatpush1.bf16.msra.mxu0 %v12423
        %12441 = vmatprep.subr.bf16.mxu0 0
        %12442 = vmatpush1.bf16.msra.mxu0 %v12424
        %12443 = vmatprep.subr.bf16.mxu0 0
        %12444 = vmatpush1.bf16.msra.mxu0 %v12425
        %12445 = vmatprep.subr.bf16.mxu0 0
        %12446 = vmatpush1.bf16.msra.mxu0 %v12426
        %12447 = vmatprep.subr.bf16.mxu0 0
        %12448 = vmatpush1.bf16.msra.mxu0 %v12427
        %12449 = vmatprep.subr.bf16.mxu0 0
        %12450 = vmatpush1.bf16.msra.mxu0 %v12428
        %12451 = vmatprep.subr.bf16.mxu0 0
        %12452 = vmatpush1.bf16.msra.mxu0 %v12429
        %12453 = vmatprep.subr.bf16.mxu0 0
        %12454 = vmatpush1.bf16.msra.mxu0 %v12430
        %12455 = vmatprep.subr.bf16.mxu0 0
        %12456 = vmatpush1.bf16.msra.mxu0 0
        %12457 = vmatprep.subr.bf16.mxu0 0
        %12458 = vmatpush1.bf16.msra.mxu0 0
        %12459 = vmatprep.subr.bf16.mxu0 0
        %12460 = vmatpush1.bf16.msra.mxu0 0
        %12461 = vmatprep.subr.bf16.mxu0 0
        %12462 = vmatpush1.bf16.msra.mxu0 0
        %12463 = vmatprep.subr.bf16.mxu0 0
        %12464 = vmatpush1.bf16.msra.mxu0 0
        %12465 = vmatprep.subr.bf16.mxu0 0
        %12466 = vmatpush1.bf16.msra.mxu0 0
        %12467 = vmatprep.subr.bf16.mxu0 0
        %12468 = vmatpush1.bf16.msra.mxu0 0
        %12469 = vmatprep.subr.bf16.mxu0 0
        %12470 = vmatpush1.bf16.msra.mxu0 0
        %12471 = vmatprep.mubr.bf16.mxu0 0
        %12472 = vmatmul.mubr.bf16.gmra.mrb[0].mxu0 %v12359
        %v12473 = vpop.f32.mrb[0].mxu0
        %v12474 = vadd.f32 0.0, %v12473
        %v12475 = vpop.f32.mrb[0].mxu0
        %v12476 = vpop.f32.mrb[0].mxu0
        %v12477 = vadd.f32 0.0, %v12476
        %v12478 = vpop.f32.mrb[0].mxu0
        %12479 = vmatprep.mubr.bf16.mxu0 0
        %12480 = vmatmul.mubr.bf16.gmra.mrb[0].mxu0 %v12360
        %v12481 = vpop.f32.mrb[0].mxu0
        %v12482 = vadd.f32 0.0, %v12481
        %v12483 = vpop.f32.mrb[0].mxu0
        %v12484 = vpop.f32.mrb[0].mxu0
        %v12485 = vadd.f32 0.0, %v12484
        %v12486 = vpop.f32.mrb[0].mxu0
        %12487 = vmatprep.mubr.bf16.mxu0 0
        %12488 = vmatmul.mubr.bf16.gmra.mrb[0].mxu0 %v12361
        %v12489 = vpop.f32.mrb[0].mxu0
        %v12490 = vadd.f32 0.0, %v12489
        %v12491 = vpop.f32.mrb[0].mxu0
        %v12492 = vpop.f32.mrb[0].mxu0
        %v12493 = vadd.f32 0.0, %v12492
        %v12494 = vpop.f32.mrb[0].mxu0
        %12495 = vmatprep.mubr.bf16.mxu0 0
        %12496 = vmatmul.mubr.bf16.gmra.mrb[0].mxu0 %v12362
        %v12497 = vpop.f32.mrb[0].mxu0
        %v12498 = vadd.f32 0.0, %v12497
        %v12499 = vpop.f32.mrb[0].mxu0
        %v12500 = vpop.f32.mrb[0].mxu0
        %v12501 = vadd.f32 0.0, %v12500
        %v12502 = vpop.f32.mrb[0].mxu0
        %12503 = vmatprep.mubr.bf16.mxu0 0
        %12504 = vmatmul.mubr.bf16.gmra.mrb[0].mxu0 %v12363
        %v12505 = vpop.f32.mrb[0].mxu0
        %v12506 = vadd.f32 0.0, %v12505
        %v12507 = vpop.f32.mrb[0].mxu0
        %v12508 = vpop.f32.mrb[0].mxu0
        %v12509 = vadd.f32 0.0, %v12508
        %v12510 = vpop.f32.mrb[0].mxu0
        %12511 = vmatprep.mubr.bf16.mxu0 0
        %12512 = vmatmul.mubr.bf16.gmra.mrb[0].mxu0 %v12364
        %v12513 = vpop.f32.mrb[0].mxu0
        %v12514 = vadd.f32 0.0, %v12513
        %v12515 = vpop.f32.mrb[0].mxu0
        %v12516 = vpop.f32.mrb[0].mxu0
        %v12517 = vadd.f32 0.0, %v12516
        %v12518 = vpop.f32.mrb[0].mxu0
        %12519 = vmatprep.mubr.bf16.mxu0 0
        %12520 = vmatmul.mubr.bf16.gmra.mrb[0].mxu0 %v12365
        %v12521 = vpop.f32.mrb[0].mxu0
        %v12522 = vadd.f32 0.0, %v12521
        %v12523 = vpop.f32.mrb[0].mxu0
        %v12524 = vpop.f32.mrb[0].mxu0
        %v12525 = vadd.f32 0.0, %v12524
        %v12526 = vpop.f32.mrb[0].mxu0
        %12527 = vmatprep.mubr.bf16.mxu0 0
        %12528 = vmatmul.mubr.bf16.gmra.mrb[0].mxu0 %v12366
        %v12529 = vpop.f32.mrb[0].mxu0
        %v12530 = vadd.f32 0.0, %v12529
        %v12531 = vpop.f32.mrb[0].mxu0
        %v12532 = vpop.f32.mrb[0].mxu0
        %v12533 = vadd.f32 0.0, %v12532
        %v12534 = vpop.f32.mrb[0].mxu0
        %12535 = vmatprep.mubr.bf16.mxu0 0
        %12536 = vmatmul.mubr.bf16.gmra.mrb[0].mxu0 %v12367
        %v12537 = vpop.f32.mrb[0].mxu0
        %v12538 = vadd.f32 0.0, %v12537
        %v12539 = vpop.f32.mrb[0].mxu0
        %v12540 = vpop.f32.mrb[0].mxu0
        %v12541 = vadd.f32 0.0, %v12540
        %v12542 = vpop.f32.mrb[0].mxu0
        %12543 = vmatprep.mubr.bf16.mxu0 0
        %12544 = vmatmul.mubr.bf16.gmra.mrb[0].mxu0 %v12368
        %v12545 = vpop.f32.mrb[0].mxu0
        %v12546 = vadd.f32 0.0, %v12545
        %v12547 = vpop.f32.mrb[0].mxu0
        %v12548 = vpop.f32.mrb[0].mxu0
        %v12549 = vadd.f32 0.0, %v12548
        %v12550 = vpop.f32.mrb[0].mxu0
        %12551 = vmatprep.mubr.bf16.mxu0 0
        %12552 = vmatmul.mubr.bf16.gmra.mrb[0].mxu0 %v12369
        %v12553 = vpop.f32.mrb[0].mxu0
        %v12554 = vadd.f32 0.0, %v12553
        %v12555 = vpop.f32.mrb[0].mxu0
        %v12556 = vpop.f32.mrb[0].mxu0
        %v12557 = vadd.f32 0.0, %v12556
        %v12558 = vpop.f32.mrb[0].mxu0
        %12559 = vmatprep.mubr.bf16.mxu0 0
        %12560 = vmatmul.mubr.bf16.gmra.mrb[0].mxu0 %v12370
        %v12561 = vpop.f32.mrb[0].mxu0
        %v12562 = vadd.f32 0.0, %v12561
        %v12563 = vpop.f32.mrb[0].mxu0
        %v12564 = vpop.f32.mrb[0].mxu0
        %v12565 = vadd.f32 0.0, %v12564
        %v12566 = vpop.f32.mrb[0].mxu0
        %12567 = vmatprep.mubr.bf16.mxu0 0
        %12568 = vmatmul.mubr.bf16.gmra.mrb[0].mxu0 %v12371
        %v12569 = vpop.f32.mrb[0].mxu0
        %v12570 = vadd.f32 0.0, %v12569
        %v12571 = vpop.f32.mrb[0].mxu0
        %v12572 = vpop.f32.mrb[0].mxu0
        %v12573 = vadd.f32 0.0, %v12572
        %v12574 = vpop.f32.mrb[0].mxu0
        %12575 = vmatprep.mubr.bf16.mxu0 0
        %12576 = vmatmul.mubr.bf16.gmra.mrb[0].mxu0 %v12372
        %v12577 = vpop.f32.mrb[0].mxu0
        %v12578 = vadd.f32 0.0, %v12577
        %v12579 = vpop.f32.mrb[0].mxu0
        %v12580 = vpop.f32.mrb[0].mxu0
        %v12581 = vadd.f32 0.0, %v12580
        %v12582 = vpop.f32.mrb[0].mxu0
        %12583 = vmatprep.mubr.bf16.mxu0 0
        %12584 = vmatmul.mubr.bf16.gmra.mrb[0].mxu0 %v12373
        %v12585 = vpop.f32.mrb[0].mxu0
        %v12586 = vadd.f32 0.0, %v12585
        %v12587 = vpop.f32.mrb[0].mxu0
        %v12588 = vpop.f32.mrb[0].mxu0
        %v12589 = vadd.f32 0.0, %v12588
        %v12590 = vpop.f32.mrb[0].mxu0
        %12591 = vmatprep.mubr.bf16.mxu0 0
        %12592 = vmatmul.mubr.bf16.gmra.mrb[0].mxu0 %v12374
        %v12593 = vpop.f32.mrb[0].mxu0
        %v12594 = vadd.f32 0.0, %v12593
        %v12595 = vpop.f32.mrb[0].mxu0
        %v12596 = vpop.f32.mrb[0].mxu0
        %v12597 = vadd.f32 0.0, %v12596
        %v12598 = vpop.f32.mrb[0].mxu0
        %12599 = vdwg.mxu0
        %v12600 = vadd.f32 %v11894, %v12474
        %v12601 = vadd.f32 %v11895, %v12477
        %v12602 = vadd.f32 %v11896, %v12482
        %v12603 = vadd.f32 %v11897, %v12485
        %v12604 = vadd.f32 %v11898, %v12490
        %v12605 = vadd.f32 %v11899, %v12493
        %v12606 = vadd.f32 %v11900, %v12498
        %v12607 = vadd.f32 %v11901, %v12501
        %v12608 = vadd.f32 %v11902, %v12506
        %v12609 = vadd.f32 %v11903, %v12509
        %v12610 = vadd.f32 %v11904, %v12514
        %v12611 = vadd.f32 %v11905, %v12517
        %v12612 = vadd.f32 %v11906, %v12522
        %v12613 = vadd.f32 %v11907, %v12525
        %v12614 = vadd.f32 %v11908, %v12530
        %v12615 = vadd.f32 %v11909, %v12533
        %v12616 = vadd.f32 %v11910, %v12538
        %v12617 = vadd.f32 %v11911, %v12541
        %v12618 = vadd.f32 %v11912, %v12546
        %v12619 = vadd.f32 %v11913, %v12549
        %v12620 = vadd.f32 %v11914, %v12554
        %v12621 = vadd.f32 %v11915, %v12557
        %v12622 = vadd.f32 %v11916, %v12562
        %v12623 = vadd.f32 %v11917, %v12565
        %v12624 = vadd.f32 %v11918, %v12570
        %v12625 = vadd.f32 %v11919, %v12573
        %v12626 = vadd.f32 %v11920, %v12578
        %v12627 = vadd.f32 %v11921, %v12581
        %v12628 = vadd.f32 %v11922, %v12586
        %v12629 = vadd.f32 %v11923, %v12589
        %v12630 = vadd.f32 %v11924, %v12594
        %v12631 = vadd.f32 %v11925, %v12597
        %v12632 = vld [vmem:[%s4] sm:$0x1]
        %v12634 = vlaneseq
        %v12635 = vshrl.u32 %v12634, 7
        %v12636 = vsub.s32 0, %v12635
        %v12637 = vrot.slane %v12632, %v12636
        %v12639 = vadd.f32 %v12600, %v12637
        %v12640 = vadd.f32 %v12601, %v12637
        %v12641 = vadd.f32 %v12602, %v12637
        %v12642 = vadd.f32 %v12603, %v12637
        %v12643 = vadd.f32 %v12604, %v12637
        %v12644 = vadd.f32 %v12605, %v12637
        %v12645 = vadd.f32 %v12606, %v12637
        %v12646 = vadd.f32 %v12607, %v12637
        %v12647 = vadd.f32 %v12608, %v12637
        %v12648 = vadd.f32 %v12609, %v12637
        %v12649 = vadd.f32 %v12610, %v12637
        %v12650 = vadd.f32 %v12611, %v12637
        %v12651 = vadd.f32 %v12612, %v12637
        %v12652 = vadd.f32 %v12613, %v12637
        %v12653 = vadd.f32 %v12614, %v12637
        %v12654 = vadd.f32 %v12615, %v12637
        %v12655 = vadd.f32 %v12616, %v12637
        %v12656 = vadd.f32 %v12617, %v12637
        %v12657 = vadd.f32 %v12618, %v12637
        %v12658 = vadd.f32 %v12619, %v12637
        %v12659 = vadd.f32 %v12620, %v12637
        %v12660 = vadd.f32 %v12621, %v12637
        %v12661 = vadd.f32 %v12622, %v12637
        %v12662 = vadd.f32 %v12623, %v12637
        %v12663 = vadd.f32 %v12624, %v12637
        %v12664 = vadd.f32 %v12625, %v12637
        %v12665 = vadd.f32 %v12626, %v12637
        %v12666 = vadd.f32 %v12627, %v12637
        %v12667 = vadd.f32 %v12628, %v12637
        %v12668 = vadd.f32 %v12629, %v12637
        %v12669 = vadd.f32 %v12630, %v12637
        %v12670 = vadd.f32 %v12631, %v12637
        %v12671 = vadd.f32 %v12639, %v273
        %v12672 = vadd.f32 %v12640, %v274
        %v12673 = vadd.f32 %v12641, %v275
        %v12674 = vadd.f32 %v12642, %v276
        %v12675 = vadd.f32 %v12643, %v277
        %v12676 = vadd.f32 %v12644, %v278
        %v12677 = vadd.f32 %v12645, %v279
        %v12678 = vadd.f32 %v12646, %v280
        %v12679 = vadd.f32 %v12647, %v281
        %v12680 = vadd.f32 %v12648, %v282
        %v12681 = vadd.f32 %v12649, %v283
        %v12682 = vadd.f32 %v12650, %v284
        %v12683 = vadd.f32 %v12651, %v285
        %v12684 = vadd.f32 %v12652, %v286
        %v12685 = vadd.f32 %v12653, %v287
        %v12686 = vadd.f32 %v12654, %v288
        %v12687 = vadd.f32 %v12655, %v289
        %v12688 = vadd.f32 %v12656, %v290
        %v12689 = vadd.f32 %v12657, %v291
        %v12690 = vadd.f32 %v12658, %v292
        %v12691 = vadd.f32 %v12659, %v293
        %v12692 = vadd.f32 %v12660, %v294
        %v12693 = vadd.f32 %v12661, %v295
        %v12694 = vadd.f32 %v12662, %v296
        %v12695 = vadd.f32 %v12663, %v297
        %v12696 = vadd.f32 %v12664, %v298
        %v12697 = vadd.f32 %v12665, %v299
        %v12698 = vadd.f32 %v12666, %v300
        %v12699 = vadd.f32 %v12667, %v301
        %v12700 = vadd.f32 %v12668, %v302
        %v12701 = vadd.f32 %v12669, %v303
        %v12702 = vadd.f32 %v12670, %v304
        %v12703 = vmax.f32 %v12671, 0.0
        %v12704 = vmax.f32 %v12672, 0.0
        %v12705 = vmax.f32 %v12673, 0.0
        %v12706 = vmax.f32 %v12674, 0.0
        %v12707 = vmax.f32 %v12675, 0.0
        %v12708 = vmax.f32 %v12676, 0.0
        %v12709 = vmax.f32 %v12677, 0.0
        %v12710 = vmax.f32 %v12678, 0.0
        %v12711 = vmax.f32 %v12679, 0.0
        %v12712 = vmax.f32 %v12680, 0.0
        %v12713 = vmax.f32 %v12681, 0.0
        %v12714 = vmax.f32 %v12682, 0.0
        %v12715 = vmax.f32 %v12683, 0.0
        %v12716 = vmax.f32 %v12684, 0.0
        %v12717 = vmax.f32 %v12685, 0.0
        %v12718 = vmax.f32 %v12686, 0.0
        %v12719 = vmax.f32 %v12687, 0.0
        %v12720 = vmax.f32 %v12688, 0.0
        %v12721 = vmax.f32 %v12689, 0.0
        %v12722 = vmax.f32 %v12690, 0.0
        %v12723 = vmax.f32 %v12691, 0.0
        %v12724 = vmax.f32 %v12692, 0.0
        %v12725 = vmax.f32 %v12693, 0.0
        %v12726 = vmax.f32 %v12694, 0.0
        %v12727 = vmax.f32 %v12695, 0.0
        %v12728 = vmax.f32 %v12696, 0.0
        %v12729 = vmax.f32 %v12697, 0.0
        %v12730 = vmax.f32 %v12698, 0.0
        %v12731 = vmax.f32 %v12699, 0.0
        %v12732 = vmax.f32 %v12700, 0.0
        %v12733 = vmax.f32 %v12701, 0.0
        %v12734 = vmax.f32 %v12702, 0.0
        %12735 = vst [vmem:[%s271] sm:$0xff] %v12703
        %12736 = vst [vmem:[%s271 + $0x8] sm:$0xff] %v12704
        %12737 = vst [vmem:[%s271 + $0x10] sm:$0xff] %v12705
        %12738 = vst [vmem:[%s271 + $0x18] sm:$0xff] %v12706
        %12739 = vst [vmem:[%s271 + $0x20] sm:$0xff] %v12707
        %12740 = vst [vmem:[%s271 + $0x28] sm:$0xff] %v12708
        %12741 = vst [vmem:[%s271 + $0x30] sm:$0xff] %v12709
        %12742 = vst [vmem:[%s271 + $0x38] sm:$0xff] %v12710
        %12743 = vst [vmem:[%s271 + $0x40] sm:$0xff] %v12711
        %12744 = vst [vmem:[%s271 + $0x48] sm:$0xff] %v12712
        %12745 = vst [vmem:[%s271 + $0x50] sm:$0xff] %v12713
        %12746 = vst [vmem:[%s271 + $0x58] sm:$0xff] %v12714
        %12747 = vst [vmem:[%s271 + $0x60] sm:$0xff] %v12715
        %12748 = vst [vmem:[%s271 + $0x68] sm:$0xff] %v12716
        %12749 = vst [vmem:[%s271 + $0x70] sm:$0xff] %v12717
        %12750 = vst [vmem:[%s271 + $0x78] sm:$0xff] %v12718
        %12751 = vst [vmem:[%s271 + $0x80] sm:$0xff] %v12719
        %12752 = vst [vmem:[%s271 + $0x88] sm:$0xff] %v12720
        %12753 = vst [vmem:[%s271 + $0x90] sm:$0xff] %v12721
        %12754 = vst [vmem:[%s271 + $0x98] sm:$0xff] %v12722
        %12755 = vst [vmem:[%s271 + $0xa0] sm:$0xff] %v12723
        %12756 = vst [vmem:[%s271 + $0xa8] sm:$0xff] %v12724
        %12757 = vst [vmem:[%s271 + $0xb0] sm:$0xff] %v12725
        %12758 = vst [vmem:[%s271 + $0xb8] sm:$0xff] %v12726
        %12759 = vst [vmem:[%s271 + $0xc0] sm:$0xff] %v12727
        %12760 = vst [vmem:[%s271 + $0xc8] sm:$0xff] %v12728
        %12761 = vst [vmem:[%s271 + $0xd0] sm:$0xff] %v12729
        %12762 = vst [vmem:[%s271 + $0xd8] sm:$0xff] %v12730
        %12763 = vst [vmem:[%s271 + $0xe0] sm:$0xff] %v12731
        %12764 = vst [vmem:[%s271 + $0xe8] sm:$0xff] %v12732
        %12765 = vst [vmem:[%s271 + $0xf0] sm:$0xff] %v12733
        %12766 = vst [vmem:[%s271 + $0xf8] sm:$0xff] %v12734
        %s12767 = sand.u32 %s141, 1
        %s12768 = scalar_lea.sflag [#allocation6], %s12767
        %s12769 = sand.u32 %s141, 1
        %s12770 = smul.addr %s12769, 256
        %s12771 = scalar_lea.vmem [#allocation10], %s12770
        // Predicated region
        $region53: #{tpu_custom_call.1} parent=39 // pred_check
          %p12772 = pneg %p151
        $region54: #{tpu_custom_call.1} parent=39 // pred_check_branch
          %12774 = sbr.rel (%p12772) target = $region56
        $region55: #{tpu_custom_call.1} parent=39 // pred_region
          %s12776 = ssub.s32 4096, 4096
          %12777 = vsyncadd %s12768, %s12776
          %s12778 = smul.addr %s23, 32
          %s12779 = smul.addr %s12778, 128
          %s12780 = scalar_lea.hbm %s5, %s12779
          %s12781 = sshll.u32 %s12771, 4
          %s12782 = int_to_ptr.vmem [resolvable:$true] %s12781
          %12787 = dma.vmem_to_hbm [thread:$0]  %s12782, 4096, %s12780, %s12768, 128, 128, 8
        $region56: #{tpu_custom_call.1} parent=39 // pred_fallthru
          _
      $region40: #{tpu_custom_call.1} parent=5 // pred_fallthru
        _
      %p12788 = scmp.le.s32.totalorder 2, %s18
      // Predicated region
      $region57: #{tpu_custom_call.1} parent=5 // pred_check
        %p12789 = pneg %p12788
      $region58: #{tpu_custom_call.1} parent=5 // pred_check_branch
        %12791 = sbr.rel (%p12789) target = $region60
      $region59: #{tpu_custom_call.1} parent=5 // pred_region
        %s12792 = ssub.s32 %s18, 2
        // Predicated region
        $region61: #{tpu_custom_call.1} parent=59 // pred_check
          %p12793 = pneg %p157
        $region62: #{tpu_custom_call.1} parent=59 // pred_check_branch
          %12795 = sbr.rel (%p12793) target = $region64
        $region63: #{tpu_custom_call.1} parent=59 // pred_region
          %s12796 = sand.u32 %s142, 1
          %s12797 = scalar_lea.sflag [#allocation6], %s12796
          %s12798 = sand.u32 %s142, 1
          %s12799 = smul.addr %s12798, 256
          %s12800 = scalar_lea.vmem [#allocation10], %s12799
          %12801 = dma.done %s12797, 4096
        $region64: #{tpu_custom_call.1} parent=59 // pred_fallthru
          _
      $region60: #{tpu_custom_call.1} parent=5 // pred_fallthru
        _
    $region6: #{tpu_custom_call.1} parent=1 // loop_footer
      %s22 = sadd.s32 1, %s18
    $region7: #{tpu_custom_call.1} parent=1 // loop_footer_branch
      %17 = sbr.rel target = $region3
    $region8: #{tpu_custom_call.1} parent=1 // loop_exit
      _
    %12802 = vsyncpa [#allocation5], 1
    %s12803 = scalar_lea.sflag [#allocation5], 1
    %12804 = vsyncpa %s12803, 1
    %12805 = vsyncpa [#allocation8], 1
    %12806 = vsyncpa [#allocation6], 1
    %s12807 = scalar_lea.sflag [#allocation6], 1
    %12808 = vsyncpa %s12807, 1

</llo_original>
